<compile_context>
chip_gen: v7x
topology: tpu7x:2x2x1
jax: 0.10.0
libtpu: 0.0.40
codegen_flags: <defaults>
</compile_context>

<pallas_src>
import functools
import math

import jax
import jax.numpy as jnp
from jax.experimental import pallas as pl
from jax.experimental.pallas import tpu as pltpu


def _layernorm(v, w, b, eps=1e-5):
    mu = jnp.mean(v, axis=-1, keepdims=True)
    c = v - mu
    var = jnp.mean(c * c, axis=-1, keepdims=True)
    return c * jax.lax.rsqrt(var + eps) * w + b


def encoder_stack_kernel(x_ref, ln1w_ref, ln1b_ref, wqkv_ref, bqkv_ref,
                         wo_ref, bo_ref, ln2w_ref, ln2b_ref,
                         w1_ref, b1_ref, w2_ref, b2_ref,
                         o_ref, *, num_heads):
    """Apply encoder layer `pl.program_id(1)` to the resident activation block."""
    layer = pl.program_id(1)

    # Layer 0 of each batch tile: seed the resident activation from the input.
    @pl.when(layer == 0)
    def _():
        o_ref[...] = x_ref[...]

    x = o_ref[...].astype(jnp.float32)                  # (Bb, S, D) f32
    Bb, S, D = x.shape
    H = num_heads
    hd = D // H
    scale = 1.0 / math.sqrt(hd)

    # Per-layer parameter slices (leading block dim of size 1 -> index with [0]).
    ln1w, ln1b = ln1w_ref[0], ln1b_ref[0]               # (1, D) f32
    ln2w, ln2b = ln2w_ref[0], ln2b_ref[0]
    wqkv, bqkv = wqkv_ref[0], bqkv_ref[0]               # (D, 3D) bf16 / (1, 3D) f32
    wo, bo = wo_ref[0], bo_ref[0]                       # (D, D)  bf16 / (1, D)  f32
    w1, b1 = w1_ref[0], b1_ref[0]                       # (D, F)  bf16 / (1, F)  f32
    w2, b2 = w2_ref[0], b2_ref[0]                       # (F, D)  bf16 / (1, D)  f32

    # ---------------- attention sub-block: x + MHA(LN(x)) ----------------
    xn = _layernorm(x, ln1w, ln1b)                      # f32
    xn_bf = xn.astype(jnp.bfloat16).reshape(Bb * S, D)
    # Fused QKV projection on the MXU (bf16 in, f32 accumulate).
    qkv = jnp.dot(xn_bf, wqkv, preferred_element_type=jnp.float32) + bqkv
    # Cast once to bf16 and fold the softmax scale into q (O(S*hd) instead of
    # scaling the O(S^2) score matrix).
    q = (qkv[:, 0 * D:1 * D] * scale).astype(jnp.bfloat16).reshape(Bb, S, D)
    k = qkv[:, 1 * D:2 * D].astype(jnp.bfloat16).reshape(Bb, S, D)
    v = qkv[:, 2 * D:3 * D].astype(jnp.bfloat16).reshape(Bb, S, D)

    # Per-head attention. Contexts are produced in bf16 and concatenated along
    # lanes into one full-width value, so the output projection is a single
    # lane-dense (Bb*S, D) @ (D, D) MXU matmul (no narrow masked stores, no
    # VMEM scratch slab).
    # TODO(synk): for large H / S, bound live ranges with a KV-tile
    #             online-softmax loop (flash) instead of this static head loop.
    ctx_heads = []
    for h in range(H):                                  # static loop, H small
        sl = slice(h * hd, (h + 1) * hd)
        s = jnp.einsum('bqd,bkd->bqk', q[:, :, sl], k[:, :, sl],
                       preferred_element_type=jnp.float32)          # (Bb,S,S) f32
        s = s - jnp.max(s, axis=-1, keepdims=True)
        p = jnp.exp(s)
        p = p * pl.reciprocal(jnp.sum(p, axis=-1, keepdims=True), approx=True)
        ctx_h = jnp.einsum('bqk,bkd->bqd', p.astype(jnp.bfloat16), v[:, :, sl],
                           preferred_element_type=jnp.float32)       # (Bb,S,hd)
        ctx_heads.append(ctx_h.astype(jnp.bfloat16))
    ctx = jnp.concatenate(ctx_heads, axis=-1).reshape(Bb * S, D)     # bf16, full width

    attn = jnp.dot(ctx, wo, preferred_element_type=jnp.float32) + bo
    x = x + attn.reshape(Bb, S, D)

    # ---------------- MLP sub-block: x + MLP(LN(x)) ----------------
    xn = _layernorm(x, ln2w, ln2b)
    h1 = jnp.dot(xn.astype(jnp.bfloat16).reshape(Bb * S, D), w1,
                 preferred_element_type=jnp.float32) + b1
    # exact (erf-based) GELU in f32, matching nn.GELU() defaults
    h1 = 0.5 * h1 * (1.0 + jax.lax.erf(h1 * (1.0 / math.sqrt(2.0))))
    h2 = jnp.dot(h1.astype(jnp.bfloat16), w2,
                 preferred_element_type=jnp.float32) + b2
    x = x + h2.reshape(Bb, S, D)

    o_ref[...] = x.astype(o_ref.dtype)


def _vmem_estimate_bytes(bb, S, D, F):
    """Rough per-invocation VMEM footprint for a batch tile of size bb."""
    act_blk = bb * S * D * 4
    act = 4 * act_blk                                   # x block + resident out, double-buffered
    w = 2 * 2 * (3 * D * D + D * D + 2 * D * F)         # bf16 weights, double-buffered
    b = 2 * 4 * (9 * D + F)                             # f32 biases / LN params, double-buffered
    tmp = (bb * S * 3 * D * 4        # qkv f32
           + bb * S * 3 * D * 2      # q/k/v bf16
           + 2 * bb * S * S * 4      # scores + probs f32 (one head live at a time; 2x margin)
           + bb * S * D * 2          # ctx bf16
           + bb * S * F * 4          # h1 f32
           + 2 * bb * S * D * 4)     # attn / mlp residual temporaries f32
    return act + w + b + tmp


def transformer_encoder(x_sbd, params, num_heads, batch_block=None,
                        vmem_limit_bytes=None):
    """x_sbd: (S, B, D), PyTorch MultiheadAttention default layout (batch_first=False)."""
    x = jnp.transpose(x_sbd, (1, 0, 2))                 # -> (B, S, D)
    B, S, D = x.shape
    depth = params['wqkv_t'].shape[0]
    F = params['w1_t'].shape[-1]

    # Per-generation VMEM capacity (v5e/v6e: 128 MiB, v7x: 64 MiB per TC).
    try:
        vmem_cap = int(getattr(pltpu.get_tpu_info(), 'vmem_capacity_bytes',
                               64 * 1024 * 1024))
    except Exception:
        vmem_cap = 64 * 1024 * 1024                      # conservative (v7x)
    budget = int(vmem_cap * 0.8)

    if batch_block is None:
        # Largest batch tile that fits the VMEM budget: maximizes the matmul M
        # (= batch_block * S) and minimizes weight HBM traffic
        # (nb * depth * weight_bytes); ideally nb == 1 so every layer's weights
        # are DMA'd exactly once.
        # NOTE(v7x megacore): nb >= 2 would give both TensorCores work, at the
        # cost of each core re-fetching the full weight stack — not worth it at
        # small B; revisit for large batches.
        batch_block = 1
        for bb in range(B, 0, -1):
            if B % bb == 0 and _vmem_estimate_bytes(bb, S, D, F) <= budget:
                batch_block = bb
                break
    nb = B // batch_block

    if vmem_limit_bytes is None:
        est = _vmem_estimate_bytes(batch_block, S, D, F)
        vmem_limit_bytes = int(min(vmem_cap - (2 << 20),
                                   max(est * 5 // 4, 32 << 20)))

    kernel = functools.partial(encoder_stack_kernel, num_heads=num_heads)

    xmap = lambda i, l: (i, 0, 0)     # activation tile: per batch block, resident over layers
    wmap = lambda i, l: (l, 0, 0)     # weights: per layer, re-used across batch blocks

    in_specs = [
        pl.BlockSpec((batch_block, S, D), xmap),        # x
        pl.BlockSpec((1, 1, D), wmap),                  # ln1_w
        pl.BlockSpec((1, 1, D), wmap),                  # ln1_b
        pl.BlockSpec((1, D, 3 * D), wmap),              # wqkv_t (bf16)
        pl.BlockSpec((1, 1, 3 * D), wmap),              # bqkv
        pl.BlockSpec((1, D, D), wmap),                  # wo_t (bf16)
        pl.BlockSpec((1, 1, D), wmap),                  # bo
        pl.BlockSpec((1, 1, D), wmap),                  # ln2_w
        pl.BlockSpec((1, 1, D), wmap),                  # ln2_b
        pl.BlockSpec((1, D, F), wmap),                  # w1_t (bf16)
        pl.BlockSpec((1, 1, F), wmap),                  # b1
        pl.BlockSpec((1, F, D), wmap),                  # w2_t (bf16)
        pl.BlockSpec((1, 1, D), wmap),                  # b2
    ]
    out_spec = pl.BlockSpec((batch_block, S, D), xmap)

    out = pl.pallas_call(
        kernel,
        out_shape=jax.ShapeDtypeStruct((B, S, D), x.dtype),
        grid_spec=pltpu.PrefetchScalarGridSpec(
            num_scalar_prefetch=0,
            grid=(nb, depth),
            in_specs=in_specs,
            out_specs=out_spec,
        ),
        compiler_params=pltpu.CompilerParams(
            dimension_semantics=("parallel", "arbitrary"),
            vmem_limit_bytes=vmem_limit_bytes,
        ),
    )(x, params['ln1_w'], params['ln1_b'], params['wqkv_t'], params['bqkv'],
      params['wo_t'], params['bo'], params['ln2_w'], params['ln2_b'],
      params['w1_t'], params['b1'], params['w2_t'], params['b2'])

    return jnp.transpose(out, (1, 0, 2))                # back to (S, B, D)


def init_params(key, dim, depth, heads, mlp_dim):
    """Per-layer params stacked along a leading depth axis.

    Matmul weights are pre-transposed (y = x @ W^T layout) and stored in bf16;
    biases / LayerNorm params stay f32.
    """
    s = 0.02
    wqkv, bqkv, wo, bo, w1, b1, w2, b2 = ([] for _ in range(8))
    for _ in range(depth):
        key, *ks = jax.random.split(key, 9)
        in_proj_w = jax.random.normal(ks[0], (3 * dim, dim), jnp.float32) * s
        in_proj_b = jax.random.normal(ks[1], (3 * dim,), jnp.float32) * s
        out_w = jax.random.normal(ks[2], (dim, dim), jnp.float32) * s
        out_b = jax.random.normal(ks[3], (dim,), jnp.float32) * s
        w1_ = jax.random.normal(ks[4], (mlp_dim, dim), jnp.float32) * s
        b1_ = jax.random.normal(ks[5], (mlp_dim,), jnp.float32) * s
        w2_ = jax.random.normal(ks[6], (dim, mlp_dim), jnp.float32) * s
        b2_ = jax.random.normal(ks[7], (dim,), jnp.float32) * s
        wqkv.append(in_proj_w.T); bqkv.append(in_proj_b.reshape(1, 3 * dim))
        wo.append(out_w.T);       bo.append(out_b.reshape(1, dim))
        w1.append(w1_.T);         b1.append(b1_.reshape(1, mlp_dim))
        w2.append(w2_.T);         b2.append(b2_.reshape(1, dim))
    stack = lambda xs: jnp.stack(xs, axis=0)
    return dict(
        ln1_w=jnp.ones((depth, 1, dim), jnp.float32),
        ln1_b=jnp.zeros((depth, 1, dim), jnp.float32),
        wqkv_t=stack(wqkv).astype(jnp.bfloat16),        # (depth, D, 3D)
        bqkv=stack(bqkv),                               # (depth, 1, 3D)
        wo_t=stack(wo).astype(jnp.bfloat16),            # (depth, D, D)
        bo=stack(bo),                                   # (depth, 1, D)
        ln2_w=jnp.ones((depth, 1, dim), jnp.float32),
        ln2_b=jnp.zeros((depth, 1, dim), jnp.float32),
        w1_t=stack(w1).astype(jnp.bfloat16),            # (depth, D, mlp_dim)
        b1=stack(b1),                                   # (depth, 1, mlp_dim)
        w2_t=stack(w2).astype(jnp.bfloat16),            # (depth, mlp_dim, D)
        b2=stack(b2),                                   # (depth, 1, D)
    )


if __name__ == "__main__":
    # Small, lane-dense demo shapes (D and mlp_dim multiples of 128).
    # batch_block auto-selects the whole batch (nb=1) -> matmul M = B*S = 256.
    dim, depth, heads, mlp_dim = 128, 2, 4, 256
    S, B = 32, 8

    key = jax.random.PRNGKey(0)
    kx, kp = jax.random.split(key)
    # PyTorch default MultiheadAttention layout: (seq, batch, dim)
    x = jax.random.normal(kx, (S, B, dim), jnp.float32)
    params = init_params(kp, dim, depth, heads, mlp_dim)

    out = transformer_encoder(x, params, heads)
    out = jax.block_until_ready(out)
    assert out.shape == (S, B, dim) and out.dtype == jnp.float32
    assert bool(jnp.all(jnp.isfinite(out)))
    print("KERNEL_OK")
</pallas_src>

<mosaic_0001>
module attributes {stable_mosaic.version = 11 : i64} {
  func.func @encoder_stack_kernel(%arg0: i32, %arg1: i32, %arg2: memref<8x32x128xf32, #tpu.memory_space<vmem>>, %arg3: memref<1x1x128xf32, #tpu.memory_space<vmem>>, %arg4: memref<1x1x128xf32, #tpu.memory_space<vmem>>, %arg5: memref<1x128x384xbf16, #tpu.memory_space<vmem>>, %arg6: memref<1x1x384xf32, #tpu.memory_space<vmem>>, %arg7: memref<1x128x128xbf16, #tpu.memory_space<vmem>>, %arg8: memref<1x1x128xf32, #tpu.memory_space<vmem>>, %arg9: memref<1x1x128xf32, #tpu.memory_space<vmem>>, %arg10: memref<1x1x128xf32, #tpu.memory_space<vmem>>, %arg11: memref<1x128x256xbf16, #tpu.memory_space<vmem>>, %arg12: memref<1x1x256xf32, #tpu.memory_space<vmem>>, %arg13: memref<1x256x128xbf16, #tpu.memory_space<vmem>>, %arg14: memref<1x1x128xf32, #tpu.memory_space<vmem>>, %arg15: memref<8x32x128xf32, #tpu.memory_space<vmem>>) attributes {dimension_semantics = [#tpu.dimension_semantics<parallel>, #tpu.dimension_semantics<arbitrary>], iteration_bounds = array<i64: 1, 2>, scalar_prefetch = 0 : i64, scratch_operands = 0 : i64, tpu.core_type = #tpu.core_type<tc>, window_params = [{transform_indices = @transform_0, window_bounds = array<i64: 8, 32, 128>}, {transform_indices = @transform_1, window_bounds = array<i64: 1, 1, 128>}, {transform_indices = @transform_2, window_bounds = array<i64: 1, 1, 128>}, {transform_indices = @transform_3, window_bounds = array<i64: 1, 128, 384>}, {transform_indices = @transform_4, window_bounds = array<i64: 1, 1, 384>}, {transform_indices = @transform_5, window_bounds = array<i64: 1, 128, 128>}, {transform_indices = @transform_6, window_bounds = array<i64: 1, 1, 128>}, {transform_indices = @transform_7, window_bounds = array<i64: 1, 1, 128>}, {transform_indices = @transform_8, window_bounds = array<i64: 1, 1, 128>}, {transform_indices = @transform_9, window_bounds = array<i64: 1, 128, 256>}, {transform_indices = @transform_10, window_bounds = array<i64: 1, 1, 256>}, {transform_indices = @transform_11, window_bounds = array<i64: 1, 256, 128>}, {transform_indices = @transform_12, window_bounds = array<i64: 1, 1, 128>}, {transform_indices = @transform_13, window_bounds = array<i64: 8, 32, 128>}]} {
    %c0_i32 = arith.constant 0 : i32
    %0 = arith.cmpi eq, %arg1, %c0_i32 : i32
    %1 = arith.extui %0 : i1 to i32
    %c0_i32_0 = arith.constant 0 : i32
    %2 = arith.cmpi ne, %1, %c0_i32_0 : i32
    scf.if %2 {
      %c0_75 = arith.constant 0 : index
      %c0_76 = arith.constant 0 : index
      %c0_77 = arith.constant 0 : index
      %183 = vector.load %arg2[%c0_75, %c0_76, %c0_77] : memref<8x32x128xf32, #tpu.memory_space<vmem>>, vector<8x32x128xf32>
      %c0_78 = arith.constant 0 : index
      %c0_79 = arith.constant 0 : index
      %c0_80 = arith.constant 0 : index
      %184 = vector.load %arg15[%c0_78, %c0_79, %c0_80] : memref<8x32x128xf32, #tpu.memory_space<vmem>>, vector<8x32x128xf32>
      tpu.vector_store %arg15[%c0_78, %c0_79, %c0_80], %183 {strides = array<i32>} : memref<8x32x128xf32, #tpu.memory_space<vmem>>, vector<8x32x128xf32>,
    } else {
    }
    %c0 = arith.constant 0 : index
    %c0_1 = arith.constant 0 : index
    %c0_2 = arith.constant 0 : index
    %3 = vector.load %arg15[%c0, %c0_1, %c0_2] : memref<8x32x128xf32, #tpu.memory_space<vmem>>, vector<8x32x128xf32>
    %c0_3 = arith.constant 0 : index
    %c0_4 = arith.constant 0 : index
    %c0_5 = arith.constant 0 : index
    %4 = vector.load %arg3[%c0_3, %c0_4, %c0_5] : memref<1x1x128xf32, #tpu.memory_space<vmem>>, vector<1x1x128xf32>
    %5 = vector.shape_cast %4 : vector<1x1x128xf32> to vector<1x128xf32>
    %c0_6 = arith.constant 0 : index
    %c0_7 = arith.constant 0 : index
    %c0_8 = arith.constant 0 : index
    %6 = vector.load %arg4[%c0_6, %c0_7, %c0_8] : memref<1x1x128xf32, #tpu.memory_space<vmem>>, vector<1x1x128xf32>
    %7 = vector.shape_cast %6 : vector<1x1x128xf32> to vector<1x128xf32>
    %c0_9 = arith.constant 0 : index
    %c0_10 = arith.constant 0 : index
    %c0_11 = arith.constant 0 : index
    %8 = vector.load %arg9[%c0_9, %c0_10, %c0_11] : memref<1x1x128xf32, #tpu.memory_space<vmem>>, vector<1x1x128xf32>
    %9 = vector.shape_cast %8 : vector<1x1x128xf32> to vector<1x128xf32>
    %c0_12 = arith.constant 0 : index
    %c0_13 = arith.constant 0 : index
    %c0_14 = arith.constant 0 : index
    %10 = vector.load %arg10[%c0_12, %c0_13, %c0_14] : memref<1x1x128xf32, #tpu.memory_space<vmem>>, vector<1x1x128xf32>
    %11 = vector.shape_cast %10 : vector<1x1x128xf32> to vector<1x128xf32>
    %c0_15 = arith.constant 0 : index
    %c0_16 = arith.constant 0 : index
    %c0_17 = arith.constant 0 : index
    %12 = vector.load %arg5[%c0_15, %c0_16, %c0_17] : memref<1x128x384xbf16, #tpu.memory_space<vmem>>, vector<1x128x384xbf16>
    %13 = vector.shape_cast %12 : vector<1x128x384xbf16> to vector<128x384xbf16>
    %c0_18 = arith.constant 0 : index
    %c0_19 = arith.constant 0 : index
    %c0_20 = arith.constant 0 : index
    %14 = vector.load %arg6[%c0_18, %c0_19, %c0_20] : memref<1x1x384xf32, #tpu.memory_space<vmem>>, vector<1x1x384xf32>
    %15 = vector.shape_cast %14 : vector<1x1x384xf32> to vector<1x384xf32>
    %c0_21 = arith.constant 0 : index
    %c0_22 = arith.constant 0 : index
    %c0_23 = arith.constant 0 : index
    %16 = vector.load %arg7[%c0_21, %c0_22, %c0_23] : memref<1x128x128xbf16, #tpu.memory_space<vmem>>, vector<1x128x128xbf16>
    %17 = vector.shape_cast %16 : vector<1x128x128xbf16> to vector<128x128xbf16>
    %c0_24 = arith.constant 0 : index
    %c0_25 = arith.constant 0 : index
    %c0_26 = arith.constant 0 : index
    %18 = vector.load %arg8[%c0_24, %c0_25, %c0_26] : memref<1x1x128xf32, #tpu.memory_space<vmem>>, vector<1x1x128xf32>
    %19 = vector.shape_cast %18 : vector<1x1x128xf32> to vector<1x128xf32>
    %c0_27 = arith.constant 0 : index
    %c0_28 = arith.constant 0 : index
    %c0_29 = arith.constant 0 : index
    %20 = vector.load %arg11[%c0_27, %c0_28, %c0_29] : memref<1x128x256xbf16, #tpu.memory_space<vmem>>, vector<1x128x256xbf16>
    %21 = vector.shape_cast %20 : vector<1x128x256xbf16> to vector<128x256xbf16>
    %c0_30 = arith.constant 0 : index
    %c0_31 = arith.constant 0 : index
    %c0_32 = arith.constant 0 : index
    %22 = vector.load %arg12[%c0_30, %c0_31, %c0_32] : memref<1x1x256xf32, #tpu.memory_space<vmem>>, vector<1x1x256xf32>
    %23 = vector.shape_cast %22 : vector<1x1x256xf32> to vector<1x256xf32>
    %c0_33 = arith.constant 0 : index
    %c0_34 = arith.constant 0 : index
    %c0_35 = arith.constant 0 : index
    %24 = vector.load %arg13[%c0_33, %c0_34, %c0_35] : memref<1x256x128xbf16, #tpu.memory_space<vmem>>, vector<1x256x128xbf16>
    %25 = vector.shape_cast %24 : vector<1x256x128xbf16> to vector<256x128xbf16>
    %c0_36 = arith.constant 0 : index
    %c0_37 = arith.constant 0 : index
    %c0_38 = arith.constant 0 : index
    %26 = vector.load %arg14[%c0_36, %c0_37, %c0_38] : memref<1x1x128xf32, #tpu.memory_space<vmem>>, vector<1x1x128xf32>
    %27 = vector.shape_cast %26 : vector<1x1x128xf32> to vector<1x128xf32>
    %cst = arith.constant dense<0.000000e+00> : vector<8x32xf32>
    %28 = vector.multi_reduction <add>, %3, %cst [2] : vector<8x32x128xf32> to vector<8x32xf32>
    %29 = vector.shape_cast %28 : vector<8x32xf32> to vector<8x32x1xf32>
    %cst_39 = arith.constant 1.280000e+02 : f32
    %30 = vector.broadcast %cst_39 : f32 to vector<8x32x1xf32>
    %31 = arith.divf %29, %30 : vector<8x32x1xf32>
    %32 = vector.broadcast %31 : vector<8x32x1xf32> to vector<8x32x128xf32>
    %33 = arith.subf %3, %32 : vector<8x32x128xf32>
    %34 = arith.mulf %33, %33 : vector<8x32x128xf32>
    %cst_40 = arith.constant dense<0.000000e+00> : vector<8x32xf32>
    %35 = vector.multi_reduction <add>, %34, %cst_40 [2] : vector<8x32x128xf32> to vector<8x32xf32>
    %36 = vector.shape_cast %35 : vector<8x32xf32> to vector<8x32x1xf32>
    %cst_41 = arith.constant 1.280000e+02 : f32
    %37 = vector.broadcast %cst_41 : f32 to vector<8x32x1xf32>
    %38 = arith.divf %36, %37 : vector<8x32x1xf32>
    %cst_42 = arith.constant 9.99999974E-6 : f32
    %39 = vector.broadcast %cst_42 : f32 to vector<8x32x1xf32>
    %40 = arith.addf %38, %39 : vector<8x32x1xf32>
    %41 = math.rsqrt %40 : vector<8x32x1xf32>
    %42 = vector.broadcast %41 : vector<8x32x1xf32> to vector<8x32x128xf32>
    %43 = arith.mulf %33, %42 : vector<8x32x128xf32>
    %44 = vector.shape_cast %5 : vector<1x128xf32> to vector<1x1x128xf32>
    %45 = vector.broadcast %44 : vector<1x1x128xf32> to vector<8x32x128xf32>
    %46 = arith.mulf %43, %45 : vector<8x32x128xf32>
    %47 = vector.shape_cast %7 : vector<1x128xf32> to vector<1x1x128xf32>
    %48 = vector.broadcast %47 : vector<1x1x128xf32> to vector<8x32x128xf32>
    %49 = arith.addf %46, %48 : vector<8x32x128xf32>
    %50 = arith.truncf %49 : vector<8x32x128xf32> to vector<8x32x128xbf16>
    %51 = vector.shape_cast %50 : vector<8x32x128xbf16> to vector<256x128xbf16>
    %cst_43 = arith.constant dense<0.000000e+00> : vector<256x384xf32>
    %52 = tpu.matmul %51, %13, %cst_43 {dimension_numbers = #tpu.dot_dimension_numbers<[1], [0], [0], [1], [0, 0, 1, 1], [], []>} : vector<256x128xbf16>, vector<128x384xbf16>, vector<256x384xf32> -> vector<256x384xf32>
    %53 = vector.broadcast %15 : vector<1x384xf32> to vector<256x384xf32>
    %54 = arith.addf %52, %53 : vector<256x384xf32>
    %55 = vector.extract_strided_slice %54 {offsets = [0, 0], sizes = [256, 128], strides = [1, 1]} : vector<256x384xf32> to vector<256x128xf32>
    %cst_44 = arith.constant 0.176776692 : f32
    %56 = vector.broadcast %cst_44 : f32 to vector<256x128xf32>
    %57 = arith.mulf %55, %56 : vector<256x128xf32>
    %58 = arith.truncf %57 : vector<256x128xf32> to vector<256x128xbf16>
    %59 = vector.shape_cast %58 : vector<256x128xbf16> to vector<8x32x128xbf16>
    %60 = vector.extract_strided_slice %54 {offsets = [0, 128], sizes = [256, 128], strides = [1, 1]} : vector<256x384xf32> to vector<256x128xf32>
    %61 = arith.truncf %60 : vector<256x128xf32> to vector<256x128xbf16>
    %62 = vector.shape_cast %61 : vector<256x128xbf16> to vector<8x32x128xbf16>
    %63 = vector.extract_strided_slice %54 {offsets = [0, 256], sizes = [256, 128], strides = [1, 1]} : vector<256x384xf32> to vector<256x128xf32>
    %64 = arith.truncf %63 : vector<256x128xf32> to vector<256x128xbf16>
    %65 = vector.shape_cast %64 : vector<256x128xbf16> to vector<8x32x128xbf16>
    %66 = vector.extract_strided_slice %59 {offsets = [0, 0, 0], sizes = [8, 32, 32], strides = [1, 1, 1]} : vector<8x32x128xbf16> to vector<8x32x32xbf16>
    %67 = vector.extract_strided_slice %62 {offsets = [0, 0, 0], sizes = [8, 32, 32], strides = [1, 1, 1]} : vector<8x32x128xbf16> to vector<8x32x32xbf16>
    "tpu.trace_start"() <{level = 10 : i32, message = "bqd,bkd->bqk"}> : () -> ()
    %cst_45 = arith.constant dense<0.000000e+00> : vector<8x32x32xf32>
    %68 = tpu.matmul %66, %67, %cst_45 {dimension_numbers = #tpu.dot_dimension_numbers<[2], [2], [1], [1], [0, 0, 0, 1, 1, 1], [0], [0]>} : vector<8x32x32xbf16>, vector<8x32x32xbf16>, vector<8x32x32xf32> -> vector<8x32x32xf32>
    "tpu.trace_stop"() : () -> ()
    %cst_46 = arith.constant dense<0xFF800000> : vector<8x32xf32>
    %69 = vector.multi_reduction <maximumf>, %68, %cst_46 [2] : vector<8x32x32xf32> to vector<8x32xf32>
    %70 = vector.shape_cast %69 : vector<8x32xf32> to vector<8x32x1xf32>
    %71 = vector.broadcast %70 : vector<8x32x1xf32> to vector<8x32x32xf32>
    %72 = arith.subf %68, %71 : vector<8x32x32xf32>
    %73 = math.exp %72 : vector<8x32x32xf32>
    %cst_47 = arith.constant dense<0.000000e+00> : vector<8x32xf32>
    %74 = vector.multi_reduction <add>, %73, %cst_47 [2] : vector<8x32x32xf32> to vector<8x32xf32>
    %75 = vector.shape_cast %74 : vector<8x32xf32> to vector<8x32x1xf32>
    %76 = tpu.reciprocal %75 {approx = true} : vector<8x32x1xf32> -> vector<8x32x1xf32>
    %77 = vector.broadcast %76 : vector<8x32x1xf32> to vector<8x32x32xf32>
    %78 = arith.mulf %73, %77 : vector<8x32x32xf32>
    %79 = arith.truncf %78 : vector<8x32x32xf32> to vector<8x32x32xbf16>
    %80 = vector.extract_strided_slice %65 {offsets = [0, 0, 0], sizes = [8, 32, 32], strides = [1, 1, 1]} : vector<8x32x128xbf16> to vector<8x32x32xbf16>
    "tpu.trace_start"() <{level = 10 : i32, message = "bqk,bkd->bqd"}> : () -> ()
    %cst_48 = arith.constant dense<0.000000e+00> : vector<8x32x32xf32>
    %81 = tpu.matmul %79, %80, %cst_48 {dimension_numbers = #tpu.dot_dimension_numbers<[2], [1], [1], [2], [0, 0, 0, 1, 1, 2], [0], [0]>} : vector<8x32x32xbf16>, vector<8x32x32xbf16>, vector<8x32x32xf32> -> vector<8x32x32xf32>
    "tpu.trace_stop"() : () -> ()
    %82 = arith.truncf %81 : vector<8x32x32xf32> to vector<8x32x32xbf16>
    %83 = vector.extract_strided_slice %59 {offsets = [0, 0, 32], sizes = [8, 32, 32], strides = [1, 1, 1]} : vector<8x32x128xbf16> to vector<8x32x32xbf16>
    %84 = vector.extract_strided_slice %62 {offsets = [0, 0, 32], sizes = [8, 32, 32], strides = [1, 1, 1]} : vector<8x32x128xbf16> to vector<8x32x32xbf16>
    "tpu.trace_start"() <{level = 10 : i32, message = "bqd,bkd->bqk"}> : () -> ()
    %cst_49 = arith.constant dense<0.000000e+00> : vector<8x32x32xf32>
    %85 = tpu.matmul %83, %84, %cst_49 {dimension_numbers = #tpu.dot_dimension_numbers<[2], [2], [1], [1], [0, 0, 0, 1, 1, 1], [0], [0]>} : vector<8x32x32xbf16>, vector<8x32x32xbf16>, vector<8x32x32xf32> -> vector<8x32x32xf32>
    "tpu.trace_stop"() : () -> ()
    %cst_50 = arith.constant dense<0xFF800000> : vector<8x32xf32>
    %86 = vector.multi_reduction <maximumf>, %85, %cst_50 [2] : vector<8x32x32xf32> to vector<8x32xf32>
    %87 = vector.shape_cast %86 : vector<8x32xf32> to vector<8x32x1xf32>
    %88 = vector.broadcast %87 : vector<8x32x1xf32> to vector<8x32x32xf32>
    %89 = arith.subf %85, %88 : vector<8x32x32xf32>
    %90 = math.exp %89 : vector<8x32x32xf32>
    %cst_51 = arith.constant dense<0.000000e+00> : vector<8x32xf32>
    %91 = vector.multi_reduction <add>, %90, %cst_51 [2] : vector<8x32x32xf32> to vector<8x32xf32>
    %92 = vector.shape_cast %91 : vector<8x32xf32> to vector<8x32x1xf32>
    %93 = tpu.reciprocal %92 {approx = true} : vector<8x32x1xf32> -> vector<8x32x1xf32>
    %94 = vector.broadcast %93 : vector<8x32x1xf32> to vector<8x32x32xf32>
    %95 = arith.mulf %90, %94 : vector<8x32x32xf32>
    %96 = arith.truncf %95 : vector<8x32x32xf32> to vector<8x32x32xbf16>
    %97 = vector.extract_strided_slice %65 {offsets = [0, 0, 32], sizes = [8, 32, 32], strides = [1, 1, 1]} : vector<8x32x128xbf16> to vector<8x32x32xbf16>
    "tpu.trace_start"() <{level = 10 : i32, message = "bqk,bkd->bqd"}> : () -> ()
    %cst_52 = arith.constant dense<0.000000e+00> : vector<8x32x32xf32>
    %98 = tpu.matmul %96, %97, %cst_52 {dimension_numbers = #tpu.dot_dimension_numbers<[2], [1], [1], [2], [0, 0, 0, 1, 1, 2], [0], [0]>} : vector<8x32x32xbf16>, vector<8x32x32xbf16>, vector<8x32x32xf32> -> vector<8x32x32xf32>
    "tpu.trace_stop"() : () -> ()
    %99 = arith.truncf %98 : vector<8x32x32xf32> to vector<8x32x32xbf16>
    %100 = vector.extract_strided_slice %59 {offsets = [0, 0, 64], sizes = [8, 32, 32], strides = [1, 1, 1]} : vector<8x32x128xbf16> to vector<8x32x32xbf16>
    %101 = vector.extract_strided_slice %62 {offsets = [0, 0, 64], sizes = [8, 32, 32], strides = [1, 1, 1]} : vector<8x32x128xbf16> to vector<8x32x32xbf16>
    "tpu.trace_start"() <{level = 10 : i32, message = "bqd,bkd->bqk"}> : () -> ()
    %cst_53 = arith.constant dense<0.000000e+00> : vector<8x32x32xf32>
    %102 = tpu.matmul %100, %101, %cst_53 {dimension_numbers = #tpu.dot_dimension_numbers<[2], [2], [1], [1], [0, 0, 0, 1, 1, 1], [0], [0]>} : vector<8x32x32xbf16>, vector<8x32x32xbf16>, vector<8x32x32xf32> -> vector<8x32x32xf32>
    "tpu.trace_stop"() : () -> ()
    %cst_54 = arith.constant dense<0xFF800000> : vector<8x32xf32>
    %103 = vector.multi_reduction <maximumf>, %102, %cst_54 [2] : vector<8x32x32xf32> to vector<8x32xf32>
    %104 = vector.shape_cast %103 : vector<8x32xf32> to vector<8x32x1xf32>
    %105 = vector.broadcast %104 : vector<8x32x1xf32> to vector<8x32x32xf32>
    %106 = arith.subf %102, %105 : vector<8x32x32xf32>
    %107 = math.exp %106 : vector<8x32x32xf32>
    %cst_55 = arith.constant dense<0.000000e+00> : vector<8x32xf32>
    %108 = vector.multi_reduction <add>, %107, %cst_55 [2] : vector<8x32x32xf32> to vector<8x32xf32>
    %109 = vector.shape_cast %108 : vector<8x32xf32> to vector<8x32x1xf32>
    %110 = tpu.reciprocal %109 {approx = true} : vector<8x32x1xf32> -> vector<8x32x1xf32>
    %111 = vector.broadcast %110 : vector<8x32x1xf32> to vector<8x32x32xf32>
    %112 = arith.mulf %107, %111 : vector<8x32x32xf32>
    %113 = arith.truncf %112 : vector<8x32x32xf32> to vector<8x32x32xbf16>
    %114 = vector.extract_strided_slice %65 {offsets = [0, 0, 64], sizes = [8, 32, 32], strides = [1, 1, 1]} : vector<8x32x128xbf16> to vector<8x32x32xbf16>
    "tpu.trace_start"() <{level = 10 : i32, message = "bqk,bkd->bqd"}> : () -> ()
    %cst_56 = arith.constant dense<0.000000e+00> : vector<8x32x32xf32>
    %115 = tpu.matmul %113, %114, %cst_56 {dimension_numbers = #tpu.dot_dimension_numbers<[2], [1], [1], [2], [0, 0, 0, 1, 1, 2], [0], [0]>} : vector<8x32x32xbf16>, vector<8x32x32xbf16>, vector<8x32x32xf32> -> vector<8x32x32xf32>
    "tpu.trace_stop"() : () -> ()
    %116 = arith.truncf %115 : vector<8x32x32xf32> to vector<8x32x32xbf16>
    %117 = vector.extract_strided_slice %59 {offsets = [0, 0, 96], sizes = [8, 32, 32], strides = [1, 1, 1]} : vector<8x32x128xbf16> to vector<8x32x32xbf16>
    %118 = vector.extract_strided_slice %62 {offsets = [0, 0, 96], sizes = [8, 32, 32], strides = [1, 1, 1]} : vector<8x32x128xbf16> to vector<8x32x32xbf16>
    "tpu.trace_start"() <{level = 10 : i32, message = "bqd,bkd->bqk"}> : () -> ()
    %cst_57 = arith.constant dense<0.000000e+00> : vector<8x32x32xf32>
    %119 = tpu.matmul %117, %118, %cst_57 {dimension_numbers = #tpu.dot_dimension_numbers<[2], [2], [1], [1], [0, 0, 0, 1, 1, 1], [0], [0]>} : vector<8x32x32xbf16>, vector<8x32x32xbf16>, vector<8x32x32xf32> -> vector<8x32x32xf32>
    "tpu.trace_stop"() : () -> ()
    %cst_58 = arith.constant dense<0xFF800000> : vector<8x32xf32>
    %120 = vector.multi_reduction <maximumf>, %119, %cst_58 [2] : vector<8x32x32xf32> to vector<8x32xf32>
    %121 = vector.shape_cast %120 : vector<8x32xf32> to vector<8x32x1xf32>
    %122 = vector.broadcast %121 : vector<8x32x1xf32> to vector<8x32x32xf32>
    %123 = arith.subf %119, %122 : vector<8x32x32xf32>
    %124 = math.exp %123 : vector<8x32x32xf32>
    %cst_59 = arith.constant dense<0.000000e+00> : vector<8x32xf32>
    %125 = vector.multi_reduction <add>, %124, %cst_59 [2] : vector<8x32x32xf32> to vector<8x32xf32>
    %126 = vector.shape_cast %125 : vector<8x32xf32> to vector<8x32x1xf32>
    %127 = tpu.reciprocal %126 {approx = true} : vector<8x32x1xf32> -> vector<8x32x1xf32>
    %128 = vector.broadcast %127 : vector<8x32x1xf32> to vector<8x32x32xf32>
    %129 = arith.mulf %124, %128 : vector<8x32x32xf32>
    %130 = arith.truncf %129 : vector<8x32x32xf32> to vector<8x32x32xbf16>
    %131 = vector.extract_strided_slice %65 {offsets = [0, 0, 96], sizes = [8, 32, 32], strides = [1, 1, 1]} : vector<8x32x128xbf16> to vector<8x32x32xbf16>
    "tpu.trace_start"() <{level = 10 : i32, message = "bqk,bkd->bqd"}> : () -> ()
    %cst_60 = arith.constant dense<0.000000e+00> : vector<8x32x32xf32>
    %132 = tpu.matmul %130, %131, %cst_60 {dimension_numbers = #tpu.dot_dimension_numbers<[2], [1], [1], [2], [0, 0, 0, 1, 1, 2], [0], [0]>} : vector<8x32x32xbf16>, vector<8x32x32xbf16>, vector<8x32x32xf32> -> vector<8x32x32xf32>
    "tpu.trace_stop"() : () -> ()
    %133 = arith.truncf %132 : vector<8x32x32xf32> to vector<8x32x32xbf16>
    %134 = tpu.concatenate %82, %99, %116, %133 in 2 : vector<8x32x32xbf16>, vector<8x32x32xbf16>, vector<8x32x32xbf16>, vector<8x32x32xbf16> -> vector<8x32x128xbf16>
    %135 = vector.shape_cast %134 : vector<8x32x128xbf16> to vector<256x128xbf16>
    %cst_61 = arith.constant dense<0.000000e+00> : vector<256x128xf32>
    %136 = tpu.matmul %135, %17, %cst_61 {dimension_numbers = #tpu.dot_dimension_numbers<[1], [0], [0], [1], [0, 0, 1, 1], [], []>} : vector<256x128xbf16>, vector<128x128xbf16>, vector<256x128xf32> -> vector<256x128xf32>
    %137 = vector.broadcast %19 : vector<1x128xf32> to vector<256x128xf32>
    %138 = arith.addf %136, %137 : vector<256x128xf32>
    %139 = vector.shape_cast %138 : vector<256x128xf32> to vector<8x32x128xf32>
    %140 = arith.addf %3, %139 : vector<8x32x128xf32>
    %cst_62 = arith.constant dense<0.000000e+00> : vector<8x32xf32>
    %141 = vector.multi_reduction <add>, %140, %cst_62 [2] : vector<8x32x128xf32> to vector<8x32xf32>
    %142 = vector.shape_cast %141 : vector<8x32xf32> to vector<8x32x1xf32>
    %cst_63 = arith.constant 1.280000e+02 : f32
    %143 = vector.broadcast %cst_63 : f32 to vector<8x32x1xf32>
    %144 = arith.divf %142, %143 : vector<8x32x1xf32>
    %145 = vector.broadcast %144 : vector<8x32x1xf32> to vector<8x32x128xf32>
    %146 = arith.subf %140, %145 : vector<8x32x128xf32>
    %147 = arith.mulf %146, %146 : vector<8x32x128xf32>
    %cst_64 = arith.constant dense<0.000000e+00> : vector<8x32xf32>
    %148 = vector.multi_reduction <add>, %147, %cst_64 [2] : vector<8x32x128xf32> to vector<8x32xf32>
    %149 = vector.shape_cast %148 : vector<8x32xf32> to vector<8x32x1xf32>
    %cst_65 = arith.constant 1.280000e+02 : f32
    %150 = vector.broadcast %cst_65 : f32 to vector<8x32x1xf32>
    %151 = arith.divf %149, %150 : vector<8x32x1xf32>
    %cst_66 = arith.constant 9.99999974E-6 : f32
    %152 = vector.broadcast %cst_66 : f32 to vector<8x32x1xf32>
    %153 = arith.addf %151, %152 : vector<8x32x1xf32>
    %154 = math.rsqrt %153 : vector<8x32x1xf32>
    %155 = vector.broadcast %154 : vector<8x32x1xf32> to vector<8x32x128xf32>
    %156 = arith.mulf %146, %155 : vector<8x32x128xf32>
    %157 = vector.shape_cast %9 : vector<1x128xf32> to vector<1x1x128xf32>
    %158 = vector.broadcast %157 : vector<1x1x128xf32> to vector<8x32x128xf32>
    %159 = arith.mulf %156, %158 : vector<8x32x128xf32>
    %160 = vector.shape_cast %11 : vector<1x128xf32> to vector<1x1x128xf32>
    %161 = vector.broadcast %160 : vector<1x1x128xf32> to vector<8x32x128xf32>
    %162 = arith.addf %159, %161 : vector<8x32x128xf32>
    %163 = arith.truncf %162 : vector<8x32x128xf32> to vector<8x32x128xbf16>
    %164 = vector.shape_cast %163 : vector<8x32x128xbf16> to vector<256x128xbf16>
    %cst_67 = arith.constant dense<0.000000e+00> : vector<256x256xf32>
    %165 = tpu.matmul %164, %21, %cst_67 {dimension_numbers = #tpu.dot_dimension_numbers<[1], [0], [0], [1], [0, 0, 1, 1], [], []>} : vector<256x128xbf16>, vector<128x256xbf16>, vector<256x256xf32> -> vector<256x256xf32>
    %166 = vector.broadcast %23 : vector<1x256xf32> to vector<256x256xf32>
    %167 = arith.addf %165, %166 : vector<256x256xf32>
    %cst_68 = arith.constant 5.000000e-01 : f32
    %168 = vector.broadcast %cst_68 : f32 to vector<256x256xf32>
    %169 = arith.mulf %168, %167 : vector<256x256xf32>
    %cst_69 = arith.constant 0.707106769 : f32
    %170 = vector.broadcast %cst_69 : f32 to vector<256x256xf32>
    %171 = arith.mulf %167, %170 : vector<256x256xf32>
    %172 = math.erf %171 : vector<256x256xf32>
    %cst_70 = arith.constant 1.000000e+00 : f32
    %173 = vector.broadcast %cst_70 : f32 to vector<256x256xf32>
    %174 = arith.addf %173, %172 : vector<256x256xf32>
    %175 = arith.mulf %169, %174 : vector<256x256xf32>
    %176 = arith.truncf %175 : vector<256x256xf32> to vector<256x256xbf16>
    %cst_71 = arith.constant dense<0.000000e+00> : vector<256x128xf32>
    %177 = tpu.matmul %176, %25, %cst_71 {dimension_numbers = #tpu.dot_dimension_numbers<[1], [0], [0], [1], [0, 0, 1, 1], [], []>} : vector<256x256xbf16>, vector<256x128xbf16>, vector<256x128xf32> -> vector<256x128xf32>
    %178 = vector.broadcast %27 : vector<1x128xf32> to vector<256x128xf32>
    %179 = arith.addf %177, %178 : vector<256x128xf32>
    %180 = vector.shape_cast %179 : vector<256x128xf32> to vector<8x32x128xf32>
    %181 = arith.addf %140, %180 : vector<8x32x128xf32>
    %c0_72 = arith.constant 0 : index
    %c0_73 = arith.constant 0 : index
    %c0_74 = arith.constant 0 : index
    %182 = vector.load %arg15[%c0_72, %c0_73, %c0_74] : memref<8x32x128xf32, #tpu.memory_space<vmem>>, vector<8x32x128xf32>
    tpu.vector_store %arg15[%c0_72, %c0_73, %c0_74], %181 {strides = array<i32>} : memref<8x32x128xf32, #tpu.memory_space<vmem>>, vector<8x32x128xf32>,
    return
  }
  func.func @transform_0(%arg0: i32, %arg1: i32) -> (i32, i32, i32) {
    %c0_i32 = arith.constant 0 : i32
    %c0_i32_0 = arith.constant 0 : i32
    %c0_i32_1 = arith.constant 0 : i32
    return %arg0, %c0_i32, %c0_i32_0 : i32, i32, i32
  }
  func.func @transform_1(%arg0: i32, %arg1: i32) -> (i32, i32, i32) {
    %c0_i32 = arith.constant 0 : i32
    %c0_i32_0 = arith.constant 0 : i32
    %c0_i32_1 = arith.constant 0 : i32
    return %arg1, %c0_i32, %c0_i32_0 : i32, i32, i32
  }
  func.func @transform_2(%arg0: i32, %arg1: i32) -> (i32, i32, i32) {
    %c0_i32 = arith.constant 0 : i32
    %c0_i32_0 = arith.constant 0 : i32
    %c0_i32_1 = arith.constant 0 : i32
    return %arg1, %c0_i32, %c0_i32_0 : i32, i32, i32
  }
  func.func @transform_3(%arg0: i32, %arg1: i32) -> (i32, i32, i32) {
    %c0_i32 = arith.constant 0 : i32
    %c0_i32_0 = arith.constant 0 : i32
    %c0_i32_1 = arith.constant 0 : i32
    return %arg1, %c0_i32, %c0_i32_0 : i32, i32, i32
  }
  func.func @transform_4(%arg0: i32, %arg1: i32) -> (i32, i32, i32) {
    %c0_i32 = arith.constant 0 : i32
    %c0_i32_0 = arith.constant 0 : i32
    %c0_i32_1 = arith.constant 0 : i32
    return %arg1, %c0_i32, %c0_i32_0 : i32, i32, i32
  }
  func.func @transform_5(%arg0: i32, %arg1: i32) -> (i32, i32, i32) {
    %c0_i32 = arith.constant 0 : i32
    %c0_i32_0 = arith.constant 0 : i32
    %c0_i32_1 = arith.constant 0 : i32
    return %arg1, %c0_i32, %c0_i32_0 : i32, i32, i32
  }
  func.func @transform_6(%arg0: i32, %arg1: i32) -> (i32, i32, i32) {
    %c0_i32 = arith.constant 0 : i32
    %c0_i32_0 = arith.constant 0 : i32
    %c0_i32_1 = arith.constant 0 : i32
    return %arg1, %c0_i32, %c0_i32_0 : i32, i32, i32
  }
  func.func @transform_7(%arg0: i32, %arg1: i32) -> (i32, i32, i32) {
    %c0_i32 = arith.constant 0 : i32
    %c0_i32_0 = arith.constant 0 : i32
    %c0_i32_1 = arith.constant 0 : i32
    return %arg1, %c0_i32, %c0_i32_0 : i32, i32, i32
  }
  func.func @transform_8(%arg0: i32, %arg1: i32) -> (i32, i32, i32) {
    %c0_i32 = arith.constant 0 : i32
    %c0_i32_0 = arith.constant 0 : i32
    %c0_i32_1 = arith.constant 0 : i32
    return %arg1, %c0_i32, %c0_i32_0 : i32, i32, i32
  }
  func.func @transform_9(%arg0: i32, %arg1: i32) -> (i32, i32, i32) {
    %c0_i32 = arith.constant 0 : i32
    %c0_i32_0 = arith.constant 0 : i32
    %c0_i32_1 = arith.constant 0 : i32
    return %arg1, %c0_i32, %c0_i32_0 : i32, i32, i32
  }
  func.func @transform_10(%arg0: i32, %arg1: i32) -> (i32, i32, i32) {
    %c0_i32 = arith.constant 0 : i32
    %c0_i32_0 = arith.constant 0 : i32
    %c0_i32_1 = arith.constant 0 : i32
    return %arg1, %c0_i32, %c0_i32_0 : i32, i32, i32
  }
  func.func @transform_11(%arg0: i32, %arg1: i32) -> (i32, i32, i32) {
    %c0_i32 = arith.constant 0 : i32
    %c0_i32_0 = arith.constant 0 : i32
    %c0_i32_1 = arith.constant 0 : i32
    return %arg1, %c0_i32, %c0_i32_0 : i32, i32, i32
  }
  func.func @transform_12(%arg0: i32, %arg1: i32) -> (i32, i32, i32) {
    %c0_i32 = arith.constant 0 : i32
    %c0_i32_0 = arith.constant 0 : i32
    %c0_i32_1 = arith.constant 0 : i32
    return %arg1, %c0_i32, %c0_i32_0 : i32, i32, i32
  }
  func.func @transform_13(%arg0: i32, %arg1: i32) -> (i32, i32, i32) {
    %c0_i32 = arith.constant 0 : i32
    %c0_i32_0 = arith.constant 0 : i32
    %c0_i32_1 = arith.constant 0 : i32
    return %arg0, %c0_i32, %c0_i32_0 : i32, i32, i32
  }
}

</mosaic_0001>

<llo_original>
// kernel: tpu_custom_call.1
$region0: #{tpu_custom_call.1}
  #allocation0 [shape = 'u32[]', space=smem, size = 0x4, offset = 0x4, fixed_abs, tag = 'smem constant byte address 0x4 - core index']
  #allocation1 [shape = 'u32[144,128]{1,0:T(1,128)}', space=vmem, size = 0x12000, scoped, tag = 'internal scratch']
  %s0 = inlined_call_operand.hbm [shape: f32[8,32,128], index: 0, kind: input, shape index: {}]
  %s1 = inlined_call_operand.hbm [shape: f32[2,1,128], index: 1, kind: input, shape index: {}]
  %s2 = inlined_call_operand.hbm [shape: f32[2,1,128], index: 2, kind: input, shape index: {}]
  %s3 = inlined_call_operand.hbm [shape: bf16[2,128,384], index: 3, kind: input, shape index: {}]
  %s4 = inlined_call_operand.vmem [shape: f32[2,1,384], index: 4, kind: input, shape index: {}]
  %s5 = inlined_call_operand.hbm [shape: bf16[2,128,128], index: 5, kind: input, shape index: {}]
  %s6 = inlined_call_operand.vmem [shape: f32[2,1,128], index: 6, kind: input, shape index: {}]
  %s7 = inlined_call_operand.vmem [shape: f32[2,1,128], index: 7, kind: input, shape index: {}]
  %s8 = inlined_call_operand.vmem [shape: f32[2,1,128], index: 8, kind: input, shape index: {}]
  %s9 = inlined_call_operand.hbm [shape: bf16[2,128,256], index: 9, kind: input, shape index: {}]
  %s10 = inlined_call_operand.vmem [shape: f32[2,1,256], index: 10, kind: input, shape index: {}]
  %s11 = inlined_call_operand.hbm [shape: bf16[2,256,128], index: 11, kind: input, shape index: {}]
  %s12 = inlined_call_operand.vmem [shape: f32[2,1,128], index: 12, kind: input, shape index: {}]
  %s13 = inlined_call_operand.hbm [shape: f32[8,32,128], index: 13, kind: output, shape index: {}]
  %s14 = sld [smem:[#allocation0]]
  $region117: #{tpu_custom_call.1} parent=0
    _
  %s16 = ssub.s32 1, %s14
  %s17 = scalar_select 0, %s16, %s14
  $region1: #{tpu_custom_call.1} parent=0
    #allocation2 [shape = 'u8[131072]{0}', space=vmem, size = 0x20000, scoped, tag = 'input window, operand 0, single buffered']
    #allocation3 [shape = 's32[2]{0}', space=sflag, size = 0x8, scoped, tag = 'scoped memory for tpu_custom_call.1']
    #allocation4 [shape = 's32[2]{0}', space=sflag, size = 0x8, scoped, tag = 'scoped memory for tpu_custom_call.1']
    #allocation5 [shape = 'u8[1024]{0}', space=vmem, size = 0x400, scoped, tag = 'input window, operand 1']
    #allocation6 [shape = 's32[2]{0}', space=sflag, size = 0x8, scoped, tag = 'scoped memory for tpu_custom_call.1']
    #allocation7 [shape = 'u8[1024]{0}', space=vmem, size = 0x400, scoped, tag = 'input window, operand 2']
    #allocation8 [shape = 'u8[196608]{0}', space=vmem, size = 0x30000, scoped, tag = 'input window, operand 3']
    #allocation9 [shape = 's32[2]{0}', space=sflag, size = 0x8, scoped, tag = 'scoped memory for tpu_custom_call.1']
    #allocation10 [shape = 'u8[65536]{0}', space=vmem, size = 0x10000, scoped, tag = 'input window, operand 5']
    #allocation11 [shape = 'u8[131072]{0}', space=vmem, size = 0x20000, scoped, tag = 'input window, operand 9']
    #allocation12 [shape = 's32[2]{0}', space=sflag, size = 0x8, scoped, tag = 'scoped memory for tpu_custom_call.1']
    #allocation13 [shape = 'u8[131072]{0}', space=vmem, size = 0x20000, scoped, tag = 'input window, operand 11']
    #allocation14 [shape = 'u8[131072]{0}', space=vmem, size = 0x20000, scoped, tag = 'output window, operand 0, single buffered']
    %18 = vsyncpa [#allocation3], 0
    %19 = vsyncpa [#allocation6], 0
    %s20 = scalar_lea.sflag [#allocation6], 1
    %21 = vsyncpa %s20, 0
    %22 = vsyncpa [#allocation9], 0
    %s23 = scalar_lea.sflag [#allocation9], 1
    %24 = vsyncpa %s23, 0
    %25 = vsyncpa [#allocation12], 0
    %s26 = scalar_lea.sflag [#allocation12], 1
    %27 = vsyncpa %s26, 0
    %28 = vsyncpa [#allocation4], 0
    loop: start=0, step=1, limit=4
    $region2: #{tpu_custom_call.1} parent=1 // loop_pre_header
      _
    $region3: #{tpu_custom_call.1} parent=1 // loop_header
      %s30 = sphi 0, %s34
      %p31 = scmp.ge.s32.totalorder %s30, 4
      %s37 = sphi 0, %s49
      %s38 = sphi 0, %s45
      %s39 = sphi 0, %s37
      %s40 = sphi 0, %s38
      %s41 = sphi 0, %s39
      %s42 = sphi 0, %s40
      %s52 = sphi 0, %s54
      %s55 = sphi 0, %s52
      %s56 = sphi 0, %s55
      %s72 = sphi 0, %s56
      %s78 = sphi 0, %s80
      %s81 = sphi 0, %s78
      %s82 = sphi 0, %s81
      %s98 = sphi 0, %s82
      %s104 = sphi 0, %s106
      %s107 = sphi 0, %s104
      %s108 = sphi 0, %s107
      %s124 = sphi 0, %s108
      %s130 = sphi 0, %s132
      %s133 = sphi 0, %s130
      %s134 = sphi 0, %s133
      %s150 = sphi 0, %s134
      %s156 = sphi 0, %s158
      %s159 = sphi 0, %s156
      %s160 = sphi 0, %s159
      %s176 = sphi 0, %s160
      %s182 = sphi 0, %s184
      %s185 = sphi 0, %s182
      %s186 = sphi 0, %s185
      %s202 = sphi 0, %s186
      %s208 = sphi 0, %s210
      %s211 = sphi 0, %s208
      %s212 = sphi 0, %s211
      %s228 = sphi 0, %s212
      %s234 = sphi 0, %s236
      %s237 = sphi 0, %s234
      %s238 = sphi 0, %s237
      %s254 = sphi 0, %s238
      %s260 = sphi 0, %s262
      %s263 = sphi 0, %s260
      %s264 = sphi 0, %s263
      %s280 = sphi 0, %s264
      %s286 = sphi 0, %s288
      %s289 = sphi 0, %s286
      %s290 = sphi 0, %s289
      %s306 = sphi 0, %s290
      %s312 = sphi 0, %s314
      %s315 = sphi 0, %s312
      %s316 = sphi 0, %s315
      %s332 = sphi 0, %s316
      %s338 = sphi 0, %s340
      %s341 = sphi 0, %s338
      %s342 = sphi 0, %s341
      %s358 = sphi 0, %s342
      %s364 = sphi 0, %s366
      %s367 = sphi 0, %s364
      %s368 = sphi 0, %s367
      %s384 = sphi 0, %s368
      %s390 = sphi 0, %s392
      %s393 = sphi 0, %s390
      %s394 = sphi 0, %s393
      %s410 = sphi 0, %s394
    $region4: #{tpu_custom_call.1} parent=1 // loop_header_branch
      %33 = sbr.rel (%p31) target = $region8
    $region5: #{tpu_custom_call.1} parent=1 // loop_body
      %s35 = ssub.s32 %s30, 1
      %s36 = ssub.s32 %s30, 2
      %s43 = sadd.s32 1, %s38
      %p44 = scmp.ge.s32.totalorder %s43, 2
      %s45 = scalar_select %p44, 0, %s43
      %s46 = sadd.s32 1, %s37
      %s47 = scalar_select %p44, %s46, %s37
      %p48 = scmp.ge.s32.totalorder %s47, 1
      %s49 = scalar_select %p48, 0, %s47
      %s50 = ssub.s32 %s37, %s49
      %p51 = scmp.eq.s32.totalorder %s50, 0
      %s53 = sadd.s32 %s52, 1
      %s54 = scalar_select %p51, %s52, %s53
      %p57 = pneg %p51
      %p58 = scmp.eq.s32.totalorder %s30, 1
      %p59 = por %p57, %p58
      %p60 = scmp.ne.s32.totalorder %s52, %s55
      %p61 = scmp.eq.s32.totalorder %s30, 0
      %p62 = por %p60, %p61
      %p63 = scmp.ne.s32.totalorder %s52, %s55
      %p64 = scmp.eq.s32.totalorder %s35, 1
      %p65 = por %p63, %p64
      %p66 = scmp.ne.s32.totalorder %s55, %s56
      %p67 = scmp.eq.s32.totalorder %s35, 0
      %p68 = por %p66, %p67
      %p69 = scmp.ne.s32.totalorder %s55, %s56
      %p70 = scmp.eq.s32.totalorder %s36, 1
      %p71 = por %p69, %p70
      %p73 = scmp.ne.s32.totalorder %s56, %s72
      %p74 = scmp.eq.s32.totalorder %s36, 0
      %p75 = por %p73, %p74
      %s76 = ssub.s32 %s38, %s45
      %p77 = scmp.eq.s32.totalorder %s76, 0
      %s79 = sadd.s32 %s78, 1
      %s80 = scalar_select %p77, %s78, %s79
      %p83 = pneg %p77
      %p84 = scmp.eq.s32.totalorder %s30, 1
      %p85 = por %p83, %p84
      %p86 = scmp.ne.s32.totalorder %s78, %s81
      %p87 = scmp.eq.s32.totalorder %s30, 0
      %p88 = por %p86, %p87
      %p89 = scmp.ne.s32.totalorder %s78, %s81
      %p90 = scmp.eq.s32.totalorder %s35, 1
      %p91 = por %p89, %p90
      %p92 = scmp.ne.s32.totalorder %s81, %s82
      %p93 = scmp.eq.s32.totalorder %s35, 0
      %p94 = por %p92, %p93
      %p95 = scmp.ne.s32.totalorder %s81, %s82
      %p96 = scmp.eq.s32.totalorder %s36, 1
      %p97 = por %p95, %p96
      %p99 = scmp.ne.s32.totalorder %s82, %s98
      %p100 = scmp.eq.s32.totalorder %s36, 0
      %p101 = por %p99, %p100
      %s102 = ssub.s32 %s38, %s45
      %p103 = scmp.eq.s32.totalorder %s102, 0
      %s105 = sadd.s32 %s104, 1
      %s106 = scalar_select %p103, %s104, %s105
      %p109 = pneg %p103
      %p110 = scmp.eq.s32.totalorder %s30, 1
      %p111 = por %p109, %p110
      %p112 = scmp.ne.s32.totalorder %s104, %s107
      %p113 = scmp.eq.s32.totalorder %s30, 0
      %p114 = por %p112, %p113
      %p115 = scmp.ne.s32.totalorder %s104, %s107
      %p116 = scmp.eq.s32.totalorder %s35, 1
      %p117 = por %p115, %p116
      %p118 = scmp.ne.s32.totalorder %s107, %s108
      %p119 = scmp.eq.s32.totalorder %s35, 0
      %p120 = por %p118, %p119
      %p121 = scmp.ne.s32.totalorder %s107, %s108
      %p122 = scmp.eq.s32.totalorder %s36, 1
      %p123 = por %p121, %p122
      %p125 = scmp.ne.s32.totalorder %s108, %s124
      %p126 = scmp.eq.s32.totalorder %s36, 0
      %p127 = por %p125, %p126
      %s128 = ssub.s32 %s38, %s45
      %p129 = scmp.eq.s32.totalorder %s128, 0
      %s131 = sadd.s32 %s130, 1
      %s132 = scalar_select %p129, %s130, %s131
      %p135 = pneg %p129
      %p136 = scmp.eq.s32.totalorder %s30, 1
      %p137 = por %p135, %p136
      %p138 = scmp.ne.s32.totalorder %s130, %s133
      %p139 = scmp.eq.s32.totalorder %s30, 0
      %p140 = por %p138, %p139
      %p141 = scmp.ne.s32.totalorder %s130, %s133
      %p142 = scmp.eq.s32.totalorder %s35, 1
      %p143 = por %p141, %p142
      %p144 = scmp.ne.s32.totalorder %s133, %s134
      %p145 = scmp.eq.s32.totalorder %s35, 0
      %p146 = por %p144, %p145
      %p147 = scmp.ne.s32.totalorder %s133, %s134
      %p148 = scmp.eq.s32.totalorder %s36, 1
      %p149 = por %p147, %p148
      %p151 = scmp.ne.s32.totalorder %s134, %s150
      %p152 = scmp.eq.s32.totalorder %s36, 0
      %p153 = por %p151, %p152
      %s154 = ssub.s32 %s38, %s45
      %p155 = scmp.eq.s32.totalorder %s154, 0
      %s157 = sadd.s32 %s156, 1
      %s158 = scalar_select %p155, %s156, %s157
      %p161 = pneg %p155
      %p162 = scmp.eq.s32.totalorder %s30, 1
      %p163 = por %p161, %p162
      %p164 = scmp.ne.s32.totalorder %s156, %s159
      %p165 = scmp.eq.s32.totalorder %s30, 0
      %p166 = por %p164, %p165
      %p167 = scmp.ne.s32.totalorder %s156, %s159
      %p168 = scmp.eq.s32.totalorder %s35, 1
      %p169 = por %p167, %p168
      %p170 = scmp.ne.s32.totalorder %s159, %s160
      %p171 = scmp.eq.s32.totalorder %s35, 0
      %p172 = por %p170, %p171
      %p173 = scmp.ne.s32.totalorder %s159, %s160
      %p174 = scmp.eq.s32.totalorder %s36, 1
      %p175 = por %p173, %p174
      %p177 = scmp.ne.s32.totalorder %s160, %s176
      %p178 = scmp.eq.s32.totalorder %s36, 0
      %p179 = por %p177, %p178
      %s180 = ssub.s32 %s38, %s45
      %p181 = scmp.eq.s32.totalorder %s180, 0
      %s183 = sadd.s32 %s182, 1
      %s184 = scalar_select %p181, %s182, %s183
      %p187 = pneg %p181
      %p188 = scmp.eq.s32.totalorder %s30, 1
      %p189 = por %p187, %p188
      %p190 = scmp.ne.s32.totalorder %s182, %s185
      %p191 = scmp.eq.s32.totalorder %s30, 0
      %p192 = por %p190, %p191
      %p193 = scmp.ne.s32.totalorder %s182, %s185
      %p194 = scmp.eq.s32.totalorder %s35, 1
      %p195 = por %p193, %p194
      %p196 = scmp.ne.s32.totalorder %s185, %s186
      %p197 = scmp.eq.s32.totalorder %s35, 0
      %p198 = por %p196, %p197
      %p199 = scmp.ne.s32.totalorder %s185, %s186
      %p200 = scmp.eq.s32.totalorder %s36, 1
      %p201 = por %p199, %p200
      %p203 = scmp.ne.s32.totalorder %s186, %s202
      %p204 = scmp.eq.s32.totalorder %s36, 0
      %p205 = por %p203, %p204
      %s206 = ssub.s32 %s38, %s45
      %p207 = scmp.eq.s32.totalorder %s206, 0
      %s209 = sadd.s32 %s208, 1
      %s210 = scalar_select %p207, %s208, %s209
      %p213 = pneg %p207
      %p214 = scmp.eq.s32.totalorder %s30, 1
      %p215 = por %p213, %p214
      %p216 = scmp.ne.s32.totalorder %s208, %s211
      %p217 = scmp.eq.s32.totalorder %s30, 0
      %p218 = por %p216, %p217
      %p219 = scmp.ne.s32.totalorder %s208, %s211
      %p220 = scmp.eq.s32.totalorder %s35, 1
      %p221 = por %p219, %p220
      %p222 = scmp.ne.s32.totalorder %s211, %s212
      %p223 = scmp.eq.s32.totalorder %s35, 0
      %p224 = por %p222, %p223
      %p225 = scmp.ne.s32.totalorder %s211, %s212
      %p226 = scmp.eq.s32.totalorder %s36, 1
      %p227 = por %p225, %p226
      %p229 = scmp.ne.s32.totalorder %s212, %s228
      %p230 = scmp.eq.s32.totalorder %s36, 0
      %p231 = por %p229, %p230
      %s232 = ssub.s32 %s38, %s45
      %p233 = scmp.eq.s32.totalorder %s232, 0
      %s235 = sadd.s32 %s234, 1
      %s236 = scalar_select %p233, %s234, %s235
      %p239 = pneg %p233
      %p240 = scmp.eq.s32.totalorder %s30, 1
      %p241 = por %p239, %p240
      %p242 = scmp.ne.s32.totalorder %s234, %s237
      %p243 = scmp.eq.s32.totalorder %s30, 0
      %p244 = por %p242, %p243
      %p245 = scmp.ne.s32.totalorder %s234, %s237
      %p246 = scmp.eq.s32.totalorder %s35, 1
      %p247 = por %p245, %p246
      %p248 = scmp.ne.s32.totalorder %s237, %s238
      %p249 = scmp.eq.s32.totalorder %s35, 0
      %p250 = por %p248, %p249
      %p251 = scmp.ne.s32.totalorder %s237, %s238
      %p252 = scmp.eq.s32.totalorder %s36, 1
      %p253 = por %p251, %p252
      %p255 = scmp.ne.s32.totalorder %s238, %s254
      %p256 = scmp.eq.s32.totalorder %s36, 0
      %p257 = por %p255, %p256
      %s258 = ssub.s32 %s38, %s45
      %p259 = scmp.eq.s32.totalorder %s258, 0
      %s261 = sadd.s32 %s260, 1
      %s262 = scalar_select %p259, %s260, %s261
      %p265 = pneg %p259
      %p266 = scmp.eq.s32.totalorder %s30, 1
      %p267 = por %p265, %p266
      %p268 = scmp.ne.s32.totalorder %s260, %s263
      %p269 = scmp.eq.s32.totalorder %s30, 0
      %p270 = por %p268, %p269
      %p271 = scmp.ne.s32.totalorder %s260, %s263
      %p272 = scmp.eq.s32.totalorder %s35, 1
      %p273 = por %p271, %p272
      %p274 = scmp.ne.s32.totalorder %s263, %s264
      %p275 = scmp.eq.s32.totalorder %s35, 0
      %p276 = por %p274, %p275
      %p277 = scmp.ne.s32.totalorder %s263, %s264
      %p278 = scmp.eq.s32.totalorder %s36, 1
      %p279 = por %p277, %p278
      %p281 = scmp.ne.s32.totalorder %s264, %s280
      %p282 = scmp.eq.s32.totalorder %s36, 0
      %p283 = por %p281, %p282
      %s284 = ssub.s32 %s38, %s45
      %p285 = scmp.eq.s32.totalorder %s284, 0
      %s287 = sadd.s32 %s286, 1
      %s288 = scalar_select %p285, %s286, %s287
      %p291 = pneg %p285
      %p292 = scmp.eq.s32.totalorder %s30, 1
      %p293 = por %p291, %p292
      %p294 = scmp.ne.s32.totalorder %s286, %s289
      %p295 = scmp.eq.s32.totalorder %s30, 0
      %p296 = por %p294, %p295
      %p297 = scmp.ne.s32.totalorder %s286, %s289
      %p298 = scmp.eq.s32.totalorder %s35, 1
      %p299 = por %p297, %p298
      %p300 = scmp.ne.s32.totalorder %s289, %s290
      %p301 = scmp.eq.s32.totalorder %s35, 0
      %p302 = por %p300, %p301
      %p303 = scmp.ne.s32.totalorder %s289, %s290
      %p304 = scmp.eq.s32.totalorder %s36, 1
      %p305 = por %p303, %p304
      %p307 = scmp.ne.s32.totalorder %s290, %s306
      %p308 = scmp.eq.s32.totalorder %s36, 0
      %p309 = por %p307, %p308
      %s310 = ssub.s32 %s38, %s45
      %p311 = scmp.eq.s32.totalorder %s310, 0
      %s313 = sadd.s32 %s312, 1
      %s314 = scalar_select %p311, %s312, %s313
      %p317 = pneg %p311
      %p318 = scmp.eq.s32.totalorder %s30, 1
      %p319 = por %p317, %p318
      %p320 = scmp.ne.s32.totalorder %s312, %s315
      %p321 = scmp.eq.s32.totalorder %s30, 0
      %p322 = por %p320, %p321
      %p323 = scmp.ne.s32.totalorder %s312, %s315
      %p324 = scmp.eq.s32.totalorder %s35, 1
      %p325 = por %p323, %p324
      %p326 = scmp.ne.s32.totalorder %s315, %s316
      %p327 = scmp.eq.s32.totalorder %s35, 0
      %p328 = por %p326, %p327
      %p329 = scmp.ne.s32.totalorder %s315, %s316
      %p330 = scmp.eq.s32.totalorder %s36, 1
      %p331 = por %p329, %p330
      %p333 = scmp.ne.s32.totalorder %s316, %s332
      %p334 = scmp.eq.s32.totalorder %s36, 0
      %p335 = por %p333, %p334
      %s336 = ssub.s32 %s38, %s45
      %p337 = scmp.eq.s32.totalorder %s336, 0
      %s339 = sadd.s32 %s338, 1
      %s340 = scalar_select %p337, %s338, %s339
      %p343 = pneg %p337
      %p344 = scmp.eq.s32.totalorder %s30, 1
      %p345 = por %p343, %p344
      %p346 = scmp.ne.s32.totalorder %s338, %s341
      %p347 = scmp.eq.s32.totalorder %s30, 0
      %p348 = por %p346, %p347
      %p349 = scmp.ne.s32.totalorder %s338, %s341
      %p350 = scmp.eq.s32.totalorder %s35, 1
      %p351 = por %p349, %p350
      %p352 = scmp.ne.s32.totalorder %s341, %s342
      %p353 = scmp.eq.s32.totalorder %s35, 0
      %p354 = por %p352, %p353
      %p355 = scmp.ne.s32.totalorder %s341, %s342
      %p356 = scmp.eq.s32.totalorder %s36, 1
      %p357 = por %p355, %p356
      %p359 = scmp.ne.s32.totalorder %s342, %s358
      %p360 = scmp.eq.s32.totalorder %s36, 0
      %p361 = por %p359, %p360
      %s362 = ssub.s32 %s38, %s45
      %p363 = scmp.eq.s32.totalorder %s362, 0
      %s365 = sadd.s32 %s364, 1
      %s366 = scalar_select %p363, %s364, %s365
      %p369 = pneg %p363
      %p370 = scmp.eq.s32.totalorder %s30, 1
      %p371 = por %p369, %p370
      %p372 = scmp.ne.s32.totalorder %s364, %s367
      %p373 = scmp.eq.s32.totalorder %s30, 0
      %p374 = por %p372, %p373
      %p375 = scmp.ne.s32.totalorder %s364, %s367
      %p376 = scmp.eq.s32.totalorder %s35, 1
      %p377 = por %p375, %p376
      %p378 = scmp.ne.s32.totalorder %s367, %s368
      %p379 = scmp.eq.s32.totalorder %s35, 0
      %p380 = por %p378, %p379
      %p381 = scmp.ne.s32.totalorder %s367, %s368
      %p382 = scmp.eq.s32.totalorder %s36, 1
      %p383 = por %p381, %p382
      %p385 = scmp.ne.s32.totalorder %s368, %s384
      %p386 = scmp.eq.s32.totalorder %s36, 0
      %p387 = por %p385, %p386
      %s388 = ssub.s32 %s37, %s49
      %p389 = scmp.eq.s32.totalorder %s388, 0
      %s391 = sadd.s32 %s390, 1
      %s392 = scalar_select %p389, %s390, %s391
      %p395 = pneg %p389
      %p396 = scmp.eq.s32.totalorder %s30, 1
      %p397 = por %p395, %p396
      %p398 = scmp.ne.s32.totalorder %s390, %s393
      %p399 = scmp.eq.s32.totalorder %s30, 0
      %p400 = por %p398, %p399
      %p401 = scmp.ne.s32.totalorder %s390, %s393
      %p402 = scmp.eq.s32.totalorder %s35, 1
      %p403 = por %p401, %p402
      %p404 = scmp.ne.s32.totalorder %s393, %s394
      %p405 = scmp.eq.s32.totalorder %s35, 0
      %p406 = por %p404, %p405
      %p407 = scmp.ne.s32.totalorder %s393, %s394
      %p408 = scmp.eq.s32.totalorder %s36, 1
      %p409 = por %p407, %p408
      %p411 = scmp.ne.s32.totalorder %s394, %s410
      %p412 = scmp.eq.s32.totalorder %s36, 0
      %p413 = por %p411, %p412
      %p414 = scmp.le.s32.totalorder 1, %s30
      %p415 = scmp.lt.s32.totalorder %s30, 3
      %p416 = pnand %p414, %p415
      %p417 = pneg %p416
      // Predicated region
      $region9: #{tpu_custom_call.1} parent=5 // pred_check
        _
      $region10: #{tpu_custom_call.1} parent=5 // pred_check_branch
        %419 = sbr.rel (%p416) target = $region12
      $region11: #{tpu_custom_call.1} parent=5 // pred_region
        %s420 = ssub.s32 %s30, 1
        // Predicated region
        $region13: #{tpu_custom_call.1} parent=11 // pred_check
          %p421 = pneg %p68
        $region14: #{tpu_custom_call.1} parent=11 // pred_check_branch
          %423 = sbr.rel (%p421) target = $region16
        $region15: #{tpu_custom_call.1} parent=11 // pred_region
          %s424 = smul.u32 8, %s39
          %s426 = ssub.s32 4096, 4096
          %427 = vsyncadd [#allocation3], %s426
          %s428 = smul.addr %s424, 4
          %s429 = smul.addr %s428, 128
          %s430 = scalar_lea.hbm %s0, %s429
          %s431 = sshll.u32 [#allocation2], 4
          %s432 = int_to_ptr.vmem [resolvable:$true] %s431
          %437 = dma.hbm_to_vmem [thread:$0]  %s430, 4096, %s432, [#allocation3], 128, 128, 8
        $region16: #{tpu_custom_call.1} parent=11 // pred_fallthru
          _
      $region12: #{tpu_custom_call.1} parent=5 // pred_fallthru
        _
      %p438 = scmp.lt.s32.totalorder %s30, 2
      // Predicated region
      $region17: #{tpu_custom_call.1} parent=5 // pred_check
        %p439 = pneg %p438
      $region18: #{tpu_custom_call.1} parent=5 // pred_check_branch
        %441 = sbr.rel (%p439) target = $region20
      $region19: #{tpu_custom_call.1} parent=5 // pred_region
        // Predicated region
        $region21: #{tpu_custom_call.1} parent=19 // pred_check
          %p442 = pneg %p88
        $region22: #{tpu_custom_call.1} parent=19 // pred_check_branch
          %444 = sbr.rel (%p442) target = $region24
        $region23: #{tpu_custom_call.1} parent=19 // pred_region
          %s445 = sand.u32 %s30, 1
          %s446 = scalar_lea.sflag [#allocation6], %s445
          %s447 = sand.u32 %s78, 1
          %s448 = scalar_lea.vmem [#allocation5], %s447
          %s450 = ssub.s32 16, 16
          %451 = vsyncadd %s446, %s450
          %s452 = smul.addr %s38, 16
          %s453 = scalar_lea.hbm %s1, %s452
          %s455 = sshll.u32 %s448, 4
          %s456 = int_to_ptr.vmem [resolvable:$true] %s455
          %458 = dma.hbm_to_vmem [thread:$0]  %s453, 16, %s456, %s446
        $region24: #{tpu_custom_call.1} parent=19 // pred_fallthru
          _
        // Predicated region
        $region25: #{tpu_custom_call.1} parent=19 // pred_check
          %p459 = pneg %p114
        $region26: #{tpu_custom_call.1} parent=19 // pred_check_branch
          %461 = sbr.rel (%p459) target = $region28
        $region27: #{tpu_custom_call.1} parent=19 // pred_region
          %s462 = sand.u32 %s30, 1
          %s463 = scalar_lea.sflag [#allocation6], %s462
          %s464 = sand.u32 %s104, 1
          %s465 = scalar_lea.vmem [#allocation7], %s464
          %s467 = ssub.s32 16, 16
          %468 = vsyncadd %s463, %s467
          %s469 = smul.addr %s38, 16
          %s470 = scalar_lea.hbm %s2, %s469
          %s472 = sshll.u32 %s465, 4
          %s473 = int_to_ptr.vmem [resolvable:$true] %s472
          %475 = dma.hbm_to_vmem [thread:$0]  %s470, 16, %s473, %s463
        $region28: #{tpu_custom_call.1} parent=19 // pred_fallthru
          _
        // Predicated region
        $region29: #{tpu_custom_call.1} parent=19 // pred_check
          %p476 = pneg %p140
        $region30: #{tpu_custom_call.1} parent=19 // pred_check_branch
          %478 = sbr.rel (%p476) target = $region32
        $region31: #{tpu_custom_call.1} parent=19 // pred_region
          %s479 = sand.u32 %s30, 1
          %s480 = scalar_lea.sflag [#allocation9], %s479
          %s481 = sand.u32 %s130, 1
          %s482 = smul.addr %s481, 192
          %s483 = scalar_lea.vmem [#allocation8], %s482
          %s485 = ssub.s32 3072, 3072
          %486 = vsyncadd %s480, %s485
          %s487 = smul.addr %s38, 48
          %s488 = smul.addr %s487, 64
          %s489 = scalar_lea.hbm %s3, %s488
          %s490 = sshll.u32 %s483, 4
          %s491 = int_to_ptr.vmem [resolvable:$true] %s490
          %496 = dma.hbm_to_vmem [thread:$0]  %s489, 3072, %s491, %s480, 192, 192, 12
        $region32: #{tpu_custom_call.1} parent=19 // pred_fallthru
          _
        // Predicated region
        $region33: #{tpu_custom_call.1} parent=19 // pred_check
          %p497 = pneg %p166
        $region34: #{tpu_custom_call.1} parent=19 // pred_check_branch
          %499 = sbr.rel (%p497) target = $region36
        $region35: #{tpu_custom_call.1} parent=19 // pred_region
          %p500 = scmp.lt.s32.totalorder %s38, 1
          %s501 = scalar_select %p500, %s38, 1
          %s502 = smul.addr %s501, 3
          %s503 = scalar_lea.vmem %s4, %s502
        $region36: #{tpu_custom_call.1} parent=19 // pred_fallthru
          _
        // Predicated region
        $region37: #{tpu_custom_call.1} parent=19 // pred_check
          %p504 = pneg %p192
        $region38: #{tpu_custom_call.1} parent=19 // pred_check_branch
          %506 = sbr.rel (%p504) target = $region40
        $region39: #{tpu_custom_call.1} parent=19 // pred_region
          %s507 = sand.u32 %s30, 1
          %s508 = scalar_lea.sflag [#allocation9], %s507
          %s509 = sand.u32 %s182, 1
          %s510 = smul.addr %s509, 64
          %s511 = scalar_lea.vmem [#allocation10], %s510
          %s513 = ssub.s32 1024, 1024
          %514 = vsyncadd %s508, %s513
          %s515 = smul.addr %s38, 16
          %s516 = smul.addr %s515, 64
          %s517 = scalar_lea.hbm %s5, %s516
          %s518 = sshll.u32 %s511, 4
          %s519 = int_to_ptr.vmem [resolvable:$true] %s518
          %524 = dma.hbm_to_vmem [thread:$0]  %s517, 1024, %s519, %s508, 64, 64, 4
        $region40: #{tpu_custom_call.1} parent=19 // pred_fallthru
          _
        // Predicated region
        $region41: #{tpu_custom_call.1} parent=19 // pred_check
          %p525 = pneg %p218
        $region42: #{tpu_custom_call.1} parent=19 // pred_check_branch
          %527 = sbr.rel (%p525) target = $region44
        $region43: #{tpu_custom_call.1} parent=19 // pred_region
          %p528 = scmp.lt.s32.totalorder %s38, 1
          %s529 = scalar_select %p528, %s38, 1
          %s530 = scalar_lea.vmem %s6, %s529
        $region44: #{tpu_custom_call.1} parent=19 // pred_fallthru
          _
        // Predicated region
        $region45: #{tpu_custom_call.1} parent=19 // pred_check
          %p531 = pneg %p244
        $region46: #{tpu_custom_call.1} parent=19 // pred_check_branch
          %533 = sbr.rel (%p531) target = $region48
        $region47: #{tpu_custom_call.1} parent=19 // pred_region
          %p534 = scmp.lt.s32.totalorder %s38, 1
          %s535 = scalar_select %p534, %s38, 1
          %s536 = scalar_lea.vmem %s7, %s535
        $region48: #{tpu_custom_call.1} parent=19 // pred_fallthru
          _
        // Predicated region
        $region49: #{tpu_custom_call.1} parent=19 // pred_check
          %p537 = pneg %p270
        $region50: #{tpu_custom_call.1} parent=19 // pred_check_branch
          %539 = sbr.rel (%p537) target = $region52
        $region51: #{tpu_custom_call.1} parent=19 // pred_region
          %p540 = scmp.lt.s32.totalorder %s38, 1
          %s541 = scalar_select %p540, %s38, 1
          %s542 = scalar_lea.vmem %s8, %s541
        $region52: #{tpu_custom_call.1} parent=19 // pred_fallthru
          _
        // Predicated region
        $region53: #{tpu_custom_call.1} parent=19 // pred_check
          %p543 = pneg %p296
        $region54: #{tpu_custom_call.1} parent=19 // pred_check_branch
          %545 = sbr.rel (%p543) target = $region56
        $region55: #{tpu_custom_call.1} parent=19 // pred_region
          %s546 = sand.u32 %s30, 1
          %s547 = scalar_lea.sflag [#allocation12], %s546
          %s548 = sand.u32 %s286, 1
          %s549 = smul.addr %s548, 128
          %s550 = scalar_lea.vmem [#allocation11], %s549
          %s552 = ssub.s32 2048, 2048
          %553 = vsyncadd %s547, %s552
          %s554 = smul.addr %s38, 32
          %s555 = smul.addr %s554, 64
          %s556 = scalar_lea.hbm %s9, %s555
          %s557 = sshll.u32 %s550, 4
          %s558 = int_to_ptr.vmem [resolvable:$true] %s557
          %563 = dma.hbm_to_vmem [thread:$0]  %s556, 2048, %s558, %s547, 128, 128, 8
        $region56: #{tpu_custom_call.1} parent=19 // pred_fallthru
          _
        // Predicated region
        $region57: #{tpu_custom_call.1} parent=19 // pred_check
          %p564 = pneg %p322
        $region58: #{tpu_custom_call.1} parent=19 // pred_check_branch
          %566 = sbr.rel (%p564) target = $region60
        $region59: #{tpu_custom_call.1} parent=19 // pred_region
          %p567 = scmp.lt.s32.totalorder %s38, 1
          %s568 = scalar_select %p567, %s38, 1
          %s569 = smul.addr %s568, 2
          %s570 = scalar_lea.vmem %s10, %s569
        $region60: #{tpu_custom_call.1} parent=19 // pred_fallthru
          _
        // Predicated region
        $region61: #{tpu_custom_call.1} parent=19 // pred_check
          %p571 = pneg %p348
        $region62: #{tpu_custom_call.1} parent=19 // pred_check_branch
          %573 = sbr.rel (%p571) target = $region64
        $region63: #{tpu_custom_call.1} parent=19 // pred_region
          %s574 = sand.u32 %s30, 1
          %s575 = scalar_lea.sflag [#allocation12], %s574
          %s576 = sand.u32 %s338, 1
          %s577 = smul.addr %s576, 128
          %s578 = scalar_lea.vmem [#allocation13], %s577
          %s580 = ssub.s32 2048, 2048
          %581 = vsyncadd %s575, %s580
          %s582 = smul.addr %s38, 32
          %s583 = smul.addr %s582, 64
          %s584 = scalar_lea.hbm %s11, %s583
          %s585 = sshll.u32 %s578, 4
          %s586 = int_to_ptr.vmem [resolvable:$true] %s585
          %591 = dma.hbm_to_vmem [thread:$0]  %s584, 2048, %s586, %s575, 64, 64, 4
        $region64: #{tpu_custom_call.1} parent=19 // pred_fallthru
          _
        // Predicated region
        $region65: #{tpu_custom_call.1} parent=19 // pred_check
          %p592 = pneg %p374
        $region66: #{tpu_custom_call.1} parent=19 // pred_check_branch
          %594 = sbr.rel (%p592) target = $region68
        $region67: #{tpu_custom_call.1} parent=19 // pred_region
          %p595 = scmp.lt.s32.totalorder %s38, 1
          %s596 = scalar_select %p595, %s38, 1
          %s597 = scalar_lea.vmem %s12, %s596
        $region68: #{tpu_custom_call.1} parent=19 // pred_fallthru
          _
      $region20: #{tpu_custom_call.1} parent=5 // pred_fallthru
        _
      %p598 = scmp.le.s32.totalorder 1, %s30
      %p599 = scmp.lt.s32.totalorder %s30, 3
      %p600 = pnand %p598, %p599
      %p601 = pneg %p600
      // Predicated region
      $region69: #{tpu_custom_call.1} parent=5 // pred_check
        _
      $region70: #{tpu_custom_call.1} parent=5 // pred_check_branch
        %603 = sbr.rel (%p600) target = $region72
      $region71: #{tpu_custom_call.1} parent=5 // pred_region
        %s604 = ssub.s32 %s30, 1
        // Predicated region
        $region73: #{tpu_custom_call.1} parent=71 // pred_check
          %p605 = pneg %p68
        $region74: #{tpu_custom_call.1} parent=71 // pred_check_branch
          %607 = sbr.rel (%p605) target = $region76
        $region75: #{tpu_custom_call.1} parent=71 // pred_region
          %608 = dma.done [#allocation3], 4096
        $region76: #{tpu_custom_call.1} parent=71 // pred_fallthru
          _
        %s609 = sand.u32 %s35, 1
        %s610 = scalar_lea.sflag [#allocation6], %s609
        %s611 = sand.u32 %s81, 1
        %s612 = scalar_lea.vmem [#allocation5], %s611
        // Predicated region
        $region77: #{tpu_custom_call.1} parent=71 // pred_check
          %p613 = pneg %p94
        $region78: #{tpu_custom_call.1} parent=71 // pred_check_branch
          %615 = sbr.rel (%p613) target = $region80
        $region79: #{tpu_custom_call.1} parent=71 // pred_region
          %616 = dma.done %s610, 16
        $region80: #{tpu_custom_call.1} parent=71 // pred_fallthru
          _
        %s617 = sand.u32 %s35, 1
        %s618 = scalar_lea.sflag [#allocation6], %s617
        %s619 = sand.u32 %s107, 1
        %s620 = scalar_lea.vmem [#allocation7], %s619
        // Predicated region
        $region81: #{tpu_custom_call.1} parent=71 // pred_check
          %p621 = pneg %p120
        $region82: #{tpu_custom_call.1} parent=71 // pred_check_branch
          %623 = sbr.rel (%p621) target = $region84
        $region83: #{tpu_custom_call.1} parent=71 // pred_region
          %624 = dma.done %s618, 16
        $region84: #{tpu_custom_call.1} parent=71 // pred_fallthru
          _
        %s625 = sand.u32 %s35, 1
        %s626 = scalar_lea.sflag [#allocation9], %s625
        %s627 = sand.u32 %s133, 1
        %s628 = smul.addr %s627, 192
        %s629 = scalar_lea.vmem [#allocation8], %s628
        // Predicated region
        $region85: #{tpu_custom_call.1} parent=71 // pred_check
          %p630 = pneg %p146
        $region86: #{tpu_custom_call.1} parent=71 // pred_check_branch
          %632 = sbr.rel (%p630) target = $region88
        $region87: #{tpu_custom_call.1} parent=71 // pred_region
          %633 = dma.done %s626, 3072
        $region88: #{tpu_custom_call.1} parent=71 // pred_fallthru
          _
        %s634 = sand.u32 %s35, 1
        %s635 = scalar_lea.sflag [#allocation9], %s634
        %s636 = sand.u32 %s185, 1
        %s637 = smul.addr %s636, 64
        %s638 = scalar_lea.vmem [#allocation10], %s637
        // Predicated region
        $region89: #{tpu_custom_call.1} parent=71 // pred_check
          %p639 = pneg %p198
        $region90: #{tpu_custom_call.1} parent=71 // pred_check_branch
          %641 = sbr.rel (%p639) target = $region92
        $region91: #{tpu_custom_call.1} parent=71 // pred_region
          %642 = dma.done %s635, 1024
        $region92: #{tpu_custom_call.1} parent=71 // pred_fallthru
          _
        %s643 = sand.u32 %s35, 1
        %s644 = scalar_lea.sflag [#allocation12], %s643
        %s645 = sand.u32 %s289, 1
        %s646 = smul.addr %s645, 128
        %s647 = scalar_lea.vmem [#allocation11], %s646
        // Predicated region
        $region93: #{tpu_custom_call.1} parent=71 // pred_check
          %p648 = pneg %p302
        $region94: #{tpu_custom_call.1} parent=71 // pred_check_branch
          %650 = sbr.rel (%p648) target = $region96
        $region95: #{tpu_custom_call.1} parent=71 // pred_region
          %651 = dma.done %s644, 2048
        $region96: #{tpu_custom_call.1} parent=71 // pred_fallthru
          _
        %s652 = sand.u32 %s35, 1
        %s653 = scalar_lea.sflag [#allocation12], %s652
        %s654 = sand.u32 %s341, 1
        %s655 = smul.addr %s654, 128
        %s656 = scalar_lea.vmem [#allocation13], %s655
        // Predicated region
        $region97: #{tpu_custom_call.1} parent=71 // pred_check
          %p657 = pneg %p354
        $region98: #{tpu_custom_call.1} parent=71 // pred_check_branch
          %659 = sbr.rel (%p657) target = $region100
        $region99: #{tpu_custom_call.1} parent=71 // pred_region
          %660 = dma.done %s653, 2048
        $region100: #{tpu_custom_call.1} parent=71 // pred_fallthru
          _
        %p661 = pneg %p68
        %p662 = pneg %p65
        %s663 = sand.u32 %s35, 1
        %s664 = scalar_lea.sflag [#allocation6], %s663
        %s665 = sand.u32 %s81, 1
        %s666 = scalar_lea.vmem [#allocation5], %s665
        %p667 = pneg %p94
        %p668 = pneg %p91
        %s669 = sand.u32 %s35, 1
        %s670 = scalar_lea.sflag [#allocation6], %s669
        %s671 = sand.u32 %s107, 1
        %s672 = scalar_lea.vmem [#allocation7], %s671
        %p673 = pneg %p120
        %p674 = pneg %p117
        %s675 = sand.u32 %s35, 1
        %s676 = scalar_lea.sflag [#allocation9], %s675
        %s677 = sand.u32 %s133, 1
        %s678 = smul.addr %s677, 192
        %s679 = scalar_lea.vmem [#allocation8], %s678
        %p680 = pneg %p146
        %p681 = pneg %p143
        %p682 = scmp.lt.s32.totalorder %s40, 1
        %s683 = scalar_select %p682, %s40, 1
        %s684 = smul.addr %s683, 3
        %s685 = scalar_lea.vmem %s4, %s684
        %p686 = pneg %p172
        %p687 = pneg %p169
        %s688 = sand.u32 %s35, 1
        %s689 = scalar_lea.sflag [#allocation9], %s688
        %s690 = sand.u32 %s185, 1
        %s691 = smul.addr %s690, 64
        %s692 = scalar_lea.vmem [#allocation10], %s691
        %p693 = pneg %p198
        %p694 = pneg %p195
        %p695 = scmp.lt.s32.totalorder %s40, 1
        %s696 = scalar_select %p695, %s40, 1
        %s697 = scalar_lea.vmem %s6, %s696
        %p698 = pneg %p224
        %p699 = pneg %p221
        %p700 = scmp.lt.s32.totalorder %s40, 1
        %s701 = scalar_select %p700, %s40, 1
        %s702 = scalar_lea.vmem %s7, %s701
        %p703 = pneg %p250
        %p704 = pneg %p247
        %p705 = scmp.lt.s32.totalorder %s40, 1
        %s706 = scalar_select %p705, %s40, 1
        %s707 = scalar_lea.vmem %s8, %s706
        %p708 = pneg %p276
        %p709 = pneg %p273
        %s710 = sand.u32 %s35, 1
        %s711 = scalar_lea.sflag [#allocation12], %s710
        %s712 = sand.u32 %s289, 1
        %s713 = smul.addr %s712, 128
        %s714 = scalar_lea.vmem [#allocation11], %s713
        %p715 = pneg %p302
        %p716 = pneg %p299
        %p717 = scmp.lt.s32.totalorder %s40, 1
        %s718 = scalar_select %p717, %s40, 1
        %s719 = smul.addr %s718, 2
        %s720 = scalar_lea.vmem %s10, %s719
        %p721 = pneg %p328
        %p722 = pneg %p325
        %s723 = sand.u32 %s35, 1
        %s724 = scalar_lea.sflag [#allocation12], %s723
        %s725 = sand.u32 %s341, 1
        %s726 = smul.addr %s725, 128
        %s727 = scalar_lea.vmem [#allocation13], %s726
        %p728 = pneg %p354
        %p729 = pneg %p351
        %p730 = scmp.lt.s32.totalorder %s40, 1
        %s731 = scalar_select %p730, %s40, 1
        %s732 = scalar_lea.vmem %s12, %s731
        %p733 = pneg %p380
        %p734 = pneg %p377
        %p735 = pneg %p406
        %p736 = pneg %p403
        %s737 = smul.u32 8, %s39
        %p738 = scmp.lt.s32.totalorder %s40, 1
        %s739 = scalar_select %p738, %s40, 1
        %s740 = smul.addr %s739, 3
        %s741 = scalar_lea.vmem %s4, %s740
        %p742 = scmp.lt.s32.totalorder %s40, 1
        %s743 = scalar_select %p742, %s40, 1
        %s744 = scalar_lea.vmem %s6, %s743
        %p745 = scmp.lt.s32.totalorder %s40, 1
        %s746 = scalar_select %p745, %s40, 1
        %s747 = scalar_lea.vmem %s7, %s746
        %p748 = scmp.lt.s32.totalorder %s40, 1
        %s749 = scalar_select %p748, %s40, 1
        %s750 = scalar_lea.vmem %s8, %s749
        %p751 = scmp.lt.s32.totalorder %s40, 1
        %s752 = scalar_select %p751, %s40, 1
        %s753 = smul.addr %s752, 2
        %s754 = scalar_lea.vmem %s10, %s753
        %p755 = scmp.lt.s32.totalorder %s40, 1
        %s756 = scalar_select %p755, %s40, 1
        %s757 = scalar_lea.vmem %s12, %s756
        %s758 = smul.u32 8, %s39
        %p760 = scmp.eq.s32.totalorder %s40, 0
        // Predicated region
        $region101: #{tpu_custom_call.1} parent=71 // pred_check
          %p761 = pneg %p760
        $region102: #{tpu_custom_call.1} parent=71 // pred_check_branch
          %763 = sbr.rel (%p761) target = $region104
        $region103: #{tpu_custom_call.1} parent=71 // pred_region
          %v764 = vld [vmem:[#allocation2] sm:$0xff]
          %v765 = vld [vmem:[#allocation2 + $0x8] sm:$0xff]
          %v766 = vld [vmem:[#allocation2 + $0x10] sm:$0xff]
          %v767 = vld [vmem:[#allocation2 + $0x18] sm:$0xff]
          %v768 = vld [vmem:[#allocation2 + $0x20] sm:$0xff]
          %v769 = vld [vmem:[#allocation2 + $0x28] sm:$0xff]
          %v770 = vld [vmem:[#allocation2 + $0x30] sm:$0xff]
          %v771 = vld [vmem:[#allocation2 + $0x38] sm:$0xff]
          %v772 = vld [vmem:[#allocation2 + $0x40] sm:$0xff]
          %v773 = vld [vmem:[#allocation2 + $0x48] sm:$0xff]
          %v774 = vld [vmem:[#allocation2 + $0x50] sm:$0xff]
          %v775 = vld [vmem:[#allocation2 + $0x58] sm:$0xff]
          %v776 = vld [vmem:[#allocation2 + $0x60] sm:$0xff]
          %v777 = vld [vmem:[#allocation2 + $0x68] sm:$0xff]
          %v778 = vld [vmem:[#allocation2 + $0x70] sm:$0xff]
          %v779 = vld [vmem:[#allocation2 + $0x78] sm:$0xff]
          %v780 = vld [vmem:[#allocation2 + $0x80] sm:$0xff]
          %v781 = vld [vmem:[#allocation2 + $0x88] sm:$0xff]
          %v782 = vld [vmem:[#allocation2 + $0x90] sm:$0xff]
          %v783 = vld [vmem:[#allocation2 + $0x98] sm:$0xff]
          %v784 = vld [vmem:[#allocation2 + $0xa0] sm:$0xff]
          %v785 = vld [vmem:[#allocation2 + $0xa8] sm:$0xff]
          %v786 = vld [vmem:[#allocation2 + $0xb0] sm:$0xff]
          %v787 = vld [vmem:[#allocation2 + $0xb8] sm:$0xff]
          %v788 = vld [vmem:[#allocation2 + $0xc0] sm:$0xff]
          %v789 = vld [vmem:[#allocation2 + $0xc8] sm:$0xff]
          %v790 = vld [vmem:[#allocation2 + $0xd0] sm:$0xff]
          %v791 = vld [vmem:[#allocation2 + $0xd8] sm:$0xff]
          %v792 = vld [vmem:[#allocation2 + $0xe0] sm:$0xff]
          %v793 = vld [vmem:[#allocation2 + $0xe8] sm:$0xff]
          %v794 = vld [vmem:[#allocation2 + $0xf0] sm:$0xff]
          %v795 = vld [vmem:[#allocation2 + $0xf8] sm:$0xff]
          %796 = vst [vmem:[#allocation14] sm:$0xff] %v764
          %797 = vst [vmem:[#allocation14 + $0x8] sm:$0xff] %v765
          %798 = vst [vmem:[#allocation14 + $0x10] sm:$0xff] %v766
          %799 = vst [vmem:[#allocation14 + $0x18] sm:$0xff] %v767
          %800 = vst [vmem:[#allocation14 + $0x20] sm:$0xff] %v768
          %801 = vst [vmem:[#allocation14 + $0x28] sm:$0xff] %v769
          %802 = vst [vmem:[#allocation14 + $0x30] sm:$0xff] %v770
          %803 = vst [vmem:[#allocation14 + $0x38] sm:$0xff] %v771
          %804 = vst [vmem:[#allocation14 + $0x40] sm:$0xff] %v772
          %805 = vst [vmem:[#allocation14 + $0x48] sm:$0xff] %v773
          %806 = vst [vmem:[#allocation14 + $0x50] sm:$0xff] %v774
          %807 = vst [vmem:[#allocation14 + $0x58] sm:$0xff] %v775
          %808 = vst [vmem:[#allocation14 + $0x60] sm:$0xff] %v776
          %809 = vst [vmem:[#allocation14 + $0x68] sm:$0xff] %v777
          %810 = vst [vmem:[#allocation14 + $0x70] sm:$0xff] %v778
          %811 = vst [vmem:[#allocation14 + $0x78] sm:$0xff] %v779
          %812 = vst [vmem:[#allocation14 + $0x80] sm:$0xff] %v780
          %813 = vst [vmem:[#allocation14 + $0x88] sm:$0xff] %v781
          %814 = vst [vmem:[#allocation14 + $0x90] sm:$0xff] %v782
          %815 = vst [vmem:[#allocation14 + $0x98] sm:$0xff] %v783
          %816 = vst [vmem:[#allocation14 + $0xa0] sm:$0xff] %v784
          %817 = vst [vmem:[#allocation14 + $0xa8] sm:$0xff] %v785
          %818 = vst [vmem:[#allocation14 + $0xb0] sm:$0xff] %v786
          %819 = vst [vmem:[#allocation14 + $0xb8] sm:$0xff] %v787
          %820 = vst [vmem:[#allocation14 + $0xc0] sm:$0xff] %v788
          %821 = vst [vmem:[#allocation14 + $0xc8] sm:$0xff] %v789
          %822 = vst [vmem:[#allocation14 + $0xd0] sm:$0xff] %v790
          %823 = vst [vmem:[#allocation14 + $0xd8] sm:$0xff] %v791
          %824 = vst [vmem:[#allocation14 + $0xe0] sm:$0xff] %v792
          %825 = vst [vmem:[#allocation14 + $0xe8] sm:$0xff] %v793
          %826 = vst [vmem:[#allocation14 + $0xf0] sm:$0xff] %v794
          %827 = vst [vmem:[#allocation14 + $0xf8] sm:$0xff] %v795
        $region104: #{tpu_custom_call.1} parent=71 // pred_fallthru
          _
        %v828 = vld [vmem:[#allocation14] sm:$0xff]
        %v829 = vld [vmem:[#allocation14 + $0x8] sm:$0xff]
        %v830 = vld [vmem:[#allocation14 + $0x10] sm:$0xff]
        %v831 = vld [vmem:[#allocation14 + $0x18] sm:$0xff]
        %v832 = vld [vmem:[#allocation14 + $0x20] sm:$0xff]
        %v833 = vld [vmem:[#allocation14 + $0x28] sm:$0xff]
        %v834 = vld [vmem:[#allocation14 + $0x30] sm:$0xff]
        %v835 = vld [vmem:[#allocation14 + $0x38] sm:$0xff]
        %v836 = vld [vmem:[#allocation14 + $0x40] sm:$0xff]
        %v837 = vld [vmem:[#allocation14 + $0x48] sm:$0xff]
        %v838 = vld [vmem:[#allocation14 + $0x50] sm:$0xff]
        %v839 = vld [vmem:[#allocation14 + $0x58] sm:$0xff]
        %v840 = vld [vmem:[#allocation14 + $0x60] sm:$0xff]
        %v841 = vld [vmem:[#allocation14 + $0x68] sm:$0xff]
        %v842 = vld [vmem:[#allocation14 + $0x70] sm:$0xff]
        %v843 = vld [vmem:[#allocation14 + $0x78] sm:$0xff]
        %v844 = vld [vmem:[#allocation14 + $0x80] sm:$0xff]
        %v845 = vld [vmem:[#allocation14 + $0x88] sm:$0xff]
        %v846 = vld [vmem:[#allocation14 + $0x90] sm:$0xff]
        %v847 = vld [vmem:[#allocation14 + $0x98] sm:$0xff]
        %v848 = vld [vmem:[#allocation14 + $0xa0] sm:$0xff]
        %v849 = vld [vmem:[#allocation14 + $0xa8] sm:$0xff]
        %v850 = vld [vmem:[#allocation14 + $0xb0] sm:$0xff]
        %v851 = vld [vmem:[#allocation14 + $0xb8] sm:$0xff]
        %v852 = vld [vmem:[#allocation14 + $0xc0] sm:$0xff]
        %v853 = vld [vmem:[#allocation14 + $0xc8] sm:$0xff]
        %v854 = vld [vmem:[#allocation14 + $0xd0] sm:$0xff]
        %v855 = vld [vmem:[#allocation14 + $0xd8] sm:$0xff]
        %v856 = vld [vmem:[#allocation14 + $0xe0] sm:$0xff]
        %v857 = vld [vmem:[#allocation14 + $0xe8] sm:$0xff]
        %v858 = vld [vmem:[#allocation14 + $0xf0] sm:$0xff]
        %v859 = vld [vmem:[#allocation14 + $0xf8] sm:$0xff]
        %v860 = vld [vmem:[%s612] sm:$0x1]
        %v861 = vld [vmem:[%s620] sm:$0x1]
        %v862 = vld [vmem:[%s747] sm:$0x1]
        %v863 = vld [vmem:[%s750] sm:$0x1]
        %v864 = vld [vmem:[%s629] sm:$0xff]
        %v865 = vld [vmem:[%s629 + $0x8] sm:$0xf]
        %v866 = vld [vmem:[%s629 + $0xc] sm:$0xff]
        %v867 = vld [vmem:[%s629 + $0x14] sm:$0xf]
        %v868 = vld [vmem:[%s629 + $0x18] sm:$0xff]
        %v869 = vld [vmem:[%s629 + $0x20] sm:$0xf]
        %v870 = vld [vmem:[%s629 + $0x24] sm:$0xff]
        %v871 = vld [vmem:[%s629 + $0x2c] sm:$0xf]
        %v872 = vld [vmem:[%s629 + $0x30] sm:$0xff]
        %v873 = vld [vmem:[%s629 + $0x38] sm:$0xf]
        %v874 = vld [vmem:[%s629 + $0x3c] sm:$0xff]
        %v875 = vld [vmem:[%s629 + $0x44] sm:$0xf]
        %v876 = vld [vmem:[%s629 + $0x48] sm:$0xff]
        %v877 = vld [vmem:[%s629 + $0x50] sm:$0xf]
        %v878 = vld [vmem:[%s629 + $0x54] sm:$0xff]
        %v879 = vld [vmem:[%s629 + $0x5c] sm:$0xf]
        %v880 = vld [vmem:[%s629 + $0x60] sm:$0xff]
        %v881 = vld [vmem:[%s629 + $0x68] sm:$0xf]
        %v882 = vld [vmem:[%s629 + $0x6c] sm:$0xff]
        %v883 = vld [vmem:[%s629 + $0x74] sm:$0xf]
        %v884 = vld [vmem:[%s629 + $0x78] sm:$0xff]
        %v885 = vld [vmem:[%s629 + $0x80] sm:$0xf]
        %v886 = vld [vmem:[%s629 + $0x84] sm:$0xff]
        %v887 = vld [vmem:[%s629 + $0x8c] sm:$0xf]
        %v888 = vld [vmem:[%s629 + $0x90] sm:$0xff]
        %v889 = vld [vmem:[%s629 + $0x98] sm:$0xf]
        %v890 = vld [vmem:[%s629 + $0x9c] sm:$0xff]
        %v891 = vld [vmem:[%s629 + $0xa4] sm:$0xf]
        %v892 = vld [vmem:[%s629 + $0xa8] sm:$0xff]
        %v893 = vld [vmem:[%s629 + $0xb0] sm:$0xf]
        %v894 = vld [vmem:[%s629 + $0xb4] sm:$0xff]
        %v895 = vld [vmem:[%s629 + $0xbc] sm:$0xf]
        %v896 = vld [vmem:[%s741] sm:$0x7]
        %v897 = vld [vmem:[%s638] sm:$0xf]
        %v898 = vld [vmem:[%s638 + $0x4] sm:$0xf]
        %v899 = vld [vmem:[%s638 + $0x8] sm:$0xf]
        %v900 = vld [vmem:[%s638 + $0xc] sm:$0xf]
        %v901 = vld [vmem:[%s638 + $0x10] sm:$0xf]
        %v902 = vld [vmem:[%s638 + $0x14] sm:$0xf]
        %v903 = vld [vmem:[%s638 + $0x18] sm:$0xf]
        %v904 = vld [vmem:[%s638 + $0x1c] sm:$0xf]
        %v905 = vld [vmem:[%s638 + $0x20] sm:$0xf]
        %v906 = vld [vmem:[%s638 + $0x24] sm:$0xf]
        %v907 = vld [vmem:[%s638 + $0x28] sm:$0xf]
        %v908 = vld [vmem:[%s638 + $0x2c] sm:$0xf]
        %v909 = vld [vmem:[%s638 + $0x30] sm:$0xf]
        %v910 = vld [vmem:[%s638 + $0x34] sm:$0xf]
        %v911 = vld [vmem:[%s638 + $0x38] sm:$0xf]
        %v912 = vld [vmem:[%s638 + $0x3c] sm:$0xf]
        %v913 = vld [vmem:[%s744] sm:$0x1]
        %v914 = vld [vmem:[%s647] sm:$0xff]
        %v915 = vld [vmem:[%s647 + $0x8] sm:$0xff]
        %v916 = vld [vmem:[%s647 + $0x10] sm:$0xff]
        %v917 = vld [vmem:[%s647 + $0x18] sm:$0xff]
        %v918 = vld [vmem:[%s647 + $0x20] sm:$0xff]
        %v919 = vld [vmem:[%s647 + $0x28] sm:$0xff]
        %v920 = vld [vmem:[%s647 + $0x30] sm:$0xff]
        %v921 = vld [vmem:[%s647 + $0x38] sm:$0xff]
        %v922 = vld [vmem:[%s647 + $0x40] sm:$0xff]
        %v923 = vld [vmem:[%s647 + $0x48] sm:$0xff]
        %v924 = vld [vmem:[%s647 + $0x50] sm:$0xff]
        %v925 = vld [vmem:[%s647 + $0x58] sm:$0xff]
        %v926 = vld [vmem:[%s647 + $0x60] sm:$0xff]
        %v927 = vld [vmem:[%s647 + $0x68] sm:$0xff]
        %v928 = vld [vmem:[%s647 + $0x70] sm:$0xff]
        %v929 = vld [vmem:[%s647 + $0x78] sm:$0xff]
        %v930 = vld [vmem:[%s754] sm:$0x3]
        %v931 = vld [vmem:[%s656] sm:$0xf]
        %v932 = vld [vmem:[%s656 + $0x4] sm:$0xf]
        %v933 = vld [vmem:[%s656 + $0x8] sm:$0xf]
        %v934 = vld [vmem:[%s656 + $0xc] sm:$0xf]
        %v935 = vld [vmem:[%s656 + $0x10] sm:$0xf]
        %v936 = vld [vmem:[%s656 + $0x14] sm:$0xf]
        %v937 = vld [vmem:[%s656 + $0x18] sm:$0xf]
        %v938 = vld [vmem:[%s656 + $0x1c] sm:$0xf]
        %v939 = vld [vmem:[%s656 + $0x20] sm:$0xf]
        %v940 = vld [vmem:[%s656 + $0x24] sm:$0xf]
        %v941 = vld [vmem:[%s656 + $0x28] sm:$0xf]
        %v942 = vld [vmem:[%s656 + $0x2c] sm:$0xf]
        %v943 = vld [vmem:[%s656 + $0x30] sm:$0xf]
        %v944 = vld [vmem:[%s656 + $0x34] sm:$0xf]
        %v945 = vld [vmem:[%s656 + $0x38] sm:$0xf]
        %v946 = vld [vmem:[%s656 + $0x3c] sm:$0xf]
        %v947 = vld [vmem:[%s656 + $0x40] sm:$0xf]
        %v948 = vld [vmem:[%s656 + $0x44] sm:$0xf]
        %v949 = vld [vmem:[%s656 + $0x48] sm:$0xf]
        %v950 = vld [vmem:[%s656 + $0x4c] sm:$0xf]
        %v951 = vld [vmem:[%s656 + $0x50] sm:$0xf]
        %v952 = vld [vmem:[%s656 + $0x54] sm:$0xf]
        %v953 = vld [vmem:[%s656 + $0x58] sm:$0xf]
        %v954 = vld [vmem:[%s656 + $0x5c] sm:$0xf]
        %v955 = vld [vmem:[%s656 + $0x60] sm:$0xf]
        %v956 = vld [vmem:[%s656 + $0x64] sm:$0xf]
        %v957 = vld [vmem:[%s656 + $0x68] sm:$0xf]
        %v958 = vld [vmem:[%s656 + $0x6c] sm:$0xf]
        %v959 = vld [vmem:[%s656 + $0x70] sm:$0xf]
        %v960 = vld [vmem:[%s656 + $0x74] sm:$0xf]
        %v961 = vld [vmem:[%s656 + $0x78] sm:$0xf]
        %v962 = vld [vmem:[%s656 + $0x7c] sm:$0xf]
        %v963 = vld [vmem:[%s757] sm:$0x1]
        %964 = vadd.xlane.f32.xlu0 %v828
        %v965 = vpop.xlane.xlu0 %964
        %966 = vadd.xlane.f32.xlu0 %v829
        %v967 = vpop.xlane.xlu0 %966
        %968 = vadd.xlane.f32.xlu0 %v830
        %v969 = vpop.xlane.xlu0 %968
        %970 = vadd.xlane.f32.xlu0 %v831
        %v971 = vpop.xlane.xlu0 %970
        %972 = vadd.xlane.f32.xlu0 %v832
        %v973 = vpop.xlane.xlu0 %972
        %974 = vadd.xlane.f32.xlu0 %v833
        %v975 = vpop.xlane.xlu0 %974
        %976 = vadd.xlane.f32.xlu0 %v834
        %v977 = vpop.xlane.xlu0 %976
        %978 = vadd.xlane.f32.xlu0 %v835
        %v979 = vpop.xlane.xlu0 %978
        %980 = vadd.xlane.f32.xlu0 %v836
        %v981 = vpop.xlane.xlu0 %980
        %982 = vadd.xlane.f32.xlu0 %v837
        %v983 = vpop.xlane.xlu0 %982
        %984 = vadd.xlane.f32.xlu0 %v838
        %v985 = vpop.xlane.xlu0 %984
        %986 = vadd.xlane.f32.xlu0 %v839
        %v987 = vpop.xlane.xlu0 %986
        %988 = vadd.xlane.f32.xlu0 %v840
        %v989 = vpop.xlane.xlu0 %988
        %990 = vadd.xlane.f32.xlu0 %v841
        %v991 = vpop.xlane.xlu0 %990
        %992 = vadd.xlane.f32.xlu0 %v842
        %v993 = vpop.xlane.xlu0 %992
        %994 = vadd.xlane.f32.xlu0 %v843
        %v995 = vpop.xlane.xlu0 %994
        %996 = vadd.xlane.f32.xlu0 %v844
        %v997 = vpop.xlane.xlu0 %996
        %998 = vadd.xlane.f32.xlu0 %v845
        %v999 = vpop.xlane.xlu0 %998
        %1000 = vadd.xlane.f32.xlu0 %v846
        %v1001 = vpop.xlane.xlu0 %1000
        %1002 = vadd.xlane.f32.xlu0 %v847
        %v1003 = vpop.xlane.xlu0 %1002
        %1004 = vadd.xlane.f32.xlu0 %v848
        %v1005 = vpop.xlane.xlu0 %1004
        %1006 = vadd.xlane.f32.xlu0 %v849
        %v1007 = vpop.xlane.xlu0 %1006
        %1008 = vadd.xlane.f32.xlu0 %v850
        %v1009 = vpop.xlane.xlu0 %1008
        %1010 = vadd.xlane.f32.xlu0 %v851
        %v1011 = vpop.xlane.xlu0 %1010
        %1012 = vadd.xlane.f32.xlu0 %v852
        %v1013 = vpop.xlane.xlu0 %1012
        %1014 = vadd.xlane.f32.xlu0 %v853
        %v1015 = vpop.xlane.xlu0 %1014
        %1016 = vadd.xlane.f32.xlu0 %v854
        %v1017 = vpop.xlane.xlu0 %1016
        %1018 = vadd.xlane.f32.xlu0 %v855
        %v1019 = vpop.xlane.xlu0 %1018
        %1020 = vadd.xlane.f32.xlu0 %v856
        %v1021 = vpop.xlane.xlu0 %1020
        %1022 = vadd.xlane.f32.xlu0 %v857
        %v1023 = vpop.xlane.xlu0 %1022
        %1024 = vadd.xlane.f32.xlu0 %v858
        %v1025 = vpop.xlane.xlu0 %1024
        %1026 = vadd.xlane.f32.xlu0 %v859
        %v1027 = vpop.xlane.xlu0 %1026
        %v1028 = vrcp.pop 128.0
        %v1029 = vmul.f32 %v965, %v1028
        %v1030 = vmul.f32 %v967, %v1028
        %v1031 = vmul.f32 %v969, %v1028
        %v1032 = vmul.f32 %v971, %v1028
        %v1033 = vmul.f32 %v973, %v1028
        %v1034 = vmul.f32 %v975, %v1028
        %v1035 = vmul.f32 %v977, %v1028
        %v1036 = vmul.f32 %v979, %v1028
        %v1037 = vmul.f32 %v981, %v1028
        %v1038 = vmul.f32 %v983, %v1028
        %v1039 = vmul.f32 %v985, %v1028
        %v1040 = vmul.f32 %v987, %v1028
        %v1041 = vmul.f32 %v989, %v1028
        %v1042 = vmul.f32 %v991, %v1028
        %v1043 = vmul.f32 %v993, %v1028
        %v1044 = vmul.f32 %v995, %v1028
        %v1045 = vmul.f32 %v997, %v1028
        %v1046 = vmul.f32 %v999, %v1028
        %v1047 = vmul.f32 %v1001, %v1028
        %v1048 = vmul.f32 %v1003, %v1028
        %v1049 = vmul.f32 %v1005, %v1028
        %v1050 = vmul.f32 %v1007, %v1028
        %v1051 = vmul.f32 %v1009, %v1028
        %v1052 = vmul.f32 %v1011, %v1028
        %v1053 = vmul.f32 %v1013, %v1028
        %v1054 = vmul.f32 %v1015, %v1028
        %v1055 = vmul.f32 %v1017, %v1028
        %v1056 = vmul.f32 %v1019, %v1028
        %v1057 = vmul.f32 %v1021, %v1028
        %v1058 = vmul.f32 %v1023, %v1028
        %v1059 = vmul.f32 %v1025, %v1028
        %v1060 = vmul.f32 %v1027, %v1028
        %v1061 = vsub.f32 %v828, %v1029
        %v1062 = vsub.f32 %v829, %v1030
        %v1063 = vsub.f32 %v830, %v1031
        %v1064 = vsub.f32 %v831, %v1032
        %v1065 = vsub.f32 %v832, %v1033
        %v1066 = vsub.f32 %v833, %v1034
        %v1067 = vsub.f32 %v834, %v1035
        %v1068 = vsub.f32 %v835, %v1036
        %v1069 = vsub.f32 %v836, %v1037
        %v1070 = vsub.f32 %v837, %v1038
        %v1071 = vsub.f32 %v838, %v1039
        %v1072 = vsub.f32 %v839, %v1040
        %v1073 = vsub.f32 %v840, %v1041
        %v1074 = vsub.f32 %v841, %v1042
        %v1075 = vsub.f32 %v842, %v1043
        %v1076 = vsub.f32 %v843, %v1044
        %v1077 = vsub.f32 %v844, %v1045
        %v1078 = vsub.f32 %v845, %v1046
        %v1079 = vsub.f32 %v846, %v1047
        %v1080 = vsub.f32 %v847, %v1048
        %v1081 = vsub.f32 %v848, %v1049
        %v1082 = vsub.f32 %v849, %v1050
        %v1083 = vsub.f32 %v850, %v1051
        %v1084 = vsub.f32 %v851, %v1052
        %v1085 = vsub.f32 %v852, %v1053
        %v1086 = vsub.f32 %v853, %v1054
        %v1087 = vsub.f32 %v854, %v1055
        %v1088 = vsub.f32 %v855, %v1056
        %v1089 = vsub.f32 %v856, %v1057
        %v1090 = vsub.f32 %v857, %v1058
        %v1091 = vsub.f32 %v858, %v1059
        %v1092 = vsub.f32 %v859, %v1060
        %v1093 = vmul.f32 %v1061, %v1061
        %v1094 = vmul.f32 %v1062, %v1062
        %v1095 = vmul.f32 %v1063, %v1063
        %v1096 = vmul.f32 %v1064, %v1064
        %v1097 = vmul.f32 %v1065, %v1065
        %v1098 = vmul.f32 %v1066, %v1066
        %v1099 = vmul.f32 %v1067, %v1067
        %v1100 = vmul.f32 %v1068, %v1068
        %v1101 = vmul.f32 %v1069, %v1069
        %v1102 = vmul.f32 %v1070, %v1070
        %v1103 = vmul.f32 %v1071, %v1071
        %v1104 = vmul.f32 %v1072, %v1072
        %v1105 = vmul.f32 %v1073, %v1073
        %v1106 = vmul.f32 %v1074, %v1074
        %v1107 = vmul.f32 %v1075, %v1075
        %v1108 = vmul.f32 %v1076, %v1076
        %v1109 = vmul.f32 %v1077, %v1077
        %v1110 = vmul.f32 %v1078, %v1078
        %v1111 = vmul.f32 %v1079, %v1079
        %v1112 = vmul.f32 %v1080, %v1080
        %v1113 = vmul.f32 %v1081, %v1081
        %v1114 = vmul.f32 %v1082, %v1082
        %v1115 = vmul.f32 %v1083, %v1083
        %v1116 = vmul.f32 %v1084, %v1084
        %v1117 = vmul.f32 %v1085, %v1085
        %v1118 = vmul.f32 %v1086, %v1086
        %v1119 = vmul.f32 %v1087, %v1087
        %v1120 = vmul.f32 %v1088, %v1088
        %v1121 = vmul.f32 %v1089, %v1089
        %v1122 = vmul.f32 %v1090, %v1090
        %v1123 = vmul.f32 %v1091, %v1091
        %v1124 = vmul.f32 %v1092, %v1092
        %1125 = vadd.xlane.f32.xlu0 %v1093
        %v1126 = vpop.xlane.xlu0 %1125
        %1127 = vadd.xlane.f32.xlu0 %v1094
        %v1128 = vpop.xlane.xlu0 %1127
        %1129 = vadd.xlane.f32.xlu0 %v1095
        %v1130 = vpop.xlane.xlu0 %1129
        %1131 = vadd.xlane.f32.xlu0 %v1096
        %v1132 = vpop.xlane.xlu0 %1131
        %1133 = vadd.xlane.f32.xlu0 %v1097
        %v1134 = vpop.xlane.xlu0 %1133
        %1135 = vadd.xlane.f32.xlu0 %v1098
        %v1136 = vpop.xlane.xlu0 %1135
        %1137 = vadd.xlane.f32.xlu0 %v1099
        %v1138 = vpop.xlane.xlu0 %1137
        %1139 = vadd.xlane.f32.xlu0 %v1100
        %v1140 = vpop.xlane.xlu0 %1139
        %1141 = vadd.xlane.f32.xlu0 %v1101
        %v1142 = vpop.xlane.xlu0 %1141
        %1143 = vadd.xlane.f32.xlu0 %v1102
        %v1144 = vpop.xlane.xlu0 %1143
        %1145 = vadd.xlane.f32.xlu0 %v1103
        %v1146 = vpop.xlane.xlu0 %1145
        %1147 = vadd.xlane.f32.xlu0 %v1104
        %v1148 = vpop.xlane.xlu0 %1147
        %1149 = vadd.xlane.f32.xlu0 %v1105
        %v1150 = vpop.xlane.xlu0 %1149
        %1151 = vadd.xlane.f32.xlu0 %v1106
        %v1152 = vpop.xlane.xlu0 %1151
        %1153 = vadd.xlane.f32.xlu0 %v1107
        %v1154 = vpop.xlane.xlu0 %1153
        %1155 = vadd.xlane.f32.xlu0 %v1108
        %v1156 = vpop.xlane.xlu0 %1155
        %1157 = vadd.xlane.f32.xlu0 %v1109
        %v1158 = vpop.xlane.xlu0 %1157
        %1159 = vadd.xlane.f32.xlu0 %v1110
        %v1160 = vpop.xlane.xlu0 %1159
        %1161 = vadd.xlane.f32.xlu0 %v1111
        %v1162 = vpop.xlane.xlu0 %1161
        %1163 = vadd.xlane.f32.xlu0 %v1112
        %v1164 = vpop.xlane.xlu0 %1163
        %1165 = vadd.xlane.f32.xlu0 %v1113
        %v1166 = vpop.xlane.xlu0 %1165
        %1167 = vadd.xlane.f32.xlu0 %v1114
        %v1168 = vpop.xlane.xlu0 %1167
        %1169 = vadd.xlane.f32.xlu0 %v1115
        %v1170 = vpop.xlane.xlu0 %1169
        %1171 = vadd.xlane.f32.xlu0 %v1116
        %v1172 = vpop.xlane.xlu0 %1171
        %1173 = vadd.xlane.f32.xlu0 %v1117
        %v1174 = vpop.xlane.xlu0 %1173
        %1175 = vadd.xlane.f32.xlu0 %v1118
        %v1176 = vpop.xlane.xlu0 %1175
        %1177 = vadd.xlane.f32.xlu0 %v1119
        %v1178 = vpop.xlane.xlu0 %1177
        %1179 = vadd.xlane.f32.xlu0 %v1120
        %v1180 = vpop.xlane.xlu0 %1179
        %1181 = vadd.xlane.f32.xlu0 %v1121
        %v1182 = vpop.xlane.xlu0 %1181
        %1183 = vadd.xlane.f32.xlu0 %v1122
        %v1184 = vpop.xlane.xlu0 %1183
        %1185 = vadd.xlane.f32.xlu0 %v1123
        %v1186 = vpop.xlane.xlu0 %1185
        %1187 = vadd.xlane.f32.xlu0 %v1124
        %v1188 = vpop.xlane.xlu0 %1187
        %v1189 = vmul.f32 %v1126, %v1028
        %v1190 = vmul.f32 %v1128, %v1028
        %v1191 = vmul.f32 %v1130, %v1028
        %v1192 = vmul.f32 %v1132, %v1028
        %v1193 = vmul.f32 %v1134, %v1028
        %v1194 = vmul.f32 %v1136, %v1028
        %v1195 = vmul.f32 %v1138, %v1028
        %v1196 = vmul.f32 %v1140, %v1028
        %v1197 = vmul.f32 %v1142, %v1028
        %v1198 = vmul.f32 %v1144, %v1028
        %v1199 = vmul.f32 %v1146, %v1028
        %v1200 = vmul.f32 %v1148, %v1028
        %v1201 = vmul.f32 %v1150, %v1028
        %v1202 = vmul.f32 %v1152, %v1028
        %v1203 = vmul.f32 %v1154, %v1028
        %v1204 = vmul.f32 %v1156, %v1028
        %v1205 = vmul.f32 %v1158, %v1028
        %v1206 = vmul.f32 %v1160, %v1028
        %v1207 = vmul.f32 %v1162, %v1028
        %v1208 = vmul.f32 %v1164, %v1028
        %v1209 = vmul.f32 %v1166, %v1028
        %v1210 = vmul.f32 %v1168, %v1028
        %v1211 = vmul.f32 %v1170, %v1028
        %v1212 = vmul.f32 %v1172, %v1028
        %v1213 = vmul.f32 %v1174, %v1028
        %v1214 = vmul.f32 %v1176, %v1028
        %v1215 = vmul.f32 %v1178, %v1028
        %v1216 = vmul.f32 %v1180, %v1028
        %v1217 = vmul.f32 %v1182, %v1028
        %v1218 = vmul.f32 %v1184, %v1028
        %v1219 = vmul.f32 %v1186, %v1028
        %v1220 = vmul.f32 %v1188, %v1028
        %v1221 = vadd.f32 %v1189, 1e-05
        %v1222 = vadd.f32 %v1190, 1e-05
        %v1223 = vadd.f32 %v1191, 1e-05
        %v1224 = vadd.f32 %v1192, 1e-05
        %v1225 = vadd.f32 %v1193, 1e-05
        %v1226 = vadd.f32 %v1194, 1e-05
        %v1227 = vadd.f32 %v1195, 1e-05
        %v1228 = vadd.f32 %v1196, 1e-05
        %v1229 = vadd.f32 %v1197, 1e-05
        %v1230 = vadd.f32 %v1198, 1e-05
        %v1231 = vadd.f32 %v1199, 1e-05
        %v1232 = vadd.f32 %v1200, 1e-05
        %v1233 = vadd.f32 %v1201, 1e-05
        %v1234 = vadd.f32 %v1202, 1e-05
        %v1235 = vadd.f32 %v1203, 1e-05
        %v1236 = vadd.f32 %v1204, 1e-05
        %v1237 = vadd.f32 %v1205, 1e-05
        %v1238 = vadd.f32 %v1206, 1e-05
        %v1239 = vadd.f32 %v1207, 1e-05
        %v1240 = vadd.f32 %v1208, 1e-05
        %v1241 = vadd.f32 %v1209, 1e-05
        %v1242 = vadd.f32 %v1210, 1e-05
        %v1243 = vadd.f32 %v1211, 1e-05
        %v1244 = vadd.f32 %v1212, 1e-05
        %v1245 = vadd.f32 %v1213, 1e-05
        %v1246 = vadd.f32 %v1214, 1e-05
        %v1247 = vadd.f32 %v1215, 1e-05
        %v1248 = vadd.f32 %v1216, 1e-05
        %v1249 = vadd.f32 %v1217, 1e-05
        %v1250 = vadd.f32 %v1218, 1e-05
        %v1251 = vadd.f32 %v1219, 1e-05
        %v1252 = vadd.f32 %v1220, 1e-05
        %v1253 = vrsqrt.pop %v1221
        %v1254 = vrsqrt.pop %v1222
        %v1255 = vrsqrt.pop %v1223
        %v1256 = vrsqrt.pop %v1224
        %v1257 = vrsqrt.pop %v1225
        %v1258 = vrsqrt.pop %v1226
        %v1259 = vrsqrt.pop %v1227
        %v1260 = vrsqrt.pop %v1228
        %v1261 = vrsqrt.pop %v1229
        %v1262 = vrsqrt.pop %v1230
        %v1263 = vrsqrt.pop %v1231
        %v1264 = vrsqrt.pop %v1232
        %v1265 = vrsqrt.pop %v1233
        %v1266 = vrsqrt.pop %v1234
        %v1267 = vrsqrt.pop %v1235
        %v1268 = vrsqrt.pop %v1236
        %v1269 = vrsqrt.pop %v1237
        %v1270 = vrsqrt.pop %v1238
        %v1271 = vrsqrt.pop %v1239
        %v1272 = vrsqrt.pop %v1240
        %v1273 = vrsqrt.pop %v1241
        %v1274 = vrsqrt.pop %v1242
        %v1275 = vrsqrt.pop %v1243
        %v1276 = vrsqrt.pop %v1244
        %v1277 = vrsqrt.pop %v1245
        %v1278 = vrsqrt.pop %v1246
        %v1279 = vrsqrt.pop %v1247
        %v1280 = vrsqrt.pop %v1248
        %v1281 = vrsqrt.pop %v1249
        %v1282 = vrsqrt.pop %v1250
        %v1283 = vrsqrt.pop %v1251
        %v1284 = vrsqrt.pop %v1252
        %v1285 = vmul.f32 %v1061, %v1253
        %v1286 = vmul.f32 %v1062, %v1254
        %v1287 = vmul.f32 %v1063, %v1255
        %v1288 = vmul.f32 %v1064, %v1256
        %v1289 = vmul.f32 %v1065, %v1257
        %v1290 = vmul.f32 %v1066, %v1258
        %v1291 = vmul.f32 %v1067, %v1259
        %v1292 = vmul.f32 %v1068, %v1260
        %v1293 = vmul.f32 %v1069, %v1261
        %v1294 = vmul.f32 %v1070, %v1262
        %v1295 = vmul.f32 %v1071, %v1263
        %v1296 = vmul.f32 %v1072, %v1264
        %v1297 = vmul.f32 %v1073, %v1265
        %v1298 = vmul.f32 %v1074, %v1266
        %v1299 = vmul.f32 %v1075, %v1267
        %v1300 = vmul.f32 %v1076, %v1268
        %v1301 = vmul.f32 %v1077, %v1269
        %v1302 = vmul.f32 %v1078, %v1270
        %v1303 = vmul.f32 %v1079, %v1271
        %v1304 = vmul.f32 %v1080, %v1272
        %v1305 = vmul.f32 %v1081, %v1273
        %v1306 = vmul.f32 %v1082, %v1274
        %v1307 = vmul.f32 %v1083, %v1275
        %v1308 = vmul.f32 %v1084, %v1276
        %v1309 = vmul.f32 %v1085, %v1277
        %v1310 = vmul.f32 %v1086, %v1278
        %v1311 = vmul.f32 %v1087, %v1279
        %v1312 = vmul.f32 %v1088, %v1280
        %v1313 = vmul.f32 %v1089, %v1281
        %v1314 = vmul.f32 %v1090, %v1282
        %v1315 = vmul.f32 %v1091, %v1283
        %v1316 = vmul.f32 %v1092, %v1284
        %v1318 = vlaneseq
        %v1319 = vshrl.u32 %v1318, 7
        %v1320 = vsub.s32 0, %v1319
        %v1321 = vrot.slane %v860, %v1320
        %v1323 = vmul.f32 %v1285, %v1321
        %v1324 = vmul.f32 %v1286, %v1321
        %v1325 = vmul.f32 %v1287, %v1321
        %v1326 = vmul.f32 %v1288, %v1321
        %v1327 = vmul.f32 %v1289, %v1321
        %v1328 = vmul.f32 %v1290, %v1321
        %v1329 = vmul.f32 %v1291, %v1321
        %v1330 = vmul.f32 %v1292, %v1321
        %v1331 = vmul.f32 %v1293, %v1321
        %v1332 = vmul.f32 %v1294, %v1321
        %v1333 = vmul.f32 %v1295, %v1321
        %v1334 = vmul.f32 %v1296, %v1321
        %v1335 = vmul.f32 %v1297, %v1321
        %v1336 = vmul.f32 %v1298, %v1321
        %v1337 = vmul.f32 %v1299, %v1321
        %v1338 = vmul.f32 %v1300, %v1321
        %v1339 = vmul.f32 %v1301, %v1321
        %v1340 = vmul.f32 %v1302, %v1321
        %v1341 = vmul.f32 %v1303, %v1321
        %v1342 = vmul.f32 %v1304, %v1321
        %v1343 = vmul.f32 %v1305, %v1321
        %v1344 = vmul.f32 %v1306, %v1321
        %v1345 = vmul.f32 %v1307, %v1321
        %v1346 = vmul.f32 %v1308, %v1321
        %v1347 = vmul.f32 %v1309, %v1321
        %v1348 = vmul.f32 %v1310, %v1321
        %v1349 = vmul.f32 %v1311, %v1321
        %v1350 = vmul.f32 %v1312, %v1321
        %v1351 = vmul.f32 %v1313, %v1321
        %v1352 = vmul.f32 %v1314, %v1321
        %v1353 = vmul.f32 %v1315, %v1321
        %v1354 = vmul.f32 %v1316, %v1321
        %v1356 = vlaneseq
        %v1357 = vshrl.u32 %v1356, 7
        %v1358 = vsub.s32 0, %v1357
        %v1359 = vrot.slane %v861, %v1358
        %v1361 = vadd.f32 %v1323, %v1359
        %v1362 = vadd.f32 %v1324, %v1359
        %v1363 = vadd.f32 %v1325, %v1359
        %v1364 = vadd.f32 %v1326, %v1359
        %v1365 = vadd.f32 %v1327, %v1359
        %v1366 = vadd.f32 %v1328, %v1359
        %v1367 = vadd.f32 %v1329, %v1359
        %v1368 = vadd.f32 %v1330, %v1359
        %v1369 = vadd.f32 %v1331, %v1359
        %v1370 = vadd.f32 %v1332, %v1359
        %v1371 = vadd.f32 %v1333, %v1359
        %v1372 = vadd.f32 %v1334, %v1359
        %v1373 = vadd.f32 %v1335, %v1359
        %v1374 = vadd.f32 %v1336, %v1359
        %v1375 = vadd.f32 %v1337, %v1359
        %v1376 = vadd.f32 %v1338, %v1359
        %v1377 = vadd.f32 %v1339, %v1359
        %v1378 = vadd.f32 %v1340, %v1359
        %v1379 = vadd.f32 %v1341, %v1359
        %v1380 = vadd.f32 %v1342, %v1359
        %v1381 = vadd.f32 %v1343, %v1359
        %v1382 = vadd.f32 %v1344, %v1359
        %v1383 = vadd.f32 %v1345, %v1359
        %v1384 = vadd.f32 %v1346, %v1359
        %v1385 = vadd.f32 %v1347, %v1359
        %v1386 = vadd.f32 %v1348, %v1359
        %v1387 = vadd.f32 %v1349, %v1359
        %v1388 = vadd.f32 %v1350, %v1359
        %v1389 = vadd.f32 %v1351, %v1359
        %v1390 = vadd.f32 %v1352, %v1359
        %v1391 = vadd.f32 %v1353, %v1359
        %v1392 = vadd.f32 %v1354, %v1359
        %v1393 = vpack.c.bf16 %v1362, %v1361
        %v1394 = vpack.c.bf16 %v1364, %v1363
        %v1395 = vpack.c.bf16 %v1366, %v1365
        %v1396 = vpack.c.bf16 %v1368, %v1367
        %v1397 = vpack.c.bf16 %v1370, %v1369
        %v1398 = vpack.c.bf16 %v1372, %v1371
        %v1399 = vpack.c.bf16 %v1374, %v1373
        %v1400 = vpack.c.bf16 %v1376, %v1375
        %v1401 = vpack.c.bf16 %v1378, %v1377
        %v1402 = vpack.c.bf16 %v1380, %v1379
        %v1403 = vpack.c.bf16 %v1382, %v1381
        %v1404 = vpack.c.bf16 %v1384, %v1383
        %v1405 = vpack.c.bf16 %v1386, %v1385
        %v1406 = vpack.c.bf16 %v1388, %v1387
        %v1407 = vpack.c.bf16 %v1390, %v1389
        %v1408 = vpack.c.bf16 %v1392, %v1391
        %v1410 = vlaneseq
        %v1411 = vshrl.u32 %v1410, 7
        %v1412 = vsub.s32 0, %v1411
        %v1413 = vrot.slane %v896, %v1412
        %v1414 = vlaneseq
        %v1415 = vshrl.u32 %v1414, 7
        %v1416 = vsub.s32 1, %v1415
        %v1417 = vrot.slane %v896, %v1416
        %v1418 = vlaneseq
        %v1419 = vshrl.u32 %v1418, 7
        %v1420 = vsub.s32 2, %v1419
        %v1421 = vrot.slane %v896, %v1420
        %v1457 = vunpack.c.l.b16 %v864
        %v1458 = vunpack.c.h.b16 %v864
        %v1459 = vunpack.c.l.b16 %v865
        %v1460 = vunpack.c.l.b16 %v866
        %v1461 = vunpack.c.h.b16 %v866
        %v1462 = vunpack.c.l.b16 %v867
        %v1463 = vunpack.c.l.b16 %v868
        %v1464 = vunpack.c.h.b16 %v868
        %v1465 = vunpack.c.l.b16 %v869
        %v1466 = vunpack.c.l.b16 %v870
        %v1467 = vunpack.c.h.b16 %v870
        %v1468 = vunpack.c.l.b16 %v871
        %v1469 = vunpack.c.l.b16 %v872
        %v1470 = vunpack.c.h.b16 %v872
        %v1471 = vunpack.c.l.b16 %v873
        %v1472 = vunpack.c.l.b16 %v874
        %v1473 = vunpack.c.h.b16 %v874
        %v1474 = vunpack.c.l.b16 %v875
        %v1475 = vunpack.c.l.b16 %v876
        %v1476 = vunpack.c.h.b16 %v876
        %v1477 = vunpack.c.l.b16 %v877
        %v1478 = vunpack.c.l.b16 %v878
        %v1479 = vunpack.c.h.b16 %v878
        %v1480 = vunpack.c.l.b16 %v879
        %v1481 = vunpack.c.l.b16 %v880
        %v1482 = vunpack.c.h.b16 %v880
        %v1483 = vunpack.c.l.b16 %v881
        %v1484 = vunpack.c.l.b16 %v882
        %v1485 = vunpack.c.h.b16 %v882
        %v1486 = vunpack.c.l.b16 %v883
        %v1487 = vunpack.c.l.b16 %v884
        %v1488 = vunpack.c.h.b16 %v884
        %v1489 = vunpack.c.l.b16 %v885
        %v1490 = vunpack.c.l.b16 %v886
        %v1491 = vunpack.c.h.b16 %v886
        %v1492 = vunpack.c.l.b16 %v887
        %v1493 = vunpack.c.l.b16 %v888
        %v1494 = vunpack.c.h.b16 %v888
        %v1495 = vunpack.c.l.b16 %v889
        %v1496 = vunpack.c.l.b16 %v890
        %v1497 = vunpack.c.h.b16 %v890
        %v1498 = vunpack.c.l.b16 %v891
        %v1499 = vunpack.c.l.b16 %v892
        %v1500 = vunpack.c.h.b16 %v892
        %v1501 = vunpack.c.l.b16 %v893
        %v1502 = vunpack.c.l.b16 %v894
        %v1503 = vunpack.c.h.b16 %v894
        %v1504 = vunpack.c.l.b16 %v895
        %v1505 = vpack.c.b16 %v1460, %v1457
        %v1506 = vpack.c.b16 %v1461, %v1458
        %v1507 = vpack.c.b16 %v1462, %v1459
        %v1508 = vpack.c.b16 %v1466, %v1463
        %v1509 = vpack.c.b16 %v1467, %v1464
        %v1510 = vpack.c.b16 %v1468, %v1465
        %v1511 = vpack.c.b16 %v1472, %v1469
        %v1512 = vpack.c.b16 %v1473, %v1470
        %v1513 = vpack.c.b16 %v1474, %v1471
        %v1514 = vpack.c.b16 %v1478, %v1475
        %v1515 = vpack.c.b16 %v1479, %v1476
        %v1516 = vpack.c.b16 %v1480, %v1477
        %v1517 = vpack.c.b16 %v1484, %v1481
        %v1518 = vpack.c.b16 %v1485, %v1482
        %v1519 = vpack.c.b16 %v1486, %v1483
        %v1520 = vpack.c.b16 %v1490, %v1487
        %v1521 = vpack.c.b16 %v1491, %v1488
        %v1522 = vpack.c.b16 %v1492, %v1489
        %v1523 = vpack.c.b16 %v1496, %v1493
        %v1524 = vpack.c.b16 %v1497, %v1494
        %v1525 = vpack.c.b16 %v1498, %v1495
        %v1526 = vpack.c.b16 %v1502, %v1499
        %v1527 = vpack.c.b16 %v1503, %v1500
        %v1528 = vpack.c.b16 %v1504, %v1501
        %1553 = vmatprep.subr.bf16.mxu0 %v1506
        %1554 = vmatpush1.bf16.msra.mxu0 %v1505
        %1555 = vmatprep.subr.bf16.mxu0 %v1509
        %1556 = vmatpush1.bf16.msra.mxu0 %v1508
        %1557 = vmatprep.subr.bf16.mxu0 %v1512
        %1558 = vmatpush1.bf16.msra.mxu0 %v1511
        %1559 = vmatprep.subr.bf16.mxu0 %v1515
        %1560 = vmatpush1.bf16.msra.mxu0 %v1514
        %1561 = vmatprep.subr.bf16.mxu0 %v1518
        %1562 = vmatpush1.bf16.msra.mxu0 %v1517
        %1563 = vmatprep.subr.bf16.mxu0 %v1521
        %1564 = vmatpush1.bf16.msra.mxu0 %v1520
        %1565 = vmatprep.subr.bf16.mxu0 %v1524
        %1566 = vmatpush1.bf16.msra.mxu0 %v1523
        %1567 = vmatprep.subr.bf16.mxu0 %v1527
        %1568 = vmatpush1.bf16.msra.mxu0 %v1526
        %1569 = vmatprep.subr.bf16.mxu0 0
        %1570 = vmatpush1.bf16.msra.mxu0 0
        %1571 = vmatprep.subr.bf16.mxu0 0
        %1572 = vmatpush1.bf16.msra.mxu0 0
        %1573 = vmatprep.subr.bf16.mxu0 0
        %1574 = vmatpush1.bf16.msra.mxu0 0
        %1575 = vmatprep.subr.bf16.mxu0 0
        %1576 = vmatpush1.bf16.msra.mxu0 0
        %1577 = vmatprep.subr.bf16.mxu0 0
        %1578 = vmatpush1.bf16.msra.mxu0 0
        %1579 = vmatprep.subr.bf16.mxu0 0
        %1580 = vmatpush1.bf16.msra.mxu0 0
        %1581 = vmatprep.subr.bf16.mxu0 0
        %1582 = vmatpush1.bf16.msra.mxu0 0
        %1583 = vmatprep.subr.bf16.mxu0 0
        %1584 = vmatpush1.bf16.msra.mxu0 0
        %1585 = vmatprep.mubr.bf16.mxu0 0
        %1586 = vmatmul.mubr.bf16.gmra.mrb[0].mxu0 %v1393
        %v1587 = vpop.f32.mrb[0].mxu0
        %v1588 = vadd.f32 %v1413, %v1587
        %v1589 = vpop.f32.mrb[0].mxu0
        %v1590 = vadd.f32 %v1417, %v1589
        %v1591 = vpop.f32.mrb[0].mxu0
        %v1592 = vadd.f32 %v1413, %v1591
        %v1593 = vpop.f32.mrb[0].mxu0
        %v1594 = vadd.f32 %v1417, %v1593
        %1595 = vmatprep.mubr.bf16.mxu0 0
        %1596 = vmatmul.mubr.bf16.gmra.mrb[0].mxu0 %v1394
        %v1597 = vpop.f32.mrb[0].mxu0
        %v1598 = vadd.f32 %v1413, %v1597
        %v1599 = vpop.f32.mrb[0].mxu0
        %v1600 = vadd.f32 %v1417, %v1599
        %v1601 = vpop.f32.mrb[0].mxu0
        %v1602 = vadd.f32 %v1413, %v1601
        %v1603 = vpop.f32.mrb[0].mxu0
        %v1604 = vadd.f32 %v1417, %v1603
        %1605 = vmatprep.mubr.bf16.mxu0 0
        %1606 = vmatmul.mubr.bf16.gmra.mrb[0].mxu0 %v1395
        %v1607 = vpop.f32.mrb[0].mxu0
        %v1608 = vadd.f32 %v1413, %v1607
        %v1609 = vpop.f32.mrb[0].mxu0
        %v1610 = vadd.f32 %v1417, %v1609
        %v1611 = vpop.f32.mrb[0].mxu0
        %v1612 = vadd.f32 %v1413, %v1611
        %v1613 = vpop.f32.mrb[0].mxu0
        %v1614 = vadd.f32 %v1417, %v1613
        %1615 = vmatprep.mubr.bf16.mxu0 0
        %1616 = vmatmul.mubr.bf16.gmra.mrb[0].mxu0 %v1396
        %v1617 = vpop.f32.mrb[0].mxu0
        %v1618 = vadd.f32 %v1413, %v1617
        %v1619 = vpop.f32.mrb[0].mxu0
        %v1620 = vadd.f32 %v1417, %v1619
        %v1621 = vpop.f32.mrb[0].mxu0
        %v1622 = vadd.f32 %v1413, %v1621
        %v1623 = vpop.f32.mrb[0].mxu0
        %v1624 = vadd.f32 %v1417, %v1623
        %1625 = vmatprep.mubr.bf16.mxu0 0
        %1626 = vmatmul.mubr.bf16.gmra.mrb[0].mxu0 %v1397
        %v1627 = vpop.f32.mrb[0].mxu0
        %v1628 = vadd.f32 %v1413, %v1627
        %v1629 = vpop.f32.mrb[0].mxu0
        %v1630 = vadd.f32 %v1417, %v1629
        %v1631 = vpop.f32.mrb[0].mxu0
        %v1632 = vadd.f32 %v1413, %v1631
        %v1633 = vpop.f32.mrb[0].mxu0
        %v1634 = vadd.f32 %v1417, %v1633
        %1635 = vmatprep.mubr.bf16.mxu0 0
        %1636 = vmatmul.mubr.bf16.gmra.mrb[0].mxu0 %v1398
        %v1637 = vpop.f32.mrb[0].mxu0
        %v1638 = vadd.f32 %v1413, %v1637
        %v1639 = vpop.f32.mrb[0].mxu0
        %v1640 = vadd.f32 %v1417, %v1639
        %v1641 = vpop.f32.mrb[0].mxu0
        %v1642 = vadd.f32 %v1413, %v1641
        %v1643 = vpop.f32.mrb[0].mxu0
        %v1644 = vadd.f32 %v1417, %v1643
        %1645 = vmatprep.mubr.bf16.mxu0 0
        %1646 = vmatmul.mubr.bf16.gmra.mrb[0].mxu0 %v1399
        %v1647 = vpop.f32.mrb[0].mxu0
        %v1648 = vadd.f32 %v1413, %v1647
        %v1649 = vpop.f32.mrb[0].mxu0
        %v1650 = vadd.f32 %v1417, %v1649
        %v1651 = vpop.f32.mrb[0].mxu0
        %v1652 = vadd.f32 %v1413, %v1651
        %v1653 = vpop.f32.mrb[0].mxu0
        %v1654 = vadd.f32 %v1417, %v1653
        %1655 = vmatprep.mubr.bf16.mxu0 0
        %1656 = vmatmul.mubr.bf16.gmra.mrb[0].mxu0 %v1400
        %v1657 = vpop.f32.mrb[0].mxu0
        %v1658 = vadd.f32 %v1413, %v1657
        %v1659 = vpop.f32.mrb[0].mxu0
        %v1660 = vadd.f32 %v1417, %v1659
        %v1661 = vpop.f32.mrb[0].mxu0
        %v1662 = vadd.f32 %v1413, %v1661
        %v1663 = vpop.f32.mrb[0].mxu0
        %v1664 = vadd.f32 %v1417, %v1663
        %1665 = vmatprep.mubr.bf16.mxu0 0
        %1666 = vmatmul.mubr.bf16.gmra.mrb[0].mxu0 %v1401
        %v1667 = vpop.f32.mrb[0].mxu0
        %v1668 = vadd.f32 %v1413, %v1667
        %v1669 = vpop.f32.mrb[0].mxu0
        %v1670 = vadd.f32 %v1417, %v1669
        %v1671 = vpop.f32.mrb[0].mxu0
        %v1672 = vadd.f32 %v1413, %v1671
        %v1673 = vpop.f32.mrb[0].mxu0
        %v1674 = vadd.f32 %v1417, %v1673
        %1675 = vmatprep.mubr.bf16.mxu0 0
        %1676 = vmatmul.mubr.bf16.gmra.mrb[0].mxu0 %v1402
        %v1677 = vpop.f32.mrb[0].mxu0
        %v1678 = vadd.f32 %v1413, %v1677
        %v1679 = vpop.f32.mrb[0].mxu0
        %v1680 = vadd.f32 %v1417, %v1679
        %v1681 = vpop.f32.mrb[0].mxu0
        %v1682 = vadd.f32 %v1413, %v1681
        %v1683 = vpop.f32.mrb[0].mxu0
        %v1684 = vadd.f32 %v1417, %v1683
        %1685 = vmatprep.mubr.bf16.mxu0 0
        %1686 = vmatmul.mubr.bf16.gmra.mrb[0].mxu0 %v1403
        %v1687 = vpop.f32.mrb[0].mxu0
        %v1688 = vadd.f32 %v1413, %v1687
        %v1689 = vpop.f32.mrb[0].mxu0
        %v1690 = vadd.f32 %v1417, %v1689
        %v1691 = vpop.f32.mrb[0].mxu0
        %v1692 = vadd.f32 %v1413, %v1691
        %v1693 = vpop.f32.mrb[0].mxu0
        %v1694 = vadd.f32 %v1417, %v1693
        %1695 = vmatprep.mubr.bf16.mxu0 0
        %1696 = vmatmul.mubr.bf16.gmra.mrb[0].mxu0 %v1404
        %v1697 = vpop.f32.mrb[0].mxu0
        %v1698 = vadd.f32 %v1413, %v1697
        %v1699 = vpop.f32.mrb[0].mxu0
        %v1700 = vadd.f32 %v1417, %v1699
        %v1701 = vpop.f32.mrb[0].mxu0
        %v1702 = vadd.f32 %v1413, %v1701
        %v1703 = vpop.f32.mrb[0].mxu0
        %v1704 = vadd.f32 %v1417, %v1703
        %1705 = vmatprep.mubr.bf16.mxu0 0
        %1706 = vmatmul.mubr.bf16.gmra.mrb[0].mxu0 %v1405
        %v1707 = vpop.f32.mrb[0].mxu0
        %v1708 = vadd.f32 %v1413, %v1707
        %v1709 = vpop.f32.mrb[0].mxu0
        %v1710 = vadd.f32 %v1417, %v1709
        %v1711 = vpop.f32.mrb[0].mxu0
        %v1712 = vadd.f32 %v1413, %v1711
        %v1713 = vpop.f32.mrb[0].mxu0
        %v1714 = vadd.f32 %v1417, %v1713
        %1715 = vmatprep.mubr.bf16.mxu0 0
        %1716 = vmatmul.mubr.bf16.gmra.mrb[0].mxu0 %v1406
        %v1717 = vpop.f32.mrb[0].mxu0
        %v1718 = vadd.f32 %v1413, %v1717
        %v1719 = vpop.f32.mrb[0].mxu0
        %v1720 = vadd.f32 %v1417, %v1719
        %v1721 = vpop.f32.mrb[0].mxu0
        %v1722 = vadd.f32 %v1413, %v1721
        %v1723 = vpop.f32.mrb[0].mxu0
        %v1724 = vadd.f32 %v1417, %v1723
        %1725 = vmatprep.mubr.bf16.mxu0 0
        %1726 = vmatmul.mubr.bf16.gmra.mrb[0].mxu0 %v1407
        %v1727 = vpop.f32.mrb[0].mxu0
        %v1728 = vadd.f32 %v1413, %v1727
        %v1729 = vpop.f32.mrb[0].mxu0
        %v1730 = vadd.f32 %v1417, %v1729
        %v1731 = vpop.f32.mrb[0].mxu0
        %v1732 = vadd.f32 %v1413, %v1731
        %v1733 = vpop.f32.mrb[0].mxu0
        %v1734 = vadd.f32 %v1417, %v1733
        %1735 = vmatprep.mubr.bf16.mxu0 0
        %1736 = vmatmul.mubr.bf16.gmra.mrb[0].mxu0 %v1408
        %v1737 = vpop.f32.mrb[0].mxu0
        %v1738 = vadd.f32 %v1413, %v1737
        %v1739 = vpop.f32.mrb[0].mxu0
        %v1740 = vadd.f32 %v1417, %v1739
        %v1741 = vpop.f32.mrb[0].mxu0
        %v1742 = vadd.f32 %v1413, %v1741
        %v1743 = vpop.f32.mrb[0].mxu0
        %v1744 = vadd.f32 %v1417, %v1743
        %1745 = vdwg.mxu0
        %1746 = vmatprep.subr.bf16.mxu0 0
        %1747 = vmatpush1.bf16.msra.mxu0 %v1507
        %1748 = vmatprep.subr.bf16.mxu0 0
        %1749 = vmatpush1.bf16.msra.mxu0 %v1510
        %1750 = vmatprep.subr.bf16.mxu0 0
        %1751 = vmatpush1.bf16.msra.mxu0 %v1513
        %1752 = vmatprep.subr.bf16.mxu0 0
        %1753 = vmatpush1.bf16.msra.mxu0 %v1516
        %1754 = vmatprep.subr.bf16.mxu0 0
        %1755 = vmatpush1.bf16.msra.mxu0 %v1519
        %1756 = vmatprep.subr.bf16.mxu0 0
        %1757 = vmatpush1.bf16.msra.mxu0 %v1522
        %1758 = vmatprep.subr.bf16.mxu0 0
        %1759 = vmatpush1.bf16.msra.mxu0 %v1525
        %1760 = vmatprep.subr.bf16.mxu0 0
        %1761 = vmatpush1.bf16.msra.mxu0 %v1528
        %1762 = vmatprep.subr.bf16.mxu0 0
        %1763 = vmatpush1.bf16.msra.mxu0 0
        %1764 = vmatprep.subr.bf16.mxu0 0
        %1765 = vmatpush1.bf16.msra.mxu0 0
        %1766 = vmatprep.subr.bf16.mxu0 0
        %1767 = vmatpush1.bf16.msra.mxu0 0
        %1768 = vmatprep.subr.bf16.mxu0 0
        %1769 = vmatpush1.bf16.msra.mxu0 0
        %1770 = vmatprep.subr.bf16.mxu0 0
        %1771 = vmatpush1.bf16.msra.mxu0 0
        %1772 = vmatprep.subr.bf16.mxu0 0
        %1773 = vmatpush1.bf16.msra.mxu0 0
        %1774 = vmatprep.subr.bf16.mxu0 0
        %1775 = vmatpush1.bf16.msra.mxu0 0
        %1776 = vmatprep.subr.bf16.mxu0 0
        %1777 = vmatpush1.bf16.msra.mxu0 0
        %1778 = vmatprep.mubr.bf16.mxu0 0
        %1779 = vmatmul.mubr.bf16.gmra.mrb[0].mxu0 %v1393
        %v1780 = vpop.f32.mrb[0].mxu0
        %v1781 = vadd.f32 %v1421, %v1780
        %v1782 = vpop.f32.mrb[0].mxu0
        %v1783 = vpop.f32.mrb[0].mxu0
        %v1784 = vadd.f32 %v1421, %v1783
        %v1785 = vpop.f32.mrb[0].mxu0
        %1786 = vmatprep.mubr.bf16.mxu0 0
        %1787 = vmatmul.mubr.bf16.gmra.mrb[0].mxu0 %v1394
        %v1788 = vpop.f32.mrb[0].mxu0
        %v1789 = vadd.f32 %v1421, %v1788
        %v1790 = vpop.f32.mrb[0].mxu0
        %v1791 = vpop.f32.mrb[0].mxu0
        %v1792 = vadd.f32 %v1421, %v1791
        %v1793 = vpop.f32.mrb[0].mxu0
        %1794 = vmatprep.mubr.bf16.mxu0 0
        %1795 = vmatmul.mubr.bf16.gmra.mrb[0].mxu0 %v1395
        %v1796 = vpop.f32.mrb[0].mxu0
        %v1797 = vadd.f32 %v1421, %v1796
        %v1798 = vpop.f32.mrb[0].mxu0
        %v1799 = vpop.f32.mrb[0].mxu0
        %v1800 = vadd.f32 %v1421, %v1799
        %v1801 = vpop.f32.mrb[0].mxu0
        %1802 = vmatprep.mubr.bf16.mxu0 0
        %1803 = vmatmul.mubr.bf16.gmra.mrb[0].mxu0 %v1396
        %v1804 = vpop.f32.mrb[0].mxu0
        %v1805 = vadd.f32 %v1421, %v1804
        %v1806 = vpop.f32.mrb[0].mxu0
        %v1807 = vpop.f32.mrb[0].mxu0
        %v1808 = vadd.f32 %v1421, %v1807
        %v1809 = vpop.f32.mrb[0].mxu0
        %1810 = vmatprep.mubr.bf16.mxu0 0
        %1811 = vmatmul.mubr.bf16.gmra.mrb[0].mxu0 %v1397
        %v1812 = vpop.f32.mrb[0].mxu0
        %v1813 = vadd.f32 %v1421, %v1812
        %v1814 = vpop.f32.mrb[0].mxu0
        %v1815 = vpop.f32.mrb[0].mxu0
        %v1816 = vadd.f32 %v1421, %v1815
        %v1817 = vpop.f32.mrb[0].mxu0
        %1818 = vmatprep.mubr.bf16.mxu0 0
        %1819 = vmatmul.mubr.bf16.gmra.mrb[0].mxu0 %v1398
        %v1820 = vpop.f32.mrb[0].mxu0
        %v1821 = vadd.f32 %v1421, %v1820
        %v1822 = vpop.f32.mrb[0].mxu0
        %v1823 = vpop.f32.mrb[0].mxu0
        %v1824 = vadd.f32 %v1421, %v1823
        %v1825 = vpop.f32.mrb[0].mxu0
        %1826 = vmatprep.mubr.bf16.mxu0 0
        %1827 = vmatmul.mubr.bf16.gmra.mrb[0].mxu0 %v1399
        %v1828 = vpop.f32.mrb[0].mxu0
        %v1829 = vadd.f32 %v1421, %v1828
        %v1830 = vpop.f32.mrb[0].mxu0
        %v1831 = vpop.f32.mrb[0].mxu0
        %v1832 = vadd.f32 %v1421, %v1831
        %v1833 = vpop.f32.mrb[0].mxu0
        %1834 = vmatprep.mubr.bf16.mxu0 0
        %1835 = vmatmul.mubr.bf16.gmra.mrb[0].mxu0 %v1400
        %v1836 = vpop.f32.mrb[0].mxu0
        %v1837 = vadd.f32 %v1421, %v1836
        %v1838 = vpop.f32.mrb[0].mxu0
        %v1839 = vpop.f32.mrb[0].mxu0
        %v1840 = vadd.f32 %v1421, %v1839
        %v1841 = vpop.f32.mrb[0].mxu0
        %1842 = vmatprep.mubr.bf16.mxu0 0
        %1843 = vmatmul.mubr.bf16.gmra.mrb[0].mxu0 %v1401
        %v1844 = vpop.f32.mrb[0].mxu0
        %v1845 = vadd.f32 %v1421, %v1844
        %v1846 = vpop.f32.mrb[0].mxu0
        %v1847 = vpop.f32.mrb[0].mxu0
        %v1848 = vadd.f32 %v1421, %v1847
        %v1849 = vpop.f32.mrb[0].mxu0
        %1850 = vmatprep.mubr.bf16.mxu0 0
        %1851 = vmatmul.mubr.bf16.gmra.mrb[0].mxu0 %v1402
        %v1852 = vpop.f32.mrb[0].mxu0
        %v1853 = vadd.f32 %v1421, %v1852
        %v1854 = vpop.f32.mrb[0].mxu0
        %v1855 = vpop.f32.mrb[0].mxu0
        %v1856 = vadd.f32 %v1421, %v1855
        %v1857 = vpop.f32.mrb[0].mxu0
        %1858 = vmatprep.mubr.bf16.mxu0 0
        %1859 = vmatmul.mubr.bf16.gmra.mrb[0].mxu0 %v1403
        %v1860 = vpop.f32.mrb[0].mxu0
        %v1861 = vadd.f32 %v1421, %v1860
        %v1862 = vpop.f32.mrb[0].mxu0
        %v1863 = vpop.f32.mrb[0].mxu0
        %v1864 = vadd.f32 %v1421, %v1863
        %v1865 = vpop.f32.mrb[0].mxu0
        %1866 = vmatprep.mubr.bf16.mxu0 0
        %1867 = vmatmul.mubr.bf16.gmra.mrb[0].mxu0 %v1404
        %v1868 = vpop.f32.mrb[0].mxu0
        %v1869 = vadd.f32 %v1421, %v1868
        %v1870 = vpop.f32.mrb[0].mxu0
        %v1871 = vpop.f32.mrb[0].mxu0
        %v1872 = vadd.f32 %v1421, %v1871
        %v1873 = vpop.f32.mrb[0].mxu0
        %1874 = vmatprep.mubr.bf16.mxu0 0
        %1875 = vmatmul.mubr.bf16.gmra.mrb[0].mxu0 %v1405
        %v1876 = vpop.f32.mrb[0].mxu0
        %v1877 = vadd.f32 %v1421, %v1876
        %v1878 = vpop.f32.mrb[0].mxu0
        %v1879 = vpop.f32.mrb[0].mxu0
        %v1880 = vadd.f32 %v1421, %v1879
        %v1881 = vpop.f32.mrb[0].mxu0
        %1882 = vmatprep.mubr.bf16.mxu0 0
        %1883 = vmatmul.mubr.bf16.gmra.mrb[0].mxu0 %v1406
        %v1884 = vpop.f32.mrb[0].mxu0
        %v1885 = vadd.f32 %v1421, %v1884
        %v1886 = vpop.f32.mrb[0].mxu0
        %v1887 = vpop.f32.mrb[0].mxu0
        %v1888 = vadd.f32 %v1421, %v1887
        %v1889 = vpop.f32.mrb[0].mxu0
        %1890 = vmatprep.mubr.bf16.mxu0 0
        %1891 = vmatmul.mubr.bf16.gmra.mrb[0].mxu0 %v1407
        %v1892 = vpop.f32.mrb[0].mxu0
        %v1893 = vadd.f32 %v1421, %v1892
        %v1894 = vpop.f32.mrb[0].mxu0
        %v1895 = vpop.f32.mrb[0].mxu0
        %v1896 = vadd.f32 %v1421, %v1895
        %v1897 = vpop.f32.mrb[0].mxu0
        %1898 = vmatprep.mubr.bf16.mxu0 0
        %1899 = vmatmul.mubr.bf16.gmra.mrb[0].mxu0 %v1408
        %v1900 = vpop.f32.mrb[0].mxu0
        %v1901 = vadd.f32 %v1421, %v1900
        %v1902 = vpop.f32.mrb[0].mxu0
        %v1903 = vpop.f32.mrb[0].mxu0
        %v1904 = vadd.f32 %v1421, %v1903
        %v1905 = vpop.f32.mrb[0].mxu0
        %1906 = vdwg.mxu0
        %v1907 = vmul.f32 %v1588, 0.17677669
        %v1908 = vmul.f32 %v1592, 0.17677669
        %v1909 = vmul.f32 %v1598, 0.17677669
        %v1910 = vmul.f32 %v1602, 0.17677669
        %v1911 = vmul.f32 %v1608, 0.17677669
        %v1912 = vmul.f32 %v1612, 0.17677669
        %v1913 = vmul.f32 %v1618, 0.17677669
        %v1914 = vmul.f32 %v1622, 0.17677669
        %v1915 = vmul.f32 %v1628, 0.17677669
        %v1916 = vmul.f32 %v1632, 0.17677669
        %v1917 = vmul.f32 %v1638, 0.17677669
        %v1918 = vmul.f32 %v1642, 0.17677669
        %v1919 = vmul.f32 %v1648, 0.17677669
        %v1920 = vmul.f32 %v1652, 0.17677669
        %v1921 = vmul.f32 %v1658, 0.17677669
        %v1922 = vmul.f32 %v1662, 0.17677669
        %v1923 = vmul.f32 %v1668, 0.17677669
        %v1924 = vmul.f32 %v1672, 0.17677669
        %v1925 = vmul.f32 %v1678, 0.17677669
        %v1926 = vmul.f32 %v1682, 0.17677669
        %v1927 = vmul.f32 %v1688, 0.17677669
        %v1928 = vmul.f32 %v1692, 0.17677669
        %v1929 = vmul.f32 %v1698, 0.17677669
        %v1930 = vmul.f32 %v1702, 0.17677669
        %v1931 = vmul.f32 %v1708, 0.17677669
        %v1932 = vmul.f32 %v1712, 0.17677669
        %v1933 = vmul.f32 %v1718, 0.17677669
        %v1934 = vmul.f32 %v1722, 0.17677669
        %v1935 = vmul.f32 %v1728, 0.17677669
        %v1936 = vmul.f32 %v1732, 0.17677669
        %v1937 = vmul.f32 %v1738, 0.17677669
        %v1938 = vmul.f32 %v1742, 0.17677669
        %v1939 = vpack.c.bf16 %v1908, %v1907
        %v1940 = vpack.c.bf16 %v1910, %v1909
        %v1941 = vpack.c.bf16 %v1912, %v1911
        %v1942 = vpack.c.bf16 %v1914, %v1913
        %v1943 = vpack.c.bf16 %v1916, %v1915
        %v1944 = vpack.c.bf16 %v1918, %v1917
        %v1945 = vpack.c.bf16 %v1920, %v1919
        %v1946 = vpack.c.bf16 %v1922, %v1921
        %v1947 = vpack.c.bf16 %v1924, %v1923
        %v1948 = vpack.c.bf16 %v1926, %v1925
        %v1949 = vpack.c.bf16 %v1928, %v1927
        %v1950 = vpack.c.bf16 %v1930, %v1929
        %v1951 = vpack.c.bf16 %v1932, %v1931
        %v1952 = vpack.c.bf16 %v1934, %v1933
        %v1953 = vpack.c.bf16 %v1936, %v1935
        %v1954 = vpack.c.bf16 %v1938, %v1937
        %v1955 = vpack.c.bf16 %v1594, %v1590
        %v1956 = vpack.c.bf16 %v1604, %v1600
        %v1957 = vpack.c.bf16 %v1614, %v1610
        %v1958 = vpack.c.bf16 %v1624, %v1620
        %v1959 = vpack.c.bf16 %v1634, %v1630
        %v1960 = vpack.c.bf16 %v1644, %v1640
        %v1961 = vpack.c.bf16 %v1654, %v1650
        %v1962 = vpack.c.bf16 %v1664, %v1660
        %v1963 = vpack.c.bf16 %v1674, %v1670
        %v1964 = vpack.c.bf16 %v1684, %v1680
        %v1965 = vpack.c.bf16 %v1694, %v1690
        %v1966 = vpack.c.bf16 %v1704, %v1700
        %v1967 = vpack.c.bf16 %v1714, %v1710
        %v1968 = vpack.c.bf16 %v1724, %v1720
        %v1969 = vpack.c.bf16 %v1734, %v1730
        %v1970 = vpack.c.bf16 %v1744, %v1740
        %v1971 = vpack.c.bf16 %v1784, %v1781
        %v1972 = vpack.c.bf16 %v1792, %v1789
        %v1973 = vpack.c.bf16 %v1800, %v1797
        %v1974 = vpack.c.bf16 %v1808, %v1805
        %v1975 = vpack.c.bf16 %v1816, %v1813
        %v1976 = vpack.c.bf16 %v1824, %v1821
        %v1977 = vpack.c.bf16 %v1832, %v1829
        %v1978 = vpack.c.bf16 %v1840, %v1837
        %v1979 = vpack.c.bf16 %v1848, %v1845
        %v1980 = vpack.c.bf16 %v1856, %v1853
        %v1981 = vpack.c.bf16 %v1864, %v1861
        %v1982 = vpack.c.bf16 %v1872, %v1869
        %v1983 = vpack.c.bf16 %v1880, %v1877
        %v1984 = vpack.c.bf16 %v1888, %v1885
        %v1985 = vpack.c.bf16 %v1896, %v1893
        %v1986 = vpack.c.bf16 %v1904, %v1901
        %vm1987 = vcmask 261120
        %v1989 = vsel %vm1987, %v1939, 0
        %v1992 = vsel %vm1987, %v1940, 0
        %v1995 = vsel %vm1987, %v1955, 0
        %v1998 = vsel %vm1987, %v1956, 0
        %2000 = vmatprep.subr.bf16.mxu0 0
        %2001 = vmatpush1.bf16.xpose.msra.mxu0 %v1995
        %2002 = vmatprep.subr.bf16.mxu0 0
        %2003 = vmatpush1.bf16.xpose.msra.mxu0 %v1998
        %2004 = vmatprep.subr.bf16.mxu0 0
        %2005 = vmatpush1.bf16.xpose.msra.mxu0 0
        %2006 = vmatprep.subr.bf16.mxu0 0
        %2007 = vmatpush1.bf16.xpose.msra.mxu0 0
        %2008 = vmatprep.subr.bf16.mxu0 0
        %2009 = vmatpush1.bf16.xpose.msra.mxu0 0
        %2010 = vmatprep.subr.bf16.mxu0 0
        %2011 = vmatpush1.bf16.xpose.msra.mxu0 0
        %2012 = vmatprep.subr.bf16.mxu0 0
        %2013 = vmatpush1.bf16.xpose.msra.mxu0 0
        %2014 = vmatprep.subr.bf16.mxu0 0
        %2015 = vmatpush1.bf16.xpose.msra.mxu0 0
        %2016 = vmatprep.subr.bf16.mxu0 0
        %2017 = vmatpush1.bf16.xpose.msra.mxu0 0
        %2018 = vmatprep.subr.bf16.mxu0 0
        %2019 = vmatpush1.bf16.xpose.msra.mxu0 0
        %2020 = vmatprep.subr.bf16.mxu0 0
        %2021 = vmatpush1.bf16.xpose.msra.mxu0 0
        %2022 = vmatprep.subr.bf16.mxu0 0
        %2023 = vmatpush1.bf16.xpose.msra.mxu0 0
        %2024 = vmatprep.subr.bf16.mxu0 0
        %2025 = vmatpush1.bf16.xpose.msra.mxu0 0
        %2026 = vmatprep.subr.bf16.mxu0 0
        %2027 = vmatpush1.bf16.xpose.msra.mxu0 0
        %2028 = vmatprep.subr.bf16.mxu0 0
        %2029 = vmatpush1.bf16.xpose.msra.mxu0 0
        %2030 = vmatprep.subr.bf16.mxu0 0
        %2031 = vmatpush1.bf16.xpose.msra.mxu0 0
        %2032 = vmatprep.mubr.bf16.mxu0 0
        %2033 = vmatmul.mubr.bf16.gmra.mrb[0].mxu0 %v1989
        %v2034 = vpop.f32.mrb[0].mxu0
        %v2035 = vadd.f32 0.0, %v2034
        %v2036 = vpop.f32.mrb[0].mxu0
        %v2037 = vpop.f32.mrb[0].mxu0
        %v2038 = vadd.f32 0.0, %v2037
        %v2039 = vpop.f32.mrb[0].mxu0
        %2040 = vmatprep.mubr.bf16.mxu0 0
        %2041 = vmatmul.mubr.bf16.gmra.mrb[0].mxu0 %v1992
        %v2042 = vpop.f32.mrb[0].mxu0
        %v2043 = vadd.f32 0.0, %v2042
        %v2044 = vpop.f32.mrb[0].mxu0
        %v2045 = vpop.f32.mrb[0].mxu0
        %v2046 = vadd.f32 0.0, %v2045
        %v2047 = vpop.f32.mrb[0].mxu0
        %2048 = vdwg.mxu0
        %v2050 = vsel %vm1987, %v1941, 0
        %v2053 = vsel %vm1987, %v1942, 0
        %v2056 = vsel %vm1987, %v1957, 0
        %v2059 = vsel %vm1987, %v1958, 0
        %2061 = vmatprep.subr.bf16.mxu0 0
        %2062 = vmatpush1.bf16.xpose.msra.mxu0 %v2056
        %2063 = vmatprep.subr.bf16.mxu0 0
        %2064 = vmatpush1.bf16.xpose.msra.mxu0 %v2059
        %2065 = vmatprep.subr.bf16.mxu0 0
        %2066 = vmatpush1.bf16.xpose.msra.mxu0 0
        %2067 = vmatprep.subr.bf16.mxu0 0
        %2068 = vmatpush1.bf16.xpose.msra.mxu0 0
        %2069 = vmatprep.subr.bf16.mxu0 0
        %2070 = vmatpush1.bf16.xpose.msra.mxu0 0
        %2071 = vmatprep.subr.bf16.mxu0 0
        %2072 = vmatpush1.bf16.xpose.msra.mxu0 0
        %2073 = vmatprep.subr.bf16.mxu0 0
        %2074 = vmatpush1.bf16.xpose.msra.mxu0 0
        %2075 = vmatprep.subr.bf16.mxu0 0
        %2076 = vmatpush1.bf16.xpose.msra.mxu0 0
        %2077 = vmatprep.subr.bf16.mxu0 0
        %2078 = vmatpush1.bf16.xpose.msra.mxu0 0
        %2079 = vmatprep.subr.bf16.mxu0 0
        %2080 = vmatpush1.bf16.xpose.msra.mxu0 0
        %2081 = vmatprep.subr.bf16.mxu0 0
        %2082 = vmatpush1.bf16.xpose.msra.mxu0 0
        %2083 = vmatprep.subr.bf16.mxu0 0
        %2084 = vmatpush1.bf16.xpose.msra.mxu0 0
        %2085 = vmatprep.subr.bf16.mxu0 0
        %2086 = vmatpush1.bf16.xpose.msra.mxu0 0
        %2087 = vmatprep.subr.bf16.mxu0 0
        %2088 = vmatpush1.bf16.xpose.msra.mxu0 0
        %2089 = vmatprep.subr.bf16.mxu0 0
        %2090 = vmatpush1.bf16.xpose.msra.mxu0 0
        %2091 = vmatprep.subr.bf16.mxu0 0
        %2092 = vmatpush1.bf16.xpose.msra.mxu0 0
        %2093 = vmatprep.mubr.bf16.mxu0 0
        %2094 = vmatmul.mubr.bf16.gmra.mrb[0].mxu0 %v2050
        %v2095 = vpop.f32.mrb[0].mxu0
        %v2096 = vadd.f32 0.0, %v2095
        %v2097 = vpop.f32.mrb[0].mxu0
        %v2098 = vpop.f32.mrb[0].mxu0
        %v2099 = vadd.f32 0.0, %v2098
        %v2100 = vpop.f32.mrb[0].mxu0
        %2101 = vmatprep.mubr.bf16.mxu0 0
        %2102 = vmatmul.mubr.bf16.gmra.mrb[0].mxu0 %v2053
        %v2103 = vpop.f32.mrb[0].mxu0
        %v2104 = vadd.f32 0.0, %v2103
        %v2105 = vpop.f32.mrb[0].mxu0
        %v2106 = vpop.f32.mrb[0].mxu0
        %v2107 = vadd.f32 0.0, %v2106
        %v2108 = vpop.f32.mrb[0].mxu0
        %2109 = vdwg.mxu0
        %v2111 = vsel %vm1987, %v1943, 0
        %v2114 = vsel %vm1987, %v1944, 0
        %v2117 = vsel %vm1987, %v1959, 0
        %v2120 = vsel %vm1987, %v1960, 0
        %2122 = vmatprep.subr.bf16.mxu0 0
        %2123 = vmatpush1.bf16.xpose.msra.mxu0 %v2117
        %2124 = vmatprep.subr.bf16.mxu0 0
        %2125 = vmatpush1.bf16.xpose.msra.mxu0 %v2120
        %2126 = vmatprep.subr.bf16.mxu0 0
        %2127 = vmatpush1.bf16.xpose.msra.mxu0 0
        %2128 = vmatprep.subr.bf16.mxu0 0
        %2129 = vmatpush1.bf16.xpose.msra.mxu0 0
        %2130 = vmatprep.subr.bf16.mxu0 0
        %2131 = vmatpush1.bf16.xpose.msra.mxu0 0
        %2132 = vmatprep.subr.bf16.mxu0 0
        %2133 = vmatpush1.bf16.xpose.msra.mxu0 0
        %2134 = vmatprep.subr.bf16.mxu0 0
        %2135 = vmatpush1.bf16.xpose.msra.mxu0 0
        %2136 = vmatprep.subr.bf16.mxu0 0
        %2137 = vmatpush1.bf16.xpose.msra.mxu0 0
        %2138 = vmatprep.subr.bf16.mxu0 0
        %2139 = vmatpush1.bf16.xpose.msra.mxu0 0
        %2140 = vmatprep.subr.bf16.mxu0 0
        %2141 = vmatpush1.bf16.xpose.msra.mxu0 0
        %2142 = vmatprep.subr.bf16.mxu0 0
        %2143 = vmatpush1.bf16.xpose.msra.mxu0 0
        %2144 = vmatprep.subr.bf16.mxu0 0
        %2145 = vmatpush1.bf16.xpose.msra.mxu0 0
        %2146 = vmatprep.subr.bf16.mxu0 0
        %2147 = vmatpush1.bf16.xpose.msra.mxu0 0
        %2148 = vmatprep.subr.bf16.mxu0 0
        %2149 = vmatpush1.bf16.xpose.msra.mxu0 0
        %2150 = vmatprep.subr.bf16.mxu0 0
        %2151 = vmatpush1.bf16.xpose.msra.mxu0 0
        %2152 = vmatprep.subr.bf16.mxu0 0
        %2153 = vmatpush1.bf16.xpose.msra.mxu0 0
        %2154 = vmatprep.mubr.bf16.mxu0 0
        %2155 = vmatmul.mubr.bf16.gmra.mrb[0].mxu0 %v2111
        %v2156 = vpop.f32.mrb[0].mxu0
        %v2157 = vadd.f32 0.0, %v2156
        %v2158 = vpop.f32.mrb[0].mxu0
        %v2159 = vpop.f32.mrb[0].mxu0
        %v2160 = vadd.f32 0.0, %v2159
        %v2161 = vpop.f32.mrb[0].mxu0
        %2162 = vmatprep.mubr.bf16.mxu0 0
        %2163 = vmatmul.mubr.bf16.gmra.mrb[0].mxu0 %v2114
        %v2164 = vpop.f32.mrb[0].mxu0
        %v2165 = vadd.f32 0.0, %v2164
        %v2166 = vpop.f32.mrb[0].mxu0
        %v2167 = vpop.f32.mrb[0].mxu0
        %v2168 = vadd.f32 0.0, %v2167
        %v2169 = vpop.f32.mrb[0].mxu0
        %2170 = vdwg.mxu0
        %v2172 = vsel %vm1987, %v1945, 0
        %v2175 = vsel %vm1987, %v1946, 0
        %v2178 = vsel %vm1987, %v1961, 0
        %v2181 = vsel %vm1987, %v1962, 0
        %2183 = vmatprep.subr.bf16.mxu0 0
        %2184 = vmatpush1.bf16.xpose.msra.mxu0 %v2178
        %2185 = vmatprep.subr.bf16.mxu0 0
        %2186 = vmatpush1.bf16.xpose.msra.mxu0 %v2181
        %2187 = vmatprep.subr.bf16.mxu0 0
        %2188 = vmatpush1.bf16.xpose.msra.mxu0 0
        %2189 = vmatprep.subr.bf16.mxu0 0
        %2190 = vmatpush1.bf16.xpose.msra.mxu0 0
        %2191 = vmatprep.subr.bf16.mxu0 0
        %2192 = vmatpush1.bf16.xpose.msra.mxu0 0
        %2193 = vmatprep.subr.bf16.mxu0 0
        %2194 = vmatpush1.bf16.xpose.msra.mxu0 0
        %2195 = vmatprep.subr.bf16.mxu0 0
        %2196 = vmatpush1.bf16.xpose.msra.mxu0 0
        %2197 = vmatprep.subr.bf16.mxu0 0
        %2198 = vmatpush1.bf16.xpose.msra.mxu0 0
        %2199 = vmatprep.subr.bf16.mxu0 0
        %2200 = vmatpush1.bf16.xpose.msra.mxu0 0
        %2201 = vmatprep.subr.bf16.mxu0 0
        %2202 = vmatpush1.bf16.xpose.msra.mxu0 0
        %2203 = vmatprep.subr.bf16.mxu0 0
        %2204 = vmatpush1.bf16.xpose.msra.mxu0 0
        %2205 = vmatprep.subr.bf16.mxu0 0
        %2206 = vmatpush1.bf16.xpose.msra.mxu0 0
        %2207 = vmatprep.subr.bf16.mxu0 0
        %2208 = vmatpush1.bf16.xpose.msra.mxu0 0
        %2209 = vmatprep.subr.bf16.mxu0 0
        %2210 = vmatpush1.bf16.xpose.msra.mxu0 0
        %2211 = vmatprep.subr.bf16.mxu0 0
        %2212 = vmatpush1.bf16.xpose.msra.mxu0 0
        %2213 = vmatprep.subr.bf16.mxu0 0
        %2214 = vmatpush1.bf16.xpose.msra.mxu0 0
        %2215 = vmatprep.mubr.bf16.mxu0 0
        %2216 = vmatmul.mubr.bf16.gmra.mrb[0].mxu0 %v2172
        %v2217 = vpop.f32.mrb[0].mxu0
        %v2218 = vadd.f32 0.0, %v2217
        %v2219 = vpop.f32.mrb[0].mxu0
        %v2220 = vpop.f32.mrb[0].mxu0
        %v2221 = vadd.f32 0.0, %v2220
        %v2222 = vpop.f32.mrb[0].mxu0
        %2223 = vmatprep.mubr.bf16.mxu0 0
        %2224 = vmatmul.mubr.bf16.gmra.mrb[0].mxu0 %v2175
        %v2225 = vpop.f32.mrb[0].mxu0
        %v2226 = vadd.f32 0.0, %v2225
        %v2227 = vpop.f32.mrb[0].mxu0
        %v2228 = vpop.f32.mrb[0].mxu0
        %v2229 = vadd.f32 0.0, %v2228
        %v2230 = vpop.f32.mrb[0].mxu0
        %2231 = vdwg.mxu0
        %v2233 = vsel %vm1987, %v1947, 0
        %v2236 = vsel %vm1987, %v1948, 0
        %v2239 = vsel %vm1987, %v1963, 0
        %v2242 = vsel %vm1987, %v1964, 0
        %2244 = vmatprep.subr.bf16.mxu0 0
        %2245 = vmatpush1.bf16.xpose.msra.mxu0 %v2239
        %2246 = vmatprep.subr.bf16.mxu0 0
        %2247 = vmatpush1.bf16.xpose.msra.mxu0 %v2242
        %2248 = vmatprep.subr.bf16.mxu0 0
        %2249 = vmatpush1.bf16.xpose.msra.mxu0 0
        %2250 = vmatprep.subr.bf16.mxu0 0
        %2251 = vmatpush1.bf16.xpose.msra.mxu0 0
        %2252 = vmatprep.subr.bf16.mxu0 0
        %2253 = vmatpush1.bf16.xpose.msra.mxu0 0
        %2254 = vmatprep.subr.bf16.mxu0 0
        %2255 = vmatpush1.bf16.xpose.msra.mxu0 0
        %2256 = vmatprep.subr.bf16.mxu0 0
        %2257 = vmatpush1.bf16.xpose.msra.mxu0 0
        %2258 = vmatprep.subr.bf16.mxu0 0
        %2259 = vmatpush1.bf16.xpose.msra.mxu0 0
        %2260 = vmatprep.subr.bf16.mxu0 0
        %2261 = vmatpush1.bf16.xpose.msra.mxu0 0
        %2262 = vmatprep.subr.bf16.mxu0 0
        %2263 = vmatpush1.bf16.xpose.msra.mxu0 0
        %2264 = vmatprep.subr.bf16.mxu0 0
        %2265 = vmatpush1.bf16.xpose.msra.mxu0 0
        %2266 = vmatprep.subr.bf16.mxu0 0
        %2267 = vmatpush1.bf16.xpose.msra.mxu0 0
        %2268 = vmatprep.subr.bf16.mxu0 0
        %2269 = vmatpush1.bf16.xpose.msra.mxu0 0
        %2270 = vmatprep.subr.bf16.mxu0 0
        %2271 = vmatpush1.bf16.xpose.msra.mxu0 0
        %2272 = vmatprep.subr.bf16.mxu0 0
        %2273 = vmatpush1.bf16.xpose.msra.mxu0 0
        %2274 = vmatprep.subr.bf16.mxu0 0
        %2275 = vmatpush1.bf16.xpose.msra.mxu0 0
        %2276 = vmatprep.mubr.bf16.mxu0 0
        %2277 = vmatmul.mubr.bf16.gmra.mrb[0].mxu0 %v2233
        %v2278 = vpop.f32.mrb[0].mxu0
        %v2279 = vadd.f32 0.0, %v2278
        %v2280 = vpop.f32.mrb[0].mxu0
        %v2281 = vpop.f32.mrb[0].mxu0
        %v2282 = vadd.f32 0.0, %v2281
        %v2283 = vpop.f32.mrb[0].mxu0
        %2284 = vmatprep.mubr.bf16.mxu0 0
        %2285 = vmatmul.mubr.bf16.gmra.mrb[0].mxu0 %v2236
        %v2286 = vpop.f32.mrb[0].mxu0
        %v2287 = vadd.f32 0.0, %v2286
        %v2288 = vpop.f32.mrb[0].mxu0
        %v2289 = vpop.f32.mrb[0].mxu0
        %v2290 = vadd.f32 0.0, %v2289
        %v2291 = vpop.f32.mrb[0].mxu0
        %2292 = vdwg.mxu0
        %v2294 = vsel %vm1987, %v1949, 0
        %v2297 = vsel %vm1987, %v1950, 0
        %v2300 = vsel %vm1987, %v1965, 0
        %v2303 = vsel %vm1987, %v1966, 0
        %2305 = vmatprep.subr.bf16.mxu0 0
        %2306 = vmatpush1.bf16.xpose.msra.mxu0 %v2300
        %2307 = vmatprep.subr.bf16.mxu0 0
        %2308 = vmatpush1.bf16.xpose.msra.mxu0 %v2303
        %2309 = vmatprep.subr.bf16.mxu0 0
        %2310 = vmatpush1.bf16.xpose.msra.mxu0 0
        %2311 = vmatprep.subr.bf16.mxu0 0
        %2312 = vmatpush1.bf16.xpose.msra.mxu0 0
        %2313 = vmatprep.subr.bf16.mxu0 0
        %2314 = vmatpush1.bf16.xpose.msra.mxu0 0
        %2315 = vmatprep.subr.bf16.mxu0 0
        %2316 = vmatpush1.bf16.xpose.msra.mxu0 0
        %2317 = vmatprep.subr.bf16.mxu0 0
        %2318 = vmatpush1.bf16.xpose.msra.mxu0 0
        %2319 = vmatprep.subr.bf16.mxu0 0
        %2320 = vmatpush1.bf16.xpose.msra.mxu0 0
        %2321 = vmatprep.subr.bf16.mxu0 0
        %2322 = vmatpush1.bf16.xpose.msra.mxu0 0
        %2323 = vmatprep.subr.bf16.mxu0 0
        %2324 = vmatpush1.bf16.xpose.msra.mxu0 0
        %2325 = vmatprep.subr.bf16.mxu0 0
        %2326 = vmatpush1.bf16.xpose.msra.mxu0 0
        %2327 = vmatprep.subr.bf16.mxu0 0
        %2328 = vmatpush1.bf16.xpose.msra.mxu0 0
        %2329 = vmatprep.subr.bf16.mxu0 0
        %2330 = vmatpush1.bf16.xpose.msra.mxu0 0
        %2331 = vmatprep.subr.bf16.mxu0 0
        %2332 = vmatpush1.bf16.xpose.msra.mxu0 0
        %2333 = vmatprep.subr.bf16.mxu0 0
        %2334 = vmatpush1.bf16.xpose.msra.mxu0 0
        %2335 = vmatprep.subr.bf16.mxu0 0
        %2336 = vmatpush1.bf16.xpose.msra.mxu0 0
        %2337 = vmatprep.mubr.bf16.mxu0 0
        %2338 = vmatmul.mubr.bf16.gmra.mrb[0].mxu0 %v2294
        %v2339 = vpop.f32.mrb[0].mxu0
        %v2340 = vadd.f32 0.0, %v2339
        %v2341 = vpop.f32.mrb[0].mxu0
        %v2342 = vpop.f32.mrb[0].mxu0
        %v2343 = vadd.f32 0.0, %v2342
        %v2344 = vpop.f32.mrb[0].mxu0
        %2345 = vmatprep.mubr.bf16.mxu0 0
        %2346 = vmatmul.mubr.bf16.gmra.mrb[0].mxu0 %v2297
        %v2347 = vpop.f32.mrb[0].mxu0
        %v2348 = vadd.f32 0.0, %v2347
        %v2349 = vpop.f32.mrb[0].mxu0
        %v2350 = vpop.f32.mrb[0].mxu0
        %v2351 = vadd.f32 0.0, %v2350
        %v2352 = vpop.f32.mrb[0].mxu0
        %2353 = vdwg.mxu0
        %v2355 = vsel %vm1987, %v1951, 0
        %v2358 = vsel %vm1987, %v1952, 0
        %v2361 = vsel %vm1987, %v1967, 0
        %v2364 = vsel %vm1987, %v1968, 0
        %2366 = vmatprep.subr.bf16.mxu0 0
        %2367 = vmatpush1.bf16.xpose.msra.mxu0 %v2361
        %2368 = vmatprep.subr.bf16.mxu0 0
        %2369 = vmatpush1.bf16.xpose.msra.mxu0 %v2364
        %2370 = vmatprep.subr.bf16.mxu0 0
        %2371 = vmatpush1.bf16.xpose.msra.mxu0 0
        %2372 = vmatprep.subr.bf16.mxu0 0
        %2373 = vmatpush1.bf16.xpose.msra.mxu0 0
        %2374 = vmatprep.subr.bf16.mxu0 0
        %2375 = vmatpush1.bf16.xpose.msra.mxu0 0
        %2376 = vmatprep.subr.bf16.mxu0 0
        %2377 = vmatpush1.bf16.xpose.msra.mxu0 0
        %2378 = vmatprep.subr.bf16.mxu0 0
        %2379 = vmatpush1.bf16.xpose.msra.mxu0 0
        %2380 = vmatprep.subr.bf16.mxu0 0
        %2381 = vmatpush1.bf16.xpose.msra.mxu0 0
        %2382 = vmatprep.subr.bf16.mxu0 0
        %2383 = vmatpush1.bf16.xpose.msra.mxu0 0
        %2384 = vmatprep.subr.bf16.mxu0 0
        %2385 = vmatpush1.bf16.xpose.msra.mxu0 0
        %2386 = vmatprep.subr.bf16.mxu0 0
        %2387 = vmatpush1.bf16.xpose.msra.mxu0 0
        %2388 = vmatprep.subr.bf16.mxu0 0
        %2389 = vmatpush1.bf16.xpose.msra.mxu0 0
        %2390 = vmatprep.subr.bf16.mxu0 0
        %2391 = vmatpush1.bf16.xpose.msra.mxu0 0
        %2392 = vmatprep.subr.bf16.mxu0 0
        %2393 = vmatpush1.bf16.xpose.msra.mxu0 0
        %2394 = vmatprep.subr.bf16.mxu0 0
        %2395 = vmatpush1.bf16.xpose.msra.mxu0 0
        %2396 = vmatprep.subr.bf16.mxu0 0
        %2397 = vmatpush1.bf16.xpose.msra.mxu0 0
        %2398 = vmatprep.mubr.bf16.mxu0 0
        %2399 = vmatmul.mubr.bf16.gmra.mrb[0].mxu0 %v2355
        %v2400 = vpop.f32.mrb[0].mxu0
        %v2401 = vadd.f32 0.0, %v2400
        %v2402 = vpop.f32.mrb[0].mxu0
        %v2403 = vpop.f32.mrb[0].mxu0
        %v2404 = vadd.f32 0.0, %v2403
        %v2405 = vpop.f32.mrb[0].mxu0
        %2406 = vmatprep.mubr.bf16.mxu0 0
        %2407 = vmatmul.mubr.bf16.gmra.mrb[0].mxu0 %v2358
        %v2408 = vpop.f32.mrb[0].mxu0
        %v2409 = vadd.f32 0.0, %v2408
        %v2410 = vpop.f32.mrb[0].mxu0
        %v2411 = vpop.f32.mrb[0].mxu0
        %v2412 = vadd.f32 0.0, %v2411
        %v2413 = vpop.f32.mrb[0].mxu0
        %2414 = vdwg.mxu0
        %v2416 = vsel %vm1987, %v1953, 0
        %v2419 = vsel %vm1987, %v1954, 0
        %v2422 = vsel %vm1987, %v1969, 0
        %v2425 = vsel %vm1987, %v1970, 0
        %2427 = vmatprep.subr.bf16.mxu0 0
        %2428 = vmatpush1.bf16.xpose.msra.mxu0 %v2422
        %2429 = vmatprep.subr.bf16.mxu0 0
        %2430 = vmatpush1.bf16.xpose.msra.mxu0 %v2425
        %2431 = vmatprep.subr.bf16.mxu0 0
        %2432 = vmatpush1.bf16.xpose.msra.mxu0 0
        %2433 = vmatprep.subr.bf16.mxu0 0
        %2434 = vmatpush1.bf16.xpose.msra.mxu0 0
        %2435 = vmatprep.subr.bf16.mxu0 0
        %2436 = vmatpush1.bf16.xpose.msra.mxu0 0
        %2437 = vmatprep.subr.bf16.mxu0 0
        %2438 = vmatpush1.bf16.xpose.msra.mxu0 0
        %2439 = vmatprep.subr.bf16.mxu0 0
        %2440 = vmatpush1.bf16.xpose.msra.mxu0 0
        %2441 = vmatprep.subr.bf16.mxu0 0
        %2442 = vmatpush1.bf16.xpose.msra.mxu0 0
        %2443 = vmatprep.subr.bf16.mxu0 0
        %2444 = vmatpush1.bf16.xpose.msra.mxu0 0
        %2445 = vmatprep.subr.bf16.mxu0 0
        %2446 = vmatpush1.bf16.xpose.msra.mxu0 0
        %2447 = vmatprep.subr.bf16.mxu0 0
        %2448 = vmatpush1.bf16.xpose.msra.mxu0 0
        %2449 = vmatprep.subr.bf16.mxu0 0
        %2450 = vmatpush1.bf16.xpose.msra.mxu0 0
        %2451 = vmatprep.subr.bf16.mxu0 0
        %2452 = vmatpush1.bf16.xpose.msra.mxu0 0
        %2453 = vmatprep.subr.bf16.mxu0 0
        %2454 = vmatpush1.bf16.xpose.msra.mxu0 0
        %2455 = vmatprep.subr.bf16.mxu0 0
        %2456 = vmatpush1.bf16.xpose.msra.mxu0 0
        %2457 = vmatprep.subr.bf16.mxu0 0
        %2458 = vmatpush1.bf16.xpose.msra.mxu0 0
        %2459 = vmatprep.mubr.bf16.mxu0 0
        %2460 = vmatmul.mubr.bf16.gmra.mrb[0].mxu0 %v2416
        %v2461 = vpop.f32.mrb[0].mxu0
        %v2462 = vadd.f32 0.0, %v2461
        %v2463 = vpop.f32.mrb[0].mxu0
        %v2464 = vpop.f32.mrb[0].mxu0
        %v2465 = vadd.f32 0.0, %v2464
        %v2466 = vpop.f32.mrb[0].mxu0
        %2467 = vmatprep.mubr.bf16.mxu0 0
        %2468 = vmatmul.mubr.bf16.gmra.mrb[0].mxu0 %v2419
        %v2469 = vpop.f32.mrb[0].mxu0
        %v2470 = vadd.f32 0.0, %v2469
        %v2471 = vpop.f32.mrb[0].mxu0
        %v2472 = vpop.f32.mrb[0].mxu0
        %v2473 = vadd.f32 0.0, %v2472
        %v2474 = vpop.f32.mrb[0].mxu0
        %2475 = vdwg.mxu0
        %v2476 = vsel %vm1987, %v2035, -inf
        %2477 = vmax.xlane.f32.xlu0 %v2476
        %v2478 = vpop.xlane.xlu0 %2477
        %v2479 = vsel %vm1987, %v2038, -inf
        %2480 = vmax.xlane.f32.xlu0 %v2479
        %v2481 = vpop.xlane.xlu0 %2480
        %v2482 = vsel %vm1987, %v2043, -inf
        %2483 = vmax.xlane.f32.xlu0 %v2482
        %v2484 = vpop.xlane.xlu0 %2483
        %v2485 = vsel %vm1987, %v2046, -inf
        %2486 = vmax.xlane.f32.xlu0 %v2485
        %v2487 = vpop.xlane.xlu0 %2486
        %v2488 = vsel %vm1987, %v2096, -inf
        %2489 = vmax.xlane.f32.xlu0 %v2488
        %v2490 = vpop.xlane.xlu0 %2489
        %v2491 = vsel %vm1987, %v2099, -inf
        %2492 = vmax.xlane.f32.xlu0 %v2491
        %v2493 = vpop.xlane.xlu0 %2492
        %v2494 = vsel %vm1987, %v2104, -inf
        %2495 = vmax.xlane.f32.xlu0 %v2494
        %v2496 = vpop.xlane.xlu0 %2495
        %v2497 = vsel %vm1987, %v2107, -inf
        %2498 = vmax.xlane.f32.xlu0 %v2497
        %v2499 = vpop.xlane.xlu0 %2498
        %v2500 = vsel %vm1987, %v2157, -inf
        %2501 = vmax.xlane.f32.xlu0 %v2500
        %v2502 = vpop.xlane.xlu0 %2501
        %v2503 = vsel %vm1987, %v2160, -inf
        %2504 = vmax.xlane.f32.xlu0 %v2503
        %v2505 = vpop.xlane.xlu0 %2504
        %v2506 = vsel %vm1987, %v2165, -inf
        %2507 = vmax.xlane.f32.xlu0 %v2506
        %v2508 = vpop.xlane.xlu0 %2507
        %v2509 = vsel %vm1987, %v2168, -inf
        %2510 = vmax.xlane.f32.xlu0 %v2509
        %v2511 = vpop.xlane.xlu0 %2510
        %v2512 = vsel %vm1987, %v2218, -inf
        %2513 = vmax.xlane.f32.xlu0 %v2512
        %v2514 = vpop.xlane.xlu0 %2513
        %v2515 = vsel %vm1987, %v2221, -inf
        %2516 = vmax.xlane.f32.xlu0 %v2515
        %v2517 = vpop.xlane.xlu0 %2516
        %v2518 = vsel %vm1987, %v2226, -inf
        %2519 = vmax.xlane.f32.xlu0 %v2518
        %v2520 = vpop.xlane.xlu0 %2519
        %v2521 = vsel %vm1987, %v2229, -inf
        %2522 = vmax.xlane.f32.xlu0 %v2521
        %v2523 = vpop.xlane.xlu0 %2522
        %v2524 = vsel %vm1987, %v2279, -inf
        %2525 = vmax.xlane.f32.xlu0 %v2524
        %v2526 = vpop.xlane.xlu0 %2525
        %v2527 = vsel %vm1987, %v2282, -inf
        %2528 = vmax.xlane.f32.xlu0 %v2527
        %v2529 = vpop.xlane.xlu0 %2528
        %v2530 = vsel %vm1987, %v2287, -inf
        %2531 = vmax.xlane.f32.xlu0 %v2530
        %v2532 = vpop.xlane.xlu0 %2531
        %v2533 = vsel %vm1987, %v2290, -inf
        %2534 = vmax.xlane.f32.xlu0 %v2533
        %v2535 = vpop.xlane.xlu0 %2534
        %v2536 = vsel %vm1987, %v2340, -inf
        %2537 = vmax.xlane.f32.xlu0 %v2536
        %v2538 = vpop.xlane.xlu0 %2537
        %v2539 = vsel %vm1987, %v2343, -inf
        %2540 = vmax.xlane.f32.xlu0 %v2539
        %v2541 = vpop.xlane.xlu0 %2540
        %v2542 = vsel %vm1987, %v2348, -inf
        %2543 = vmax.xlane.f32.xlu0 %v2542
        %v2544 = vpop.xlane.xlu0 %2543
        %v2545 = vsel %vm1987, %v2351, -inf
        %2546 = vmax.xlane.f32.xlu0 %v2545
        %v2547 = vpop.xlane.xlu0 %2546
        %v2548 = vsel %vm1987, %v2401, -inf
        %2549 = vmax.xlane.f32.xlu0 %v2548
        %v2550 = vpop.xlane.xlu0 %2549
        %v2551 = vsel %vm1987, %v2404, -inf
        %2552 = vmax.xlane.f32.xlu0 %v2551
        %v2553 = vpop.xlane.xlu0 %2552
        %v2554 = vsel %vm1987, %v2409, -inf
        %2555 = vmax.xlane.f32.xlu0 %v2554
        %v2556 = vpop.xlane.xlu0 %2555
        %v2557 = vsel %vm1987, %v2412, -inf
        %2558 = vmax.xlane.f32.xlu0 %v2557
        %v2559 = vpop.xlane.xlu0 %2558
        %v2560 = vsel %vm1987, %v2462, -inf
        %2561 = vmax.xlane.f32.xlu0 %v2560
        %v2562 = vpop.xlane.xlu0 %2561
        %v2563 = vsel %vm1987, %v2465, -inf
        %2564 = vmax.xlane.f32.xlu0 %v2563
        %v2565 = vpop.xlane.xlu0 %2564
        %v2566 = vsel %vm1987, %v2470, -inf
        %2567 = vmax.xlane.f32.xlu0 %v2566
        %v2568 = vpop.xlane.xlu0 %2567
        %v2569 = vsel %vm1987, %v2473, -inf
        %2570 = vmax.xlane.f32.xlu0 %v2569
        %v2571 = vpop.xlane.xlu0 %2570
        %v2572 = vsub.f32 %v2035, %v2478
        %v2573 = vsub.f32 %v2038, %v2481
        %v2574 = vsub.f32 %v2043, %v2484
        %v2575 = vsub.f32 %v2046, %v2487
        %v2576 = vsub.f32 %v2096, %v2490
        %v2577 = vsub.f32 %v2099, %v2493
        %v2578 = vsub.f32 %v2104, %v2496
        %v2579 = vsub.f32 %v2107, %v2499
        %v2580 = vsub.f32 %v2157, %v2502
        %v2581 = vsub.f32 %v2160, %v2505
        %v2582 = vsub.f32 %v2165, %v2508
        %v2583 = vsub.f32 %v2168, %v2511
        %v2584 = vsub.f32 %v2218, %v2514
        %v2585 = vsub.f32 %v2221, %v2517
        %v2586 = vsub.f32 %v2226, %v2520
        %v2587 = vsub.f32 %v2229, %v2523
        %v2588 = vsub.f32 %v2279, %v2526
        %v2589 = vsub.f32 %v2282, %v2529
        %v2590 = vsub.f32 %v2287, %v2532
        %v2591 = vsub.f32 %v2290, %v2535
        %v2592 = vsub.f32 %v2340, %v2538
        %v2593 = vsub.f32 %v2343, %v2541
        %v2594 = vsub.f32 %v2348, %v2544
        %v2595 = vsub.f32 %v2351, %v2547
        %v2596 = vsub.f32 %v2401, %v2550
        %v2597 = vsub.f32 %v2404, %v2553
        %v2598 = vsub.f32 %v2409, %v2556
        %v2599 = vsub.f32 %v2412, %v2559
        %v2600 = vsub.f32 %v2462, %v2562
        %v2601 = vsub.f32 %v2465, %v2565
        %v2602 = vsub.f32 %v2470, %v2568
        %v2603 = vsub.f32 %v2473, %v2571
        %v2604 = vmul.f32 %v2572, 1.442695
        %v2605 = vpow.pop %v2604
        %v2606 = vmul.f32 %v2573, 1.442695
        %v2607 = vpow.pop %v2606
        %v2608 = vmul.f32 %v2574, 1.442695
        %v2609 = vpow.pop %v2608
        %v2610 = vmul.f32 %v2575, 1.442695
        %v2611 = vpow.pop %v2610
        %v2612 = vmul.f32 %v2576, 1.442695
        %v2613 = vpow.pop %v2612
        %v2614 = vmul.f32 %v2577, 1.442695
        %v2615 = vpow.pop %v2614
        %v2616 = vmul.f32 %v2578, 1.442695
        %v2617 = vpow.pop %v2616
        %v2618 = vmul.f32 %v2579, 1.442695
        %v2619 = vpow.pop %v2618
        %v2620 = vmul.f32 %v2580, 1.442695
        %v2621 = vpow.pop %v2620
        %v2622 = vmul.f32 %v2581, 1.442695
        %v2623 = vpow.pop %v2622
        %v2624 = vmul.f32 %v2582, 1.442695
        %v2625 = vpow.pop %v2624
        %v2626 = vmul.f32 %v2583, 1.442695
        %v2627 = vpow.pop %v2626
        %v2628 = vmul.f32 %v2584, 1.442695
        %v2629 = vpow.pop %v2628
        %v2630 = vmul.f32 %v2585, 1.442695
        %v2631 = vpow.pop %v2630
        %v2632 = vmul.f32 %v2586, 1.442695
        %v2633 = vpow.pop %v2632
        %v2634 = vmul.f32 %v2587, 1.442695
        %v2635 = vpow.pop %v2634
        %v2636 = vmul.f32 %v2588, 1.442695
        %v2637 = vpow.pop %v2636
        %v2638 = vmul.f32 %v2589, 1.442695
        %v2639 = vpow.pop %v2638
        %v2640 = vmul.f32 %v2590, 1.442695
        %v2641 = vpow.pop %v2640
        %v2642 = vmul.f32 %v2591, 1.442695
        %v2643 = vpow.pop %v2642
        %v2644 = vmul.f32 %v2592, 1.442695
        %v2645 = vpow.pop %v2644
        %v2646 = vmul.f32 %v2593, 1.442695
        %v2647 = vpow.pop %v2646
        %v2648 = vmul.f32 %v2594, 1.442695
        %v2649 = vpow.pop %v2648
        %v2650 = vmul.f32 %v2595, 1.442695
        %v2651 = vpow.pop %v2650
        %v2652 = vmul.f32 %v2596, 1.442695
        %v2653 = vpow.pop %v2652
        %v2654 = vmul.f32 %v2597, 1.442695
        %v2655 = vpow.pop %v2654
        %v2656 = vmul.f32 %v2598, 1.442695
        %v2657 = vpow.pop %v2656
        %v2658 = vmul.f32 %v2599, 1.442695
        %v2659 = vpow.pop %v2658
        %v2660 = vmul.f32 %v2600, 1.442695
        %v2661 = vpow.pop %v2660
        %v2662 = vmul.f32 %v2601, 1.442695
        %v2663 = vpow.pop %v2662
        %v2664 = vmul.f32 %v2602, 1.442695
        %v2665 = vpow.pop %v2664
        %v2666 = vmul.f32 %v2603, 1.442695
        %v2667 = vpow.pop %v2666
        %v2668 = vsel %vm1987, %v2605, 0.0
        %2669 = vadd.xlane.f32.xlu0 %v2668
        %v2670 = vpop.xlane.xlu0 %2669
        %v2671 = vsel %vm1987, %v2607, 0.0
        %2672 = vadd.xlane.f32.xlu0 %v2671
        %v2673 = vpop.xlane.xlu0 %2672
        %v2674 = vsel %vm1987, %v2609, 0.0
        %2675 = vadd.xlane.f32.xlu0 %v2674
        %v2676 = vpop.xlane.xlu0 %2675
        %v2677 = vsel %vm1987, %v2611, 0.0
        %2678 = vadd.xlane.f32.xlu0 %v2677
        %v2679 = vpop.xlane.xlu0 %2678
        %v2680 = vsel %vm1987, %v2613, 0.0
        %2681 = vadd.xlane.f32.xlu0 %v2680
        %v2682 = vpop.xlane.xlu0 %2681
        %v2683 = vsel %vm1987, %v2615, 0.0
        %2684 = vadd.xlane.f32.xlu0 %v2683
        %v2685 = vpop.xlane.xlu0 %2684
        %v2686 = vsel %vm1987, %v2617, 0.0
        %2687 = vadd.xlane.f32.xlu0 %v2686
        %v2688 = vpop.xlane.xlu0 %2687
        %v2689 = vsel %vm1987, %v2619, 0.0
        %2690 = vadd.xlane.f32.xlu0 %v2689
        %v2691 = vpop.xlane.xlu0 %2690
        %v2692 = vsel %vm1987, %v2621, 0.0
        %2693 = vadd.xlane.f32.xlu0 %v2692
        %v2694 = vpop.xlane.xlu0 %2693
        %v2695 = vsel %vm1987, %v2623, 0.0
        %2696 = vadd.xlane.f32.xlu0 %v2695
        %v2697 = vpop.xlane.xlu0 %2696
        %v2698 = vsel %vm1987, %v2625, 0.0
        %2699 = vadd.xlane.f32.xlu0 %v2698
        %v2700 = vpop.xlane.xlu0 %2699
        %v2701 = vsel %vm1987, %v2627, 0.0
        %2702 = vadd.xlane.f32.xlu0 %v2701
        %v2703 = vpop.xlane.xlu0 %2702
        %v2704 = vsel %vm1987, %v2629, 0.0
        %2705 = vadd.xlane.f32.xlu0 %v2704
        %v2706 = vpop.xlane.xlu0 %2705
        %v2707 = vsel %vm1987, %v2631, 0.0
        %2708 = vadd.xlane.f32.xlu0 %v2707
        %v2709 = vpop.xlane.xlu0 %2708
        %v2710 = vsel %vm1987, %v2633, 0.0
        %2711 = vadd.xlane.f32.xlu0 %v2710
        %v2712 = vpop.xlane.xlu0 %2711
        %v2713 = vsel %vm1987, %v2635, 0.0
        %2714 = vadd.xlane.f32.xlu0 %v2713
        %v2715 = vpop.xlane.xlu0 %2714
        %v2716 = vsel %vm1987, %v2637, 0.0
        %2717 = vadd.xlane.f32.xlu0 %v2716
        %v2718 = vpop.xlane.xlu0 %2717
        %v2719 = vsel %vm1987, %v2639, 0.0
        %2720 = vadd.xlane.f32.xlu0 %v2719
        %v2721 = vpop.xlane.xlu0 %2720
        %v2722 = vsel %vm1987, %v2641, 0.0
        %2723 = vadd.xlane.f32.xlu0 %v2722
        %v2724 = vpop.xlane.xlu0 %2723
        %v2725 = vsel %vm1987, %v2643, 0.0
        %2726 = vadd.xlane.f32.xlu0 %v2725
        %v2727 = vpop.xlane.xlu0 %2726
        %v2728 = vsel %vm1987, %v2645, 0.0
        %2729 = vadd.xlane.f32.xlu0 %v2728
        %v2730 = vpop.xlane.xlu0 %2729
        %v2731 = vsel %vm1987, %v2647, 0.0
        %2732 = vadd.xlane.f32.xlu0 %v2731
        %v2733 = vpop.xlane.xlu0 %2732
        %v2734 = vsel %vm1987, %v2649, 0.0
        %2735 = vadd.xlane.f32.xlu0 %v2734
        %v2736 = vpop.xlane.xlu0 %2735
        %v2737 = vsel %vm1987, %v2651, 0.0
        %2738 = vadd.xlane.f32.xlu0 %v2737
        %v2739 = vpop.xlane.xlu0 %2738
        %v2740 = vsel %vm1987, %v2653, 0.0
        %2741 = vadd.xlane.f32.xlu0 %v2740
        %v2742 = vpop.xlane.xlu0 %2741
        %v2743 = vsel %vm1987, %v2655, 0.0
        %2744 = vadd.xlane.f32.xlu0 %v2743
        %v2745 = vpop.xlane.xlu0 %2744
        %v2746 = vsel %vm1987, %v2657, 0.0
        %2747 = vadd.xlane.f32.xlu0 %v2746
        %v2748 = vpop.xlane.xlu0 %2747
        %v2749 = vsel %vm1987, %v2659, 0.0
        %2750 = vadd.xlane.f32.xlu0 %v2749
        %v2751 = vpop.xlane.xlu0 %2750
        %v2752 = vsel %vm1987, %v2661, 0.0
        %2753 = vadd.xlane.f32.xlu0 %v2752
        %v2754 = vpop.xlane.xlu0 %2753
        %v2755 = vsel %vm1987, %v2663, 0.0
        %2756 = vadd.xlane.f32.xlu0 %v2755
        %v2757 = vpop.xlane.xlu0 %2756
        %v2758 = vsel %vm1987, %v2665, 0.0
        %2759 = vadd.xlane.f32.xlu0 %v2758
        %v2760 = vpop.xlane.xlu0 %2759
        %v2761 = vsel %vm1987, %v2667, 0.0
        %2762 = vadd.xlane.f32.xlu0 %v2761
        %v2763 = vpop.xlane.xlu0 %2762
        %v2764 = vrcp.pop %v2670
        %v2765 = vrcp.pop %v2673
        %v2766 = vrcp.pop %v2676
        %v2767 = vrcp.pop %v2679
        %v2768 = vrcp.pop %v2682
        %v2769 = vrcp.pop %v2685
        %v2770 = vrcp.pop %v2688
        %v2771 = vrcp.pop %v2691
        %v2772 = vrcp.pop %v2694
        %v2773 = vrcp.pop %v2697
        %v2774 = vrcp.pop %v2700
        %v2775 = vrcp.pop %v2703
        %v2776 = vrcp.pop %v2706
        %v2777 = vrcp.pop %v2709
        %v2778 = vrcp.pop %v2712
        %v2779 = vrcp.pop %v2715
        %v2780 = vrcp.pop %v2718
        %v2781 = vrcp.pop %v2721
        %v2782 = vrcp.pop %v2724
        %v2783 = vrcp.pop %v2727
        %v2784 = vrcp.pop %v2730
        %v2785 = vrcp.pop %v2733
        %v2786 = vrcp.pop %v2736
        %v2787 = vrcp.pop %v2739
        %v2788 = vrcp.pop %v2742
        %v2789 = vrcp.pop %v2745
        %v2790 = vrcp.pop %v2748
        %v2791 = vrcp.pop %v2751
        %v2792 = vrcp.pop %v2754
        %v2793 = vrcp.pop %v2757
        %v2794 = vrcp.pop %v2760
        %v2795 = vrcp.pop %v2763
        %v2796 = vmul.f32 %v2605, %v2764
        %v2797 = vmul.f32 %v2607, %v2765
        %v2798 = vmul.f32 %v2609, %v2766
        %v2799 = vmul.f32 %v2611, %v2767
        %v2800 = vmul.f32 %v2613, %v2768
        %v2801 = vmul.f32 %v2615, %v2769
        %v2802 = vmul.f32 %v2617, %v2770
        %v2803 = vmul.f32 %v2619, %v2771
        %v2804 = vmul.f32 %v2621, %v2772
        %v2805 = vmul.f32 %v2623, %v2773
        %v2806 = vmul.f32 %v2625, %v2774
        %v2807 = vmul.f32 %v2627, %v2775
        %v2808 = vmul.f32 %v2629, %v2776
        %v2809 = vmul.f32 %v2631, %v2777
        %v2810 = vmul.f32 %v2633, %v2778
        %v2811 = vmul.f32 %v2635, %v2779
        %v2812 = vmul.f32 %v2637, %v2780
        %v2813 = vmul.f32 %v2639, %v2781
        %v2814 = vmul.f32 %v2641, %v2782
        %v2815 = vmul.f32 %v2643, %v2783
        %v2816 = vmul.f32 %v2645, %v2784
        %v2817 = vmul.f32 %v2647, %v2785
        %v2818 = vmul.f32 %v2649, %v2786
        %v2819 = vmul.f32 %v2651, %v2787
        %v2820 = vmul.f32 %v2653, %v2788
        %v2821 = vmul.f32 %v2655, %v2789
        %v2822 = vmul.f32 %v2657, %v2790
        %v2823 = vmul.f32 %v2659, %v2791
        %v2824 = vmul.f32 %v2661, %v2792
        %v2825 = vmul.f32 %v2663, %v2793
        %v2826 = vmul.f32 %v2665, %v2794
        %v2827 = vmul.f32 %v2667, %v2795
        %v2828 = vpack.c.bf16 %v2797, %v2796
        %v2829 = vpack.c.bf16 %v2799, %v2798
        %v2830 = vpack.c.bf16 %v2801, %v2800
        %v2831 = vpack.c.bf16 %v2803, %v2802
        %v2832 = vpack.c.bf16 %v2805, %v2804
        %v2833 = vpack.c.bf16 %v2807, %v2806
        %v2834 = vpack.c.bf16 %v2809, %v2808
        %v2835 = vpack.c.bf16 %v2811, %v2810
        %v2836 = vpack.c.bf16 %v2813, %v2812
        %v2837 = vpack.c.bf16 %v2815, %v2814
        %v2838 = vpack.c.bf16 %v2817, %v2816
        %v2839 = vpack.c.bf16 %v2819, %v2818
        %v2840 = vpack.c.bf16 %v2821, %v2820
        %v2841 = vpack.c.bf16 %v2823, %v2822
        %v2842 = vpack.c.bf16 %v2825, %v2824
        %v2843 = vpack.c.bf16 %v2827, %v2826
        %v2845 = vsel %vm1987, %v2828, 0
        %v2848 = vsel %vm1987, %v2829, 0
        %2850 = vmatprep.subr.bf16.mxu0 0
        %2851 = vmatpush1.bf16.msra.mxu0 %v1971
        %2852 = vmatprep.subr.bf16.mxu0 0
        %2853 = vmatpush1.bf16.msra.mxu0 %v1972
        %2854 = vmatprep.subr.bf16.mxu0 0
        %2855 = vmatpush1.bf16.msra.mxu0 0
        %2856 = vmatprep.subr.bf16.mxu0 0
        %2857 = vmatpush1.bf16.msra.mxu0 0
        %2858 = vmatprep.subr.bf16.mxu0 0
        %2859 = vmatpush1.bf16.msra.mxu0 0
        %2860 = vmatprep.subr.bf16.mxu0 0
        %2861 = vmatpush1.bf16.msra.mxu0 0
        %2862 = vmatprep.subr.bf16.mxu0 0
        %2863 = vmatpush1.bf16.msra.mxu0 0
        %2864 = vmatprep.subr.bf16.mxu0 0
        %2865 = vmatpush1.bf16.msra.mxu0 0
        %2866 = vmatprep.subr.bf16.mxu0 0
        %2867 = vmatpush1.bf16.msra.mxu0 0
        %2868 = vmatprep.subr.bf16.mxu0 0
        %2869 = vmatpush1.bf16.msra.mxu0 0
        %2870 = vmatprep.subr.bf16.mxu0 0
        %2871 = vmatpush1.bf16.msra.mxu0 0
        %2872 = vmatprep.subr.bf16.mxu0 0
        %2873 = vmatpush1.bf16.msra.mxu0 0
        %2874 = vmatprep.subr.bf16.mxu0 0
        %2875 = vmatpush1.bf16.msra.mxu0 0
        %2876 = vmatprep.subr.bf16.mxu0 0
        %2877 = vmatpush1.bf16.msra.mxu0 0
        %2878 = vmatprep.subr.bf16.mxu0 0
        %2879 = vmatpush1.bf16.msra.mxu0 0
        %2880 = vmatprep.subr.bf16.mxu0 0
        %2881 = vmatpush1.bf16.msra.mxu0 0
        %2882 = vmatprep.mubr.bf16.mxu0 0
        %2883 = vmatmul.mubr.bf16.gmra.mrb[0].mxu0 %v2845
        %v2884 = vpop.f32.mrb[0].mxu0
        %v2885 = vadd.f32 0.0, %v2884
        %v2886 = vpop.f32.mrb[0].mxu0
        %v2887 = vpop.f32.mrb[0].mxu0
        %v2888 = vadd.f32 0.0, %v2887
        %v2889 = vpop.f32.mrb[0].mxu0
        %2890 = vmatprep.mubr.bf16.mxu0 0
        %2891 = vmatmul.mubr.bf16.gmra.mrb[0].mxu0 %v2848
        %v2892 = vpop.f32.mrb[0].mxu0
        %v2893 = vadd.f32 0.0, %v2892
        %v2894 = vpop.f32.mrb[0].mxu0
        %v2895 = vpop.f32.mrb[0].mxu0
        %v2896 = vadd.f32 0.0, %v2895
        %v2897 = vpop.f32.mrb[0].mxu0
        %2898 = vdwg.mxu0
        %v2900 = vsel %vm1987, %v2830, 0
        %v2903 = vsel %vm1987, %v2831, 0
        %2905 = vmatprep.subr.bf16.mxu0 0
        %2906 = vmatpush1.bf16.msra.mxu0 %v1973
        %2907 = vmatprep.subr.bf16.mxu0 0
        %2908 = vmatpush1.bf16.msra.mxu0 %v1974
        %2909 = vmatprep.subr.bf16.mxu0 0
        %2910 = vmatpush1.bf16.msra.mxu0 0
        %2911 = vmatprep.subr.bf16.mxu0 0
        %2912 = vmatpush1.bf16.msra.mxu0 0
        %2913 = vmatprep.subr.bf16.mxu0 0
        %2914 = vmatpush1.bf16.msra.mxu0 0
        %2915 = vmatprep.subr.bf16.mxu0 0
        %2916 = vmatpush1.bf16.msra.mxu0 0
        %2917 = vmatprep.subr.bf16.mxu0 0
        %2918 = vmatpush1.bf16.msra.mxu0 0
        %2919 = vmatprep.subr.bf16.mxu0 0
        %2920 = vmatpush1.bf16.msra.mxu0 0
        %2921 = vmatprep.subr.bf16.mxu0 0
        %2922 = vmatpush1.bf16.msra.mxu0 0
        %2923 = vmatprep.subr.bf16.mxu0 0
        %2924 = vmatpush1.bf16.msra.mxu0 0
        %2925 = vmatprep.subr.bf16.mxu0 0
        %2926 = vmatpush1.bf16.msra.mxu0 0
        %2927 = vmatprep.subr.bf16.mxu0 0
        %2928 = vmatpush1.bf16.msra.mxu0 0
        %2929 = vmatprep.subr.bf16.mxu0 0
        %2930 = vmatpush1.bf16.msra.mxu0 0
        %2931 = vmatprep.subr.bf16.mxu0 0
        %2932 = vmatpush1.bf16.msra.mxu0 0
        %2933 = vmatprep.subr.bf16.mxu0 0
        %2934 = vmatpush1.bf16.msra.mxu0 0
        %2935 = vmatprep.subr.bf16.mxu0 0
        %2936 = vmatpush1.bf16.msra.mxu0 0
        %2937 = vmatprep.mubr.bf16.mxu0 0
        %2938 = vmatmul.mubr.bf16.gmra.mrb[0].mxu0 %v2900
        %v2939 = vpop.f32.mrb[0].mxu0
        %v2940 = vadd.f32 0.0, %v2939
        %v2941 = vpop.f32.mrb[0].mxu0
        %v2942 = vpop.f32.mrb[0].mxu0
        %v2943 = vadd.f32 0.0, %v2942
        %v2944 = vpop.f32.mrb[0].mxu0
        %2945 = vmatprep.mubr.bf16.mxu0 0
        %2946 = vmatmul.mubr.bf16.gmra.mrb[0].mxu0 %v2903
        %v2947 = vpop.f32.mrb[0].mxu0
        %v2948 = vadd.f32 0.0, %v2947
        %v2949 = vpop.f32.mrb[0].mxu0
        %v2950 = vpop.f32.mrb[0].mxu0
        %v2951 = vadd.f32 0.0, %v2950
        %v2952 = vpop.f32.mrb[0].mxu0
        %2953 = vdwg.mxu0
        %v2955 = vsel %vm1987, %v2832, 0
        %v2958 = vsel %vm1987, %v2833, 0
        %2960 = vmatprep.subr.bf16.mxu0 0
        %2961 = vmatpush1.bf16.msra.mxu0 %v1975
        %2962 = vmatprep.subr.bf16.mxu0 0
        %2963 = vmatpush1.bf16.msra.mxu0 %v1976
        %2964 = vmatprep.subr.bf16.mxu0 0
        %2965 = vmatpush1.bf16.msra.mxu0 0
        %2966 = vmatprep.subr.bf16.mxu0 0
        %2967 = vmatpush1.bf16.msra.mxu0 0
        %2968 = vmatprep.subr.bf16.mxu0 0
        %2969 = vmatpush1.bf16.msra.mxu0 0
        %2970 = vmatprep.subr.bf16.mxu0 0
        %2971 = vmatpush1.bf16.msra.mxu0 0
        %2972 = vmatprep.subr.bf16.mxu0 0
        %2973 = vmatpush1.bf16.msra.mxu0 0
        %2974 = vmatprep.subr.bf16.mxu0 0
        %2975 = vmatpush1.bf16.msra.mxu0 0
        %2976 = vmatprep.subr.bf16.mxu0 0
        %2977 = vmatpush1.bf16.msra.mxu0 0
        %2978 = vmatprep.subr.bf16.mxu0 0
        %2979 = vmatpush1.bf16.msra.mxu0 0
        %2980 = vmatprep.subr.bf16.mxu0 0
        %2981 = vmatpush1.bf16.msra.mxu0 0
        %2982 = vmatprep.subr.bf16.mxu0 0
        %2983 = vmatpush1.bf16.msra.mxu0 0
        %2984 = vmatprep.subr.bf16.mxu0 0
        %2985 = vmatpush1.bf16.msra.mxu0 0
        %2986 = vmatprep.subr.bf16.mxu0 0
        %2987 = vmatpush1.bf16.msra.mxu0 0
        %2988 = vmatprep.subr.bf16.mxu0 0
        %2989 = vmatpush1.bf16.msra.mxu0 0
        %2990 = vmatprep.subr.bf16.mxu0 0
        %2991 = vmatpush1.bf16.msra.mxu0 0
        %2992 = vmatprep.mubr.bf16.mxu0 0
        %2993 = vmatmul.mubr.bf16.gmra.mrb[0].mxu0 %v2955
        %v2994 = vpop.f32.mrb[0].mxu0
        %v2995 = vadd.f32 0.0, %v2994
        %v2996 = vpop.f32.mrb[0].mxu0
        %v2997 = vpop.f32.mrb[0].mxu0
        %v2998 = vadd.f32 0.0, %v2997
        %v2999 = vpop.f32.mrb[0].mxu0
        %3000 = vmatprep.mubr.bf16.mxu0 0
        %3001 = vmatmul.mubr.bf16.gmra.mrb[0].mxu0 %v2958
        %v3002 = vpop.f32.mrb[0].mxu0
        %v3003 = vadd.f32 0.0, %v3002
        %v3004 = vpop.f32.mrb[0].mxu0
        %v3005 = vpop.f32.mrb[0].mxu0
        %v3006 = vadd.f32 0.0, %v3005
        %v3007 = vpop.f32.mrb[0].mxu0
        %3008 = vdwg.mxu0
        %v3010 = vsel %vm1987, %v2834, 0
        %v3013 = vsel %vm1987, %v2835, 0
        %3015 = vmatprep.subr.bf16.mxu0 0
        %3016 = vmatpush1.bf16.msra.mxu0 %v1977
        %3017 = vmatprep.subr.bf16.mxu0 0
        %3018 = vmatpush1.bf16.msra.mxu0 %v1978
        %3019 = vmatprep.subr.bf16.mxu0 0
        %3020 = vmatpush1.bf16.msra.mxu0 0
        %3021 = vmatprep.subr.bf16.mxu0 0
        %3022 = vmatpush1.bf16.msra.mxu0 0
        %3023 = vmatprep.subr.bf16.mxu0 0
        %3024 = vmatpush1.bf16.msra.mxu0 0
        %3025 = vmatprep.subr.bf16.mxu0 0
        %3026 = vmatpush1.bf16.msra.mxu0 0
        %3027 = vmatprep.subr.bf16.mxu0 0
        %3028 = vmatpush1.bf16.msra.mxu0 0
        %3029 = vmatprep.subr.bf16.mxu0 0
        %3030 = vmatpush1.bf16.msra.mxu0 0
        %3031 = vmatprep.subr.bf16.mxu0 0
        %3032 = vmatpush1.bf16.msra.mxu0 0
        %3033 = vmatprep.subr.bf16.mxu0 0
        %3034 = vmatpush1.bf16.msra.mxu0 0
        %3035 = vmatprep.subr.bf16.mxu0 0
        %3036 = vmatpush1.bf16.msra.mxu0 0
        %3037 = vmatprep.subr.bf16.mxu0 0
        %3038 = vmatpush1.bf16.msra.mxu0 0
        %3039 = vmatprep.subr.bf16.mxu0 0
        %3040 = vmatpush1.bf16.msra.mxu0 0
        %3041 = vmatprep.subr.bf16.mxu0 0
        %3042 = vmatpush1.bf16.msra.mxu0 0
        %3043 = vmatprep.subr.bf16.mxu0 0
        %3044 = vmatpush1.bf16.msra.mxu0 0
        %3045 = vmatprep.subr.bf16.mxu0 0
        %3046 = vmatpush1.bf16.msra.mxu0 0
        %3047 = vmatprep.mubr.bf16.mxu0 0
        %3048 = vmatmul.mubr.bf16.gmra.mrb[0].mxu0 %v3010
        %v3049 = vpop.f32.mrb[0].mxu0
        %v3050 = vadd.f32 0.0, %v3049
        %v3051 = vpop.f32.mrb[0].mxu0
        %v3052 = vpop.f32.mrb[0].mxu0
        %v3053 = vadd.f32 0.0, %v3052
        %v3054 = vpop.f32.mrb[0].mxu0
        %3055 = vmatprep.mubr.bf16.mxu0 0
        %3056 = vmatmul.mubr.bf16.gmra.mrb[0].mxu0 %v3013
        %v3057 = vpop.f32.mrb[0].mxu0
        %v3058 = vadd.f32 0.0, %v3057
        %v3059 = vpop.f32.mrb[0].mxu0
        %v3060 = vpop.f32.mrb[0].mxu0
        %v3061 = vadd.f32 0.0, %v3060
        %v3062 = vpop.f32.mrb[0].mxu0
        %3063 = vdwg.mxu0
        %v3065 = vsel %vm1987, %v2836, 0
        %v3068 = vsel %vm1987, %v2837, 0
        %3070 = vmatprep.subr.bf16.mxu0 0
        %3071 = vmatpush1.bf16.msra.mxu0 %v1979
        %3072 = vmatprep.subr.bf16.mxu0 0
        %3073 = vmatpush1.bf16.msra.mxu0 %v1980
        %3074 = vmatprep.subr.bf16.mxu0 0
        %3075 = vmatpush1.bf16.msra.mxu0 0
        %3076 = vmatprep.subr.bf16.mxu0 0
        %3077 = vmatpush1.bf16.msra.mxu0 0
        %3078 = vmatprep.subr.bf16.mxu0 0
        %3079 = vmatpush1.bf16.msra.mxu0 0
        %3080 = vmatprep.subr.bf16.mxu0 0
        %3081 = vmatpush1.bf16.msra.mxu0 0
        %3082 = vmatprep.subr.bf16.mxu0 0
        %3083 = vmatpush1.bf16.msra.mxu0 0
        %3084 = vmatprep.subr.bf16.mxu0 0
        %3085 = vmatpush1.bf16.msra.mxu0 0
        %3086 = vmatprep.subr.bf16.mxu0 0
        %3087 = vmatpush1.bf16.msra.mxu0 0
        %3088 = vmatprep.subr.bf16.mxu0 0
        %3089 = vmatpush1.bf16.msra.mxu0 0
        %3090 = vmatprep.subr.bf16.mxu0 0
        %3091 = vmatpush1.bf16.msra.mxu0 0
        %3092 = vmatprep.subr.bf16.mxu0 0
        %3093 = vmatpush1.bf16.msra.mxu0 0
        %3094 = vmatprep.subr.bf16.mxu0 0
        %3095 = vmatpush1.bf16.msra.mxu0 0
        %3096 = vmatprep.subr.bf16.mxu0 0
        %3097 = vmatpush1.bf16.msra.mxu0 0
        %3098 = vmatprep.subr.bf16.mxu0 0
        %3099 = vmatpush1.bf16.msra.mxu0 0
        %3100 = vmatprep.subr.bf16.mxu0 0
        %3101 = vmatpush1.bf16.msra.mxu0 0
        %3102 = vmatprep.mubr.bf16.mxu0 0
        %3103 = vmatmul.mubr.bf16.gmra.mrb[0].mxu0 %v3065
        %v3104 = vpop.f32.mrb[0].mxu0
        %v3105 = vadd.f32 0.0, %v3104
        %v3106 = vpop.f32.mrb[0].mxu0
        %v3107 = vpop.f32.mrb[0].mxu0
        %v3108 = vadd.f32 0.0, %v3107
        %v3109 = vpop.f32.mrb[0].mxu0
        %3110 = vmatprep.mubr.bf16.mxu0 0
        %3111 = vmatmul.mubr.bf16.gmra.mrb[0].mxu0 %v3068
        %v3112 = vpop.f32.mrb[0].mxu0
        %v3113 = vadd.f32 0.0, %v3112
        %v3114 = vpop.f32.mrb[0].mxu0
        %v3115 = vpop.f32.mrb[0].mxu0
        %v3116 = vadd.f32 0.0, %v3115
        %v3117 = vpop.f32.mrb[0].mxu0
        %3118 = vdwg.mxu0
        %v3120 = vsel %vm1987, %v2838, 0
        %v3123 = vsel %vm1987, %v2839, 0
        %3125 = vmatprep.subr.bf16.mxu0 0
        %3126 = vmatpush1.bf16.msra.mxu0 %v1981
        %3127 = vmatprep.subr.bf16.mxu0 0
        %3128 = vmatpush1.bf16.msra.mxu0 %v1982
        %3129 = vmatprep.subr.bf16.mxu0 0
        %3130 = vmatpush1.bf16.msra.mxu0 0
        %3131 = vmatprep.subr.bf16.mxu0 0
        %3132 = vmatpush1.bf16.msra.mxu0 0
        %3133 = vmatprep.subr.bf16.mxu0 0
        %3134 = vmatpush1.bf16.msra.mxu0 0
        %3135 = vmatprep.subr.bf16.mxu0 0
        %3136 = vmatpush1.bf16.msra.mxu0 0
        %3137 = vmatprep.subr.bf16.mxu0 0
        %3138 = vmatpush1.bf16.msra.mxu0 0
        %3139 = vmatprep.subr.bf16.mxu0 0
        %3140 = vmatpush1.bf16.msra.mxu0 0
        %3141 = vmatprep.subr.bf16.mxu0 0
        %3142 = vmatpush1.bf16.msra.mxu0 0
        %3143 = vmatprep.subr.bf16.mxu0 0
        %3144 = vmatpush1.bf16.msra.mxu0 0
        %3145 = vmatprep.subr.bf16.mxu0 0
        %3146 = vmatpush1.bf16.msra.mxu0 0
        %3147 = vmatprep.subr.bf16.mxu0 0
        %3148 = vmatpush1.bf16.msra.mxu0 0
        %3149 = vmatprep.subr.bf16.mxu0 0
        %3150 = vmatpush1.bf16.msra.mxu0 0
        %3151 = vmatprep.subr.bf16.mxu0 0
        %3152 = vmatpush1.bf16.msra.mxu0 0
        %3153 = vmatprep.subr.bf16.mxu0 0
        %3154 = vmatpush1.bf16.msra.mxu0 0
        %3155 = vmatprep.subr.bf16.mxu0 0
        %3156 = vmatpush1.bf16.msra.mxu0 0
        %3157 = vmatprep.mubr.bf16.mxu0 0
        %3158 = vmatmul.mubr.bf16.gmra.mrb[0].mxu0 %v3120
        %v3159 = vpop.f32.mrb[0].mxu0
        %v3160 = vadd.f32 0.0, %v3159
        %v3161 = vpop.f32.mrb[0].mxu0
        %v3162 = vpop.f32.mrb[0].mxu0
        %v3163 = vadd.f32 0.0, %v3162
        %v3164 = vpop.f32.mrb[0].mxu0
        %3165 = vmatprep.mubr.bf16.mxu0 0
        %3166 = vmatmul.mubr.bf16.gmra.mrb[0].mxu0 %v3123
        %v3167 = vpop.f32.mrb[0].mxu0
        %v3168 = vadd.f32 0.0, %v3167
        %v3169 = vpop.f32.mrb[0].mxu0
        %v3170 = vpop.f32.mrb[0].mxu0
        %v3171 = vadd.f32 0.0, %v3170
        %v3172 = vpop.f32.mrb[0].mxu0
        %3173 = vdwg.mxu0
        %v3175 = vsel %vm1987, %v2840, 0
        %v3178 = vsel %vm1987, %v2841, 0
        %3180 = vmatprep.subr.bf16.mxu0 0
        %3181 = vmatpush1.bf16.msra.mxu0 %v1983
        %3182 = vmatprep.subr.bf16.mxu0 0
        %3183 = vmatpush1.bf16.msra.mxu0 %v1984
        %3184 = vmatprep.subr.bf16.mxu0 0
        %3185 = vmatpush1.bf16.msra.mxu0 0
        %3186 = vmatprep.subr.bf16.mxu0 0
        %3187 = vmatpush1.bf16.msra.mxu0 0
        %3188 = vmatprep.subr.bf16.mxu0 0
        %3189 = vmatpush1.bf16.msra.mxu0 0
        %3190 = vmatprep.subr.bf16.mxu0 0
        %3191 = vmatpush1.bf16.msra.mxu0 0
        %3192 = vmatprep.subr.bf16.mxu0 0
        %3193 = vmatpush1.bf16.msra.mxu0 0
        %3194 = vmatprep.subr.bf16.mxu0 0
        %3195 = vmatpush1.bf16.msra.mxu0 0
        %3196 = vmatprep.subr.bf16.mxu0 0
        %3197 = vmatpush1.bf16.msra.mxu0 0
        %3198 = vmatprep.subr.bf16.mxu0 0
        %3199 = vmatpush1.bf16.msra.mxu0 0
        %3200 = vmatprep.subr.bf16.mxu0 0
        %3201 = vmatpush1.bf16.msra.mxu0 0
        %3202 = vmatprep.subr.bf16.mxu0 0
        %3203 = vmatpush1.bf16.msra.mxu0 0
        %3204 = vmatprep.subr.bf16.mxu0 0
        %3205 = vmatpush1.bf16.msra.mxu0 0
        %3206 = vmatprep.subr.bf16.mxu0 0
        %3207 = vmatpush1.bf16.msra.mxu0 0
        %3208 = vmatprep.subr.bf16.mxu0 0
        %3209 = vmatpush1.bf16.msra.mxu0 0
        %3210 = vmatprep.subr.bf16.mxu0 0
        %3211 = vmatpush1.bf16.msra.mxu0 0
        %3212 = vmatprep.mubr.bf16.mxu0 0
        %3213 = vmatmul.mubr.bf16.gmra.mrb[0].mxu0 %v3175
        %v3214 = vpop.f32.mrb[0].mxu0
        %v3215 = vadd.f32 0.0, %v3214
        %v3216 = vpop.f32.mrb[0].mxu0
        %v3217 = vpop.f32.mrb[0].mxu0
        %v3218 = vadd.f32 0.0, %v3217
        %v3219 = vpop.f32.mrb[0].mxu0
        %3220 = vmatprep.mubr.bf16.mxu0 0
        %3221 = vmatmul.mubr.bf16.gmra.mrb[0].mxu0 %v3178
        %v3222 = vpop.f32.mrb[0].mxu0
        %v3223 = vadd.f32 0.0, %v3222
        %v3224 = vpop.f32.mrb[0].mxu0
        %v3225 = vpop.f32.mrb[0].mxu0
        %v3226 = vadd.f32 0.0, %v3225
        %v3227 = vpop.f32.mrb[0].mxu0
        %3228 = vdwg.mxu0
        %v3230 = vsel %vm1987, %v2842, 0
        %v3233 = vsel %vm1987, %v2843, 0
        %3235 = vmatprep.subr.bf16.mxu0 0
        %3236 = vmatpush1.bf16.msra.mxu0 %v1985
        %3237 = vmatprep.subr.bf16.mxu0 0
        %3238 = vmatpush1.bf16.msra.mxu0 %v1986
        %3239 = vmatprep.subr.bf16.mxu0 0
        %3240 = vmatpush1.bf16.msra.mxu0 0
        %3241 = vmatprep.subr.bf16.mxu0 0
        %3242 = vmatpush1.bf16.msra.mxu0 0
        %3243 = vmatprep.subr.bf16.mxu0 0
        %3244 = vmatpush1.bf16.msra.mxu0 0
        %3245 = vmatprep.subr.bf16.mxu0 0
        %3246 = vmatpush1.bf16.msra.mxu0 0
        %3247 = vmatprep.subr.bf16.mxu0 0
        %3248 = vmatpush1.bf16.msra.mxu0 0
        %3249 = vmatprep.subr.bf16.mxu0 0
        %3250 = vmatpush1.bf16.msra.mxu0 0
        %3251 = vmatprep.subr.bf16.mxu0 0
        %3252 = vmatpush1.bf16.msra.mxu0 0
        %3253 = vmatprep.subr.bf16.mxu0 0
        %3254 = vmatpush1.bf16.msra.mxu0 0
        %3255 = vmatprep.subr.bf16.mxu0 0
        %3256 = vmatpush1.bf16.msra.mxu0 0
        %3257 = vmatprep.subr.bf16.mxu0 0
        %3258 = vmatpush1.bf16.msra.mxu0 0
        %3259 = vmatprep.subr.bf16.mxu0 0
        %3260 = vmatpush1.bf16.msra.mxu0 0
        %3261 = vmatprep.subr.bf16.mxu0 0
        %3262 = vmatpush1.bf16.msra.mxu0 0
        %3263 = vmatprep.subr.bf16.mxu0 0
        %3264 = vmatpush1.bf16.msra.mxu0 0
        %3265 = vmatprep.subr.bf16.mxu0 0
        %3266 = vmatpush1.bf16.msra.mxu0 0
        %3267 = vmatprep.mubr.bf16.mxu0 0
        %3268 = vmatmul.mubr.bf16.gmra.mrb[0].mxu0 %v3230
        %v3269 = vpop.f32.mrb[0].mxu0
        %v3270 = vadd.f32 0.0, %v3269
        %v3271 = vpop.f32.mrb[0].mxu0
        %v3272 = vpop.f32.mrb[0].mxu0
        %v3273 = vadd.f32 0.0, %v3272
        %v3274 = vpop.f32.mrb[0].mxu0
        %3275 = vmatprep.mubr.bf16.mxu0 0
        %3276 = vmatmul.mubr.bf16.gmra.mrb[0].mxu0 %v3233
        %v3277 = vpop.f32.mrb[0].mxu0
        %v3278 = vadd.f32 0.0, %v3277
        %v3279 = vpop.f32.mrb[0].mxu0
        %v3280 = vpop.f32.mrb[0].mxu0
        %v3281 = vadd.f32 0.0, %v3280
        %v3282 = vpop.f32.mrb[0].mxu0
        %3283 = vdwg.mxu0
        %v3284 = vpack.c.bf16 %v2888, %v2885
        %v3285 = vpack.c.bf16 %v2896, %v2893
        %v3286 = vpack.c.bf16 %v2943, %v2940
        %v3287 = vpack.c.bf16 %v2951, %v2948
        %v3288 = vpack.c.bf16 %v2998, %v2995
        %v3289 = vpack.c.bf16 %v3006, %v3003
        %v3290 = vpack.c.bf16 %v3053, %v3050
        %v3291 = vpack.c.bf16 %v3061, %v3058
        %v3292 = vpack.c.bf16 %v3108, %v3105
        %v3293 = vpack.c.bf16 %v3116, %v3113
        %v3294 = vpack.c.bf16 %v3163, %v3160
        %v3295 = vpack.c.bf16 %v3171, %v3168
        %v3296 = vpack.c.bf16 %v3218, %v3215
        %v3297 = vpack.c.bf16 %v3226, %v3223
        %v3298 = vpack.c.bf16 %v3273, %v3270
        %v3299 = vpack.c.bf16 %v3281, %v3278
        %3302 = vrot.lane.b32.xlu0 %v1939, 96
        %v3303 = vpop.permute.xlu0 %3302
        %3304 = vrot.lane.b32.xlu0 %v1940, 96
        %v3305 = vpop.permute.xlu0 %3304
        %3308 = vrot.lane.b32.xlu0 %v1955, 96
        %v3309 = vpop.permute.xlu0 %3308
        %3310 = vrot.lane.b32.xlu0 %v1956, 96
        %v3311 = vpop.permute.xlu0 %3310
        %v3313 = vsel %vm1987, %v3303, 0
        %v3316 = vsel %vm1987, %v3305, 0
        %v3319 = vsel %vm1987, %v3309, 0
        %v3322 = vsel %vm1987, %v3311, 0
        %3324 = vmatprep.subr.bf16.mxu0 0
        %3325 = vmatpush1.bf16.xpose.msra.mxu0 %v3319
        %3326 = vmatprep.subr.bf16.mxu0 0
        %3327 = vmatpush1.bf16.xpose.msra.mxu0 %v3322
        %3328 = vmatprep.subr.bf16.mxu0 0
        %3329 = vmatpush1.bf16.xpose.msra.mxu0 0
        %3330 = vmatprep.subr.bf16.mxu0 0
        %3331 = vmatpush1.bf16.xpose.msra.mxu0 0
        %3332 = vmatprep.subr.bf16.mxu0 0
        %3333 = vmatpush1.bf16.xpose.msra.mxu0 0
        %3334 = vmatprep.subr.bf16.mxu0 0
        %3335 = vmatpush1.bf16.xpose.msra.mxu0 0
        %3336 = vmatprep.subr.bf16.mxu0 0
        %3337 = vmatpush1.bf16.xpose.msra.mxu0 0
        %3338 = vmatprep.subr.bf16.mxu0 0
        %3339 = vmatpush1.bf16.xpose.msra.mxu0 0
        %3340 = vmatprep.subr.bf16.mxu0 0
        %3341 = vmatpush1.bf16.xpose.msra.mxu0 0
        %3342 = vmatprep.subr.bf16.mxu0 0
        %3343 = vmatpush1.bf16.xpose.msra.mxu0 0
        %3344 = vmatprep.subr.bf16.mxu0 0
        %3345 = vmatpush1.bf16.xpose.msra.mxu0 0
        %3346 = vmatprep.subr.bf16.mxu0 0
        %3347 = vmatpush1.bf16.xpose.msra.mxu0 0
        %3348 = vmatprep.subr.bf16.mxu0 0
        %3349 = vmatpush1.bf16.xpose.msra.mxu0 0
        %3350 = vmatprep.subr.bf16.mxu0 0
        %3351 = vmatpush1.bf16.xpose.msra.mxu0 0
        %3352 = vmatprep.subr.bf16.mxu0 0
        %3353 = vmatpush1.bf16.xpose.msra.mxu0 0
        %3354 = vmatprep.subr.bf16.mxu0 0
        %3355 = vmatpush1.bf16.xpose.msra.mxu0 0
        %3356 = vmatprep.mubr.bf16.mxu0 0
        %3357 = vmatmul.mubr.bf16.gmra.mrb[0].mxu0 %v3313
        %v3358 = vpop.f32.mrb[0].mxu0
        %v3359 = vadd.f32 0.0, %v3358
        %v3360 = vpop.f32.mrb[0].mxu0
        %v3361 = vpop.f32.mrb[0].mxu0
        %v3362 = vadd.f32 0.0, %v3361
        %v3363 = vpop.f32.mrb[0].mxu0
        %3364 = vmatprep.mubr.bf16.mxu0 0
        %3365 = vmatmul.mubr.bf16.gmra.mrb[0].mxu0 %v3316
        %v3366 = vpop.f32.mrb[0].mxu0
        %v3367 = vadd.f32 0.0, %v3366
        %v3368 = vpop.f32.mrb[0].mxu0
        %v3369 = vpop.f32.mrb[0].mxu0
        %v3370 = vadd.f32 0.0, %v3369
        %v3371 = vpop.f32.mrb[0].mxu0
        %3372 = vdwg.mxu0
        %3375 = vrot.lane.b32.xlu0 %v1941, 96
        %v3376 = vpop.permute.xlu0 %3375
        %3377 = vrot.lane.b32.xlu0 %v1942, 96
        %v3378 = vpop.permute.xlu0 %3377
        %3381 = vrot.lane.b32.xlu0 %v1957, 96
        %v3382 = vpop.permute.xlu0 %3381
        %3383 = vrot.lane.b32.xlu0 %v1958, 96
        %v3384 = vpop.permute.xlu0 %3383
        %v3386 = vsel %vm1987, %v3376, 0
        %v3389 = vsel %vm1987, %v3378, 0
        %v3392 = vsel %vm1987, %v3382, 0
        %v3395 = vsel %vm1987, %v3384, 0
        %3397 = vmatprep.subr.bf16.mxu0 0
        %3398 = vmatpush1.bf16.xpose.msra.mxu0 %v3392
        %3399 = vmatprep.subr.bf16.mxu0 0
        %3400 = vmatpush1.bf16.xpose.msra.mxu0 %v3395
        %3401 = vmatprep.subr.bf16.mxu0 0
        %3402 = vmatpush1.bf16.xpose.msra.mxu0 0
        %3403 = vmatprep.subr.bf16.mxu0 0
        %3404 = vmatpush1.bf16.xpose.msra.mxu0 0
        %3405 = vmatprep.subr.bf16.mxu0 0
        %3406 = vmatpush1.bf16.xpose.msra.mxu0 0
        %3407 = vmatprep.subr.bf16.mxu0 0
        %3408 = vmatpush1.bf16.xpose.msra.mxu0 0
        %3409 = vmatprep.subr.bf16.mxu0 0
        %3410 = vmatpush1.bf16.xpose.msra.mxu0 0
        %3411 = vmatprep.subr.bf16.mxu0 0
        %3412 = vmatpush1.bf16.xpose.msra.mxu0 0
        %3413 = vmatprep.subr.bf16.mxu0 0
        %3414 = vmatpush1.bf16.xpose.msra.mxu0 0
        %3415 = vmatprep.subr.bf16.mxu0 0
        %3416 = vmatpush1.bf16.xpose.msra.mxu0 0
        %3417 = vmatprep.subr.bf16.mxu0 0
        %3418 = vmatpush1.bf16.xpose.msra.mxu0 0
        %3419 = vmatprep.subr.bf16.mxu0 0
        %3420 = vmatpush1.bf16.xpose.msra.mxu0 0
        %3421 = vmatprep.subr.bf16.mxu0 0
        %3422 = vmatpush1.bf16.xpose.msra.mxu0 0
        %3423 = vmatprep.subr.bf16.mxu0 0
        %3424 = vmatpush1.bf16.xpose.msra.mxu0 0
        %3425 = vmatprep.subr.bf16.mxu0 0
        %3426 = vmatpush1.bf16.xpose.msra.mxu0 0
        %3427 = vmatprep.subr.bf16.mxu0 0
        %3428 = vmatpush1.bf16.xpose.msra.mxu0 0
        %3429 = vmatprep.mubr.bf16.mxu0 0
        %3430 = vmatmul.mubr.bf16.gmra.mrb[0].mxu0 %v3386
        %v3431 = vpop.f32.mrb[0].mxu0
        %v3432 = vadd.f32 0.0, %v3431
        %v3433 = vpop.f32.mrb[0].mxu0
        %v3434 = vpop.f32.mrb[0].mxu0
        %v3435 = vadd.f32 0.0, %v3434
        %v3436 = vpop.f32.mrb[0].mxu0
        %3437 = vmatprep.mubr.bf16.mxu0 0
        %3438 = vmatmul.mubr.bf16.gmra.mrb[0].mxu0 %v3389
        %v3439 = vpop.f32.mrb[0].mxu0
        %v3440 = vadd.f32 0.0, %v3439
        %v3441 = vpop.f32.mrb[0].mxu0
        %v3442 = vpop.f32.mrb[0].mxu0
        %v3443 = vadd.f32 0.0, %v3442
        %v3444 = vpop.f32.mrb[0].mxu0
        %3445 = vdwg.mxu0
        %3448 = vrot.lane.b32.xlu0 %v1943, 96
        %v3449 = vpop.permute.xlu0 %3448
        %3450 = vrot.lane.b32.xlu0 %v1944, 96
        %v3451 = vpop.permute.xlu0 %3450
        %3454 = vrot.lane.b32.xlu0 %v1959, 96
        %v3455 = vpop.permute.xlu0 %3454
        %3456 = vrot.lane.b32.xlu0 %v1960, 96
        %v3457 = vpop.permute.xlu0 %3456
        %v3459 = vsel %vm1987, %v3449, 0
        %v3462 = vsel %vm1987, %v3451, 0
        %v3465 = vsel %vm1987, %v3455, 0
        %v3468 = vsel %vm1987, %v3457, 0
        %3470 = vmatprep.subr.bf16.mxu0 0
        %3471 = vmatpush1.bf16.xpose.msra.mxu0 %v3465
        %3472 = vmatprep.subr.bf16.mxu0 0
        %3473 = vmatpush1.bf16.xpose.msra.mxu0 %v3468
        %3474 = vmatprep.subr.bf16.mxu0 0
        %3475 = vmatpush1.bf16.xpose.msra.mxu0 0
        %3476 = vmatprep.subr.bf16.mxu0 0
        %3477 = vmatpush1.bf16.xpose.msra.mxu0 0
        %3478 = vmatprep.subr.bf16.mxu0 0
        %3479 = vmatpush1.bf16.xpose.msra.mxu0 0
        %3480 = vmatprep.subr.bf16.mxu0 0
        %3481 = vmatpush1.bf16.xpose.msra.mxu0 0
        %3482 = vmatprep.subr.bf16.mxu0 0
        %3483 = vmatpush1.bf16.xpose.msra.mxu0 0
        %3484 = vmatprep.subr.bf16.mxu0 0
        %3485 = vmatpush1.bf16.xpose.msra.mxu0 0
        %3486 = vmatprep.subr.bf16.mxu0 0
        %3487 = vmatpush1.bf16.xpose.msra.mxu0 0
        %3488 = vmatprep.subr.bf16.mxu0 0
        %3489 = vmatpush1.bf16.xpose.msra.mxu0 0
        %3490 = vmatprep.subr.bf16.mxu0 0
        %3491 = vmatpush1.bf16.xpose.msra.mxu0 0
        %3492 = vmatprep.subr.bf16.mxu0 0
        %3493 = vmatpush1.bf16.xpose.msra.mxu0 0
        %3494 = vmatprep.subr.bf16.mxu0 0
        %3495 = vmatpush1.bf16.xpose.msra.mxu0 0
        %3496 = vmatprep.subr.bf16.mxu0 0
        %3497 = vmatpush1.bf16.xpose.msra.mxu0 0
        %3498 = vmatprep.subr.bf16.mxu0 0
        %3499 = vmatpush1.bf16.xpose.msra.mxu0 0
        %3500 = vmatprep.subr.bf16.mxu0 0
        %3501 = vmatpush1.bf16.xpose.msra.mxu0 0
        %3502 = vmatprep.mubr.bf16.mxu0 0
        %3503 = vmatmul.mubr.bf16.gmra.mrb[0].mxu0 %v3459
        %v3504 = vpop.f32.mrb[0].mxu0
        %v3505 = vadd.f32 0.0, %v3504
        %v3506 = vpop.f32.mrb[0].mxu0
        %v3507 = vpop.f32.mrb[0].mxu0
        %v3508 = vadd.f32 0.0, %v3507
        %v3509 = vpop.f32.mrb[0].mxu0
        %3510 = vmatprep.mubr.bf16.mxu0 0
        %3511 = vmatmul.mubr.bf16.gmra.mrb[0].mxu0 %v3462
        %v3512 = vpop.f32.mrb[0].mxu0
        %v3513 = vadd.f32 0.0, %v3512
        %v3514 = vpop.f32.mrb[0].mxu0
        %v3515 = vpop.f32.mrb[0].mxu0
        %v3516 = vadd.f32 0.0, %v3515
        %v3517 = vpop.f32.mrb[0].mxu0
        %3518 = vdwg.mxu0
        %3521 = vrot.lane.b32.xlu0 %v1945, 96
        %v3522 = vpop.permute.xlu0 %3521
        %3523 = vrot.lane.b32.xlu0 %v1946, 96
        %v3524 = vpop.permute.xlu0 %3523
        %3527 = vrot.lane.b32.xlu0 %v1961, 96
        %v3528 = vpop.permute.xlu0 %3527
        %3529 = vrot.lane.b32.xlu0 %v1962, 96
        %v3530 = vpop.permute.xlu0 %3529
        %v3532 = vsel %vm1987, %v3522, 0
        %v3535 = vsel %vm1987, %v3524, 0
        %v3538 = vsel %vm1987, %v3528, 0
        %v3541 = vsel %vm1987, %v3530, 0
        %3543 = vmatprep.subr.bf16.mxu0 0
        %3544 = vmatpush1.bf16.xpose.msra.mxu0 %v3538
        %3545 = vmatprep.subr.bf16.mxu0 0
        %3546 = vmatpush1.bf16.xpose.msra.mxu0 %v3541
        %3547 = vmatprep.subr.bf16.mxu0 0
        %3548 = vmatpush1.bf16.xpose.msra.mxu0 0
        %3549 = vmatprep.subr.bf16.mxu0 0
        %3550 = vmatpush1.bf16.xpose.msra.mxu0 0
        %3551 = vmatprep.subr.bf16.mxu0 0
        %3552 = vmatpush1.bf16.xpose.msra.mxu0 0
        %3553 = vmatprep.subr.bf16.mxu0 0
        %3554 = vmatpush1.bf16.xpose.msra.mxu0 0
        %3555 = vmatprep.subr.bf16.mxu0 0
        %3556 = vmatpush1.bf16.xpose.msra.mxu0 0
        %3557 = vmatprep.subr.bf16.mxu0 0
        %3558 = vmatpush1.bf16.xpose.msra.mxu0 0
        %3559 = vmatprep.subr.bf16.mxu0 0
        %3560 = vmatpush1.bf16.xpose.msra.mxu0 0
        %3561 = vmatprep.subr.bf16.mxu0 0
        %3562 = vmatpush1.bf16.xpose.msra.mxu0 0
        %3563 = vmatprep.subr.bf16.mxu0 0
        %3564 = vmatpush1.bf16.xpose.msra.mxu0 0
        %3565 = vmatprep.subr.bf16.mxu0 0
        %3566 = vmatpush1.bf16.xpose.msra.mxu0 0
        %3567 = vmatprep.subr.bf16.mxu0 0
        %3568 = vmatpush1.bf16.xpose.msra.mxu0 0
        %3569 = vmatprep.subr.bf16.mxu0 0
        %3570 = vmatpush1.bf16.xpose.msra.mxu0 0
        %3571 = vmatprep.subr.bf16.mxu0 0
        %3572 = vmatpush1.bf16.xpose.msra.mxu0 0
        %3573 = vmatprep.subr.bf16.mxu0 0
        %3574 = vmatpush1.bf16.xpose.msra.mxu0 0
        %3575 = vmatprep.mubr.bf16.mxu0 0
        %3576 = vmatmul.mubr.bf16.gmra.mrb[0].mxu0 %v3532
        %v3577 = vpop.f32.mrb[0].mxu0
        %v3578 = vadd.f32 0.0, %v3577
        %v3579 = vpop.f32.mrb[0].mxu0
        %v3580 = vpop.f32.mrb[0].mxu0
        %v3581 = vadd.f32 0.0, %v3580
        %v3582 = vpop.f32.mrb[0].mxu0
        %3583 = vmatprep.mubr.bf16.mxu0 0
        %3584 = vmatmul.mubr.bf16.gmra.mrb[0].mxu0 %v3535
        %v3585 = vpop.f32.mrb[0].mxu0
        %v3586 = vadd.f32 0.0, %v3585
        %v3587 = vpop.f32.mrb[0].mxu0
        %v3588 = vpop.f32.mrb[0].mxu0
        %v3589 = vadd.f32 0.0, %v3588
        %v3590 = vpop.f32.mrb[0].mxu0
        %3591 = vdwg.mxu0
        %3594 = vrot.lane.b32.xlu0 %v1947, 96
        %v3595 = vpop.permute.xlu0 %3594
        %3596 = vrot.lane.b32.xlu0 %v1948, 96
        %v3597 = vpop.permute.xlu0 %3596
        %3600 = vrot.lane.b32.xlu0 %v1963, 96
        %v3601 = vpop.permute.xlu0 %3600
        %3602 = vrot.lane.b32.xlu0 %v1964, 96
        %v3603 = vpop.permute.xlu0 %3602
        %v3605 = vsel %vm1987, %v3595, 0
        %v3608 = vsel %vm1987, %v3597, 0
        %v3611 = vsel %vm1987, %v3601, 0
        %v3614 = vsel %vm1987, %v3603, 0
        %3616 = vmatprep.subr.bf16.mxu0 0
        %3617 = vmatpush1.bf16.xpose.msra.mxu0 %v3611
        %3618 = vmatprep.subr.bf16.mxu0 0
        %3619 = vmatpush1.bf16.xpose.msra.mxu0 %v3614
        %3620 = vmatprep.subr.bf16.mxu0 0
        %3621 = vmatpush1.bf16.xpose.msra.mxu0 0
        %3622 = vmatprep.subr.bf16.mxu0 0
        %3623 = vmatpush1.bf16.xpose.msra.mxu0 0
        %3624 = vmatprep.subr.bf16.mxu0 0
        %3625 = vmatpush1.bf16.xpose.msra.mxu0 0
        %3626 = vmatprep.subr.bf16.mxu0 0
        %3627 = vmatpush1.bf16.xpose.msra.mxu0 0
        %3628 = vmatprep.subr.bf16.mxu0 0
        %3629 = vmatpush1.bf16.xpose.msra.mxu0 0
        %3630 = vmatprep.subr.bf16.mxu0 0
        %3631 = vmatpush1.bf16.xpose.msra.mxu0 0
        %3632 = vmatprep.subr.bf16.mxu0 0
        %3633 = vmatpush1.bf16.xpose.msra.mxu0 0
        %3634 = vmatprep.subr.bf16.mxu0 0
        %3635 = vmatpush1.bf16.xpose.msra.mxu0 0
        %3636 = vmatprep.subr.bf16.mxu0 0
        %3637 = vmatpush1.bf16.xpose.msra.mxu0 0
        %3638 = vmatprep.subr.bf16.mxu0 0
        %3639 = vmatpush1.bf16.xpose.msra.mxu0 0
        %3640 = vmatprep.subr.bf16.mxu0 0
        %3641 = vmatpush1.bf16.xpose.msra.mxu0 0
        %3642 = vmatprep.subr.bf16.mxu0 0
        %3643 = vmatpush1.bf16.xpose.msra.mxu0 0
        %3644 = vmatprep.subr.bf16.mxu0 0
        %3645 = vmatpush1.bf16.xpose.msra.mxu0 0
        %3646 = vmatprep.subr.bf16.mxu0 0
        %3647 = vmatpush1.bf16.xpose.msra.mxu0 0
        %3648 = vmatprep.mubr.bf16.mxu0 0
        %3649 = vmatmul.mubr.bf16.gmra.mrb[0].mxu0 %v3605
        %v3650 = vpop.f32.mrb[0].mxu0
        %v3651 = vadd.f32 0.0, %v3650
        %v3652 = vpop.f32.mrb[0].mxu0
        %v3653 = vpop.f32.mrb[0].mxu0
        %v3654 = vadd.f32 0.0, %v3653
        %v3655 = vpop.f32.mrb[0].mxu0
        %3656 = vmatprep.mubr.bf16.mxu0 0
        %3657 = vmatmul.mubr.bf16.gmra.mrb[0].mxu0 %v3608
        %v3658 = vpop.f32.mrb[0].mxu0
        %v3659 = vadd.f32 0.0, %v3658
        %v3660 = vpop.f32.mrb[0].mxu0
        %v3661 = vpop.f32.mrb[0].mxu0
        %v3662 = vadd.f32 0.0, %v3661
        %v3663 = vpop.f32.mrb[0].mxu0
        %3664 = vdwg.mxu0
        %3667 = vrot.lane.b32.xlu0 %v1949, 96
        %v3668 = vpop.permute.xlu0 %3667
        %3669 = vrot.lane.b32.xlu0 %v1950, 96
        %v3670 = vpop.permute.xlu0 %3669
        %3673 = vrot.lane.b32.xlu0 %v1965, 96
        %v3674 = vpop.permute.xlu0 %3673
        %3675 = vrot.lane.b32.xlu0 %v1966, 96
        %v3676 = vpop.permute.xlu0 %3675
        %v3678 = vsel %vm1987, %v3668, 0
        %v3681 = vsel %vm1987, %v3670, 0
        %v3684 = vsel %vm1987, %v3674, 0
        %v3687 = vsel %vm1987, %v3676, 0
        %3689 = vmatprep.subr.bf16.mxu0 0
        %3690 = vmatpush1.bf16.xpose.msra.mxu0 %v3684
        %3691 = vmatprep.subr.bf16.mxu0 0
        %3692 = vmatpush1.bf16.xpose.msra.mxu0 %v3687
        %3693 = vmatprep.subr.bf16.mxu0 0
        %3694 = vmatpush1.bf16.xpose.msra.mxu0 0
        %3695 = vmatprep.subr.bf16.mxu0 0
        %3696 = vmatpush1.bf16.xpose.msra.mxu0 0
        %3697 = vmatprep.subr.bf16.mxu0 0
        %3698 = vmatpush1.bf16.xpose.msra.mxu0 0
        %3699 = vmatprep.subr.bf16.mxu0 0
        %3700 = vmatpush1.bf16.xpose.msra.mxu0 0
        %3701 = vmatprep.subr.bf16.mxu0 0
        %3702 = vmatpush1.bf16.xpose.msra.mxu0 0
        %3703 = vmatprep.subr.bf16.mxu0 0
        %3704 = vmatpush1.bf16.xpose.msra.mxu0 0
        %3705 = vmatprep.subr.bf16.mxu0 0
        %3706 = vmatpush1.bf16.xpose.msra.mxu0 0
        %3707 = vmatprep.subr.bf16.mxu0 0
        %3708 = vmatpush1.bf16.xpose.msra.mxu0 0
        %3709 = vmatprep.subr.bf16.mxu0 0
        %3710 = vmatpush1.bf16.xpose.msra.mxu0 0
        %3711 = vmatprep.subr.bf16.mxu0 0
        %3712 = vmatpush1.bf16.xpose.msra.mxu0 0
        %3713 = vmatprep.subr.bf16.mxu0 0
        %3714 = vmatpush1.bf16.xpose.msra.mxu0 0
        %3715 = vmatprep.subr.bf16.mxu0 0
        %3716 = vmatpush1.bf16.xpose.msra.mxu0 0
        %3717 = vmatprep.subr.bf16.mxu0 0
        %3718 = vmatpush1.bf16.xpose.msra.mxu0 0
        %3719 = vmatprep.subr.bf16.mxu0 0
        %3720 = vmatpush1.bf16.xpose.msra.mxu0 0
        %3721 = vmatprep.mubr.bf16.mxu0 0
        %3722 = vmatmul.mubr.bf16.gmra.mrb[0].mxu0 %v3678
        %v3723 = vpop.f32.mrb[0].mxu0
        %v3724 = vadd.f32 0.0, %v3723
        %v3725 = vpop.f32.mrb[0].mxu0
        %v3726 = vpop.f32.mrb[0].mxu0
        %v3727 = vadd.f32 0.0, %v3726
        %v3728 = vpop.f32.mrb[0].mxu0
        %3729 = vmatprep.mubr.bf16.mxu0 0
        %3730 = vmatmul.mubr.bf16.gmra.mrb[0].mxu0 %v3681
        %v3731 = vpop.f32.mrb[0].mxu0
        %v3732 = vadd.f32 0.0, %v3731
        %v3733 = vpop.f32.mrb[0].mxu0
        %v3734 = vpop.f32.mrb[0].mxu0
        %v3735 = vadd.f32 0.0, %v3734
        %v3736 = vpop.f32.mrb[0].mxu0
        %3737 = vdwg.mxu0
        %3740 = vrot.lane.b32.xlu0 %v1951, 96
        %v3741 = vpop.permute.xlu0 %3740
        %3742 = vrot.lane.b32.xlu0 %v1952, 96
        %v3743 = vpop.permute.xlu0 %3742
        %3746 = vrot.lane.b32.xlu0 %v1967, 96
        %v3747 = vpop.permute.xlu0 %3746
        %3748 = vrot.lane.b32.xlu0 %v1968, 96
        %v3749 = vpop.permute.xlu0 %3748
        %v3751 = vsel %vm1987, %v3741, 0
        %v3754 = vsel %vm1987, %v3743, 0
        %v3757 = vsel %vm1987, %v3747, 0
        %v3760 = vsel %vm1987, %v3749, 0
        %3762 = vmatprep.subr.bf16.mxu0 0
        %3763 = vmatpush1.bf16.xpose.msra.mxu0 %v3757
        %3764 = vmatprep.subr.bf16.mxu0 0
        %3765 = vmatpush1.bf16.xpose.msra.mxu0 %v3760
        %3766 = vmatprep.subr.bf16.mxu0 0
        %3767 = vmatpush1.bf16.xpose.msra.mxu0 0
        %3768 = vmatprep.subr.bf16.mxu0 0
        %3769 = vmatpush1.bf16.xpose.msra.mxu0 0
        %3770 = vmatprep.subr.bf16.mxu0 0
        %3771 = vmatpush1.bf16.xpose.msra.mxu0 0
        %3772 = vmatprep.subr.bf16.mxu0 0
        %3773 = vmatpush1.bf16.xpose.msra.mxu0 0
        %3774 = vmatprep.subr.bf16.mxu0 0
        %3775 = vmatpush1.bf16.xpose.msra.mxu0 0
        %3776 = vmatprep.subr.bf16.mxu0 0
        %3777 = vmatpush1.bf16.xpose.msra.mxu0 0
        %3778 = vmatprep.subr.bf16.mxu0 0
        %3779 = vmatpush1.bf16.xpose.msra.mxu0 0
        %3780 = vmatprep.subr.bf16.mxu0 0
        %3781 = vmatpush1.bf16.xpose.msra.mxu0 0
        %3782 = vmatprep.subr.bf16.mxu0 0
        %3783 = vmatpush1.bf16.xpose.msra.mxu0 0
        %3784 = vmatprep.subr.bf16.mxu0 0
        %3785 = vmatpush1.bf16.xpose.msra.mxu0 0
        %3786 = vmatprep.subr.bf16.mxu0 0
        %3787 = vmatpush1.bf16.xpose.msra.mxu0 0
        %3788 = vmatprep.subr.bf16.mxu0 0
        %3789 = vmatpush1.bf16.xpose.msra.mxu0 0
        %3790 = vmatprep.subr.bf16.mxu0 0
        %3791 = vmatpush1.bf16.xpose.msra.mxu0 0
        %3792 = vmatprep.subr.bf16.mxu0 0
        %3793 = vmatpush1.bf16.xpose.msra.mxu0 0
        %3794 = vmatprep.mubr.bf16.mxu0 0
        %3795 = vmatmul.mubr.bf16.gmra.mrb[0].mxu0 %v3751
        %v3796 = vpop.f32.mrb[0].mxu0
        %v3797 = vadd.f32 0.0, %v3796
        %v3798 = vpop.f32.mrb[0].mxu0
        %v3799 = vpop.f32.mrb[0].mxu0
        %v3800 = vadd.f32 0.0, %v3799
        %v3801 = vpop.f32.mrb[0].mxu0
        %3802 = vmatprep.mubr.bf16.mxu0 0
        %3803 = vmatmul.mubr.bf16.gmra.mrb[0].mxu0 %v3754
        %v3804 = vpop.f32.mrb[0].mxu0
        %v3805 = vadd.f32 0.0, %v3804
        %v3806 = vpop.f32.mrb[0].mxu0
        %v3807 = vpop.f32.mrb[0].mxu0
        %v3808 = vadd.f32 0.0, %v3807
        %v3809 = vpop.f32.mrb[0].mxu0
        %3810 = vdwg.mxu0
        %3813 = vrot.lane.b32.xlu0 %v1953, 96
        %v3814 = vpop.permute.xlu0 %3813
        %3815 = vrot.lane.b32.xlu0 %v1954, 96
        %v3816 = vpop.permute.xlu0 %3815
        %3819 = vrot.lane.b32.xlu0 %v1969, 96
        %v3820 = vpop.permute.xlu0 %3819
        %3821 = vrot.lane.b32.xlu0 %v1970, 96
        %v3822 = vpop.permute.xlu0 %3821
        %v3824 = vsel %vm1987, %v3814, 0
        %v3827 = vsel %vm1987, %v3816, 0
        %v3830 = vsel %vm1987, %v3820, 0
        %v3833 = vsel %vm1987, %v3822, 0
        %3835 = vmatprep.subr.bf16.mxu0 0
        %3836 = vmatpush1.bf16.xpose.msra.mxu0 %v3830
        %3837 = vmatprep.subr.bf16.mxu0 0
        %3838 = vmatpush1.bf16.xpose.msra.mxu0 %v3833
        %3839 = vmatprep.subr.bf16.mxu0 0
        %3840 = vmatpush1.bf16.xpose.msra.mxu0 0
        %3841 = vmatprep.subr.bf16.mxu0 0
        %3842 = vmatpush1.bf16.xpose.msra.mxu0 0
        %3843 = vmatprep.subr.bf16.mxu0 0
        %3844 = vmatpush1.bf16.xpose.msra.mxu0 0
        %3845 = vmatprep.subr.bf16.mxu0 0
        %3846 = vmatpush1.bf16.xpose.msra.mxu0 0
        %3847 = vmatprep.subr.bf16.mxu0 0
        %3848 = vmatpush1.bf16.xpose.msra.mxu0 0
        %3849 = vmatprep.subr.bf16.mxu0 0
        %3850 = vmatpush1.bf16.xpose.msra.mxu0 0
        %3851 = vmatprep.subr.bf16.mxu0 0
        %3852 = vmatpush1.bf16.xpose.msra.mxu0 0
        %3853 = vmatprep.subr.bf16.mxu0 0
        %3854 = vmatpush1.bf16.xpose.msra.mxu0 0
        %3855 = vmatprep.subr.bf16.mxu0 0
        %3856 = vmatpush1.bf16.xpose.msra.mxu0 0
        %3857 = vmatprep.subr.bf16.mxu0 0
        %3858 = vmatpush1.bf16.xpose.msra.mxu0 0
        %3859 = vmatprep.subr.bf16.mxu0 0
        %3860 = vmatpush1.bf16.xpose.msra.mxu0 0
        %3861 = vmatprep.subr.bf16.mxu0 0
        %3862 = vmatpush1.bf16.xpose.msra.mxu0 0
        %3863 = vmatprep.subr.bf16.mxu0 0
        %3864 = vmatpush1.bf16.xpose.msra.mxu0 0
        %3865 = vmatprep.subr.bf16.mxu0 0
        %3866 = vmatpush1.bf16.xpose.msra.mxu0 0
        %3867 = vmatprep.mubr.bf16.mxu0 0
        %3868 = vmatmul.mubr.bf16.gmra.mrb[0].mxu0 %v3824
        %v3869 = vpop.f32.mrb[0].mxu0
        %v3870 = vadd.f32 0.0, %v3869
        %v3871 = vpop.f32.mrb[0].mxu0
        %v3872 = vpop.f32.mrb[0].mxu0
        %v3873 = vadd.f32 0.0, %v3872
        %v3874 = vpop.f32.mrb[0].mxu0
        %3875 = vmatprep.mubr.bf16.mxu0 0
        %3876 = vmatmul.mubr.bf16.gmra.mrb[0].mxu0 %v3827
        %v3877 = vpop.f32.mrb[0].mxu0
        %v3878 = vadd.f32 0.0, %v3877
        %v3879 = vpop.f32.mrb[0].mxu0
        %v3880 = vpop.f32.mrb[0].mxu0
        %v3881 = vadd.f32 0.0, %v3880
        %v3882 = vpop.f32.mrb[0].mxu0
        %3883 = vdwg.mxu0
        %v3884 = vsel %vm1987, %v3359, -inf
        %3885 = vmax.xlane.f32.xlu0 %v3884
        %v3886 = vpop.xlane.xlu0 %3885
        %v3887 = vsel %vm1987, %v3362, -inf
        %3888 = vmax.xlane.f32.xlu0 %v3887
        %v3889 = vpop.xlane.xlu0 %3888
        %v3890 = vsel %vm1987, %v3367, -inf
        %3891 = vmax.xlane.f32.xlu0 %v3890
        %v3892 = vpop.xlane.xlu0 %3891
        %v3893 = vsel %vm1987, %v3370, -inf
        %3894 = vmax.xlane.f32.xlu0 %v3893
        %v3895 = vpop.xlane.xlu0 %3894
        %v3896 = vsel %vm1987, %v3432, -inf
        %3897 = vmax.xlane.f32.xlu0 %v3896
        %v3898 = vpop.xlane.xlu0 %3897
        %v3899 = vsel %vm1987, %v3435, -inf
        %3900 = vmax.xlane.f32.xlu0 %v3899
        %v3901 = vpop.xlane.xlu0 %3900
        %v3902 = vsel %vm1987, %v3440, -inf
        %3903 = vmax.xlane.f32.xlu0 %v3902
        %v3904 = vpop.xlane.xlu0 %3903
        %v3905 = vsel %vm1987, %v3443, -inf
        %3906 = vmax.xlane.f32.xlu0 %v3905
        %v3907 = vpop.xlane.xlu0 %3906
        %v3908 = vsel %vm1987, %v3505, -inf
        %3909 = vmax.xlane.f32.xlu0 %v3908
        %v3910 = vpop.xlane.xlu0 %3909
        %v3911 = vsel %vm1987, %v3508, -inf
        %3912 = vmax.xlane.f32.xlu0 %v3911
        %v3913 = vpop.xlane.xlu0 %3912
        %v3914 = vsel %vm1987, %v3513, -inf
        %3915 = vmax.xlane.f32.xlu0 %v3914
        %v3916 = vpop.xlane.xlu0 %3915
        %v3917 = vsel %vm1987, %v3516, -inf
        %3918 = vmax.xlane.f32.xlu0 %v3917
        %v3919 = vpop.xlane.xlu0 %3918
        %v3920 = vsel %vm1987, %v3578, -inf
        %3921 = vmax.xlane.f32.xlu0 %v3920
        %v3922 = vpop.xlane.xlu0 %3921
        %v3923 = vsel %vm1987, %v3581, -inf
        %3924 = vmax.xlane.f32.xlu0 %v3923
        %v3925 = vpop.xlane.xlu0 %3924
        %v3926 = vsel %vm1987, %v3586, -inf
        %3927 = vmax.xlane.f32.xlu0 %v3926
        %v3928 = vpop.xlane.xlu0 %3927
        %v3929 = vsel %vm1987, %v3589, -inf
        %3930 = vmax.xlane.f32.xlu0 %v3929
        %v3931 = vpop.xlane.xlu0 %3930
        %v3932 = vsel %vm1987, %v3651, -inf
        %3933 = vmax.xlane.f32.xlu0 %v3932
        %v3934 = vpop.xlane.xlu0 %3933
        %v3935 = vsel %vm1987, %v3654, -inf
        %3936 = vmax.xlane.f32.xlu0 %v3935
        %v3937 = vpop.xlane.xlu0 %3936
        %v3938 = vsel %vm1987, %v3659, -inf
        %3939 = vmax.xlane.f32.xlu0 %v3938
        %v3940 = vpop.xlane.xlu0 %3939
        %v3941 = vsel %vm1987, %v3662, -inf
        %3942 = vmax.xlane.f32.xlu0 %v3941
        %v3943 = vpop.xlane.xlu0 %3942
        %v3944 = vsel %vm1987, %v3724, -inf
        %3945 = vmax.xlane.f32.xlu0 %v3944
        %v3946 = vpop.xlane.xlu0 %3945
        %v3947 = vsel %vm1987, %v3727, -inf
        %3948 = vmax.xlane.f32.xlu0 %v3947
        %v3949 = vpop.xlane.xlu0 %3948
        %v3950 = vsel %vm1987, %v3732, -inf
        %3951 = vmax.xlane.f32.xlu0 %v3950
        %v3952 = vpop.xlane.xlu0 %3951
        %v3953 = vsel %vm1987, %v3735, -inf
        %3954 = vmax.xlane.f32.xlu0 %v3953
        %v3955 = vpop.xlane.xlu0 %3954
        %v3956 = vsel %vm1987, %v3797, -inf
        %3957 = vmax.xlane.f32.xlu0 %v3956
        %v3958 = vpop.xlane.xlu0 %3957
        %v3959 = vsel %vm1987, %v3800, -inf
        %3960 = vmax.xlane.f32.xlu0 %v3959
        %v3961 = vpop.xlane.xlu0 %3960
        %v3962 = vsel %vm1987, %v3805, -inf
        %3963 = vmax.xlane.f32.xlu0 %v3962
        %v3964 = vpop.xlane.xlu0 %3963
        %v3965 = vsel %vm1987, %v3808, -inf
        %3966 = vmax.xlane.f32.xlu0 %v3965
        %v3967 = vpop.xlane.xlu0 %3966
        %v3968 = vsel %vm1987, %v3870, -inf
        %3969 = vmax.xlane.f32.xlu0 %v3968
        %v3970 = vpop.xlane.xlu0 %3969
        %v3971 = vsel %vm1987, %v3873, -inf
        %3972 = vmax.xlane.f32.xlu0 %v3971
        %v3973 = vpop.xlane.xlu0 %3972
        %v3974 = vsel %vm1987, %v3878, -inf
        %3975 = vmax.xlane.f32.xlu0 %v3974
        %v3976 = vpop.xlane.xlu0 %3975
        %v3977 = vsel %vm1987, %v3881, -inf
        %3978 = vmax.xlane.f32.xlu0 %v3977
        %v3979 = vpop.xlane.xlu0 %3978
        %v3980 = vsub.f32 %v3359, %v3886
        %v3981 = vsub.f32 %v3362, %v3889
        %v3982 = vsub.f32 %v3367, %v3892
        %v3983 = vsub.f32 %v3370, %v3895
        %v3984 = vsub.f32 %v3432, %v3898
        %v3985 = vsub.f32 %v3435, %v3901
        %v3986 = vsub.f32 %v3440, %v3904
        %v3987 = vsub.f32 %v3443, %v3907
        %v3988 = vsub.f32 %v3505, %v3910
        %v3989 = vsub.f32 %v3508, %v3913
        %v3990 = vsub.f32 %v3513, %v3916
        %v3991 = vsub.f32 %v3516, %v3919
        %v3992 = vsub.f32 %v3578, %v3922
        %v3993 = vsub.f32 %v3581, %v3925
        %v3994 = vsub.f32 %v3586, %v3928
        %v3995 = vsub.f32 %v3589, %v3931
        %v3996 = vsub.f32 %v3651, %v3934
        %v3997 = vsub.f32 %v3654, %v3937
        %v3998 = vsub.f32 %v3659, %v3940
        %v3999 = vsub.f32 %v3662, %v3943
        %v4000 = vsub.f32 %v3724, %v3946
        %v4001 = vsub.f32 %v3727, %v3949
        %v4002 = vsub.f32 %v3732, %v3952
        %v4003 = vsub.f32 %v3735, %v3955
        %v4004 = vsub.f32 %v3797, %v3958
        %v4005 = vsub.f32 %v3800, %v3961
        %v4006 = vsub.f32 %v3805, %v3964
        %v4007 = vsub.f32 %v3808, %v3967
        %v4008 = vsub.f32 %v3870, %v3970
        %v4009 = vsub.f32 %v3873, %v3973
        %v4010 = vsub.f32 %v3878, %v3976
        %v4011 = vsub.f32 %v3881, %v3979
        %v4012 = vmul.f32 %v3980, 1.442695
        %v4013 = vpow.pop %v4012
        %v4014 = vmul.f32 %v3981, 1.442695
        %v4015 = vpow.pop %v4014
        %v4016 = vmul.f32 %v3982, 1.442695
        %v4017 = vpow.pop %v4016
        %v4018 = vmul.f32 %v3983, 1.442695
        %v4019 = vpow.pop %v4018
        %v4020 = vmul.f32 %v3984, 1.442695
        %v4021 = vpow.pop %v4020
        %v4022 = vmul.f32 %v3985, 1.442695
        %v4023 = vpow.pop %v4022
        %v4024 = vmul.f32 %v3986, 1.442695
        %v4025 = vpow.pop %v4024
        %v4026 = vmul.f32 %v3987, 1.442695
        %v4027 = vpow.pop %v4026
        %v4028 = vmul.f32 %v3988, 1.442695
        %v4029 = vpow.pop %v4028
        %v4030 = vmul.f32 %v3989, 1.442695
        %v4031 = vpow.pop %v4030
        %v4032 = vmul.f32 %v3990, 1.442695
        %v4033 = vpow.pop %v4032
        %v4034 = vmul.f32 %v3991, 1.442695
        %v4035 = vpow.pop %v4034
        %v4036 = vmul.f32 %v3992, 1.442695
        %v4037 = vpow.pop %v4036
        %v4038 = vmul.f32 %v3993, 1.442695
        %v4039 = vpow.pop %v4038
        %v4040 = vmul.f32 %v3994, 1.442695
        %v4041 = vpow.pop %v4040
        %v4042 = vmul.f32 %v3995, 1.442695
        %v4043 = vpow.pop %v4042
        %v4044 = vmul.f32 %v3996, 1.442695
        %v4045 = vpow.pop %v4044
        %v4046 = vmul.f32 %v3997, 1.442695
        %v4047 = vpow.pop %v4046
        %v4048 = vmul.f32 %v3998, 1.442695
        %v4049 = vpow.pop %v4048
        %v4050 = vmul.f32 %v3999, 1.442695
        %v4051 = vpow.pop %v4050
        %v4052 = vmul.f32 %v4000, 1.442695
        %v4053 = vpow.pop %v4052
        %v4054 = vmul.f32 %v4001, 1.442695
        %v4055 = vpow.pop %v4054
        %v4056 = vmul.f32 %v4002, 1.442695
        %v4057 = vpow.pop %v4056
        %v4058 = vmul.f32 %v4003, 1.442695
        %v4059 = vpow.pop %v4058
        %v4060 = vmul.f32 %v4004, 1.442695
        %v4061 = vpow.pop %v4060
        %v4062 = vmul.f32 %v4005, 1.442695
        %v4063 = vpow.pop %v4062
        %v4064 = vmul.f32 %v4006, 1.442695
        %v4065 = vpow.pop %v4064
        %v4066 = vmul.f32 %v4007, 1.442695
        %v4067 = vpow.pop %v4066
        %v4068 = vmul.f32 %v4008, 1.442695
        %v4069 = vpow.pop %v4068
        %v4070 = vmul.f32 %v4009, 1.442695
        %v4071 = vpow.pop %v4070
        %v4072 = vmul.f32 %v4010, 1.442695
        %v4073 = vpow.pop %v4072
        %v4074 = vmul.f32 %v4011, 1.442695
        %v4075 = vpow.pop %v4074
        %v4076 = vsel %vm1987, %v4013, 0.0
        %4077 = vadd.xlane.f32.xlu0 %v4076
        %v4078 = vpop.xlane.xlu0 %4077
        %v4079 = vsel %vm1987, %v4015, 0.0
        %4080 = vadd.xlane.f32.xlu0 %v4079
        %v4081 = vpop.xlane.xlu0 %4080
        %v4082 = vsel %vm1987, %v4017, 0.0
        %4083 = vadd.xlane.f32.xlu0 %v4082
        %v4084 = vpop.xlane.xlu0 %4083
        %v4085 = vsel %vm1987, %v4019, 0.0
        %4086 = vadd.xlane.f32.xlu0 %v4085
        %v4087 = vpop.xlane.xlu0 %4086
        %v4088 = vsel %vm1987, %v4021, 0.0
        %4089 = vadd.xlane.f32.xlu0 %v4088
        %v4090 = vpop.xlane.xlu0 %4089
        %v4091 = vsel %vm1987, %v4023, 0.0
        %4092 = vadd.xlane.f32.xlu0 %v4091
        %v4093 = vpop.xlane.xlu0 %4092
        %v4094 = vsel %vm1987, %v4025, 0.0
        %4095 = vadd.xlane.f32.xlu0 %v4094
        %v4096 = vpop.xlane.xlu0 %4095
        %v4097 = vsel %vm1987, %v4027, 0.0
        %4098 = vadd.xlane.f32.xlu0 %v4097
        %v4099 = vpop.xlane.xlu0 %4098
        %v4100 = vsel %vm1987, %v4029, 0.0
        %4101 = vadd.xlane.f32.xlu0 %v4100
        %v4102 = vpop.xlane.xlu0 %4101
        %v4103 = vsel %vm1987, %v4031, 0.0
        %4104 = vadd.xlane.f32.xlu0 %v4103
        %v4105 = vpop.xlane.xlu0 %4104
        %v4106 = vsel %vm1987, %v4033, 0.0
        %4107 = vadd.xlane.f32.xlu0 %v4106
        %v4108 = vpop.xlane.xlu0 %4107
        %v4109 = vsel %vm1987, %v4035, 0.0
        %4110 = vadd.xlane.f32.xlu0 %v4109
        %v4111 = vpop.xlane.xlu0 %4110
        %v4112 = vsel %vm1987, %v4037, 0.0
        %4113 = vadd.xlane.f32.xlu0 %v4112
        %v4114 = vpop.xlane.xlu0 %4113
        %v4115 = vsel %vm1987, %v4039, 0.0
        %4116 = vadd.xlane.f32.xlu0 %v4115
        %v4117 = vpop.xlane.xlu0 %4116
        %v4118 = vsel %vm1987, %v4041, 0.0
        %4119 = vadd.xlane.f32.xlu0 %v4118
        %v4120 = vpop.xlane.xlu0 %4119
        %v4121 = vsel %vm1987, %v4043, 0.0
        %4122 = vadd.xlane.f32.xlu0 %v4121
        %v4123 = vpop.xlane.xlu0 %4122
        %v4124 = vsel %vm1987, %v4045, 0.0
        %4125 = vadd.xlane.f32.xlu0 %v4124
        %v4126 = vpop.xlane.xlu0 %4125
        %v4127 = vsel %vm1987, %v4047, 0.0
        %4128 = vadd.xlane.f32.xlu0 %v4127
        %v4129 = vpop.xlane.xlu0 %4128
        %v4130 = vsel %vm1987, %v4049, 0.0
        %4131 = vadd.xlane.f32.xlu0 %v4130
        %v4132 = vpop.xlane.xlu0 %4131
        %v4133 = vsel %vm1987, %v4051, 0.0
        %4134 = vadd.xlane.f32.xlu0 %v4133
        %v4135 = vpop.xlane.xlu0 %4134
        %v4136 = vsel %vm1987, %v4053, 0.0
        %4137 = vadd.xlane.f32.xlu0 %v4136
        %v4138 = vpop.xlane.xlu0 %4137
        %v4139 = vsel %vm1987, %v4055, 0.0
        %4140 = vadd.xlane.f32.xlu0 %v4139
        %v4141 = vpop.xlane.xlu0 %4140
        %v4142 = vsel %vm1987, %v4057, 0.0
        %4143 = vadd.xlane.f32.xlu0 %v4142
        %v4144 = vpop.xlane.xlu0 %4143
        %v4145 = vsel %vm1987, %v4059, 0.0
        %4146 = vadd.xlane.f32.xlu0 %v4145
        %v4147 = vpop.xlane.xlu0 %4146
        %v4148 = vsel %vm1987, %v4061, 0.0
        %4149 = vadd.xlane.f32.xlu0 %v4148
        %v4150 = vpop.xlane.xlu0 %4149
        %v4151 = vsel %vm1987, %v4063, 0.0
        %4152 = vadd.xlane.f32.xlu0 %v4151
        %v4153 = vpop.xlane.xlu0 %4152
        %v4154 = vsel %vm1987, %v4065, 0.0
        %4155 = vadd.xlane.f32.xlu0 %v4154
        %v4156 = vpop.xlane.xlu0 %4155
        %v4157 = vsel %vm1987, %v4067, 0.0
        %4158 = vadd.xlane.f32.xlu0 %v4157
        %v4159 = vpop.xlane.xlu0 %4158
        %v4160 = vsel %vm1987, %v4069, 0.0
        %4161 = vadd.xlane.f32.xlu0 %v4160
        %v4162 = vpop.xlane.xlu0 %4161
        %v4163 = vsel %vm1987, %v4071, 0.0
        %4164 = vadd.xlane.f32.xlu0 %v4163
        %v4165 = vpop.xlane.xlu0 %4164
        %v4166 = vsel %vm1987, %v4073, 0.0
        %4167 = vadd.xlane.f32.xlu0 %v4166
        %v4168 = vpop.xlane.xlu0 %4167
        %v4169 = vsel %vm1987, %v4075, 0.0
        %4170 = vadd.xlane.f32.xlu0 %v4169
        %v4171 = vpop.xlane.xlu0 %4170
        %v4172 = vrcp.pop %v4078
        %v4173 = vrcp.pop %v4081
        %v4174 = vrcp.pop %v4084
        %v4175 = vrcp.pop %v4087
        %v4176 = vrcp.pop %v4090
        %v4177 = vrcp.pop %v4093
        %v4178 = vrcp.pop %v4096
        %v4179 = vrcp.pop %v4099
        %v4180 = vrcp.pop %v4102
        %v4181 = vrcp.pop %v4105
        %v4182 = vrcp.pop %v4108
        %v4183 = vrcp.pop %v4111
        %v4184 = vrcp.pop %v4114
        %v4185 = vrcp.pop %v4117
        %v4186 = vrcp.pop %v4120
        %v4187 = vrcp.pop %v4123
        %v4188 = vrcp.pop %v4126
        %v4189 = vrcp.pop %v4129
        %v4190 = vrcp.pop %v4132
        %v4191 = vrcp.pop %v4135
        %v4192 = vrcp.pop %v4138
        %v4193 = vrcp.pop %v4141
        %v4194 = vrcp.pop %v4144
        %v4195 = vrcp.pop %v4147
        %v4196 = vrcp.pop %v4150
        %v4197 = vrcp.pop %v4153
        %v4198 = vrcp.pop %v4156
        %v4199 = vrcp.pop %v4159
        %v4200 = vrcp.pop %v4162
        %v4201 = vrcp.pop %v4165
        %v4202 = vrcp.pop %v4168
        %v4203 = vrcp.pop %v4171
        %v4204 = vmul.f32 %v4013, %v4172
        %v4205 = vmul.f32 %v4015, %v4173
        %v4206 = vmul.f32 %v4017, %v4174
        %v4207 = vmul.f32 %v4019, %v4175
        %v4208 = vmul.f32 %v4021, %v4176
        %v4209 = vmul.f32 %v4023, %v4177
        %v4210 = vmul.f32 %v4025, %v4178
        %v4211 = vmul.f32 %v4027, %v4179
        %v4212 = vmul.f32 %v4029, %v4180
        %v4213 = vmul.f32 %v4031, %v4181
        %v4214 = vmul.f32 %v4033, %v4182
        %v4215 = vmul.f32 %v4035, %v4183
        %v4216 = vmul.f32 %v4037, %v4184
        %v4217 = vmul.f32 %v4039, %v4185
        %v4218 = vmul.f32 %v4041, %v4186
        %v4219 = vmul.f32 %v4043, %v4187
        %v4220 = vmul.f32 %v4045, %v4188
        %v4221 = vmul.f32 %v4047, %v4189
        %v4222 = vmul.f32 %v4049, %v4190
        %v4223 = vmul.f32 %v4051, %v4191
        %v4224 = vmul.f32 %v4053, %v4192
        %v4225 = vmul.f32 %v4055, %v4193
        %v4226 = vmul.f32 %v4057, %v4194
        %v4227 = vmul.f32 %v4059, %v4195
        %v4228 = vmul.f32 %v4061, %v4196
        %v4229 = vmul.f32 %v4063, %v4197
        %v4230 = vmul.f32 %v4065, %v4198
        %v4231 = vmul.f32 %v4067, %v4199
        %v4232 = vmul.f32 %v4069, %v4200
        %v4233 = vmul.f32 %v4071, %v4201
        %v4234 = vmul.f32 %v4073, %v4202
        %v4235 = vmul.f32 %v4075, %v4203
        %v4236 = vpack.c.bf16 %v4205, %v4204
        %v4237 = vpack.c.bf16 %v4207, %v4206
        %v4238 = vpack.c.bf16 %v4209, %v4208
        %v4239 = vpack.c.bf16 %v4211, %v4210
        %v4240 = vpack.c.bf16 %v4213, %v4212
        %v4241 = vpack.c.bf16 %v4215, %v4214
        %v4242 = vpack.c.bf16 %v4217, %v4216
        %v4243 = vpack.c.bf16 %v4219, %v4218
        %v4244 = vpack.c.bf16 %v4221, %v4220
        %v4245 = vpack.c.bf16 %v4223, %v4222
        %v4246 = vpack.c.bf16 %v4225, %v4224
        %v4247 = vpack.c.bf16 %v4227, %v4226
        %v4248 = vpack.c.bf16 %v4229, %v4228
        %v4249 = vpack.c.bf16 %v4231, %v4230
        %v4250 = vpack.c.bf16 %v4233, %v4232
        %v4251 = vpack.c.bf16 %v4235, %v4234
        %4254 = vrot.lane.b32.xlu0 %v1971, 96
        %v4255 = vpop.permute.xlu0 %4254
        %4256 = vrot.lane.b32.xlu0 %v1972, 96
        %v4257 = vpop.permute.xlu0 %4256
        %v4261 = vsel %vm1987, %v4236, 0
        %v4264 = vsel %vm1987, %v4237, 0
        %4266 = vmatprep.subr.bf16.mxu0 0
        %4267 = vmatpush1.bf16.msra.mxu0 %v4255
        %4268 = vmatprep.subr.bf16.mxu0 0
        %4269 = vmatpush1.bf16.msra.mxu0 %v4257
        %4270 = vmatprep.subr.bf16.mxu0 0
        %4271 = vmatpush1.bf16.msra.mxu0 0
        %4272 = vmatprep.subr.bf16.mxu0 0
        %4273 = vmatpush1.bf16.msra.mxu0 0
        %4274 = vmatprep.subr.bf16.mxu0 0
        %4275 = vmatpush1.bf16.msra.mxu0 0
        %4276 = vmatprep.subr.bf16.mxu0 0
        %4277 = vmatpush1.bf16.msra.mxu0 0
        %4278 = vmatprep.subr.bf16.mxu0 0
        %4279 = vmatpush1.bf16.msra.mxu0 0
        %4280 = vmatprep.subr.bf16.mxu0 0
        %4281 = vmatpush1.bf16.msra.mxu0 0
        %4282 = vmatprep.subr.bf16.mxu0 0
        %4283 = vmatpush1.bf16.msra.mxu0 0
        %4284 = vmatprep.subr.bf16.mxu0 0
        %4285 = vmatpush1.bf16.msra.mxu0 0
        %4286 = vmatprep.subr.bf16.mxu0 0
        %4287 = vmatpush1.bf16.msra.mxu0 0
        %4288 = vmatprep.subr.bf16.mxu0 0
        %4289 = vmatpush1.bf16.msra.mxu0 0
        %4290 = vmatprep.subr.bf16.mxu0 0
        %4291 = vmatpush1.bf16.msra.mxu0 0
        %4292 = vmatprep.subr.bf16.mxu0 0
        %4293 = vmatpush1.bf16.msra.mxu0 0
        %4294 = vmatprep.subr.bf16.mxu0 0
        %4295 = vmatpush1.bf16.msra.mxu0 0
        %4296 = vmatprep.subr.bf16.mxu0 0
        %4297 = vmatpush1.bf16.msra.mxu0 0
        %4298 = vmatprep.mubr.bf16.mxu0 0
        %4299 = vmatmul.mubr.bf16.gmra.mrb[0].mxu0 %v4261
        %v4300 = vpop.f32.mrb[0].mxu0
        %v4301 = vadd.f32 0.0, %v4300
        %v4302 = vpop.f32.mrb[0].mxu0
        %v4303 = vpop.f32.mrb[0].mxu0
        %v4304 = vadd.f32 0.0, %v4303
        %v4305 = vpop.f32.mrb[0].mxu0
        %4306 = vmatprep.mubr.bf16.mxu0 0
        %4307 = vmatmul.mubr.bf16.gmra.mrb[0].mxu0 %v4264
        %v4308 = vpop.f32.mrb[0].mxu0
        %v4309 = vadd.f32 0.0, %v4308
        %v4310 = vpop.f32.mrb[0].mxu0
        %v4311 = vpop.f32.mrb[0].mxu0
        %v4312 = vadd.f32 0.0, %v4311
        %v4313 = vpop.f32.mrb[0].mxu0
        %4314 = vdwg.mxu0
        %4317 = vrot.lane.b32.xlu0 %v1973, 96
        %v4318 = vpop.permute.xlu0 %4317
        %4319 = vrot.lane.b32.xlu0 %v1974, 96
        %v4320 = vpop.permute.xlu0 %4319
        %v4324 = vsel %vm1987, %v4238, 0
        %v4327 = vsel %vm1987, %v4239, 0
        %4329 = vmatprep.subr.bf16.mxu0 0
        %4330 = vmatpush1.bf16.msra.mxu0 %v4318
        %4331 = vmatprep.subr.bf16.mxu0 0
        %4332 = vmatpush1.bf16.msra.mxu0 %v4320
        %4333 = vmatprep.subr.bf16.mxu0 0
        %4334 = vmatpush1.bf16.msra.mxu0 0
        %4335 = vmatprep.subr.bf16.mxu0 0
        %4336 = vmatpush1.bf16.msra.mxu0 0
        %4337 = vmatprep.subr.bf16.mxu0 0
        %4338 = vmatpush1.bf16.msra.mxu0 0
        %4339 = vmatprep.subr.bf16.mxu0 0
        %4340 = vmatpush1.bf16.msra.mxu0 0
        %4341 = vmatprep.subr.bf16.mxu0 0
        %4342 = vmatpush1.bf16.msra.mxu0 0
        %4343 = vmatprep.subr.bf16.mxu0 0
        %4344 = vmatpush1.bf16.msra.mxu0 0
        %4345 = vmatprep.subr.bf16.mxu0 0
        %4346 = vmatpush1.bf16.msra.mxu0 0
        %4347 = vmatprep.subr.bf16.mxu0 0
        %4348 = vmatpush1.bf16.msra.mxu0 0
        %4349 = vmatprep.subr.bf16.mxu0 0
        %4350 = vmatpush1.bf16.msra.mxu0 0
        %4351 = vmatprep.subr.bf16.mxu0 0
        %4352 = vmatpush1.bf16.msra.mxu0 0
        %4353 = vmatprep.subr.bf16.mxu0 0
        %4354 = vmatpush1.bf16.msra.mxu0 0
        %4355 = vmatprep.subr.bf16.mxu0 0
        %4356 = vmatpush1.bf16.msra.mxu0 0
        %4357 = vmatprep.subr.bf16.mxu0 0
        %4358 = vmatpush1.bf16.msra.mxu0 0
        %4359 = vmatprep.subr.bf16.mxu0 0
        %4360 = vmatpush1.bf16.msra.mxu0 0
        %4361 = vmatprep.mubr.bf16.mxu0 0
        %4362 = vmatmul.mubr.bf16.gmra.mrb[0].mxu0 %v4324
        %v4363 = vpop.f32.mrb[0].mxu0
        %v4364 = vadd.f32 0.0, %v4363
        %v4365 = vpop.f32.mrb[0].mxu0
        %v4366 = vpop.f32.mrb[0].mxu0
        %v4367 = vadd.f32 0.0, %v4366
        %v4368 = vpop.f32.mrb[0].mxu0
        %4369 = vmatprep.mubr.bf16.mxu0 0
        %4370 = vmatmul.mubr.bf16.gmra.mrb[0].mxu0 %v4327
        %v4371 = vpop.f32.mrb[0].mxu0
        %v4372 = vadd.f32 0.0, %v4371
        %v4373 = vpop.f32.mrb[0].mxu0
        %v4374 = vpop.f32.mrb[0].mxu0
        %v4375 = vadd.f32 0.0, %v4374
        %v4376 = vpop.f32.mrb[0].mxu0
        %4377 = vdwg.mxu0
        %4380 = vrot.lane.b32.xlu0 %v1975, 96
        %v4381 = vpop.permute.xlu0 %4380
        %4382 = vrot.lane.b32.xlu0 %v1976, 96
        %v4383 = vpop.permute.xlu0 %4382
        %v4387 = vsel %vm1987, %v4240, 0
        %v4390 = vsel %vm1987, %v4241, 0
        %4392 = vmatprep.subr.bf16.mxu0 0
        %4393 = vmatpush1.bf16.msra.mxu0 %v4381
        %4394 = vmatprep.subr.bf16.mxu0 0
        %4395 = vmatpush1.bf16.msra.mxu0 %v4383
        %4396 = vmatprep.subr.bf16.mxu0 0
        %4397 = vmatpush1.bf16.msra.mxu0 0
        %4398 = vmatprep.subr.bf16.mxu0 0
        %4399 = vmatpush1.bf16.msra.mxu0 0
        %4400 = vmatprep.subr.bf16.mxu0 0
        %4401 = vmatpush1.bf16.msra.mxu0 0
        %4402 = vmatprep.subr.bf16.mxu0 0
        %4403 = vmatpush1.bf16.msra.mxu0 0
        %4404 = vmatprep.subr.bf16.mxu0 0
        %4405 = vmatpush1.bf16.msra.mxu0 0
        %4406 = vmatprep.subr.bf16.mxu0 0
        %4407 = vmatpush1.bf16.msra.mxu0 0
        %4408 = vmatprep.subr.bf16.mxu0 0
        %4409 = vmatpush1.bf16.msra.mxu0 0
        %4410 = vmatprep.subr.bf16.mxu0 0
        %4411 = vmatpush1.bf16.msra.mxu0 0
        %4412 = vmatprep.subr.bf16.mxu0 0
        %4413 = vmatpush1.bf16.msra.mxu0 0
        %4414 = vmatprep.subr.bf16.mxu0 0
        %4415 = vmatpush1.bf16.msra.mxu0 0
        %4416 = vmatprep.subr.bf16.mxu0 0
        %4417 = vmatpush1.bf16.msra.mxu0 0
        %4418 = vmatprep.subr.bf16.mxu0 0
        %4419 = vmatpush1.bf16.msra.mxu0 0
        %4420 = vmatprep.subr.bf16.mxu0 0
        %4421 = vmatpush1.bf16.msra.mxu0 0
        %4422 = vmatprep.subr.bf16.mxu0 0
        %4423 = vmatpush1.bf16.msra.mxu0 0
        %4424 = vmatprep.mubr.bf16.mxu0 0
        %4425 = vmatmul.mubr.bf16.gmra.mrb[0].mxu0 %v4387
        %v4426 = vpop.f32.mrb[0].mxu0
        %v4427 = vadd.f32 0.0, %v4426
        %v4428 = vpop.f32.mrb[0].mxu0
        %v4429 = vpop.f32.mrb[0].mxu0
        %v4430 = vadd.f32 0.0, %v4429
        %v4431 = vpop.f32.mrb[0].mxu0
        %4432 = vmatprep.mubr.bf16.mxu0 0
        %4433 = vmatmul.mubr.bf16.gmra.mrb[0].mxu0 %v4390
        %v4434 = vpop.f32.mrb[0].mxu0
        %v4435 = vadd.f32 0.0, %v4434
        %v4436 = vpop.f32.mrb[0].mxu0
        %v4437 = vpop.f32.mrb[0].mxu0
        %v4438 = vadd.f32 0.0, %v4437
        %v4439 = vpop.f32.mrb[0].mxu0
        %4440 = vdwg.mxu0
        %4443 = vrot.lane.b32.xlu0 %v1977, 96
        %v4444 = vpop.permute.xlu0 %4443
        %4445 = vrot.lane.b32.xlu0 %v1978, 96
        %v4446 = vpop.permute.xlu0 %4445
        %v4450 = vsel %vm1987, %v4242, 0
        %v4453 = vsel %vm1987, %v4243, 0
        %4455 = vmatprep.subr.bf16.mxu0 0
        %4456 = vmatpush1.bf16.msra.mxu0 %v4444
        %4457 = vmatprep.subr.bf16.mxu0 0
        %4458 = vmatpush1.bf16.msra.mxu0 %v4446
        %4459 = vmatprep.subr.bf16.mxu0 0
        %4460 = vmatpush1.bf16.msra.mxu0 0
        %4461 = vmatprep.subr.bf16.mxu0 0
        %4462 = vmatpush1.bf16.msra.mxu0 0
        %4463 = vmatprep.subr.bf16.mxu0 0
        %4464 = vmatpush1.bf16.msra.mxu0 0
        %4465 = vmatprep.subr.bf16.mxu0 0
        %4466 = vmatpush1.bf16.msra.mxu0 0
        %4467 = vmatprep.subr.bf16.mxu0 0
        %4468 = vmatpush1.bf16.msra.mxu0 0
        %4469 = vmatprep.subr.bf16.mxu0 0
        %4470 = vmatpush1.bf16.msra.mxu0 0
        %4471 = vmatprep.subr.bf16.mxu0 0
        %4472 = vmatpush1.bf16.msra.mxu0 0
        %4473 = vmatprep.subr.bf16.mxu0 0
        %4474 = vmatpush1.bf16.msra.mxu0 0
        %4475 = vmatprep.subr.bf16.mxu0 0
        %4476 = vmatpush1.bf16.msra.mxu0 0
        %4477 = vmatprep.subr.bf16.mxu0 0
        %4478 = vmatpush1.bf16.msra.mxu0 0
        %4479 = vmatprep.subr.bf16.mxu0 0
        %4480 = vmatpush1.bf16.msra.mxu0 0
        %4481 = vmatprep.subr.bf16.mxu0 0
        %4482 = vmatpush1.bf16.msra.mxu0 0
        %4483 = vmatprep.subr.bf16.mxu0 0
        %4484 = vmatpush1.bf16.msra.mxu0 0
        %4485 = vmatprep.subr.bf16.mxu0 0
        %4486 = vmatpush1.bf16.msra.mxu0 0
        %4487 = vmatprep.mubr.bf16.mxu0 0
        %4488 = vmatmul.mubr.bf16.gmra.mrb[0].mxu0 %v4450
        %v4489 = vpop.f32.mrb[0].mxu0
        %v4490 = vadd.f32 0.0, %v4489
        %v4491 = vpop.f32.mrb[0].mxu0
        %v4492 = vpop.f32.mrb[0].mxu0
        %v4493 = vadd.f32 0.0, %v4492
        %v4494 = vpop.f32.mrb[0].mxu0
        %4495 = vmatprep.mubr.bf16.mxu0 0
        %4496 = vmatmul.mubr.bf16.gmra.mrb[0].mxu0 %v4453
        %v4497 = vpop.f32.mrb[0].mxu0
        %v4498 = vadd.f32 0.0, %v4497
        %v4499 = vpop.f32.mrb[0].mxu0
        %v4500 = vpop.f32.mrb[0].mxu0
        %v4501 = vadd.f32 0.0, %v4500
        %v4502 = vpop.f32.mrb[0].mxu0
        %4503 = vdwg.mxu0
        %4506 = vrot.lane.b32.xlu0 %v1979, 96
        %v4507 = vpop.permute.xlu0 %4506
        %4508 = vrot.lane.b32.xlu0 %v1980, 96
        %v4509 = vpop.permute.xlu0 %4508
        %v4513 = vsel %vm1987, %v4244, 0
        %v4516 = vsel %vm1987, %v4245, 0
        %4518 = vmatprep.subr.bf16.mxu0 0
        %4519 = vmatpush1.bf16.msra.mxu0 %v4507
        %4520 = vmatprep.subr.bf16.mxu0 0
        %4521 = vmatpush1.bf16.msra.mxu0 %v4509
        %4522 = vmatprep.subr.bf16.mxu0 0
        %4523 = vmatpush1.bf16.msra.mxu0 0
        %4524 = vmatprep.subr.bf16.mxu0 0
        %4525 = vmatpush1.bf16.msra.mxu0 0
        %4526 = vmatprep.subr.bf16.mxu0 0
        %4527 = vmatpush1.bf16.msra.mxu0 0
        %4528 = vmatprep.subr.bf16.mxu0 0
        %4529 = vmatpush1.bf16.msra.mxu0 0
        %4530 = vmatprep.subr.bf16.mxu0 0
        %4531 = vmatpush1.bf16.msra.mxu0 0
        %4532 = vmatprep.subr.bf16.mxu0 0
        %4533 = vmatpush1.bf16.msra.mxu0 0
        %4534 = vmatprep.subr.bf16.mxu0 0
        %4535 = vmatpush1.bf16.msra.mxu0 0
        %4536 = vmatprep.subr.bf16.mxu0 0
        %4537 = vmatpush1.bf16.msra.mxu0 0
        %4538 = vmatprep.subr.bf16.mxu0 0
        %4539 = vmatpush1.bf16.msra.mxu0 0
        %4540 = vmatprep.subr.bf16.mxu0 0
        %4541 = vmatpush1.bf16.msra.mxu0 0
        %4542 = vmatprep.subr.bf16.mxu0 0
        %4543 = vmatpush1.bf16.msra.mxu0 0
        %4544 = vmatprep.subr.bf16.mxu0 0
        %4545 = vmatpush1.bf16.msra.mxu0 0
        %4546 = vmatprep.subr.bf16.mxu0 0
        %4547 = vmatpush1.bf16.msra.mxu0 0
        %4548 = vmatprep.subr.bf16.mxu0 0
        %4549 = vmatpush1.bf16.msra.mxu0 0
        %4550 = vmatprep.mubr.bf16.mxu0 0
        %4551 = vmatmul.mubr.bf16.gmra.mrb[0].mxu0 %v4513
        %v4552 = vpop.f32.mrb[0].mxu0
        %v4553 = vadd.f32 0.0, %v4552
        %v4554 = vpop.f32.mrb[0].mxu0
        %v4555 = vpop.f32.mrb[0].mxu0
        %v4556 = vadd.f32 0.0, %v4555
        %v4557 = vpop.f32.mrb[0].mxu0
        %4558 = vmatprep.mubr.bf16.mxu0 0
        %4559 = vmatmul.mubr.bf16.gmra.mrb[0].mxu0 %v4516
        %v4560 = vpop.f32.mrb[0].mxu0
        %v4561 = vadd.f32 0.0, %v4560
        %v4562 = vpop.f32.mrb[0].mxu0
        %v4563 = vpop.f32.mrb[0].mxu0
        %v4564 = vadd.f32 0.0, %v4563
        %v4565 = vpop.f32.mrb[0].mxu0
        %4566 = vdwg.mxu0
        %4569 = vrot.lane.b32.xlu0 %v1981, 96
        %v4570 = vpop.permute.xlu0 %4569
        %4571 = vrot.lane.b32.xlu0 %v1982, 96
        %v4572 = vpop.permute.xlu0 %4571
        %v4576 = vsel %vm1987, %v4246, 0
        %v4579 = vsel %vm1987, %v4247, 0
        %4581 = vmatprep.subr.bf16.mxu0 0
        %4582 = vmatpush1.bf16.msra.mxu0 %v4570
        %4583 = vmatprep.subr.bf16.mxu0 0
        %4584 = vmatpush1.bf16.msra.mxu0 %v4572
        %4585 = vmatprep.subr.bf16.mxu0 0
        %4586 = vmatpush1.bf16.msra.mxu0 0
        %4587 = vmatprep.subr.bf16.mxu0 0
        %4588 = vmatpush1.bf16.msra.mxu0 0
        %4589 = vmatprep.subr.bf16.mxu0 0
        %4590 = vmatpush1.bf16.msra.mxu0 0
        %4591 = vmatprep.subr.bf16.mxu0 0
        %4592 = vmatpush1.bf16.msra.mxu0 0
        %4593 = vmatprep.subr.bf16.mxu0 0
        %4594 = vmatpush1.bf16.msra.mxu0 0
        %4595 = vmatprep.subr.bf16.mxu0 0
        %4596 = vmatpush1.bf16.msra.mxu0 0
        %4597 = vmatprep.subr.bf16.mxu0 0
        %4598 = vmatpush1.bf16.msra.mxu0 0
        %4599 = vmatprep.subr.bf16.mxu0 0
        %4600 = vmatpush1.bf16.msra.mxu0 0
        %4601 = vmatprep.subr.bf16.mxu0 0
        %4602 = vmatpush1.bf16.msra.mxu0 0
        %4603 = vmatprep.subr.bf16.mxu0 0
        %4604 = vmatpush1.bf16.msra.mxu0 0
        %4605 = vmatprep.subr.bf16.mxu0 0
        %4606 = vmatpush1.bf16.msra.mxu0 0
        %4607 = vmatprep.subr.bf16.mxu0 0
        %4608 = vmatpush1.bf16.msra.mxu0 0
        %4609 = vmatprep.subr.bf16.mxu0 0
        %4610 = vmatpush1.bf16.msra.mxu0 0
        %4611 = vmatprep.subr.bf16.mxu0 0
        %4612 = vmatpush1.bf16.msra.mxu0 0
        %4613 = vmatprep.mubr.bf16.mxu0 0
        %4614 = vmatmul.mubr.bf16.gmra.mrb[0].mxu0 %v4576
        %v4615 = vpop.f32.mrb[0].mxu0
        %v4616 = vadd.f32 0.0, %v4615
        %v4617 = vpop.f32.mrb[0].mxu0
        %v4618 = vpop.f32.mrb[0].mxu0
        %v4619 = vadd.f32 0.0, %v4618
        %v4620 = vpop.f32.mrb[0].mxu0
        %4621 = vmatprep.mubr.bf16.mxu0 0
        %4622 = vmatmul.mubr.bf16.gmra.mrb[0].mxu0 %v4579
        %v4623 = vpop.f32.mrb[0].mxu0
        %v4624 = vadd.f32 0.0, %v4623
        %v4625 = vpop.f32.mrb[0].mxu0
        %v4626 = vpop.f32.mrb[0].mxu0
        %v4627 = vadd.f32 0.0, %v4626
        %v4628 = vpop.f32.mrb[0].mxu0
        %4629 = vdwg.mxu0
        %4632 = vrot.lane.b32.xlu0 %v1983, 96
        %v4633 = vpop.permute.xlu0 %4632
        %4634 = vrot.lane.b32.xlu0 %v1984, 96
        %v4635 = vpop.permute.xlu0 %4634
        %v4639 = vsel %vm1987, %v4248, 0
        %v4642 = vsel %vm1987, %v4249, 0
        %4644 = vmatprep.subr.bf16.mxu0 0
        %4645 = vmatpush1.bf16.msra.mxu0 %v4633
        %4646 = vmatprep.subr.bf16.mxu0 0
        %4647 = vmatpush1.bf16.msra.mxu0 %v4635
        %4648 = vmatprep.subr.bf16.mxu0 0
        %4649 = vmatpush1.bf16.msra.mxu0 0
        %4650 = vmatprep.subr.bf16.mxu0 0
        %4651 = vmatpush1.bf16.msra.mxu0 0
        %4652 = vmatprep.subr.bf16.mxu0 0
        %4653 = vmatpush1.bf16.msra.mxu0 0
        %4654 = vmatprep.subr.bf16.mxu0 0
        %4655 = vmatpush1.bf16.msra.mxu0 0
        %4656 = vmatprep.subr.bf16.mxu0 0
        %4657 = vmatpush1.bf16.msra.mxu0 0
        %4658 = vmatprep.subr.bf16.mxu0 0
        %4659 = vmatpush1.bf16.msra.mxu0 0
        %4660 = vmatprep.subr.bf16.mxu0 0
        %4661 = vmatpush1.bf16.msra.mxu0 0
        %4662 = vmatprep.subr.bf16.mxu0 0
        %4663 = vmatpush1.bf16.msra.mxu0 0
        %4664 = vmatprep.subr.bf16.mxu0 0
        %4665 = vmatpush1.bf16.msra.mxu0 0
        %4666 = vmatprep.subr.bf16.mxu0 0
        %4667 = vmatpush1.bf16.msra.mxu0 0
        %4668 = vmatprep.subr.bf16.mxu0 0
        %4669 = vmatpush1.bf16.msra.mxu0 0
        %4670 = vmatprep.subr.bf16.mxu0 0
        %4671 = vmatpush1.bf16.msra.mxu0 0
        %4672 = vmatprep.subr.bf16.mxu0 0
        %4673 = vmatpush1.bf16.msra.mxu0 0
        %4674 = vmatprep.subr.bf16.mxu0 0
        %4675 = vmatpush1.bf16.msra.mxu0 0
        %4676 = vmatprep.mubr.bf16.mxu0 0
        %4677 = vmatmul.mubr.bf16.gmra.mrb[0].mxu0 %v4639
        %v4678 = vpop.f32.mrb[0].mxu0
        %v4679 = vadd.f32 0.0, %v4678
        %v4680 = vpop.f32.mrb[0].mxu0
        %v4681 = vpop.f32.mrb[0].mxu0
        %v4682 = vadd.f32 0.0, %v4681
        %v4683 = vpop.f32.mrb[0].mxu0
        %4684 = vmatprep.mubr.bf16.mxu0 0
        %4685 = vmatmul.mubr.bf16.gmra.mrb[0].mxu0 %v4642
        %v4686 = vpop.f32.mrb[0].mxu0
        %v4687 = vadd.f32 0.0, %v4686
        %v4688 = vpop.f32.mrb[0].mxu0
        %v4689 = vpop.f32.mrb[0].mxu0
        %v4690 = vadd.f32 0.0, %v4689
        %v4691 = vpop.f32.mrb[0].mxu0
        %4692 = vdwg.mxu0
        %4695 = vrot.lane.b32.xlu0 %v1985, 96
        %v4696 = vpop.permute.xlu0 %4695
        %4697 = vrot.lane.b32.xlu0 %v1986, 96
        %v4698 = vpop.permute.xlu0 %4697
        %v4702 = vsel %vm1987, %v4250, 0
        %v4705 = vsel %vm1987, %v4251, 0
        %4707 = vmatprep.subr.bf16.mxu0 0
        %4708 = vmatpush1.bf16.msra.mxu0 %v4696
        %4709 = vmatprep.subr.bf16.mxu0 0
        %4710 = vmatpush1.bf16.msra.mxu0 %v4698
        %4711 = vmatprep.subr.bf16.mxu0 0
        %4712 = vmatpush1.bf16.msra.mxu0 0
        %4713 = vmatprep.subr.bf16.mxu0 0
        %4714 = vmatpush1.bf16.msra.mxu0 0
        %4715 = vmatprep.subr.bf16.mxu0 0
        %4716 = vmatpush1.bf16.msra.mxu0 0
        %4717 = vmatprep.subr.bf16.mxu0 0
        %4718 = vmatpush1.bf16.msra.mxu0 0
        %4719 = vmatprep.subr.bf16.mxu0 0
        %4720 = vmatpush1.bf16.msra.mxu0 0
        %4721 = vmatprep.subr.bf16.mxu0 0
        %4722 = vmatpush1.bf16.msra.mxu0 0
        %4723 = vmatprep.subr.bf16.mxu0 0
        %4724 = vmatpush1.bf16.msra.mxu0 0
        %4725 = vmatprep.subr.bf16.mxu0 0
        %4726 = vmatpush1.bf16.msra.mxu0 0
        %4727 = vmatprep.subr.bf16.mxu0 0
        %4728 = vmatpush1.bf16.msra.mxu0 0
        %4729 = vmatprep.subr.bf16.mxu0 0
        %4730 = vmatpush1.bf16.msra.mxu0 0
        %4731 = vmatprep.subr.bf16.mxu0 0
        %4732 = vmatpush1.bf16.msra.mxu0 0
        %4733 = vmatprep.subr.bf16.mxu0 0
        %4734 = vmatpush1.bf16.msra.mxu0 0
        %4735 = vmatprep.subr.bf16.mxu0 0
        %4736 = vmatpush1.bf16.msra.mxu0 0
        %4737 = vmatprep.subr.bf16.mxu0 0
        %4738 = vmatpush1.bf16.msra.mxu0 0
        %4739 = vmatprep.mubr.bf16.mxu0 0
        %4740 = vmatmul.mubr.bf16.gmra.mrb[0].mxu0 %v4702
        %v4741 = vpop.f32.mrb[0].mxu0
        %v4742 = vadd.f32 0.0, %v4741
        %v4743 = vpop.f32.mrb[0].mxu0
        %v4744 = vpop.f32.mrb[0].mxu0
        %v4745 = vadd.f32 0.0, %v4744
        %v4746 = vpop.f32.mrb[0].mxu0
        %4747 = vmatprep.mubr.bf16.mxu0 0
        %4748 = vmatmul.mubr.bf16.gmra.mrb[0].mxu0 %v4705
        %v4749 = vpop.f32.mrb[0].mxu0
        %v4750 = vadd.f32 0.0, %v4749
        %v4751 = vpop.f32.mrb[0].mxu0
        %v4752 = vpop.f32.mrb[0].mxu0
        %v4753 = vadd.f32 0.0, %v4752
        %v4754 = vpop.f32.mrb[0].mxu0
        %4755 = vdwg.mxu0
        %v4756 = vpack.c.bf16 %v4304, %v4301
        %v4757 = vpack.c.bf16 %v4312, %v4309
        %v4758 = vpack.c.bf16 %v4367, %v4364
        %v4759 = vpack.c.bf16 %v4375, %v4372
        %v4760 = vpack.c.bf16 %v4430, %v4427
        %v4761 = vpack.c.bf16 %v4438, %v4435
        %v4762 = vpack.c.bf16 %v4493, %v4490
        %v4763 = vpack.c.bf16 %v4501, %v4498
        %v4764 = vpack.c.bf16 %v4556, %v4553
        %v4765 = vpack.c.bf16 %v4564, %v4561
        %v4766 = vpack.c.bf16 %v4619, %v4616
        %v4767 = vpack.c.bf16 %v4627, %v4624
        %v4768 = vpack.c.bf16 %v4682, %v4679
        %v4769 = vpack.c.bf16 %v4690, %v4687
        %v4770 = vpack.c.bf16 %v4745, %v4742
        %v4771 = vpack.c.bf16 %v4753, %v4750
        %4772 = vrot.lane.b32.xlu0 %v1939, 64
        %v4773 = vpop.permute.xlu0 %4772
        %4774 = vrot.lane.b32.xlu0 %v1940, 64
        %v4775 = vpop.permute.xlu0 %4774
        %4776 = vrot.lane.b32.xlu0 %v1955, 64
        %v4777 = vpop.permute.xlu0 %4776
        %4778 = vrot.lane.b32.xlu0 %v1956, 64
        %v4779 = vpop.permute.xlu0 %4778
        %v4781 = vsel %vm1987, %v4773, 0
        %v4784 = vsel %vm1987, %v4775, 0
        %v4787 = vsel %vm1987, %v4777, 0
        %v4790 = vsel %vm1987, %v4779, 0
        %4792 = vmatprep.subr.bf16.mxu0 0
        %4793 = vmatpush1.bf16.xpose.msra.mxu0 %v4787
        %4794 = vmatprep.subr.bf16.mxu0 0
        %4795 = vmatpush1.bf16.xpose.msra.mxu0 %v4790
        %4796 = vmatprep.subr.bf16.mxu0 0
        %4797 = vmatpush1.bf16.xpose.msra.mxu0 0
        %4798 = vmatprep.subr.bf16.mxu0 0
        %4799 = vmatpush1.bf16.xpose.msra.mxu0 0
        %4800 = vmatprep.subr.bf16.mxu0 0
        %4801 = vmatpush1.bf16.xpose.msra.mxu0 0
        %4802 = vmatprep.subr.bf16.mxu0 0
        %4803 = vmatpush1.bf16.xpose.msra.mxu0 0
        %4804 = vmatprep.subr.bf16.mxu0 0
        %4805 = vmatpush1.bf16.xpose.msra.mxu0 0
        %4806 = vmatprep.subr.bf16.mxu0 0
        %4807 = vmatpush1.bf16.xpose.msra.mxu0 0
        %4808 = vmatprep.subr.bf16.mxu0 0
        %4809 = vmatpush1.bf16.xpose.msra.mxu0 0
        %4810 = vmatprep.subr.bf16.mxu0 0
        %4811 = vmatpush1.bf16.xpose.msra.mxu0 0
        %4812 = vmatprep.subr.bf16.mxu0 0
        %4813 = vmatpush1.bf16.xpose.msra.mxu0 0
        %4814 = vmatprep.subr.bf16.mxu0 0
        %4815 = vmatpush1.bf16.xpose.msra.mxu0 0
        %4816 = vmatprep.subr.bf16.mxu0 0
        %4817 = vmatpush1.bf16.xpose.msra.mxu0 0
        %4818 = vmatprep.subr.bf16.mxu0 0
        %4819 = vmatpush1.bf16.xpose.msra.mxu0 0
        %4820 = vmatprep.subr.bf16.mxu0 0
        %4821 = vmatpush1.bf16.xpose.msra.mxu0 0
        %4822 = vmatprep.subr.bf16.mxu0 0
        %4823 = vmatpush1.bf16.xpose.msra.mxu0 0
        %4824 = vmatprep.mubr.bf16.mxu0 0
        %4825 = vmatmul.mubr.bf16.gmra.mrb[0].mxu0 %v4781
        %v4826 = vpop.f32.mrb[0].mxu0
        %v4827 = vadd.f32 0.0, %v4826
        %v4828 = vpop.f32.mrb[0].mxu0
        %v4829 = vpop.f32.mrb[0].mxu0
        %v4830 = vadd.f32 0.0, %v4829
        %v4831 = vpop.f32.mrb[0].mxu0
        %4832 = vmatprep.mubr.bf16.mxu0 0
        %4833 = vmatmul.mubr.bf16.gmra.mrb[0].mxu0 %v4784
        %v4834 = vpop.f32.mrb[0].mxu0
        %v4835 = vadd.f32 0.0, %v4834
        %v4836 = vpop.f32.mrb[0].mxu0
        %v4837 = vpop.f32.mrb[0].mxu0
        %v4838 = vadd.f32 0.0, %v4837
        %v4839 = vpop.f32.mrb[0].mxu0
        %4840 = vdwg.mxu0
        %4841 = vrot.lane.b32.xlu0 %v1941, 64
        %v4842 = vpop.permute.xlu0 %4841
        %4843 = vrot.lane.b32.xlu0 %v1942, 64
        %v4844 = vpop.permute.xlu0 %4843
        %4845 = vrot.lane.b32.xlu0 %v1957, 64
        %v4846 = vpop.permute.xlu0 %4845
        %4847 = vrot.lane.b32.xlu0 %v1958, 64
        %v4848 = vpop.permute.xlu0 %4847
        %v4850 = vsel %vm1987, %v4842, 0
        %v4853 = vsel %vm1987, %v4844, 0
        %v4856 = vsel %vm1987, %v4846, 0
        %v4859 = vsel %vm1987, %v4848, 0
        %4861 = vmatprep.subr.bf16.mxu0 0
        %4862 = vmatpush1.bf16.xpose.msra.mxu0 %v4856
        %4863 = vmatprep.subr.bf16.mxu0 0
        %4864 = vmatpush1.bf16.xpose.msra.mxu0 %v4859
        %4865 = vmatprep.subr.bf16.mxu0 0
        %4866 = vmatpush1.bf16.xpose.msra.mxu0 0
        %4867 = vmatprep.subr.bf16.mxu0 0
        %4868 = vmatpush1.bf16.xpose.msra.mxu0 0
        %4869 = vmatprep.subr.bf16.mxu0 0
        %4870 = vmatpush1.bf16.xpose.msra.mxu0 0
        %4871 = vmatprep.subr.bf16.mxu0 0
        %4872 = vmatpush1.bf16.xpose.msra.mxu0 0
        %4873 = vmatprep.subr.bf16.mxu0 0
        %4874 = vmatpush1.bf16.xpose.msra.mxu0 0
        %4875 = vmatprep.subr.bf16.mxu0 0
        %4876 = vmatpush1.bf16.xpose.msra.mxu0 0
        %4877 = vmatprep.subr.bf16.mxu0 0
        %4878 = vmatpush1.bf16.xpose.msra.mxu0 0
        %4879 = vmatprep.subr.bf16.mxu0 0
        %4880 = vmatpush1.bf16.xpose.msra.mxu0 0
        %4881 = vmatprep.subr.bf16.mxu0 0
        %4882 = vmatpush1.bf16.xpose.msra.mxu0 0
        %4883 = vmatprep.subr.bf16.mxu0 0
        %4884 = vmatpush1.bf16.xpose.msra.mxu0 0
        %4885 = vmatprep.subr.bf16.mxu0 0
        %4886 = vmatpush1.bf16.xpose.msra.mxu0 0
        %4887 = vmatprep.subr.bf16.mxu0 0
        %4888 = vmatpush1.bf16.xpose.msra.mxu0 0
        %4889 = vmatprep.subr.bf16.mxu0 0
        %4890 = vmatpush1.bf16.xpose.msra.mxu0 0
        %4891 = vmatprep.subr.bf16.mxu0 0
        %4892 = vmatpush1.bf16.xpose.msra.mxu0 0
        %4893 = vmatprep.mubr.bf16.mxu0 0
        %4894 = vmatmul.mubr.bf16.gmra.mrb[0].mxu0 %v4850
        %v4895 = vpop.f32.mrb[0].mxu0
        %v4896 = vadd.f32 0.0, %v4895
        %v4897 = vpop.f32.mrb[0].mxu0
        %v4898 = vpop.f32.mrb[0].mxu0
        %v4899 = vadd.f32 0.0, %v4898
        %v4900 = vpop.f32.mrb[0].mxu0
        %4901 = vmatprep.mubr.bf16.mxu0 0
        %4902 = vmatmul.mubr.bf16.gmra.mrb[0].mxu0 %v4853
        %v4903 = vpop.f32.mrb[0].mxu0
        %v4904 = vadd.f32 0.0, %v4903
        %v4905 = vpop.f32.mrb[0].mxu0
        %v4906 = vpop.f32.mrb[0].mxu0
        %v4907 = vadd.f32 0.0, %v4906
        %v4908 = vpop.f32.mrb[0].mxu0
        %4909 = vdwg.mxu0
        %4910 = vrot.lane.b32.xlu0 %v1943, 64
        %v4911 = vpop.permute.xlu0 %4910
        %4912 = vrot.lane.b32.xlu0 %v1944, 64
        %v4913 = vpop.permute.xlu0 %4912
        %4914 = vrot.lane.b32.xlu0 %v1959, 64
        %v4915 = vpop.permute.xlu0 %4914
        %4916 = vrot.lane.b32.xlu0 %v1960, 64
        %v4917 = vpop.permute.xlu0 %4916
        %v4919 = vsel %vm1987, %v4911, 0
        %v4922 = vsel %vm1987, %v4913, 0
        %v4925 = vsel %vm1987, %v4915, 0
        %v4928 = vsel %vm1987, %v4917, 0
        %4930 = vmatprep.subr.bf16.mxu0 0
        %4931 = vmatpush1.bf16.xpose.msra.mxu0 %v4925
        %4932 = vmatprep.subr.bf16.mxu0 0
        %4933 = vmatpush1.bf16.xpose.msra.mxu0 %v4928
        %4934 = vmatprep.subr.bf16.mxu0 0
        %4935 = vmatpush1.bf16.xpose.msra.mxu0 0
        %4936 = vmatprep.subr.bf16.mxu0 0
        %4937 = vmatpush1.bf16.xpose.msra.mxu0 0
        %4938 = vmatprep.subr.bf16.mxu0 0
        %4939 = vmatpush1.bf16.xpose.msra.mxu0 0
        %4940 = vmatprep.subr.bf16.mxu0 0
        %4941 = vmatpush1.bf16.xpose.msra.mxu0 0
        %4942 = vmatprep.subr.bf16.mxu0 0
        %4943 = vmatpush1.bf16.xpose.msra.mxu0 0
        %4944 = vmatprep.subr.bf16.mxu0 0
        %4945 = vmatpush1.bf16.xpose.msra.mxu0 0
        %4946 = vmatprep.subr.bf16.mxu0 0
        %4947 = vmatpush1.bf16.xpose.msra.mxu0 0
        %4948 = vmatprep.subr.bf16.mxu0 0
        %4949 = vmatpush1.bf16.xpose.msra.mxu0 0
        %4950 = vmatprep.subr.bf16.mxu0 0
        %4951 = vmatpush1.bf16.xpose.msra.mxu0 0
        %4952 = vmatprep.subr.bf16.mxu0 0
        %4953 = vmatpush1.bf16.xpose.msra.mxu0 0
        %4954 = vmatprep.subr.bf16.mxu0 0
        %4955 = vmatpush1.bf16.xpose.msra.mxu0 0
        %4956 = vmatprep.subr.bf16.mxu0 0
        %4957 = vmatpush1.bf16.xpose.msra.mxu0 0
        %4958 = vmatprep.subr.bf16.mxu0 0
        %4959 = vmatpush1.bf16.xpose.msra.mxu0 0
        %4960 = vmatprep.subr.bf16.mxu0 0
        %4961 = vmatpush1.bf16.xpose.msra.mxu0 0
        %4962 = vmatprep.mubr.bf16.mxu0 0
        %4963 = vmatmul.mubr.bf16.gmra.mrb[0].mxu0 %v4919
        %v4964 = vpop.f32.mrb[0].mxu0
        %v4965 = vadd.f32 0.0, %v4964
        %v4966 = vpop.f32.mrb[0].mxu0
        %v4967 = vpop.f32.mrb[0].mxu0
        %v4968 = vadd.f32 0.0, %v4967
        %v4969 = vpop.f32.mrb[0].mxu0
        %4970 = vmatprep.mubr.bf16.mxu0 0
        %4971 = vmatmul.mubr.bf16.gmra.mrb[0].mxu0 %v4922
        %v4972 = vpop.f32.mrb[0].mxu0
        %v4973 = vadd.f32 0.0, %v4972
        %v4974 = vpop.f32.mrb[0].mxu0
        %v4975 = vpop.f32.mrb[0].mxu0
        %v4976 = vadd.f32 0.0, %v4975
        %v4977 = vpop.f32.mrb[0].mxu0
        %4978 = vdwg.mxu0
        %4979 = vrot.lane.b32.xlu0 %v1945, 64
        %v4980 = vpop.permute.xlu0 %4979
        %4981 = vrot.lane.b32.xlu0 %v1946, 64
        %v4982 = vpop.permute.xlu0 %4981
        %4983 = vrot.lane.b32.xlu0 %v1961, 64
        %v4984 = vpop.permute.xlu0 %4983
        %4985 = vrot.lane.b32.xlu0 %v1962, 64
        %v4986 = vpop.permute.xlu0 %4985
        %v4988 = vsel %vm1987, %v4980, 0
        %v4991 = vsel %vm1987, %v4982, 0
        %v4994 = vsel %vm1987, %v4984, 0
        %v4997 = vsel %vm1987, %v4986, 0
        %4999 = vmatprep.subr.bf16.mxu0 0
        %5000 = vmatpush1.bf16.xpose.msra.mxu0 %v4994
        %5001 = vmatprep.subr.bf16.mxu0 0
        %5002 = vmatpush1.bf16.xpose.msra.mxu0 %v4997
        %5003 = vmatprep.subr.bf16.mxu0 0
        %5004 = vmatpush1.bf16.xpose.msra.mxu0 0
        %5005 = vmatprep.subr.bf16.mxu0 0
        %5006 = vmatpush1.bf16.xpose.msra.mxu0 0
        %5007 = vmatprep.subr.bf16.mxu0 0
        %5008 = vmatpush1.bf16.xpose.msra.mxu0 0
        %5009 = vmatprep.subr.bf16.mxu0 0
        %5010 = vmatpush1.bf16.xpose.msra.mxu0 0
        %5011 = vmatprep.subr.bf16.mxu0 0
        %5012 = vmatpush1.bf16.xpose.msra.mxu0 0
        %5013 = vmatprep.subr.bf16.mxu0 0
        %5014 = vmatpush1.bf16.xpose.msra.mxu0 0
        %5015 = vmatprep.subr.bf16.mxu0 0
        %5016 = vmatpush1.bf16.xpose.msra.mxu0 0
        %5017 = vmatprep.subr.bf16.mxu0 0
        %5018 = vmatpush1.bf16.xpose.msra.mxu0 0
        %5019 = vmatprep.subr.bf16.mxu0 0
        %5020 = vmatpush1.bf16.xpose.msra.mxu0 0
        %5021 = vmatprep.subr.bf16.mxu0 0
        %5022 = vmatpush1.bf16.xpose.msra.mxu0 0
        %5023 = vmatprep.subr.bf16.mxu0 0
        %5024 = vmatpush1.bf16.xpose.msra.mxu0 0
        %5025 = vmatprep.subr.bf16.mxu0 0
        %5026 = vmatpush1.bf16.xpose.msra.mxu0 0
        %5027 = vmatprep.subr.bf16.mxu0 0
        %5028 = vmatpush1.bf16.xpose.msra.mxu0 0
        %5029 = vmatprep.subr.bf16.mxu0 0
        %5030 = vmatpush1.bf16.xpose.msra.mxu0 0
        %5031 = vmatprep.mubr.bf16.mxu0 0
        %5032 = vmatmul.mubr.bf16.gmra.mrb[0].mxu0 %v4988
        %v5033 = vpop.f32.mrb[0].mxu0
        %v5034 = vadd.f32 0.0, %v5033
        %v5035 = vpop.f32.mrb[0].mxu0
        %v5036 = vpop.f32.mrb[0].mxu0
        %v5037 = vadd.f32 0.0, %v5036
        %v5038 = vpop.f32.mrb[0].mxu0
        %5039 = vmatprep.mubr.bf16.mxu0 0
        %5040 = vmatmul.mubr.bf16.gmra.mrb[0].mxu0 %v4991
        %v5041 = vpop.f32.mrb[0].mxu0
        %v5042 = vadd.f32 0.0, %v5041
        %v5043 = vpop.f32.mrb[0].mxu0
        %v5044 = vpop.f32.mrb[0].mxu0
        %v5045 = vadd.f32 0.0, %v5044
        %v5046 = vpop.f32.mrb[0].mxu0
        %5047 = vdwg.mxu0
        %5048 = vrot.lane.b32.xlu0 %v1947, 64
        %v5049 = vpop.permute.xlu0 %5048
        %5050 = vrot.lane.b32.xlu0 %v1948, 64
        %v5051 = vpop.permute.xlu0 %5050
        %5052 = vrot.lane.b32.xlu0 %v1963, 64
        %v5053 = vpop.permute.xlu0 %5052
        %5054 = vrot.lane.b32.xlu0 %v1964, 64
        %v5055 = vpop.permute.xlu0 %5054
        %v5057 = vsel %vm1987, %v5049, 0
        %v5060 = vsel %vm1987, %v5051, 0
        %v5063 = vsel %vm1987, %v5053, 0
        %v5066 = vsel %vm1987, %v5055, 0
        %5068 = vmatprep.subr.bf16.mxu0 0
        %5069 = vmatpush1.bf16.xpose.msra.mxu0 %v5063
        %5070 = vmatprep.subr.bf16.mxu0 0
        %5071 = vmatpush1.bf16.xpose.msra.mxu0 %v5066
        %5072 = vmatprep.subr.bf16.mxu0 0
        %5073 = vmatpush1.bf16.xpose.msra.mxu0 0
        %5074 = vmatprep.subr.bf16.mxu0 0
        %5075 = vmatpush1.bf16.xpose.msra.mxu0 0
        %5076 = vmatprep.subr.bf16.mxu0 0
        %5077 = vmatpush1.bf16.xpose.msra.mxu0 0
        %5078 = vmatprep.subr.bf16.mxu0 0
        %5079 = vmatpush1.bf16.xpose.msra.mxu0 0
        %5080 = vmatprep.subr.bf16.mxu0 0
        %5081 = vmatpush1.bf16.xpose.msra.mxu0 0
        %5082 = vmatprep.subr.bf16.mxu0 0
        %5083 = vmatpush1.bf16.xpose.msra.mxu0 0
        %5084 = vmatprep.subr.bf16.mxu0 0
        %5085 = vmatpush1.bf16.xpose.msra.mxu0 0
        %5086 = vmatprep.subr.bf16.mxu0 0
        %5087 = vmatpush1.bf16.xpose.msra.mxu0 0
        %5088 = vmatprep.subr.bf16.mxu0 0
        %5089 = vmatpush1.bf16.xpose.msra.mxu0 0
        %5090 = vmatprep.subr.bf16.mxu0 0
        %5091 = vmatpush1.bf16.xpose.msra.mxu0 0
        %5092 = vmatprep.subr.bf16.mxu0 0
        %5093 = vmatpush1.bf16.xpose.msra.mxu0 0
        %5094 = vmatprep.subr.bf16.mxu0 0
        %5095 = vmatpush1.bf16.xpose.msra.mxu0 0
        %5096 = vmatprep.subr.bf16.mxu0 0
        %5097 = vmatpush1.bf16.xpose.msra.mxu0 0
        %5098 = vmatprep.subr.bf16.mxu0 0
        %5099 = vmatpush1.bf16.xpose.msra.mxu0 0
        %5100 = vmatprep.mubr.bf16.mxu0 0
        %5101 = vmatmul.mubr.bf16.gmra.mrb[0].mxu0 %v5057
        %v5102 = vpop.f32.mrb[0].mxu0
        %v5103 = vadd.f32 0.0, %v5102
        %v5104 = vpop.f32.mrb[0].mxu0
        %v5105 = vpop.f32.mrb[0].mxu0
        %v5106 = vadd.f32 0.0, %v5105
        %v5107 = vpop.f32.mrb[0].mxu0
        %5108 = vmatprep.mubr.bf16.mxu0 0
        %5109 = vmatmul.mubr.bf16.gmra.mrb[0].mxu0 %v5060
        %v5110 = vpop.f32.mrb[0].mxu0
        %v5111 = vadd.f32 0.0, %v5110
        %v5112 = vpop.f32.mrb[0].mxu0
        %v5113 = vpop.f32.mrb[0].mxu0
        %v5114 = vadd.f32 0.0, %v5113
        %v5115 = vpop.f32.mrb[0].mxu0
        %5116 = vdwg.mxu0
        %5117 = vrot.lane.b32.xlu0 %v1949, 64
        %v5118 = vpop.permute.xlu0 %5117
        %5119 = vrot.lane.b32.xlu0 %v1950, 64
        %v5120 = vpop.permute.xlu0 %5119
        %5121 = vrot.lane.b32.xlu0 %v1965, 64
        %v5122 = vpop.permute.xlu0 %5121
        %5123 = vrot.lane.b32.xlu0 %v1966, 64
        %v5124 = vpop.permute.xlu0 %5123
        %v5126 = vsel %vm1987, %v5118, 0
        %v5129 = vsel %vm1987, %v5120, 0
        %v5132 = vsel %vm1987, %v5122, 0
        %v5135 = vsel %vm1987, %v5124, 0
        %5137 = vmatprep.subr.bf16.mxu0 0
        %5138 = vmatpush1.bf16.xpose.msra.mxu0 %v5132
        %5139 = vmatprep.subr.bf16.mxu0 0
        %5140 = vmatpush1.bf16.xpose.msra.mxu0 %v5135
        %5141 = vmatprep.subr.bf16.mxu0 0
        %5142 = vmatpush1.bf16.xpose.msra.mxu0 0
        %5143 = vmatprep.subr.bf16.mxu0 0
        %5144 = vmatpush1.bf16.xpose.msra.mxu0 0
        %5145 = vmatprep.subr.bf16.mxu0 0
        %5146 = vmatpush1.bf16.xpose.msra.mxu0 0
        %5147 = vmatprep.subr.bf16.mxu0 0
        %5148 = vmatpush1.bf16.xpose.msra.mxu0 0
        %5149 = vmatprep.subr.bf16.mxu0 0
        %5150 = vmatpush1.bf16.xpose.msra.mxu0 0
        %5151 = vmatprep.subr.bf16.mxu0 0
        %5152 = vmatpush1.bf16.xpose.msra.mxu0 0
        %5153 = vmatprep.subr.bf16.mxu0 0
        %5154 = vmatpush1.bf16.xpose.msra.mxu0 0
        %5155 = vmatprep.subr.bf16.mxu0 0
        %5156 = vmatpush1.bf16.xpose.msra.mxu0 0
        %5157 = vmatprep.subr.bf16.mxu0 0
        %5158 = vmatpush1.bf16.xpose.msra.mxu0 0
        %5159 = vmatprep.subr.bf16.mxu0 0
        %5160 = vmatpush1.bf16.xpose.msra.mxu0 0
        %5161 = vmatprep.subr.bf16.mxu0 0
        %5162 = vmatpush1.bf16.xpose.msra.mxu0 0
        %5163 = vmatprep.subr.bf16.mxu0 0
        %5164 = vmatpush1.bf16.xpose.msra.mxu0 0
        %5165 = vmatprep.subr.bf16.mxu0 0
        %5166 = vmatpush1.bf16.xpose.msra.mxu0 0
        %5167 = vmatprep.subr.bf16.mxu0 0
        %5168 = vmatpush1.bf16.xpose.msra.mxu0 0
        %5169 = vmatprep.mubr.bf16.mxu0 0
        %5170 = vmatmul.mubr.bf16.gmra.mrb[0].mxu0 %v5126
        %v5171 = vpop.f32.mrb[0].mxu0
        %v5172 = vadd.f32 0.0, %v5171
        %v5173 = vpop.f32.mrb[0].mxu0
        %v5174 = vpop.f32.mrb[0].mxu0
        %v5175 = vadd.f32 0.0, %v5174
        %v5176 = vpop.f32.mrb[0].mxu0
        %5177 = vmatprep.mubr.bf16.mxu0 0
        %5178 = vmatmul.mubr.bf16.gmra.mrb[0].mxu0 %v5129
        %v5179 = vpop.f32.mrb[0].mxu0
        %v5180 = vadd.f32 0.0, %v5179
        %v5181 = vpop.f32.mrb[0].mxu0
        %v5182 = vpop.f32.mrb[0].mxu0
        %v5183 = vadd.f32 0.0, %v5182
        %v5184 = vpop.f32.mrb[0].mxu0
        %5185 = vdwg.mxu0
        %5186 = vrot.lane.b32.xlu0 %v1951, 64
        %v5187 = vpop.permute.xlu0 %5186
        %5188 = vrot.lane.b32.xlu0 %v1952, 64
        %v5189 = vpop.permute.xlu0 %5188
        %5190 = vrot.lane.b32.xlu0 %v1967, 64
        %v5191 = vpop.permute.xlu0 %5190
        %5192 = vrot.lane.b32.xlu0 %v1968, 64
        %v5193 = vpop.permute.xlu0 %5192
        %v5195 = vsel %vm1987, %v5187, 0
        %v5198 = vsel %vm1987, %v5189, 0
        %v5201 = vsel %vm1987, %v5191, 0
        %v5204 = vsel %vm1987, %v5193, 0
        %5206 = vmatprep.subr.bf16.mxu0 0
        %5207 = vmatpush1.bf16.xpose.msra.mxu0 %v5201
        %5208 = vmatprep.subr.bf16.mxu0 0
        %5209 = vmatpush1.bf16.xpose.msra.mxu0 %v5204
        %5210 = vmatprep.subr.bf16.mxu0 0
        %5211 = vmatpush1.bf16.xpose.msra.mxu0 0
        %5212 = vmatprep.subr.bf16.mxu0 0
        %5213 = vmatpush1.bf16.xpose.msra.mxu0 0
        %5214 = vmatprep.subr.bf16.mxu0 0
        %5215 = vmatpush1.bf16.xpose.msra.mxu0 0
        %5216 = vmatprep.subr.bf16.mxu0 0
        %5217 = vmatpush1.bf16.xpose.msra.mxu0 0
        %5218 = vmatprep.subr.bf16.mxu0 0
        %5219 = vmatpush1.bf16.xpose.msra.mxu0 0
        %5220 = vmatprep.subr.bf16.mxu0 0
        %5221 = vmatpush1.bf16.xpose.msra.mxu0 0
        %5222 = vmatprep.subr.bf16.mxu0 0
        %5223 = vmatpush1.bf16.xpose.msra.mxu0 0
        %5224 = vmatprep.subr.bf16.mxu0 0
        %5225 = vmatpush1.bf16.xpose.msra.mxu0 0
        %5226 = vmatprep.subr.bf16.mxu0 0
        %5227 = vmatpush1.bf16.xpose.msra.mxu0 0
        %5228 = vmatprep.subr.bf16.mxu0 0
        %5229 = vmatpush1.bf16.xpose.msra.mxu0 0
        %5230 = vmatprep.subr.bf16.mxu0 0
        %5231 = vmatpush1.bf16.xpose.msra.mxu0 0
        %5232 = vmatprep.subr.bf16.mxu0 0
        %5233 = vmatpush1.bf16.xpose.msra.mxu0 0
        %5234 = vmatprep.subr.bf16.mxu0 0
        %5235 = vmatpush1.bf16.xpose.msra.mxu0 0
        %5236 = vmatprep.subr.bf16.mxu0 0
        %5237 = vmatpush1.bf16.xpose.msra.mxu0 0
        %5238 = vmatprep.mubr.bf16.mxu0 0
        %5239 = vmatmul.mubr.bf16.gmra.mrb[0].mxu0 %v5195
        %v5240 = vpop.f32.mrb[0].mxu0
        %v5241 = vadd.f32 0.0, %v5240
        %v5242 = vpop.f32.mrb[0].mxu0
        %v5243 = vpop.f32.mrb[0].mxu0
        %v5244 = vadd.f32 0.0, %v5243
        %v5245 = vpop.f32.mrb[0].mxu0
        %5246 = vmatprep.mubr.bf16.mxu0 0
        %5247 = vmatmul.mubr.bf16.gmra.mrb[0].mxu0 %v5198
        %v5248 = vpop.f32.mrb[0].mxu0
        %v5249 = vadd.f32 0.0, %v5248
        %v5250 = vpop.f32.mrb[0].mxu0
        %v5251 = vpop.f32.mrb[0].mxu0
        %v5252 = vadd.f32 0.0, %v5251
        %v5253 = vpop.f32.mrb[0].mxu0
        %5254 = vdwg.mxu0
        %5255 = vrot.lane.b32.xlu0 %v1953, 64
        %v5256 = vpop.permute.xlu0 %5255
        %5257 = vrot.lane.b32.xlu0 %v1954, 64
        %v5258 = vpop.permute.xlu0 %5257
        %5259 = vrot.lane.b32.xlu0 %v1969, 64
        %v5260 = vpop.permute.xlu0 %5259
        %5261 = vrot.lane.b32.xlu0 %v1970, 64
        %v5262 = vpop.permute.xlu0 %5261
        %v5264 = vsel %vm1987, %v5256, 0
        %v5267 = vsel %vm1987, %v5258, 0
        %v5270 = vsel %vm1987, %v5260, 0
        %v5273 = vsel %vm1987, %v5262, 0
        %5275 = vmatprep.subr.bf16.mxu0 0
        %5276 = vmatpush1.bf16.xpose.msra.mxu0 %v5270
        %5277 = vmatprep.subr.bf16.mxu0 0
        %5278 = vmatpush1.bf16.xpose.msra.mxu0 %v5273
        %5279 = vmatprep.subr.bf16.mxu0 0
        %5280 = vmatpush1.bf16.xpose.msra.mxu0 0
        %5281 = vmatprep.subr.bf16.mxu0 0
        %5282 = vmatpush1.bf16.xpose.msra.mxu0 0
        %5283 = vmatprep.subr.bf16.mxu0 0
        %5284 = vmatpush1.bf16.xpose.msra.mxu0 0
        %5285 = vmatprep.subr.bf16.mxu0 0
        %5286 = vmatpush1.bf16.xpose.msra.mxu0 0
        %5287 = vmatprep.subr.bf16.mxu0 0
        %5288 = vmatpush1.bf16.xpose.msra.mxu0 0
        %5289 = vmatprep.subr.bf16.mxu0 0
        %5290 = vmatpush1.bf16.xpose.msra.mxu0 0
        %5291 = vmatprep.subr.bf16.mxu0 0
        %5292 = vmatpush1.bf16.xpose.msra.mxu0 0
        %5293 = vmatprep.subr.bf16.mxu0 0
        %5294 = vmatpush1.bf16.xpose.msra.mxu0 0
        %5295 = vmatprep.subr.bf16.mxu0 0
        %5296 = vmatpush1.bf16.xpose.msra.mxu0 0
        %5297 = vmatprep.subr.bf16.mxu0 0
        %5298 = vmatpush1.bf16.xpose.msra.mxu0 0
        %5299 = vmatprep.subr.bf16.mxu0 0
        %5300 = vmatpush1.bf16.xpose.msra.mxu0 0
        %5301 = vmatprep.subr.bf16.mxu0 0
        %5302 = vmatpush1.bf16.xpose.msra.mxu0 0
        %5303 = vmatprep.subr.bf16.mxu0 0
        %5304 = vmatpush1.bf16.xpose.msra.mxu0 0
        %5305 = vmatprep.subr.bf16.mxu0 0
        %5306 = vmatpush1.bf16.xpose.msra.mxu0 0
        %5307 = vmatprep.mubr.bf16.mxu0 0
        %5308 = vmatmul.mubr.bf16.gmra.mrb[0].mxu0 %v5264
        %v5309 = vpop.f32.mrb[0].mxu0
        %v5310 = vadd.f32 0.0, %v5309
        %v5311 = vpop.f32.mrb[0].mxu0
        %v5312 = vpop.f32.mrb[0].mxu0
        %v5313 = vadd.f32 0.0, %v5312
        %v5314 = vpop.f32.mrb[0].mxu0
        %5315 = vmatprep.mubr.bf16.mxu0 0
        %5316 = vmatmul.mubr.bf16.gmra.mrb[0].mxu0 %v5267
        %v5317 = vpop.f32.mrb[0].mxu0
        %v5318 = vadd.f32 0.0, %v5317
        %v5319 = vpop.f32.mrb[0].mxu0
        %v5320 = vpop.f32.mrb[0].mxu0
        %v5321 = vadd.f32 0.0, %v5320
        %v5322 = vpop.f32.mrb[0].mxu0
        %5323 = vdwg.mxu0
        %v5324 = vsel %vm1987, %v4827, -inf
        %5325 = vmax.xlane.f32.xlu0 %v5324
        %v5326 = vpop.xlane.xlu0 %5325
        %v5327 = vsel %vm1987, %v4830, -inf
        %5328 = vmax.xlane.f32.xlu0 %v5327
        %v5329 = vpop.xlane.xlu0 %5328
        %v5330 = vsel %vm1987, %v4835, -inf
        %5331 = vmax.xlane.f32.xlu0 %v5330
        %v5332 = vpop.xlane.xlu0 %5331
        %v5333 = vsel %vm1987, %v4838, -inf
        %5334 = vmax.xlane.f32.xlu0 %v5333
        %v5335 = vpop.xlane.xlu0 %5334
        %v5336 = vsel %vm1987, %v4896, -inf
        %5337 = vmax.xlane.f32.xlu0 %v5336
        %v5338 = vpop.xlane.xlu0 %5337
        %v5339 = vsel %vm1987, %v4899, -inf
        %5340 = vmax.xlane.f32.xlu0 %v5339
        %v5341 = vpop.xlane.xlu0 %5340
        %v5342 = vsel %vm1987, %v4904, -inf
        %5343 = vmax.xlane.f32.xlu0 %v5342
        %v5344 = vpop.xlane.xlu0 %5343
        %v5345 = vsel %vm1987, %v4907, -inf
        %5346 = vmax.xlane.f32.xlu0 %v5345
        %v5347 = vpop.xlane.xlu0 %5346
        %v5348 = vsel %vm1987, %v4965, -inf
        %5349 = vmax.xlane.f32.xlu0 %v5348
        %v5350 = vpop.xlane.xlu0 %5349
        %v5351 = vsel %vm1987, %v4968, -inf
        %5352 = vmax.xlane.f32.xlu0 %v5351
        %v5353 = vpop.xlane.xlu0 %5352
        %v5354 = vsel %vm1987, %v4973, -inf
        %5355 = vmax.xlane.f32.xlu0 %v5354
        %v5356 = vpop.xlane.xlu0 %5355
        %v5357 = vsel %vm1987, %v4976, -inf
        %5358 = vmax.xlane.f32.xlu0 %v5357
        %v5359 = vpop.xlane.xlu0 %5358
        %v5360 = vsel %vm1987, %v5034, -inf
        %5361 = vmax.xlane.f32.xlu0 %v5360
        %v5362 = vpop.xlane.xlu0 %5361
        %v5363 = vsel %vm1987, %v5037, -inf
        %5364 = vmax.xlane.f32.xlu0 %v5363
        %v5365 = vpop.xlane.xlu0 %5364
        %v5366 = vsel %vm1987, %v5042, -inf
        %5367 = vmax.xlane.f32.xlu0 %v5366
        %v5368 = vpop.xlane.xlu0 %5367
        %v5369 = vsel %vm1987, %v5045, -inf
        %5370 = vmax.xlane.f32.xlu0 %v5369
        %v5371 = vpop.xlane.xlu0 %5370
        %v5372 = vsel %vm1987, %v5103, -inf
        %5373 = vmax.xlane.f32.xlu0 %v5372
        %v5374 = vpop.xlane.xlu0 %5373
        %v5375 = vsel %vm1987, %v5106, -inf
        %5376 = vmax.xlane.f32.xlu0 %v5375
        %v5377 = vpop.xlane.xlu0 %5376
        %v5378 = vsel %vm1987, %v5111, -inf
        %5379 = vmax.xlane.f32.xlu0 %v5378
        %v5380 = vpop.xlane.xlu0 %5379
        %v5381 = vsel %vm1987, %v5114, -inf
        %5382 = vmax.xlane.f32.xlu0 %v5381
        %v5383 = vpop.xlane.xlu0 %5382
        %v5384 = vsel %vm1987, %v5172, -inf
        %5385 = vmax.xlane.f32.xlu0 %v5384
        %v5386 = vpop.xlane.xlu0 %5385
        %v5387 = vsel %vm1987, %v5175, -inf
        %5388 = vmax.xlane.f32.xlu0 %v5387
        %v5389 = vpop.xlane.xlu0 %5388
        %v5390 = vsel %vm1987, %v5180, -inf
        %5391 = vmax.xlane.f32.xlu0 %v5390
        %v5392 = vpop.xlane.xlu0 %5391
        %v5393 = vsel %vm1987, %v5183, -inf
        %5394 = vmax.xlane.f32.xlu0 %v5393
        %v5395 = vpop.xlane.xlu0 %5394
        %v5396 = vsel %vm1987, %v5241, -inf
        %5397 = vmax.xlane.f32.xlu0 %v5396
        %v5398 = vpop.xlane.xlu0 %5397
        %v5399 = vsel %vm1987, %v5244, -inf
        %5400 = vmax.xlane.f32.xlu0 %v5399
        %v5401 = vpop.xlane.xlu0 %5400
        %v5402 = vsel %vm1987, %v5249, -inf
        %5403 = vmax.xlane.f32.xlu0 %v5402
        %v5404 = vpop.xlane.xlu0 %5403
        %v5405 = vsel %vm1987, %v5252, -inf
        %5406 = vmax.xlane.f32.xlu0 %v5405
        %v5407 = vpop.xlane.xlu0 %5406
        %v5408 = vsel %vm1987, %v5310, -inf
        %5409 = vmax.xlane.f32.xlu0 %v5408
        %v5410 = vpop.xlane.xlu0 %5409
        %v5411 = vsel %vm1987, %v5313, -inf
        %5412 = vmax.xlane.f32.xlu0 %v5411
        %v5413 = vpop.xlane.xlu0 %5412
        %v5414 = vsel %vm1987, %v5318, -inf
        %5415 = vmax.xlane.f32.xlu0 %v5414
        %v5416 = vpop.xlane.xlu0 %5415
        %v5417 = vsel %vm1987, %v5321, -inf
        %5418 = vmax.xlane.f32.xlu0 %v5417
        %v5419 = vpop.xlane.xlu0 %5418
        %v5420 = vsub.f32 %v4827, %v5326
        %v5421 = vsub.f32 %v4830, %v5329
        %v5422 = vsub.f32 %v4835, %v5332
        %v5423 = vsub.f32 %v4838, %v5335
        %v5424 = vsub.f32 %v4896, %v5338
        %v5425 = vsub.f32 %v4899, %v5341
        %v5426 = vsub.f32 %v4904, %v5344
        %v5427 = vsub.f32 %v4907, %v5347
        %v5428 = vsub.f32 %v4965, %v5350
        %v5429 = vsub.f32 %v4968, %v5353
        %v5430 = vsub.f32 %v4973, %v5356
        %v5431 = vsub.f32 %v4976, %v5359
        %v5432 = vsub.f32 %v5034, %v5362
        %v5433 = vsub.f32 %v5037, %v5365
        %v5434 = vsub.f32 %v5042, %v5368
        %v5435 = vsub.f32 %v5045, %v5371
        %v5436 = vsub.f32 %v5103, %v5374
        %v5437 = vsub.f32 %v5106, %v5377
        %v5438 = vsub.f32 %v5111, %v5380
        %v5439 = vsub.f32 %v5114, %v5383
        %v5440 = vsub.f32 %v5172, %v5386
        %v5441 = vsub.f32 %v5175, %v5389
        %v5442 = vsub.f32 %v5180, %v5392
        %v5443 = vsub.f32 %v5183, %v5395
        %v5444 = vsub.f32 %v5241, %v5398
        %v5445 = vsub.f32 %v5244, %v5401
        %v5446 = vsub.f32 %v5249, %v5404
        %v5447 = vsub.f32 %v5252, %v5407
        %v5448 = vsub.f32 %v5310, %v5410
        %v5449 = vsub.f32 %v5313, %v5413
        %v5450 = vsub.f32 %v5318, %v5416
        %v5451 = vsub.f32 %v5321, %v5419
        %v5452 = vmul.f32 %v5420, 1.442695
        %v5453 = vpow.pop %v5452
        %v5454 = vmul.f32 %v5421, 1.442695
        %v5455 = vpow.pop %v5454
        %v5456 = vmul.f32 %v5422, 1.442695
        %v5457 = vpow.pop %v5456
        %v5458 = vmul.f32 %v5423, 1.442695
        %v5459 = vpow.pop %v5458
        %v5460 = vmul.f32 %v5424, 1.442695
        %v5461 = vpow.pop %v5460
        %v5462 = vmul.f32 %v5425, 1.442695
        %v5463 = vpow.pop %v5462
        %v5464 = vmul.f32 %v5426, 1.442695
        %v5465 = vpow.pop %v5464
        %v5466 = vmul.f32 %v5427, 1.442695
        %v5467 = vpow.pop %v5466
        %v5468 = vmul.f32 %v5428, 1.442695
        %v5469 = vpow.pop %v5468
        %v5470 = vmul.f32 %v5429, 1.442695
        %v5471 = vpow.pop %v5470
        %v5472 = vmul.f32 %v5430, 1.442695
        %v5473 = vpow.pop %v5472
        %v5474 = vmul.f32 %v5431, 1.442695
        %v5475 = vpow.pop %v5474
        %v5476 = vmul.f32 %v5432, 1.442695
        %v5477 = vpow.pop %v5476
        %v5478 = vmul.f32 %v5433, 1.442695
        %v5479 = vpow.pop %v5478
        %v5480 = vmul.f32 %v5434, 1.442695
        %v5481 = vpow.pop %v5480
        %v5482 = vmul.f32 %v5435, 1.442695
        %v5483 = vpow.pop %v5482
        %v5484 = vmul.f32 %v5436, 1.442695
        %v5485 = vpow.pop %v5484
        %v5486 = vmul.f32 %v5437, 1.442695
        %v5487 = vpow.pop %v5486
        %v5488 = vmul.f32 %v5438, 1.442695
        %v5489 = vpow.pop %v5488
        %v5490 = vmul.f32 %v5439, 1.442695
        %v5491 = vpow.pop %v5490
        %v5492 = vmul.f32 %v5440, 1.442695
        %v5493 = vpow.pop %v5492
        %v5494 = vmul.f32 %v5441, 1.442695
        %v5495 = vpow.pop %v5494
        %v5496 = vmul.f32 %v5442, 1.442695
        %v5497 = vpow.pop %v5496
        %v5498 = vmul.f32 %v5443, 1.442695
        %v5499 = vpow.pop %v5498
        %v5500 = vmul.f32 %v5444, 1.442695
        %v5501 = vpow.pop %v5500
        %v5502 = vmul.f32 %v5445, 1.442695
        %v5503 = vpow.pop %v5502
        %v5504 = vmul.f32 %v5446, 1.442695
        %v5505 = vpow.pop %v5504
        %v5506 = vmul.f32 %v5447, 1.442695
        %v5507 = vpow.pop %v5506
        %v5508 = vmul.f32 %v5448, 1.442695
        %v5509 = vpow.pop %v5508
        %v5510 = vmul.f32 %v5449, 1.442695
        %v5511 = vpow.pop %v5510
        %v5512 = vmul.f32 %v5450, 1.442695
        %v5513 = vpow.pop %v5512
        %v5514 = vmul.f32 %v5451, 1.442695
        %v5515 = vpow.pop %v5514
        %v5516 = vsel %vm1987, %v5453, 0.0
        %5517 = vadd.xlane.f32.xlu0 %v5516
        %v5518 = vpop.xlane.xlu0 %5517
        %v5519 = vsel %vm1987, %v5455, 0.0
        %5520 = vadd.xlane.f32.xlu0 %v5519
        %v5521 = vpop.xlane.xlu0 %5520
        %v5522 = vsel %vm1987, %v5457, 0.0
        %5523 = vadd.xlane.f32.xlu0 %v5522
        %v5524 = vpop.xlane.xlu0 %5523
        %v5525 = vsel %vm1987, %v5459, 0.0
        %5526 = vadd.xlane.f32.xlu0 %v5525
        %v5527 = vpop.xlane.xlu0 %5526
        %v5528 = vsel %vm1987, %v5461, 0.0
        %5529 = vadd.xlane.f32.xlu0 %v5528
        %v5530 = vpop.xlane.xlu0 %5529
        %v5531 = vsel %vm1987, %v5463, 0.0
        %5532 = vadd.xlane.f32.xlu0 %v5531
        %v5533 = vpop.xlane.xlu0 %5532
        %v5534 = vsel %vm1987, %v5465, 0.0
        %5535 = vadd.xlane.f32.xlu0 %v5534
        %v5536 = vpop.xlane.xlu0 %5535
        %v5537 = vsel %vm1987, %v5467, 0.0
        %5538 = vadd.xlane.f32.xlu0 %v5537
        %v5539 = vpop.xlane.xlu0 %5538
        %v5540 = vsel %vm1987, %v5469, 0.0
        %5541 = vadd.xlane.f32.xlu0 %v5540
        %v5542 = vpop.xlane.xlu0 %5541
        %v5543 = vsel %vm1987, %v5471, 0.0
        %5544 = vadd.xlane.f32.xlu0 %v5543
        %v5545 = vpop.xlane.xlu0 %5544
        %v5546 = vsel %vm1987, %v5473, 0.0
        %5547 = vadd.xlane.f32.xlu0 %v5546
        %v5548 = vpop.xlane.xlu0 %5547
        %v5549 = vsel %vm1987, %v5475, 0.0
        %5550 = vadd.xlane.f32.xlu0 %v5549
        %v5551 = vpop.xlane.xlu0 %5550
        %v5552 = vsel %vm1987, %v5477, 0.0
        %5553 = vadd.xlane.f32.xlu0 %v5552
        %v5554 = vpop.xlane.xlu0 %5553
        %v5555 = vsel %vm1987, %v5479, 0.0
        %5556 = vadd.xlane.f32.xlu0 %v5555
        %v5557 = vpop.xlane.xlu0 %5556
        %v5558 = vsel %vm1987, %v5481, 0.0
        %5559 = vadd.xlane.f32.xlu0 %v5558
        %v5560 = vpop.xlane.xlu0 %5559
        %v5561 = vsel %vm1987, %v5483, 0.0
        %5562 = vadd.xlane.f32.xlu0 %v5561
        %v5563 = vpop.xlane.xlu0 %5562
        %v5564 = vsel %vm1987, %v5485, 0.0
        %5565 = vadd.xlane.f32.xlu0 %v5564
        %v5566 = vpop.xlane.xlu0 %5565
        %v5567 = vsel %vm1987, %v5487, 0.0
        %5568 = vadd.xlane.f32.xlu0 %v5567
        %v5569 = vpop.xlane.xlu0 %5568
        %v5570 = vsel %vm1987, %v5489, 0.0
        %5571 = vadd.xlane.f32.xlu0 %v5570
        %v5572 = vpop.xlane.xlu0 %5571
        %v5573 = vsel %vm1987, %v5491, 0.0
        %5574 = vadd.xlane.f32.xlu0 %v5573
        %v5575 = vpop.xlane.xlu0 %5574
        %v5576 = vsel %vm1987, %v5493, 0.0
        %5577 = vadd.xlane.f32.xlu0 %v5576
        %v5578 = vpop.xlane.xlu0 %5577
        %v5579 = vsel %vm1987, %v5495, 0.0
        %5580 = vadd.xlane.f32.xlu0 %v5579
        %v5581 = vpop.xlane.xlu0 %5580
        %v5582 = vsel %vm1987, %v5497, 0.0
        %5583 = vadd.xlane.f32.xlu0 %v5582
        %v5584 = vpop.xlane.xlu0 %5583
        %v5585 = vsel %vm1987, %v5499, 0.0
        %5586 = vadd.xlane.f32.xlu0 %v5585
        %v5587 = vpop.xlane.xlu0 %5586
        %v5588 = vsel %vm1987, %v5501, 0.0
        %5589 = vadd.xlane.f32.xlu0 %v5588
        %v5590 = vpop.xlane.xlu0 %5589
        %v5591 = vsel %vm1987, %v5503, 0.0
        %5592 = vadd.xlane.f32.xlu0 %v5591
        %v5593 = vpop.xlane.xlu0 %5592
        %v5594 = vsel %vm1987, %v5505, 0.0
        %5595 = vadd.xlane.f32.xlu0 %v5594
        %v5596 = vpop.xlane.xlu0 %5595
        %v5597 = vsel %vm1987, %v5507, 0.0
        %5598 = vadd.xlane.f32.xlu0 %v5597
        %v5599 = vpop.xlane.xlu0 %5598
        %v5600 = vsel %vm1987, %v5509, 0.0
        %5601 = vadd.xlane.f32.xlu0 %v5600
        %v5602 = vpop.xlane.xlu0 %5601
        %v5603 = vsel %vm1987, %v5511, 0.0
        %5604 = vadd.xlane.f32.xlu0 %v5603
        %v5605 = vpop.xlane.xlu0 %5604
        %v5606 = vsel %vm1987, %v5513, 0.0
        %5607 = vadd.xlane.f32.xlu0 %v5606
        %v5608 = vpop.xlane.xlu0 %5607
        %v5609 = vsel %vm1987, %v5515, 0.0
        %5610 = vadd.xlane.f32.xlu0 %v5609
        %v5611 = vpop.xlane.xlu0 %5610
        %v5612 = vrcp.pop %v5518
        %v5613 = vrcp.pop %v5521
        %v5614 = vrcp.pop %v5524
        %v5615 = vrcp.pop %v5527
        %v5616 = vrcp.pop %v5530
        %v5617 = vrcp.pop %v5533
        %v5618 = vrcp.pop %v5536
        %v5619 = vrcp.pop %v5539
        %v5620 = vrcp.pop %v5542
        %v5621 = vrcp.pop %v5545
        %v5622 = vrcp.pop %v5548
        %v5623 = vrcp.pop %v5551
        %v5624 = vrcp.pop %v5554
        %v5625 = vrcp.pop %v5557
        %v5626 = vrcp.pop %v5560
        %v5627 = vrcp.pop %v5563
        %v5628 = vrcp.pop %v5566
        %v5629 = vrcp.pop %v5569
        %v5630 = vrcp.pop %v5572
        %v5631 = vrcp.pop %v5575
        %v5632 = vrcp.pop %v5578
        %v5633 = vrcp.pop %v5581
        %v5634 = vrcp.pop %v5584
        %v5635 = vrcp.pop %v5587
        %v5636 = vrcp.pop %v5590
        %v5637 = vrcp.pop %v5593
        %v5638 = vrcp.pop %v5596
        %v5639 = vrcp.pop %v5599
        %v5640 = vrcp.pop %v5602
        %v5641 = vrcp.pop %v5605
        %v5642 = vrcp.pop %v5608
        %v5643 = vrcp.pop %v5611
        %v5644 = vmul.f32 %v5453, %v5612
        %v5645 = vmul.f32 %v5455, %v5613
        %v5646 = vmul.f32 %v5457, %v5614
        %v5647 = vmul.f32 %v5459, %v5615
        %v5648 = vmul.f32 %v5461, %v5616
        %v5649 = vmul.f32 %v5463, %v5617
        %v5650 = vmul.f32 %v5465, %v5618
        %v5651 = vmul.f32 %v5467, %v5619
        %v5652 = vmul.f32 %v5469, %v5620
        %v5653 = vmul.f32 %v5471, %v5621
        %v5654 = vmul.f32 %v5473, %v5622
        %v5655 = vmul.f32 %v5475, %v5623
        %v5656 = vmul.f32 %v5477, %v5624
        %v5657 = vmul.f32 %v5479, %v5625
        %v5658 = vmul.f32 %v5481, %v5626
        %v5659 = vmul.f32 %v5483, %v5627
        %v5660 = vmul.f32 %v5485, %v5628
        %v5661 = vmul.f32 %v5487, %v5629
        %v5662 = vmul.f32 %v5489, %v5630
        %v5663 = vmul.f32 %v5491, %v5631
        %v5664 = vmul.f32 %v5493, %v5632
        %v5665 = vmul.f32 %v5495, %v5633
        %v5666 = vmul.f32 %v5497, %v5634
        %v5667 = vmul.f32 %v5499, %v5635
        %v5668 = vmul.f32 %v5501, %v5636
        %v5669 = vmul.f32 %v5503, %v5637
        %v5670 = vmul.f32 %v5505, %v5638
        %v5671 = vmul.f32 %v5507, %v5639
        %v5672 = vmul.f32 %v5509, %v5640
        %v5673 = vmul.f32 %v5511, %v5641
        %v5674 = vmul.f32 %v5513, %v5642
        %v5675 = vmul.f32 %v5515, %v5643
        %v5676 = vpack.c.bf16 %v5645, %v5644
        %v5677 = vpack.c.bf16 %v5647, %v5646
        %v5678 = vpack.c.bf16 %v5649, %v5648
        %v5679 = vpack.c.bf16 %v5651, %v5650
        %v5680 = vpack.c.bf16 %v5653, %v5652
        %v5681 = vpack.c.bf16 %v5655, %v5654
        %v5682 = vpack.c.bf16 %v5657, %v5656
        %v5683 = vpack.c.bf16 %v5659, %v5658
        %v5684 = vpack.c.bf16 %v5661, %v5660
        %v5685 = vpack.c.bf16 %v5663, %v5662
        %v5686 = vpack.c.bf16 %v5665, %v5664
        %v5687 = vpack.c.bf16 %v5667, %v5666
        %v5688 = vpack.c.bf16 %v5669, %v5668
        %v5689 = vpack.c.bf16 %v5671, %v5670
        %v5690 = vpack.c.bf16 %v5673, %v5672
        %v5691 = vpack.c.bf16 %v5675, %v5674
        %5692 = vrot.lane.b32.xlu0 %v1971, 64
        %v5693 = vpop.permute.xlu0 %5692
        %5694 = vrot.lane.b32.xlu0 %v1972, 64
        %v5695 = vpop.permute.xlu0 %5694
        %v5699 = vsel %vm1987, %v5676, 0
        %v5702 = vsel %vm1987, %v5677, 0
        %5704 = vmatprep.subr.bf16.mxu0 0
        %5705 = vmatpush1.bf16.msra.mxu0 %v5693
        %5706 = vmatprep.subr.bf16.mxu0 0
        %5707 = vmatpush1.bf16.msra.mxu0 %v5695
        %5708 = vmatprep.subr.bf16.mxu0 0
        %5709 = vmatpush1.bf16.msra.mxu0 0
        %5710 = vmatprep.subr.bf16.mxu0 0
        %5711 = vmatpush1.bf16.msra.mxu0 0
        %5712 = vmatprep.subr.bf16.mxu0 0
        %5713 = vmatpush1.bf16.msra.mxu0 0
        %5714 = vmatprep.subr.bf16.mxu0 0
        %5715 = vmatpush1.bf16.msra.mxu0 0
        %5716 = vmatprep.subr.bf16.mxu0 0
        %5717 = vmatpush1.bf16.msra.mxu0 0
        %5718 = vmatprep.subr.bf16.mxu0 0
        %5719 = vmatpush1.bf16.msra.mxu0 0
        %5720 = vmatprep.subr.bf16.mxu0 0
        %5721 = vmatpush1.bf16.msra.mxu0 0
        %5722 = vmatprep.subr.bf16.mxu0 0
        %5723 = vmatpush1.bf16.msra.mxu0 0
        %5724 = vmatprep.subr.bf16.mxu0 0
        %5725 = vmatpush1.bf16.msra.mxu0 0
        %5726 = vmatprep.subr.bf16.mxu0 0
        %5727 = vmatpush1.bf16.msra.mxu0 0
        %5728 = vmatprep.subr.bf16.mxu0 0
        %5729 = vmatpush1.bf16.msra.mxu0 0
        %5730 = vmatprep.subr.bf16.mxu0 0
        %5731 = vmatpush1.bf16.msra.mxu0 0
        %5732 = vmatprep.subr.bf16.mxu0 0
        %5733 = vmatpush1.bf16.msra.mxu0 0
        %5734 = vmatprep.subr.bf16.mxu0 0
        %5735 = vmatpush1.bf16.msra.mxu0 0
        %5736 = vmatprep.mubr.bf16.mxu0 0
        %5737 = vmatmul.mubr.bf16.gmra.mrb[0].mxu0 %v5699
        %v5738 = vpop.f32.mrb[0].mxu0
        %v5739 = vadd.f32 0.0, %v5738
        %v5740 = vpop.f32.mrb[0].mxu0
        %v5741 = vpop.f32.mrb[0].mxu0
        %v5742 = vadd.f32 0.0, %v5741
        %v5743 = vpop.f32.mrb[0].mxu0
        %5744 = vmatprep.mubr.bf16.mxu0 0
        %5745 = vmatmul.mubr.bf16.gmra.mrb[0].mxu0 %v5702
        %v5746 = vpop.f32.mrb[0].mxu0
        %v5747 = vadd.f32 0.0, %v5746
        %v5748 = vpop.f32.mrb[0].mxu0
        %v5749 = vpop.f32.mrb[0].mxu0
        %v5750 = vadd.f32 0.0, %v5749
        %v5751 = vpop.f32.mrb[0].mxu0
        %5752 = vdwg.mxu0
        %5753 = vrot.lane.b32.xlu0 %v1973, 64
        %v5754 = vpop.permute.xlu0 %5753
        %5755 = vrot.lane.b32.xlu0 %v1974, 64
        %v5756 = vpop.permute.xlu0 %5755
        %v5760 = vsel %vm1987, %v5678, 0
        %v5763 = vsel %vm1987, %v5679, 0
        %5765 = vmatprep.subr.bf16.mxu0 0
        %5766 = vmatpush1.bf16.msra.mxu0 %v5754
        %5767 = vmatprep.subr.bf16.mxu0 0
        %5768 = vmatpush1.bf16.msra.mxu0 %v5756
        %5769 = vmatprep.subr.bf16.mxu0 0
        %5770 = vmatpush1.bf16.msra.mxu0 0
        %5771 = vmatprep.subr.bf16.mxu0 0
        %5772 = vmatpush1.bf16.msra.mxu0 0
        %5773 = vmatprep.subr.bf16.mxu0 0
        %5774 = vmatpush1.bf16.msra.mxu0 0
        %5775 = vmatprep.subr.bf16.mxu0 0
        %5776 = vmatpush1.bf16.msra.mxu0 0
        %5777 = vmatprep.subr.bf16.mxu0 0
        %5778 = vmatpush1.bf16.msra.mxu0 0
        %5779 = vmatprep.subr.bf16.mxu0 0
        %5780 = vmatpush1.bf16.msra.mxu0 0
        %5781 = vmatprep.subr.bf16.mxu0 0
        %5782 = vmatpush1.bf16.msra.mxu0 0
        %5783 = vmatprep.subr.bf16.mxu0 0
        %5784 = vmatpush1.bf16.msra.mxu0 0
        %5785 = vmatprep.subr.bf16.mxu0 0
        %5786 = vmatpush1.bf16.msra.mxu0 0
        %5787 = vmatprep.subr.bf16.mxu0 0
        %5788 = vmatpush1.bf16.msra.mxu0 0
        %5789 = vmatprep.subr.bf16.mxu0 0
        %5790 = vmatpush1.bf16.msra.mxu0 0
        %5791 = vmatprep.subr.bf16.mxu0 0
        %5792 = vmatpush1.bf16.msra.mxu0 0
        %5793 = vmatprep.subr.bf16.mxu0 0
        %5794 = vmatpush1.bf16.msra.mxu0 0
        %5795 = vmatprep.subr.bf16.mxu0 0
        %5796 = vmatpush1.bf16.msra.mxu0 0
        %5797 = vmatprep.mubr.bf16.mxu0 0
        %5798 = vmatmul.mubr.bf16.gmra.mrb[0].mxu0 %v5760
        %v5799 = vpop.f32.mrb[0].mxu0
        %v5800 = vadd.f32 0.0, %v5799
        %v5801 = vpop.f32.mrb[0].mxu0
        %v5802 = vpop.f32.mrb[0].mxu0
        %v5803 = vadd.f32 0.0, %v5802
        %v5804 = vpop.f32.mrb[0].mxu0
        %5805 = vmatprep.mubr.bf16.mxu0 0
        %5806 = vmatmul.mubr.bf16.gmra.mrb[0].mxu0 %v5763
        %v5807 = vpop.f32.mrb[0].mxu0
        %v5808 = vadd.f32 0.0, %v5807
        %v5809 = vpop.f32.mrb[0].mxu0
        %v5810 = vpop.f32.mrb[0].mxu0
        %v5811 = vadd.f32 0.0, %v5810
        %v5812 = vpop.f32.mrb[0].mxu0
        %5813 = vdwg.mxu0
        %5814 = vrot.lane.b32.xlu0 %v1975, 64
        %v5815 = vpop.permute.xlu0 %5814
        %5816 = vrot.lane.b32.xlu0 %v1976, 64
        %v5817 = vpop.permute.xlu0 %5816
        %v5821 = vsel %vm1987, %v5680, 0
        %v5824 = vsel %vm1987, %v5681, 0
        %5826 = vmatprep.subr.bf16.mxu0 0
        %5827 = vmatpush1.bf16.msra.mxu0 %v5815
        %5828 = vmatprep.subr.bf16.mxu0 0
        %5829 = vmatpush1.bf16.msra.mxu0 %v5817
        %5830 = vmatprep.subr.bf16.mxu0 0
        %5831 = vmatpush1.bf16.msra.mxu0 0
        %5832 = vmatprep.subr.bf16.mxu0 0
        %5833 = vmatpush1.bf16.msra.mxu0 0
        %5834 = vmatprep.subr.bf16.mxu0 0
        %5835 = vmatpush1.bf16.msra.mxu0 0
        %5836 = vmatprep.subr.bf16.mxu0 0
        %5837 = vmatpush1.bf16.msra.mxu0 0
        %5838 = vmatprep.subr.bf16.mxu0 0
        %5839 = vmatpush1.bf16.msra.mxu0 0
        %5840 = vmatprep.subr.bf16.mxu0 0
        %5841 = vmatpush1.bf16.msra.mxu0 0
        %5842 = vmatprep.subr.bf16.mxu0 0
        %5843 = vmatpush1.bf16.msra.mxu0 0
        %5844 = vmatprep.subr.bf16.mxu0 0
        %5845 = vmatpush1.bf16.msra.mxu0 0
        %5846 = vmatprep.subr.bf16.mxu0 0
        %5847 = vmatpush1.bf16.msra.mxu0 0
        %5848 = vmatprep.subr.bf16.mxu0 0
        %5849 = vmatpush1.bf16.msra.mxu0 0
        %5850 = vmatprep.subr.bf16.mxu0 0
        %5851 = vmatpush1.bf16.msra.mxu0 0
        %5852 = vmatprep.subr.bf16.mxu0 0
        %5853 = vmatpush1.bf16.msra.mxu0 0
        %5854 = vmatprep.subr.bf16.mxu0 0
        %5855 = vmatpush1.bf16.msra.mxu0 0
        %5856 = vmatprep.subr.bf16.mxu0 0
        %5857 = vmatpush1.bf16.msra.mxu0 0
        %5858 = vmatprep.mubr.bf16.mxu0 0
        %5859 = vmatmul.mubr.bf16.gmra.mrb[0].mxu0 %v5821
        %v5860 = vpop.f32.mrb[0].mxu0
        %v5861 = vadd.f32 0.0, %v5860
        %v5862 = vpop.f32.mrb[0].mxu0
        %v5863 = vpop.f32.mrb[0].mxu0
        %v5864 = vadd.f32 0.0, %v5863
        %v5865 = vpop.f32.mrb[0].mxu0
        %5866 = vmatprep.mubr.bf16.mxu0 0
        %5867 = vmatmul.mubr.bf16.gmra.mrb[0].mxu0 %v5824
        %v5868 = vpop.f32.mrb[0].mxu0
        %v5869 = vadd.f32 0.0, %v5868
        %v5870 = vpop.f32.mrb[0].mxu0
        %v5871 = vpop.f32.mrb[0].mxu0
        %v5872 = vadd.f32 0.0, %v5871
        %v5873 = vpop.f32.mrb[0].mxu0
        %5874 = vdwg.mxu0
        %5875 = vrot.lane.b32.xlu0 %v1977, 64
        %v5876 = vpop.permute.xlu0 %5875
        %5877 = vrot.lane.b32.xlu0 %v1978, 64
        %v5878 = vpop.permute.xlu0 %5877
        %v5882 = vsel %vm1987, %v5682, 0
        %v5885 = vsel %vm1987, %v5683, 0
        %5887 = vmatprep.subr.bf16.mxu0 0
        %5888 = vmatpush1.bf16.msra.mxu0 %v5876
        %5889 = vmatprep.subr.bf16.mxu0 0
        %5890 = vmatpush1.bf16.msra.mxu0 %v5878
        %5891 = vmatprep.subr.bf16.mxu0 0
        %5892 = vmatpush1.bf16.msra.mxu0 0
        %5893 = vmatprep.subr.bf16.mxu0 0
        %5894 = vmatpush1.bf16.msra.mxu0 0
        %5895 = vmatprep.subr.bf16.mxu0 0
        %5896 = vmatpush1.bf16.msra.mxu0 0
        %5897 = vmatprep.subr.bf16.mxu0 0
        %5898 = vmatpush1.bf16.msra.mxu0 0
        %5899 = vmatprep.subr.bf16.mxu0 0
        %5900 = vmatpush1.bf16.msra.mxu0 0
        %5901 = vmatprep.subr.bf16.mxu0 0
        %5902 = vmatpush1.bf16.msra.mxu0 0
        %5903 = vmatprep.subr.bf16.mxu0 0
        %5904 = vmatpush1.bf16.msra.mxu0 0
        %5905 = vmatprep.subr.bf16.mxu0 0
        %5906 = vmatpush1.bf16.msra.mxu0 0
        %5907 = vmatprep.subr.bf16.mxu0 0
        %5908 = vmatpush1.bf16.msra.mxu0 0
        %5909 = vmatprep.subr.bf16.mxu0 0
        %5910 = vmatpush1.bf16.msra.mxu0 0
        %5911 = vmatprep.subr.bf16.mxu0 0
        %5912 = vmatpush1.bf16.msra.mxu0 0
        %5913 = vmatprep.subr.bf16.mxu0 0
        %5914 = vmatpush1.bf16.msra.mxu0 0
        %5915 = vmatprep.subr.bf16.mxu0 0
        %5916 = vmatpush1.bf16.msra.mxu0 0
        %5917 = vmatprep.subr.bf16.mxu0 0
        %5918 = vmatpush1.bf16.msra.mxu0 0
        %5919 = vmatprep.mubr.bf16.mxu0 0
        %5920 = vmatmul.mubr.bf16.gmra.mrb[0].mxu0 %v5882
        %v5921 = vpop.f32.mrb[0].mxu0
        %v5922 = vadd.f32 0.0, %v5921
        %v5923 = vpop.f32.mrb[0].mxu0
        %v5924 = vpop.f32.mrb[0].mxu0
        %v5925 = vadd.f32 0.0, %v5924
        %v5926 = vpop.f32.mrb[0].mxu0
        %5927 = vmatprep.mubr.bf16.mxu0 0
        %5928 = vmatmul.mubr.bf16.gmra.mrb[0].mxu0 %v5885
        %v5929 = vpop.f32.mrb[0].mxu0
        %v5930 = vadd.f32 0.0, %v5929
        %v5931 = vpop.f32.mrb[0].mxu0
        %v5932 = vpop.f32.mrb[0].mxu0
        %v5933 = vadd.f32 0.0, %v5932
        %v5934 = vpop.f32.mrb[0].mxu0
        %5935 = vdwg.mxu0
        %5936 = vrot.lane.b32.xlu0 %v1979, 64
        %v5937 = vpop.permute.xlu0 %5936
        %5938 = vrot.lane.b32.xlu0 %v1980, 64
        %v5939 = vpop.permute.xlu0 %5938
        %v5943 = vsel %vm1987, %v5684, 0
        %v5946 = vsel %vm1987, %v5685, 0
        %5948 = vmatprep.subr.bf16.mxu0 0
        %5949 = vmatpush1.bf16.msra.mxu0 %v5937
        %5950 = vmatprep.subr.bf16.mxu0 0
        %5951 = vmatpush1.bf16.msra.mxu0 %v5939
        %5952 = vmatprep.subr.bf16.mxu0 0
        %5953 = vmatpush1.bf16.msra.mxu0 0
        %5954 = vmatprep.subr.bf16.mxu0 0
        %5955 = vmatpush1.bf16.msra.mxu0 0
        %5956 = vmatprep.subr.bf16.mxu0 0
        %5957 = vmatpush1.bf16.msra.mxu0 0
        %5958 = vmatprep.subr.bf16.mxu0 0
        %5959 = vmatpush1.bf16.msra.mxu0 0
        %5960 = vmatprep.subr.bf16.mxu0 0
        %5961 = vmatpush1.bf16.msra.mxu0 0
        %5962 = vmatprep.subr.bf16.mxu0 0
        %5963 = vmatpush1.bf16.msra.mxu0 0
        %5964 = vmatprep.subr.bf16.mxu0 0
        %5965 = vmatpush1.bf16.msra.mxu0 0
        %5966 = vmatprep.subr.bf16.mxu0 0
        %5967 = vmatpush1.bf16.msra.mxu0 0
        %5968 = vmatprep.subr.bf16.mxu0 0
        %5969 = vmatpush1.bf16.msra.mxu0 0
        %5970 = vmatprep.subr.bf16.mxu0 0
        %5971 = vmatpush1.bf16.msra.mxu0 0
        %5972 = vmatprep.subr.bf16.mxu0 0
        %5973 = vmatpush1.bf16.msra.mxu0 0
        %5974 = vmatprep.subr.bf16.mxu0 0
        %5975 = vmatpush1.bf16.msra.mxu0 0
        %5976 = vmatprep.subr.bf16.mxu0 0
        %5977 = vmatpush1.bf16.msra.mxu0 0
        %5978 = vmatprep.subr.bf16.mxu0 0
        %5979 = vmatpush1.bf16.msra.mxu0 0
        %5980 = vmatprep.mubr.bf16.mxu0 0
        %5981 = vmatmul.mubr.bf16.gmra.mrb[0].mxu0 %v5943
        %v5982 = vpop.f32.mrb[0].mxu0
        %v5983 = vadd.f32 0.0, %v5982
        %v5984 = vpop.f32.mrb[0].mxu0
        %v5985 = vpop.f32.mrb[0].mxu0
        %v5986 = vadd.f32 0.0, %v5985
        %v5987 = vpop.f32.mrb[0].mxu0
        %5988 = vmatprep.mubr.bf16.mxu0 0
        %5989 = vmatmul.mubr.bf16.gmra.mrb[0].mxu0 %v5946
        %v5990 = vpop.f32.mrb[0].mxu0
        %v5991 = vadd.f32 0.0, %v5990
        %v5992 = vpop.f32.mrb[0].mxu0
        %v5993 = vpop.f32.mrb[0].mxu0
        %v5994 = vadd.f32 0.0, %v5993
        %v5995 = vpop.f32.mrb[0].mxu0
        %5996 = vdwg.mxu0
        %5997 = vrot.lane.b32.xlu0 %v1981, 64
        %v5998 = vpop.permute.xlu0 %5997
        %5999 = vrot.lane.b32.xlu0 %v1982, 64
        %v6000 = vpop.permute.xlu0 %5999
        %v6004 = vsel %vm1987, %v5686, 0
        %v6007 = vsel %vm1987, %v5687, 0
        %6009 = vmatprep.subr.bf16.mxu0 0
        %6010 = vmatpush1.bf16.msra.mxu0 %v5998
        %6011 = vmatprep.subr.bf16.mxu0 0
        %6012 = vmatpush1.bf16.msra.mxu0 %v6000
        %6013 = vmatprep.subr.bf16.mxu0 0
        %6014 = vmatpush1.bf16.msra.mxu0 0
        %6015 = vmatprep.subr.bf16.mxu0 0
        %6016 = vmatpush1.bf16.msra.mxu0 0
        %6017 = vmatprep.subr.bf16.mxu0 0
        %6018 = vmatpush1.bf16.msra.mxu0 0
        %6019 = vmatprep.subr.bf16.mxu0 0
        %6020 = vmatpush1.bf16.msra.mxu0 0
        %6021 = vmatprep.subr.bf16.mxu0 0
        %6022 = vmatpush1.bf16.msra.mxu0 0
        %6023 = vmatprep.subr.bf16.mxu0 0
        %6024 = vmatpush1.bf16.msra.mxu0 0
        %6025 = vmatprep.subr.bf16.mxu0 0
        %6026 = vmatpush1.bf16.msra.mxu0 0
        %6027 = vmatprep.subr.bf16.mxu0 0
        %6028 = vmatpush1.bf16.msra.mxu0 0
        %6029 = vmatprep.subr.bf16.mxu0 0
        %6030 = vmatpush1.bf16.msra.mxu0 0
        %6031 = vmatprep.subr.bf16.mxu0 0
        %6032 = vmatpush1.bf16.msra.mxu0 0
        %6033 = vmatprep.subr.bf16.mxu0 0
        %6034 = vmatpush1.bf16.msra.mxu0 0
        %6035 = vmatprep.subr.bf16.mxu0 0
        %6036 = vmatpush1.bf16.msra.mxu0 0
        %6037 = vmatprep.subr.bf16.mxu0 0
        %6038 = vmatpush1.bf16.msra.mxu0 0
        %6039 = vmatprep.subr.bf16.mxu0 0
        %6040 = vmatpush1.bf16.msra.mxu0 0
        %6041 = vmatprep.mubr.bf16.mxu0 0
        %6042 = vmatmul.mubr.bf16.gmra.mrb[0].mxu0 %v6004
        %v6043 = vpop.f32.mrb[0].mxu0
        %v6044 = vadd.f32 0.0, %v6043
        %v6045 = vpop.f32.mrb[0].mxu0
        %v6046 = vpop.f32.mrb[0].mxu0
        %v6047 = vadd.f32 0.0, %v6046
        %v6048 = vpop.f32.mrb[0].mxu0
        %6049 = vmatprep.mubr.bf16.mxu0 0
        %6050 = vmatmul.mubr.bf16.gmra.mrb[0].mxu0 %v6007
        %v6051 = vpop.f32.mrb[0].mxu0
        %v6052 = vadd.f32 0.0, %v6051
        %v6053 = vpop.f32.mrb[0].mxu0
        %v6054 = vpop.f32.mrb[0].mxu0
        %v6055 = vadd.f32 0.0, %v6054
        %v6056 = vpop.f32.mrb[0].mxu0
        %6057 = vdwg.mxu0
        %6058 = vrot.lane.b32.xlu0 %v1983, 64
        %v6059 = vpop.permute.xlu0 %6058
        %6060 = vrot.lane.b32.xlu0 %v1984, 64
        %v6061 = vpop.permute.xlu0 %6060
        %v6065 = vsel %vm1987, %v5688, 0
        %v6068 = vsel %vm1987, %v5689, 0
        %6070 = vmatprep.subr.bf16.mxu0 0
        %6071 = vmatpush1.bf16.msra.mxu0 %v6059
        %6072 = vmatprep.subr.bf16.mxu0 0
        %6073 = vmatpush1.bf16.msra.mxu0 %v6061
        %6074 = vmatprep.subr.bf16.mxu0 0
        %6075 = vmatpush1.bf16.msra.mxu0 0
        %6076 = vmatprep.subr.bf16.mxu0 0
        %6077 = vmatpush1.bf16.msra.mxu0 0
        %6078 = vmatprep.subr.bf16.mxu0 0
        %6079 = vmatpush1.bf16.msra.mxu0 0
        %6080 = vmatprep.subr.bf16.mxu0 0
        %6081 = vmatpush1.bf16.msra.mxu0 0
        %6082 = vmatprep.subr.bf16.mxu0 0
        %6083 = vmatpush1.bf16.msra.mxu0 0
        %6084 = vmatprep.subr.bf16.mxu0 0
        %6085 = vmatpush1.bf16.msra.mxu0 0
        %6086 = vmatprep.subr.bf16.mxu0 0
        %6087 = vmatpush1.bf16.msra.mxu0 0
        %6088 = vmatprep.subr.bf16.mxu0 0
        %6089 = vmatpush1.bf16.msra.mxu0 0
        %6090 = vmatprep.subr.bf16.mxu0 0
        %6091 = vmatpush1.bf16.msra.mxu0 0
        %6092 = vmatprep.subr.bf16.mxu0 0
        %6093 = vmatpush1.bf16.msra.mxu0 0
        %6094 = vmatprep.subr.bf16.mxu0 0
        %6095 = vmatpush1.bf16.msra.mxu0 0
        %6096 = vmatprep.subr.bf16.mxu0 0
        %6097 = vmatpush1.bf16.msra.mxu0 0
        %6098 = vmatprep.subr.bf16.mxu0 0
        %6099 = vmatpush1.bf16.msra.mxu0 0
        %6100 = vmatprep.subr.bf16.mxu0 0
        %6101 = vmatpush1.bf16.msra.mxu0 0
        %6102 = vmatprep.mubr.bf16.mxu0 0
        %6103 = vmatmul.mubr.bf16.gmra.mrb[0].mxu0 %v6065
        %v6104 = vpop.f32.mrb[0].mxu0
        %v6105 = vadd.f32 0.0, %v6104
        %v6106 = vpop.f32.mrb[0].mxu0
        %v6107 = vpop.f32.mrb[0].mxu0
        %v6108 = vadd.f32 0.0, %v6107
        %v6109 = vpop.f32.mrb[0].mxu0
        %6110 = vmatprep.mubr.bf16.mxu0 0
        %6111 = vmatmul.mubr.bf16.gmra.mrb[0].mxu0 %v6068
        %v6112 = vpop.f32.mrb[0].mxu0
        %v6113 = vadd.f32 0.0, %v6112
        %v6114 = vpop.f32.mrb[0].mxu0
        %v6115 = vpop.f32.mrb[0].mxu0
        %v6116 = vadd.f32 0.0, %v6115
        %v6117 = vpop.f32.mrb[0].mxu0
        %6118 = vdwg.mxu0
        %6119 = vrot.lane.b32.xlu0 %v1985, 64
        %v6120 = vpop.permute.xlu0 %6119
        %6121 = vrot.lane.b32.xlu0 %v1986, 64
        %v6122 = vpop.permute.xlu0 %6121
        %v6126 = vsel %vm1987, %v5690, 0
        %v6129 = vsel %vm1987, %v5691, 0
        %6131 = vmatprep.subr.bf16.mxu0 0
        %6132 = vmatpush1.bf16.msra.mxu0 %v6120
        %6133 = vmatprep.subr.bf16.mxu0 0
        %6134 = vmatpush1.bf16.msra.mxu0 %v6122
        %6135 = vmatprep.subr.bf16.mxu0 0
        %6136 = vmatpush1.bf16.msra.mxu0 0
        %6137 = vmatprep.subr.bf16.mxu0 0
        %6138 = vmatpush1.bf16.msra.mxu0 0
        %6139 = vmatprep.subr.bf16.mxu0 0
        %6140 = vmatpush1.bf16.msra.mxu0 0
        %6141 = vmatprep.subr.bf16.mxu0 0
        %6142 = vmatpush1.bf16.msra.mxu0 0
        %6143 = vmatprep.subr.bf16.mxu0 0
        %6144 = vmatpush1.bf16.msra.mxu0 0
        %6145 = vmatprep.subr.bf16.mxu0 0
        %6146 = vmatpush1.bf16.msra.mxu0 0
        %6147 = vmatprep.subr.bf16.mxu0 0
        %6148 = vmatpush1.bf16.msra.mxu0 0
        %6149 = vmatprep.subr.bf16.mxu0 0
        %6150 = vmatpush1.bf16.msra.mxu0 0
        %6151 = vmatprep.subr.bf16.mxu0 0
        %6152 = vmatpush1.bf16.msra.mxu0 0
        %6153 = vmatprep.subr.bf16.mxu0 0
        %6154 = vmatpush1.bf16.msra.mxu0 0
        %6155 = vmatprep.subr.bf16.mxu0 0
        %6156 = vmatpush1.bf16.msra.mxu0 0
        %6157 = vmatprep.subr.bf16.mxu0 0
        %6158 = vmatpush1.bf16.msra.mxu0 0
        %6159 = vmatprep.subr.bf16.mxu0 0
        %6160 = vmatpush1.bf16.msra.mxu0 0
        %6161 = vmatprep.subr.bf16.mxu0 0
        %6162 = vmatpush1.bf16.msra.mxu0 0
        %6163 = vmatprep.mubr.bf16.mxu0 0
        %6164 = vmatmul.mubr.bf16.gmra.mrb[0].mxu0 %v6126
        %v6165 = vpop.f32.mrb[0].mxu0
        %v6166 = vadd.f32 0.0, %v6165
        %v6167 = vpop.f32.mrb[0].mxu0
        %v6168 = vpop.f32.mrb[0].mxu0
        %v6169 = vadd.f32 0.0, %v6168
        %v6170 = vpop.f32.mrb[0].mxu0
        %6171 = vmatprep.mubr.bf16.mxu0 0
        %6172 = vmatmul.mubr.bf16.gmra.mrb[0].mxu0 %v6129
        %v6173 = vpop.f32.mrb[0].mxu0
        %v6174 = vadd.f32 0.0, %v6173
        %v6175 = vpop.f32.mrb[0].mxu0
        %v6176 = vpop.f32.mrb[0].mxu0
        %v6177 = vadd.f32 0.0, %v6176
        %v6178 = vpop.f32.mrb[0].mxu0
        %6179 = vdwg.mxu0
        %v6180 = vpack.c.bf16 %v5742, %v5739
        %v6181 = vpack.c.bf16 %v5750, %v5747
        %v6182 = vpack.c.bf16 %v5803, %v5800
        %v6183 = vpack.c.bf16 %v5811, %v5808
        %v6184 = vpack.c.bf16 %v5864, %v5861
        %v6185 = vpack.c.bf16 %v5872, %v5869
        %v6186 = vpack.c.bf16 %v5925, %v5922
        %v6187 = vpack.c.bf16 %v5933, %v5930
        %v6188 = vpack.c.bf16 %v5986, %v5983
        %v6189 = vpack.c.bf16 %v5994, %v5991
        %v6190 = vpack.c.bf16 %v6047, %v6044
        %v6191 = vpack.c.bf16 %v6055, %v6052
        %v6192 = vpack.c.bf16 %v6108, %v6105
        %v6193 = vpack.c.bf16 %v6116, %v6113
        %v6194 = vpack.c.bf16 %v6169, %v6166
        %v6195 = vpack.c.bf16 %v6177, %v6174
        %6196 = vrot.lane.b32.xlu0 %v1939, 32
        %v6197 = vpop.permute.xlu0 %6196
        %6198 = vrot.lane.b32.xlu0 %v1940, 32
        %v6199 = vpop.permute.xlu0 %6198
        %6200 = vrot.lane.b32.xlu0 %v1955, 32
        %v6201 = vpop.permute.xlu0 %6200
        %6202 = vrot.lane.b32.xlu0 %v1956, 32
        %v6203 = vpop.permute.xlu0 %6202
        %v6205 = vsel %vm1987, %v6197, 0
        %v6208 = vsel %vm1987, %v6199, 0
        %v6211 = vsel %vm1987, %v6201, 0
        %v6214 = vsel %vm1987, %v6203, 0
        %6216 = vmatprep.subr.bf16.mxu0 0
        %6217 = vmatpush1.bf16.xpose.msra.mxu0 %v6211
        %6218 = vmatprep.subr.bf16.mxu0 0
        %6219 = vmatpush1.bf16.xpose.msra.mxu0 %v6214
        %6220 = vmatprep.subr.bf16.mxu0 0
        %6221 = vmatpush1.bf16.xpose.msra.mxu0 0
        %6222 = vmatprep.subr.bf16.mxu0 0
        %6223 = vmatpush1.bf16.xpose.msra.mxu0 0
        %6224 = vmatprep.subr.bf16.mxu0 0
        %6225 = vmatpush1.bf16.xpose.msra.mxu0 0
        %6226 = vmatprep.subr.bf16.mxu0 0
        %6227 = vmatpush1.bf16.xpose.msra.mxu0 0
        %6228 = vmatprep.subr.bf16.mxu0 0
        %6229 = vmatpush1.bf16.xpose.msra.mxu0 0
        %6230 = vmatprep.subr.bf16.mxu0 0
        %6231 = vmatpush1.bf16.xpose.msra.mxu0 0
        %6232 = vmatprep.subr.bf16.mxu0 0
        %6233 = vmatpush1.bf16.xpose.msra.mxu0 0
        %6234 = vmatprep.subr.bf16.mxu0 0
        %6235 = vmatpush1.bf16.xpose.msra.mxu0 0
        %6236 = vmatprep.subr.bf16.mxu0 0
        %6237 = vmatpush1.bf16.xpose.msra.mxu0 0
        %6238 = vmatprep.subr.bf16.mxu0 0
        %6239 = vmatpush1.bf16.xpose.msra.mxu0 0
        %6240 = vmatprep.subr.bf16.mxu0 0
        %6241 = vmatpush1.bf16.xpose.msra.mxu0 0
        %6242 = vmatprep.subr.bf16.mxu0 0
        %6243 = vmatpush1.bf16.xpose.msra.mxu0 0
        %6244 = vmatprep.subr.bf16.mxu0 0
        %6245 = vmatpush1.bf16.xpose.msra.mxu0 0
        %6246 = vmatprep.subr.bf16.mxu0 0
        %6247 = vmatpush1.bf16.xpose.msra.mxu0 0
        %6248 = vmatprep.mubr.bf16.mxu0 0
        %6249 = vmatmul.mubr.bf16.gmra.mrb[0].mxu0 %v6205
        %v6250 = vpop.f32.mrb[0].mxu0
        %v6251 = vadd.f32 0.0, %v6250
        %v6252 = vpop.f32.mrb[0].mxu0
        %v6253 = vpop.f32.mrb[0].mxu0
        %v6254 = vadd.f32 0.0, %v6253
        %v6255 = vpop.f32.mrb[0].mxu0
        %6256 = vmatprep.mubr.bf16.mxu0 0
        %6257 = vmatmul.mubr.bf16.gmra.mrb[0].mxu0 %v6208
        %v6258 = vpop.f32.mrb[0].mxu0
        %v6259 = vadd.f32 0.0, %v6258
        %v6260 = vpop.f32.mrb[0].mxu0
        %v6261 = vpop.f32.mrb[0].mxu0
        %v6262 = vadd.f32 0.0, %v6261
        %v6263 = vpop.f32.mrb[0].mxu0
        %6264 = vdwg.mxu0
        %6265 = vrot.lane.b32.xlu0 %v1941, 32
        %v6266 = vpop.permute.xlu0 %6265
        %6267 = vrot.lane.b32.xlu0 %v1942, 32
        %v6268 = vpop.permute.xlu0 %6267
        %6269 = vrot.lane.b32.xlu0 %v1957, 32
        %v6270 = vpop.permute.xlu0 %6269
        %6271 = vrot.lane.b32.xlu0 %v1958, 32
        %v6272 = vpop.permute.xlu0 %6271
        %v6274 = vsel %vm1987, %v6266, 0
        %v6277 = vsel %vm1987, %v6268, 0
        %v6280 = vsel %vm1987, %v6270, 0
        %v6283 = vsel %vm1987, %v6272, 0
        %6285 = vmatprep.subr.bf16.mxu0 0
        %6286 = vmatpush1.bf16.xpose.msra.mxu0 %v6280
        %6287 = vmatprep.subr.bf16.mxu0 0
        %6288 = vmatpush1.bf16.xpose.msra.mxu0 %v6283
        %6289 = vmatprep.subr.bf16.mxu0 0
        %6290 = vmatpush1.bf16.xpose.msra.mxu0 0
        %6291 = vmatprep.subr.bf16.mxu0 0
        %6292 = vmatpush1.bf16.xpose.msra.mxu0 0
        %6293 = vmatprep.subr.bf16.mxu0 0
        %6294 = vmatpush1.bf16.xpose.msra.mxu0 0
        %6295 = vmatprep.subr.bf16.mxu0 0
        %6296 = vmatpush1.bf16.xpose.msra.mxu0 0
        %6297 = vmatprep.subr.bf16.mxu0 0
        %6298 = vmatpush1.bf16.xpose.msra.mxu0 0
        %6299 = vmatprep.subr.bf16.mxu0 0
        %6300 = vmatpush1.bf16.xpose.msra.mxu0 0
        %6301 = vmatprep.subr.bf16.mxu0 0
        %6302 = vmatpush1.bf16.xpose.msra.mxu0 0
        %6303 = vmatprep.subr.bf16.mxu0 0
        %6304 = vmatpush1.bf16.xpose.msra.mxu0 0
        %6305 = vmatprep.subr.bf16.mxu0 0
        %6306 = vmatpush1.bf16.xpose.msra.mxu0 0
        %6307 = vmatprep.subr.bf16.mxu0 0
        %6308 = vmatpush1.bf16.xpose.msra.mxu0 0
        %6309 = vmatprep.subr.bf16.mxu0 0
        %6310 = vmatpush1.bf16.xpose.msra.mxu0 0
        %6311 = vmatprep.subr.bf16.mxu0 0
        %6312 = vmatpush1.bf16.xpose.msra.mxu0 0
        %6313 = vmatprep.subr.bf16.mxu0 0
        %6314 = vmatpush1.bf16.xpose.msra.mxu0 0
        %6315 = vmatprep.subr.bf16.mxu0 0
        %6316 = vmatpush1.bf16.xpose.msra.mxu0 0
        %6317 = vmatprep.mubr.bf16.mxu0 0
        %6318 = vmatmul.mubr.bf16.gmra.mrb[0].mxu0 %v6274
        %v6319 = vpop.f32.mrb[0].mxu0
        %v6320 = vadd.f32 0.0, %v6319
        %v6321 = vpop.f32.mrb[0].mxu0
        %v6322 = vpop.f32.mrb[0].mxu0
        %v6323 = vadd.f32 0.0, %v6322
        %v6324 = vpop.f32.mrb[0].mxu0
        %6325 = vmatprep.mubr.bf16.mxu0 0
        %6326 = vmatmul.mubr.bf16.gmra.mrb[0].mxu0 %v6277
        %v6327 = vpop.f32.mrb[0].mxu0
        %v6328 = vadd.f32 0.0, %v6327
        %v6329 = vpop.f32.mrb[0].mxu0
        %v6330 = vpop.f32.mrb[0].mxu0
        %v6331 = vadd.f32 0.0, %v6330
        %v6332 = vpop.f32.mrb[0].mxu0
        %6333 = vdwg.mxu0
        %6334 = vrot.lane.b32.xlu0 %v1943, 32
        %v6335 = vpop.permute.xlu0 %6334
        %6336 = vrot.lane.b32.xlu0 %v1944, 32
        %v6337 = vpop.permute.xlu0 %6336
        %6338 = vrot.lane.b32.xlu0 %v1959, 32
        %v6339 = vpop.permute.xlu0 %6338
        %6340 = vrot.lane.b32.xlu0 %v1960, 32
        %v6341 = vpop.permute.xlu0 %6340
        %v6343 = vsel %vm1987, %v6335, 0
        %v6346 = vsel %vm1987, %v6337, 0
        %v6349 = vsel %vm1987, %v6339, 0
        %v6352 = vsel %vm1987, %v6341, 0
        %6354 = vmatprep.subr.bf16.mxu0 0
        %6355 = vmatpush1.bf16.xpose.msra.mxu0 %v6349
        %6356 = vmatprep.subr.bf16.mxu0 0
        %6357 = vmatpush1.bf16.xpose.msra.mxu0 %v6352
        %6358 = vmatprep.subr.bf16.mxu0 0
        %6359 = vmatpush1.bf16.xpose.msra.mxu0 0
        %6360 = vmatprep.subr.bf16.mxu0 0
        %6361 = vmatpush1.bf16.xpose.msra.mxu0 0
        %6362 = vmatprep.subr.bf16.mxu0 0
        %6363 = vmatpush1.bf16.xpose.msra.mxu0 0
        %6364 = vmatprep.subr.bf16.mxu0 0
        %6365 = vmatpush1.bf16.xpose.msra.mxu0 0
        %6366 = vmatprep.subr.bf16.mxu0 0
        %6367 = vmatpush1.bf16.xpose.msra.mxu0 0
        %6368 = vmatprep.subr.bf16.mxu0 0
        %6369 = vmatpush1.bf16.xpose.msra.mxu0 0
        %6370 = vmatprep.subr.bf16.mxu0 0
        %6371 = vmatpush1.bf16.xpose.msra.mxu0 0
        %6372 = vmatprep.subr.bf16.mxu0 0
        %6373 = vmatpush1.bf16.xpose.msra.mxu0 0
        %6374 = vmatprep.subr.bf16.mxu0 0
        %6375 = vmatpush1.bf16.xpose.msra.mxu0 0
        %6376 = vmatprep.subr.bf16.mxu0 0
        %6377 = vmatpush1.bf16.xpose.msra.mxu0 0
        %6378 = vmatprep.subr.bf16.mxu0 0
        %6379 = vmatpush1.bf16.xpose.msra.mxu0 0
        %6380 = vmatprep.subr.bf16.mxu0 0
        %6381 = vmatpush1.bf16.xpose.msra.mxu0 0
        %6382 = vmatprep.subr.bf16.mxu0 0
        %6383 = vmatpush1.bf16.xpose.msra.mxu0 0
        %6384 = vmatprep.subr.bf16.mxu0 0
        %6385 = vmatpush1.bf16.xpose.msra.mxu0 0
        %6386 = vmatprep.mubr.bf16.mxu0 0
        %6387 = vmatmul.mubr.bf16.gmra.mrb[0].mxu0 %v6343
        %v6388 = vpop.f32.mrb[0].mxu0
        %v6389 = vadd.f32 0.0, %v6388
        %v6390 = vpop.f32.mrb[0].mxu0
        %v6391 = vpop.f32.mrb[0].mxu0
        %v6392 = vadd.f32 0.0, %v6391
        %v6393 = vpop.f32.mrb[0].mxu0
        %6394 = vmatprep.mubr.bf16.mxu0 0
        %6395 = vmatmul.mubr.bf16.gmra.mrb[0].mxu0 %v6346
        %v6396 = vpop.f32.mrb[0].mxu0
        %v6397 = vadd.f32 0.0, %v6396
        %v6398 = vpop.f32.mrb[0].mxu0
        %v6399 = vpop.f32.mrb[0].mxu0
        %v6400 = vadd.f32 0.0, %v6399
        %v6401 = vpop.f32.mrb[0].mxu0
        %6402 = vdwg.mxu0
        %6403 = vrot.lane.b32.xlu0 %v1945, 32
        %v6404 = vpop.permute.xlu0 %6403
        %6405 = vrot.lane.b32.xlu0 %v1946, 32
        %v6406 = vpop.permute.xlu0 %6405
        %6407 = vrot.lane.b32.xlu0 %v1961, 32
        %v6408 = vpop.permute.xlu0 %6407
        %6409 = vrot.lane.b32.xlu0 %v1962, 32
        %v6410 = vpop.permute.xlu0 %6409
        %v6412 = vsel %vm1987, %v6404, 0
        %v6415 = vsel %vm1987, %v6406, 0
        %v6418 = vsel %vm1987, %v6408, 0
        %v6421 = vsel %vm1987, %v6410, 0
        %6423 = vmatprep.subr.bf16.mxu0 0
        %6424 = vmatpush1.bf16.xpose.msra.mxu0 %v6418
        %6425 = vmatprep.subr.bf16.mxu0 0
        %6426 = vmatpush1.bf16.xpose.msra.mxu0 %v6421
        %6427 = vmatprep.subr.bf16.mxu0 0
        %6428 = vmatpush1.bf16.xpose.msra.mxu0 0
        %6429 = vmatprep.subr.bf16.mxu0 0
        %6430 = vmatpush1.bf16.xpose.msra.mxu0 0
        %6431 = vmatprep.subr.bf16.mxu0 0
        %6432 = vmatpush1.bf16.xpose.msra.mxu0 0
        %6433 = vmatprep.subr.bf16.mxu0 0
        %6434 = vmatpush1.bf16.xpose.msra.mxu0 0
        %6435 = vmatprep.subr.bf16.mxu0 0
        %6436 = vmatpush1.bf16.xpose.msra.mxu0 0
        %6437 = vmatprep.subr.bf16.mxu0 0
        %6438 = vmatpush1.bf16.xpose.msra.mxu0 0
        %6439 = vmatprep.subr.bf16.mxu0 0
        %6440 = vmatpush1.bf16.xpose.msra.mxu0 0
        %6441 = vmatprep.subr.bf16.mxu0 0
        %6442 = vmatpush1.bf16.xpose.msra.mxu0 0
        %6443 = vmatprep.subr.bf16.mxu0 0
        %6444 = vmatpush1.bf16.xpose.msra.mxu0 0
        %6445 = vmatprep.subr.bf16.mxu0 0
        %6446 = vmatpush1.bf16.xpose.msra.mxu0 0
        %6447 = vmatprep.subr.bf16.mxu0 0
        %6448 = vmatpush1.bf16.xpose.msra.mxu0 0
        %6449 = vmatprep.subr.bf16.mxu0 0
        %6450 = vmatpush1.bf16.xpose.msra.mxu0 0
        %6451 = vmatprep.subr.bf16.mxu0 0
        %6452 = vmatpush1.bf16.xpose.msra.mxu0 0
        %6453 = vmatprep.subr.bf16.mxu0 0
        %6454 = vmatpush1.bf16.xpose.msra.mxu0 0
        %6455 = vmatprep.mubr.bf16.mxu0 0
        %6456 = vmatmul.mubr.bf16.gmra.mrb[0].mxu0 %v6412
        %v6457 = vpop.f32.mrb[0].mxu0
        %v6458 = vadd.f32 0.0, %v6457
        %v6459 = vpop.f32.mrb[0].mxu0
        %v6460 = vpop.f32.mrb[0].mxu0
        %v6461 = vadd.f32 0.0, %v6460
        %v6462 = vpop.f32.mrb[0].mxu0
        %6463 = vmatprep.mubr.bf16.mxu0 0
        %6464 = vmatmul.mubr.bf16.gmra.mrb[0].mxu0 %v6415
        %v6465 = vpop.f32.mrb[0].mxu0
        %v6466 = vadd.f32 0.0, %v6465
        %v6467 = vpop.f32.mrb[0].mxu0
        %v6468 = vpop.f32.mrb[0].mxu0
        %v6469 = vadd.f32 0.0, %v6468
        %v6470 = vpop.f32.mrb[0].mxu0
        %6471 = vdwg.mxu0
        %6472 = vrot.lane.b32.xlu0 %v1947, 32
        %v6473 = vpop.permute.xlu0 %6472
        %6474 = vrot.lane.b32.xlu0 %v1948, 32
        %v6475 = vpop.permute.xlu0 %6474
        %6476 = vrot.lane.b32.xlu0 %v1963, 32
        %v6477 = vpop.permute.xlu0 %6476
        %6478 = vrot.lane.b32.xlu0 %v1964, 32
        %v6479 = vpop.permute.xlu0 %6478
        %v6481 = vsel %vm1987, %v6473, 0
        %v6484 = vsel %vm1987, %v6475, 0
        %v6487 = vsel %vm1987, %v6477, 0
        %v6490 = vsel %vm1987, %v6479, 0
        %6492 = vmatprep.subr.bf16.mxu0 0
        %6493 = vmatpush1.bf16.xpose.msra.mxu0 %v6487
        %6494 = vmatprep.subr.bf16.mxu0 0
        %6495 = vmatpush1.bf16.xpose.msra.mxu0 %v6490
        %6496 = vmatprep.subr.bf16.mxu0 0
        %6497 = vmatpush1.bf16.xpose.msra.mxu0 0
        %6498 = vmatprep.subr.bf16.mxu0 0
        %6499 = vmatpush1.bf16.xpose.msra.mxu0 0
        %6500 = vmatprep.subr.bf16.mxu0 0
        %6501 = vmatpush1.bf16.xpose.msra.mxu0 0
        %6502 = vmatprep.subr.bf16.mxu0 0
        %6503 = vmatpush1.bf16.xpose.msra.mxu0 0
        %6504 = vmatprep.subr.bf16.mxu0 0
        %6505 = vmatpush1.bf16.xpose.msra.mxu0 0
        %6506 = vmatprep.subr.bf16.mxu0 0
        %6507 = vmatpush1.bf16.xpose.msra.mxu0 0
        %6508 = vmatprep.subr.bf16.mxu0 0
        %6509 = vmatpush1.bf16.xpose.msra.mxu0 0
        %6510 = vmatprep.subr.bf16.mxu0 0
        %6511 = vmatpush1.bf16.xpose.msra.mxu0 0
        %6512 = vmatprep.subr.bf16.mxu0 0
        %6513 = vmatpush1.bf16.xpose.msra.mxu0 0
        %6514 = vmatprep.subr.bf16.mxu0 0
        %6515 = vmatpush1.bf16.xpose.msra.mxu0 0
        %6516 = vmatprep.subr.bf16.mxu0 0
        %6517 = vmatpush1.bf16.xpose.msra.mxu0 0
        %6518 = vmatprep.subr.bf16.mxu0 0
        %6519 = vmatpush1.bf16.xpose.msra.mxu0 0
        %6520 = vmatprep.subr.bf16.mxu0 0
        %6521 = vmatpush1.bf16.xpose.msra.mxu0 0
        %6522 = vmatprep.subr.bf16.mxu0 0
        %6523 = vmatpush1.bf16.xpose.msra.mxu0 0
        %6524 = vmatprep.mubr.bf16.mxu0 0
        %6525 = vmatmul.mubr.bf16.gmra.mrb[0].mxu0 %v6481
        %v6526 = vpop.f32.mrb[0].mxu0
        %v6527 = vadd.f32 0.0, %v6526
        %v6528 = vpop.f32.mrb[0].mxu0
        %v6529 = vpop.f32.mrb[0].mxu0
        %v6530 = vadd.f32 0.0, %v6529
        %v6531 = vpop.f32.mrb[0].mxu0
        %6532 = vmatprep.mubr.bf16.mxu0 0
        %6533 = vmatmul.mubr.bf16.gmra.mrb[0].mxu0 %v6484
        %v6534 = vpop.f32.mrb[0].mxu0
        %v6535 = vadd.f32 0.0, %v6534
        %v6536 = vpop.f32.mrb[0].mxu0
        %v6537 = vpop.f32.mrb[0].mxu0
        %v6538 = vadd.f32 0.0, %v6537
        %v6539 = vpop.f32.mrb[0].mxu0
        %6540 = vdwg.mxu0
        %6541 = vrot.lane.b32.xlu0 %v1949, 32
        %v6542 = vpop.permute.xlu0 %6541
        %6543 = vrot.lane.b32.xlu0 %v1950, 32
        %v6544 = vpop.permute.xlu0 %6543
        %6545 = vrot.lane.b32.xlu0 %v1965, 32
        %v6546 = vpop.permute.xlu0 %6545
        %6547 = vrot.lane.b32.xlu0 %v1966, 32
        %v6548 = vpop.permute.xlu0 %6547
        %v6550 = vsel %vm1987, %v6542, 0
        %v6553 = vsel %vm1987, %v6544, 0
        %v6556 = vsel %vm1987, %v6546, 0
        %v6559 = vsel %vm1987, %v6548, 0
        %6561 = vmatprep.subr.bf16.mxu0 0
        %6562 = vmatpush1.bf16.xpose.msra.mxu0 %v6556
        %6563 = vmatprep.subr.bf16.mxu0 0
        %6564 = vmatpush1.bf16.xpose.msra.mxu0 %v6559
        %6565 = vmatprep.subr.bf16.mxu0 0
        %6566 = vmatpush1.bf16.xpose.msra.mxu0 0
        %6567 = vmatprep.subr.bf16.mxu0 0
        %6568 = vmatpush1.bf16.xpose.msra.mxu0 0
        %6569 = vmatprep.subr.bf16.mxu0 0
        %6570 = vmatpush1.bf16.xpose.msra.mxu0 0
        %6571 = vmatprep.subr.bf16.mxu0 0
        %6572 = vmatpush1.bf16.xpose.msra.mxu0 0
        %6573 = vmatprep.subr.bf16.mxu0 0
        %6574 = vmatpush1.bf16.xpose.msra.mxu0 0
        %6575 = vmatprep.subr.bf16.mxu0 0
        %6576 = vmatpush1.bf16.xpose.msra.mxu0 0
        %6577 = vmatprep.subr.bf16.mxu0 0
        %6578 = vmatpush1.bf16.xpose.msra.mxu0 0
        %6579 = vmatprep.subr.bf16.mxu0 0
        %6580 = vmatpush1.bf16.xpose.msra.mxu0 0
        %6581 = vmatprep.subr.bf16.mxu0 0
        %6582 = vmatpush1.bf16.xpose.msra.mxu0 0
        %6583 = vmatprep.subr.bf16.mxu0 0
        %6584 = vmatpush1.bf16.xpose.msra.mxu0 0
        %6585 = vmatprep.subr.bf16.mxu0 0
        %6586 = vmatpush1.bf16.xpose.msra.mxu0 0
        %6587 = vmatprep.subr.bf16.mxu0 0
        %6588 = vmatpush1.bf16.xpose.msra.mxu0 0
        %6589 = vmatprep.subr.bf16.mxu0 0
        %6590 = vmatpush1.bf16.xpose.msra.mxu0 0
        %6591 = vmatprep.subr.bf16.mxu0 0
        %6592 = vmatpush1.bf16.xpose.msra.mxu0 0
        %6593 = vmatprep.mubr.bf16.mxu0 0
        %6594 = vmatmul.mubr.bf16.gmra.mrb[0].mxu0 %v6550
        %v6595 = vpop.f32.mrb[0].mxu0
        %v6596 = vadd.f32 0.0, %v6595
        %v6597 = vpop.f32.mrb[0].mxu0
        %v6598 = vpop.f32.mrb[0].mxu0
        %v6599 = vadd.f32 0.0, %v6598
        %v6600 = vpop.f32.mrb[0].mxu0
        %6601 = vmatprep.mubr.bf16.mxu0 0
        %6602 = vmatmul.mubr.bf16.gmra.mrb[0].mxu0 %v6553
        %v6603 = vpop.f32.mrb[0].mxu0
        %v6604 = vadd.f32 0.0, %v6603
        %v6605 = vpop.f32.mrb[0].mxu0
        %v6606 = vpop.f32.mrb[0].mxu0
        %v6607 = vadd.f32 0.0, %v6606
        %v6608 = vpop.f32.mrb[0].mxu0
        %6609 = vdwg.mxu0
        %6610 = vrot.lane.b32.xlu0 %v1951, 32
        %v6611 = vpop.permute.xlu0 %6610
        %6612 = vrot.lane.b32.xlu0 %v1952, 32
        %v6613 = vpop.permute.xlu0 %6612
        %6614 = vrot.lane.b32.xlu0 %v1967, 32
        %v6615 = vpop.permute.xlu0 %6614
        %6616 = vrot.lane.b32.xlu0 %v1968, 32
        %v6617 = vpop.permute.xlu0 %6616
        %v6619 = vsel %vm1987, %v6611, 0
        %v6622 = vsel %vm1987, %v6613, 0
        %v6625 = vsel %vm1987, %v6615, 0
        %v6628 = vsel %vm1987, %v6617, 0
        %6630 = vmatprep.subr.bf16.mxu0 0
        %6631 = vmatpush1.bf16.xpose.msra.mxu0 %v6625
        %6632 = vmatprep.subr.bf16.mxu0 0
        %6633 = vmatpush1.bf16.xpose.msra.mxu0 %v6628
        %6634 = vmatprep.subr.bf16.mxu0 0
        %6635 = vmatpush1.bf16.xpose.msra.mxu0 0
        %6636 = vmatprep.subr.bf16.mxu0 0
        %6637 = vmatpush1.bf16.xpose.msra.mxu0 0
        %6638 = vmatprep.subr.bf16.mxu0 0
        %6639 = vmatpush1.bf16.xpose.msra.mxu0 0
        %6640 = vmatprep.subr.bf16.mxu0 0
        %6641 = vmatpush1.bf16.xpose.msra.mxu0 0
        %6642 = vmatprep.subr.bf16.mxu0 0
        %6643 = vmatpush1.bf16.xpose.msra.mxu0 0
        %6644 = vmatprep.subr.bf16.mxu0 0
        %6645 = vmatpush1.bf16.xpose.msra.mxu0 0
        %6646 = vmatprep.subr.bf16.mxu0 0
        %6647 = vmatpush1.bf16.xpose.msra.mxu0 0
        %6648 = vmatprep.subr.bf16.mxu0 0
        %6649 = vmatpush1.bf16.xpose.msra.mxu0 0
        %6650 = vmatprep.subr.bf16.mxu0 0
        %6651 = vmatpush1.bf16.xpose.msra.mxu0 0
        %6652 = vmatprep.subr.bf16.mxu0 0
        %6653 = vmatpush1.bf16.xpose.msra.mxu0 0
        %6654 = vmatprep.subr.bf16.mxu0 0
        %6655 = vmatpush1.bf16.xpose.msra.mxu0 0
        %6656 = vmatprep.subr.bf16.mxu0 0
        %6657 = vmatpush1.bf16.xpose.msra.mxu0 0
        %6658 = vmatprep.subr.bf16.mxu0 0
        %6659 = vmatpush1.bf16.xpose.msra.mxu0 0
        %6660 = vmatprep.subr.bf16.mxu0 0
        %6661 = vmatpush1.bf16.xpose.msra.mxu0 0
        %6662 = vmatprep.mubr.bf16.mxu0 0
        %6663 = vmatmul.mubr.bf16.gmra.mrb[0].mxu0 %v6619
        %v6664 = vpop.f32.mrb[0].mxu0
        %v6665 = vadd.f32 0.0, %v6664
        %v6666 = vpop.f32.mrb[0].mxu0
        %v6667 = vpop.f32.mrb[0].mxu0
        %v6668 = vadd.f32 0.0, %v6667
        %v6669 = vpop.f32.mrb[0].mxu0
        %6670 = vmatprep.mubr.bf16.mxu0 0
        %6671 = vmatmul.mubr.bf16.gmra.mrb[0].mxu0 %v6622
        %v6672 = vpop.f32.mrb[0].mxu0
        %v6673 = vadd.f32 0.0, %v6672
        %v6674 = vpop.f32.mrb[0].mxu0
        %v6675 = vpop.f32.mrb[0].mxu0
        %v6676 = vadd.f32 0.0, %v6675
        %v6677 = vpop.f32.mrb[0].mxu0
        %6678 = vdwg.mxu0
        %6679 = vrot.lane.b32.xlu0 %v1953, 32
        %v6680 = vpop.permute.xlu0 %6679
        %6681 = vrot.lane.b32.xlu0 %v1954, 32
        %v6682 = vpop.permute.xlu0 %6681
        %6683 = vrot.lane.b32.xlu0 %v1969, 32
        %v6684 = vpop.permute.xlu0 %6683
        %6685 = vrot.lane.b32.xlu0 %v1970, 32
        %v6686 = vpop.permute.xlu0 %6685
        %v6688 = vsel %vm1987, %v6680, 0
        %v6691 = vsel %vm1987, %v6682, 0
        %v6694 = vsel %vm1987, %v6684, 0
        %v6697 = vsel %vm1987, %v6686, 0
        %6699 = vmatprep.subr.bf16.mxu0 0
        %6700 = vmatpush1.bf16.xpose.msra.mxu0 %v6694
        %6701 = vmatprep.subr.bf16.mxu0 0
        %6702 = vmatpush1.bf16.xpose.msra.mxu0 %v6697
        %6703 = vmatprep.subr.bf16.mxu0 0
        %6704 = vmatpush1.bf16.xpose.msra.mxu0 0
        %6705 = vmatprep.subr.bf16.mxu0 0
        %6706 = vmatpush1.bf16.xpose.msra.mxu0 0
        %6707 = vmatprep.subr.bf16.mxu0 0
        %6708 = vmatpush1.bf16.xpose.msra.mxu0 0
        %6709 = vmatprep.subr.bf16.mxu0 0
        %6710 = vmatpush1.bf16.xpose.msra.mxu0 0
        %6711 = vmatprep.subr.bf16.mxu0 0
        %6712 = vmatpush1.bf16.xpose.msra.mxu0 0
        %6713 = vmatprep.subr.bf16.mxu0 0
        %6714 = vmatpush1.bf16.xpose.msra.mxu0 0
        %6715 = vmatprep.subr.bf16.mxu0 0
        %6716 = vmatpush1.bf16.xpose.msra.mxu0 0
        %6717 = vmatprep.subr.bf16.mxu0 0
        %6718 = vmatpush1.bf16.xpose.msra.mxu0 0
        %6719 = vmatprep.subr.bf16.mxu0 0
        %6720 = vmatpush1.bf16.xpose.msra.mxu0 0
        %6721 = vmatprep.subr.bf16.mxu0 0
        %6722 = vmatpush1.bf16.xpose.msra.mxu0 0
        %6723 = vmatprep.subr.bf16.mxu0 0
        %6724 = vmatpush1.bf16.xpose.msra.mxu0 0
        %6725 = vmatprep.subr.bf16.mxu0 0
        %6726 = vmatpush1.bf16.xpose.msra.mxu0 0
        %6727 = vmatprep.subr.bf16.mxu0 0
        %6728 = vmatpush1.bf16.xpose.msra.mxu0 0
        %6729 = vmatprep.subr.bf16.mxu0 0
        %6730 = vmatpush1.bf16.xpose.msra.mxu0 0
        %6731 = vmatprep.mubr.bf16.mxu0 0
        %6732 = vmatmul.mubr.bf16.gmra.mrb[0].mxu0 %v6688
        %v6733 = vpop.f32.mrb[0].mxu0
        %v6734 = vadd.f32 0.0, %v6733
        %v6735 = vpop.f32.mrb[0].mxu0
        %v6736 = vpop.f32.mrb[0].mxu0
        %v6737 = vadd.f32 0.0, %v6736
        %v6738 = vpop.f32.mrb[0].mxu0
        %6739 = vmatprep.mubr.bf16.mxu0 0
        %6740 = vmatmul.mubr.bf16.gmra.mrb[0].mxu0 %v6691
        %v6741 = vpop.f32.mrb[0].mxu0
        %v6742 = vadd.f32 0.0, %v6741
        %v6743 = vpop.f32.mrb[0].mxu0
        %v6744 = vpop.f32.mrb[0].mxu0
        %v6745 = vadd.f32 0.0, %v6744
        %v6746 = vpop.f32.mrb[0].mxu0
        %6747 = vdwg.mxu0
        %v6748 = vsel %vm1987, %v6251, -inf
        %6749 = vmax.xlane.f32.xlu0 %v6748
        %v6750 = vpop.xlane.xlu0 %6749
        %v6751 = vsel %vm1987, %v6254, -inf
        %6752 = vmax.xlane.f32.xlu0 %v6751
        %v6753 = vpop.xlane.xlu0 %6752
        %v6754 = vsel %vm1987, %v6259, -inf
        %6755 = vmax.xlane.f32.xlu0 %v6754
        %v6756 = vpop.xlane.xlu0 %6755
        %v6757 = vsel %vm1987, %v6262, -inf
        %6758 = vmax.xlane.f32.xlu0 %v6757
        %v6759 = vpop.xlane.xlu0 %6758
        %v6760 = vsel %vm1987, %v6320, -inf
        %6761 = vmax.xlane.f32.xlu0 %v6760
        %v6762 = vpop.xlane.xlu0 %6761
        %v6763 = vsel %vm1987, %v6323, -inf
        %6764 = vmax.xlane.f32.xlu0 %v6763
        %v6765 = vpop.xlane.xlu0 %6764
        %v6766 = vsel %vm1987, %v6328, -inf
        %6767 = vmax.xlane.f32.xlu0 %v6766
        %v6768 = vpop.xlane.xlu0 %6767
        %v6769 = vsel %vm1987, %v6331, -inf
        %6770 = vmax.xlane.f32.xlu0 %v6769
        %v6771 = vpop.xlane.xlu0 %6770
        %v6772 = vsel %vm1987, %v6389, -inf
        %6773 = vmax.xlane.f32.xlu0 %v6772
        %v6774 = vpop.xlane.xlu0 %6773
        %v6775 = vsel %vm1987, %v6392, -inf
        %6776 = vmax.xlane.f32.xlu0 %v6775
        %v6777 = vpop.xlane.xlu0 %6776
        %v6778 = vsel %vm1987, %v6397, -inf
        %6779 = vmax.xlane.f32.xlu0 %v6778
        %v6780 = vpop.xlane.xlu0 %6779
        %v6781 = vsel %vm1987, %v6400, -inf
        %6782 = vmax.xlane.f32.xlu0 %v6781
        %v6783 = vpop.xlane.xlu0 %6782
        %v6784 = vsel %vm1987, %v6458, -inf
        %6785 = vmax.xlane.f32.xlu0 %v6784
        %v6786 = vpop.xlane.xlu0 %6785
        %v6787 = vsel %vm1987, %v6461, -inf
        %6788 = vmax.xlane.f32.xlu0 %v6787
        %v6789 = vpop.xlane.xlu0 %6788
        %v6790 = vsel %vm1987, %v6466, -inf
        %6791 = vmax.xlane.f32.xlu0 %v6790
        %v6792 = vpop.xlane.xlu0 %6791
        %v6793 = vsel %vm1987, %v6469, -inf
        %6794 = vmax.xlane.f32.xlu0 %v6793
        %v6795 = vpop.xlane.xlu0 %6794
        %v6796 = vsel %vm1987, %v6527, -inf
        %6797 = vmax.xlane.f32.xlu0 %v6796
        %v6798 = vpop.xlane.xlu0 %6797
        %v6799 = vsel %vm1987, %v6530, -inf
        %6800 = vmax.xlane.f32.xlu0 %v6799
        %v6801 = vpop.xlane.xlu0 %6800
        %v6802 = vsel %vm1987, %v6535, -inf
        %6803 = vmax.xlane.f32.xlu0 %v6802
        %v6804 = vpop.xlane.xlu0 %6803
        %v6805 = vsel %vm1987, %v6538, -inf
        %6806 = vmax.xlane.f32.xlu0 %v6805
        %v6807 = vpop.xlane.xlu0 %6806
        %v6808 = vsel %vm1987, %v6596, -inf
        %6809 = vmax.xlane.f32.xlu0 %v6808
        %v6810 = vpop.xlane.xlu0 %6809
        %v6811 = vsel %vm1987, %v6599, -inf
        %6812 = vmax.xlane.f32.xlu0 %v6811
        %v6813 = vpop.xlane.xlu0 %6812
        %v6814 = vsel %vm1987, %v6604, -inf
        %6815 = vmax.xlane.f32.xlu0 %v6814
        %v6816 = vpop.xlane.xlu0 %6815
        %v6817 = vsel %vm1987, %v6607, -inf
        %6818 = vmax.xlane.f32.xlu0 %v6817
        %v6819 = vpop.xlane.xlu0 %6818
        %v6820 = vsel %vm1987, %v6665, -inf
        %6821 = vmax.xlane.f32.xlu0 %v6820
        %v6822 = vpop.xlane.xlu0 %6821
        %v6823 = vsel %vm1987, %v6668, -inf
        %6824 = vmax.xlane.f32.xlu0 %v6823
        %v6825 = vpop.xlane.xlu0 %6824
        %v6826 = vsel %vm1987, %v6673, -inf
        %6827 = vmax.xlane.f32.xlu0 %v6826
        %v6828 = vpop.xlane.xlu0 %6827
        %v6829 = vsel %vm1987, %v6676, -inf
        %6830 = vmax.xlane.f32.xlu0 %v6829
        %v6831 = vpop.xlane.xlu0 %6830
        %v6832 = vsel %vm1987, %v6734, -inf
        %6833 = vmax.xlane.f32.xlu0 %v6832
        %v6834 = vpop.xlane.xlu0 %6833
        %v6835 = vsel %vm1987, %v6737, -inf
        %6836 = vmax.xlane.f32.xlu0 %v6835
        %v6837 = vpop.xlane.xlu0 %6836
        %v6838 = vsel %vm1987, %v6742, -inf
        %6839 = vmax.xlane.f32.xlu0 %v6838
        %v6840 = vpop.xlane.xlu0 %6839
        %v6841 = vsel %vm1987, %v6745, -inf
        %6842 = vmax.xlane.f32.xlu0 %v6841
        %v6843 = vpop.xlane.xlu0 %6842
        %v6844 = vsub.f32 %v6251, %v6750
        %v6845 = vsub.f32 %v6254, %v6753
        %v6846 = vsub.f32 %v6259, %v6756
        %v6847 = vsub.f32 %v6262, %v6759
        %v6848 = vsub.f32 %v6320, %v6762
        %v6849 = vsub.f32 %v6323, %v6765
        %v6850 = vsub.f32 %v6328, %v6768
        %v6851 = vsub.f32 %v6331, %v6771
        %v6852 = vsub.f32 %v6389, %v6774
        %v6853 = vsub.f32 %v6392, %v6777
        %v6854 = vsub.f32 %v6397, %v6780
        %v6855 = vsub.f32 %v6400, %v6783
        %v6856 = vsub.f32 %v6458, %v6786
        %v6857 = vsub.f32 %v6461, %v6789
        %v6858 = vsub.f32 %v6466, %v6792
        %v6859 = vsub.f32 %v6469, %v6795
        %v6860 = vsub.f32 %v6527, %v6798
        %v6861 = vsub.f32 %v6530, %v6801
        %v6862 = vsub.f32 %v6535, %v6804
        %v6863 = vsub.f32 %v6538, %v6807
        %v6864 = vsub.f32 %v6596, %v6810
        %v6865 = vsub.f32 %v6599, %v6813
        %v6866 = vsub.f32 %v6604, %v6816
        %v6867 = vsub.f32 %v6607, %v6819
        %v6868 = vsub.f32 %v6665, %v6822
        %v6869 = vsub.f32 %v6668, %v6825
        %v6870 = vsub.f32 %v6673, %v6828
        %v6871 = vsub.f32 %v6676, %v6831
        %v6872 = vsub.f32 %v6734, %v6834
        %v6873 = vsub.f32 %v6737, %v6837
        %v6874 = vsub.f32 %v6742, %v6840
        %v6875 = vsub.f32 %v6745, %v6843
        %v6876 = vmul.f32 %v6844, 1.442695
        %v6877 = vpow.pop %v6876
        %v6878 = vmul.f32 %v6845, 1.442695
        %v6879 = vpow.pop %v6878
        %v6880 = vmul.f32 %v6846, 1.442695
        %v6881 = vpow.pop %v6880
        %v6882 = vmul.f32 %v6847, 1.442695
        %v6883 = vpow.pop %v6882
        %v6884 = vmul.f32 %v6848, 1.442695
        %v6885 = vpow.pop %v6884
        %v6886 = vmul.f32 %v6849, 1.442695
        %v6887 = vpow.pop %v6886
        %v6888 = vmul.f32 %v6850, 1.442695
        %v6889 = vpow.pop %v6888
        %v6890 = vmul.f32 %v6851, 1.442695
        %v6891 = vpow.pop %v6890
        %v6892 = vmul.f32 %v6852, 1.442695
        %v6893 = vpow.pop %v6892
        %v6894 = vmul.f32 %v6853, 1.442695
        %v6895 = vpow.pop %v6894
        %v6896 = vmul.f32 %v6854, 1.442695
        %v6897 = vpow.pop %v6896
        %v6898 = vmul.f32 %v6855, 1.442695
        %v6899 = vpow.pop %v6898
        %v6900 = vmul.f32 %v6856, 1.442695
        %v6901 = vpow.pop %v6900
        %v6902 = vmul.f32 %v6857, 1.442695
        %v6903 = vpow.pop %v6902
        %v6904 = vmul.f32 %v6858, 1.442695
        %v6905 = vpow.pop %v6904
        %v6906 = vmul.f32 %v6859, 1.442695
        %v6907 = vpow.pop %v6906
        %v6908 = vmul.f32 %v6860, 1.442695
        %v6909 = vpow.pop %v6908
        %v6910 = vmul.f32 %v6861, 1.442695
        %v6911 = vpow.pop %v6910
        %v6912 = vmul.f32 %v6862, 1.442695
        %v6913 = vpow.pop %v6912
        %v6914 = vmul.f32 %v6863, 1.442695
        %v6915 = vpow.pop %v6914
        %v6916 = vmul.f32 %v6864, 1.442695
        %v6917 = vpow.pop %v6916
        %v6918 = vmul.f32 %v6865, 1.442695
        %v6919 = vpow.pop %v6918
        %v6920 = vmul.f32 %v6866, 1.442695
        %v6921 = vpow.pop %v6920
        %v6922 = vmul.f32 %v6867, 1.442695
        %v6923 = vpow.pop %v6922
        %v6924 = vmul.f32 %v6868, 1.442695
        %v6925 = vpow.pop %v6924
        %v6926 = vmul.f32 %v6869, 1.442695
        %v6927 = vpow.pop %v6926
        %v6928 = vmul.f32 %v6870, 1.442695
        %v6929 = vpow.pop %v6928
        %v6930 = vmul.f32 %v6871, 1.442695
        %v6931 = vpow.pop %v6930
        %v6932 = vmul.f32 %v6872, 1.442695
        %v6933 = vpow.pop %v6932
        %v6934 = vmul.f32 %v6873, 1.442695
        %v6935 = vpow.pop %v6934
        %v6936 = vmul.f32 %v6874, 1.442695
        %v6937 = vpow.pop %v6936
        %v6938 = vmul.f32 %v6875, 1.442695
        %v6939 = vpow.pop %v6938
        %v6940 = vsel %vm1987, %v6877, 0.0
        %6941 = vadd.xlane.f32.xlu0 %v6940
        %v6942 = vpop.xlane.xlu0 %6941
        %v6943 = vsel %vm1987, %v6879, 0.0
        %6944 = vadd.xlane.f32.xlu0 %v6943
        %v6945 = vpop.xlane.xlu0 %6944
        %v6946 = vsel %vm1987, %v6881, 0.0
        %6947 = vadd.xlane.f32.xlu0 %v6946
        %v6948 = vpop.xlane.xlu0 %6947
        %v6949 = vsel %vm1987, %v6883, 0.0
        %6950 = vadd.xlane.f32.xlu0 %v6949
        %v6951 = vpop.xlane.xlu0 %6950
        %v6952 = vsel %vm1987, %v6885, 0.0
        %6953 = vadd.xlane.f32.xlu0 %v6952
        %v6954 = vpop.xlane.xlu0 %6953
        %v6955 = vsel %vm1987, %v6887, 0.0
        %6956 = vadd.xlane.f32.xlu0 %v6955
        %v6957 = vpop.xlane.xlu0 %6956
        %v6958 = vsel %vm1987, %v6889, 0.0
        %6959 = vadd.xlane.f32.xlu0 %v6958
        %v6960 = vpop.xlane.xlu0 %6959
        %v6961 = vsel %vm1987, %v6891, 0.0
        %6962 = vadd.xlane.f32.xlu0 %v6961
        %v6963 = vpop.xlane.xlu0 %6962
        %v6964 = vsel %vm1987, %v6893, 0.0
        %6965 = vadd.xlane.f32.xlu0 %v6964
        %v6966 = vpop.xlane.xlu0 %6965
        %v6967 = vsel %vm1987, %v6895, 0.0
        %6968 = vadd.xlane.f32.xlu0 %v6967
        %v6969 = vpop.xlane.xlu0 %6968
        %v6970 = vsel %vm1987, %v6897, 0.0
        %6971 = vadd.xlane.f32.xlu0 %v6970
        %v6972 = vpop.xlane.xlu0 %6971
        %v6973 = vsel %vm1987, %v6899, 0.0
        %6974 = vadd.xlane.f32.xlu0 %v6973
        %v6975 = vpop.xlane.xlu0 %6974
        %v6976 = vsel %vm1987, %v6901, 0.0
        %6977 = vadd.xlane.f32.xlu0 %v6976
        %v6978 = vpop.xlane.xlu0 %6977
        %v6979 = vsel %vm1987, %v6903, 0.0
        %6980 = vadd.xlane.f32.xlu0 %v6979
        %v6981 = vpop.xlane.xlu0 %6980
        %v6982 = vsel %vm1987, %v6905, 0.0
        %6983 = vadd.xlane.f32.xlu0 %v6982
        %v6984 = vpop.xlane.xlu0 %6983
        %v6985 = vsel %vm1987, %v6907, 0.0
        %6986 = vadd.xlane.f32.xlu0 %v6985
        %v6987 = vpop.xlane.xlu0 %6986
        %v6988 = vsel %vm1987, %v6909, 0.0
        %6989 = vadd.xlane.f32.xlu0 %v6988
        %v6990 = vpop.xlane.xlu0 %6989
        %v6991 = vsel %vm1987, %v6911, 0.0
        %6992 = vadd.xlane.f32.xlu0 %v6991
        %v6993 = vpop.xlane.xlu0 %6992
        %v6994 = vsel %vm1987, %v6913, 0.0
        %6995 = vadd.xlane.f32.xlu0 %v6994
        %v6996 = vpop.xlane.xlu0 %6995
        %v6997 = vsel %vm1987, %v6915, 0.0
        %6998 = vadd.xlane.f32.xlu0 %v6997
        %v6999 = vpop.xlane.xlu0 %6998
        %v7000 = vsel %vm1987, %v6917, 0.0
        %7001 = vadd.xlane.f32.xlu0 %v7000
        %v7002 = vpop.xlane.xlu0 %7001
        %v7003 = vsel %vm1987, %v6919, 0.0
        %7004 = vadd.xlane.f32.xlu0 %v7003
        %v7005 = vpop.xlane.xlu0 %7004
        %v7006 = vsel %vm1987, %v6921, 0.0
        %7007 = vadd.xlane.f32.xlu0 %v7006
        %v7008 = vpop.xlane.xlu0 %7007
        %v7009 = vsel %vm1987, %v6923, 0.0
        %7010 = vadd.xlane.f32.xlu0 %v7009
        %v7011 = vpop.xlane.xlu0 %7010
        %v7012 = vsel %vm1987, %v6925, 0.0
        %7013 = vadd.xlane.f32.xlu0 %v7012
        %v7014 = vpop.xlane.xlu0 %7013
        %v7015 = vsel %vm1987, %v6927, 0.0
        %7016 = vadd.xlane.f32.xlu0 %v7015
        %v7017 = vpop.xlane.xlu0 %7016
        %v7018 = vsel %vm1987, %v6929, 0.0
        %7019 = vadd.xlane.f32.xlu0 %v7018
        %v7020 = vpop.xlane.xlu0 %7019
        %v7021 = vsel %vm1987, %v6931, 0.0
        %7022 = vadd.xlane.f32.xlu0 %v7021
        %v7023 = vpop.xlane.xlu0 %7022
        %v7024 = vsel %vm1987, %v6933, 0.0
        %7025 = vadd.xlane.f32.xlu0 %v7024
        %v7026 = vpop.xlane.xlu0 %7025
        %v7027 = vsel %vm1987, %v6935, 0.0
        %7028 = vadd.xlane.f32.xlu0 %v7027
        %v7029 = vpop.xlane.xlu0 %7028
        %v7030 = vsel %vm1987, %v6937, 0.0
        %7031 = vadd.xlane.f32.xlu0 %v7030
        %v7032 = vpop.xlane.xlu0 %7031
        %v7033 = vsel %vm1987, %v6939, 0.0
        %7034 = vadd.xlane.f32.xlu0 %v7033
        %v7035 = vpop.xlane.xlu0 %7034
        %v7036 = vrcp.pop %v6942
        %v7037 = vrcp.pop %v6945
        %v7038 = vrcp.pop %v6948
        %v7039 = vrcp.pop %v6951
        %v7040 = vrcp.pop %v6954
        %v7041 = vrcp.pop %v6957
        %v7042 = vrcp.pop %v6960
        %v7043 = vrcp.pop %v6963
        %v7044 = vrcp.pop %v6966
        %v7045 = vrcp.pop %v6969
        %v7046 = vrcp.pop %v6972
        %v7047 = vrcp.pop %v6975
        %v7048 = vrcp.pop %v6978
        %v7049 = vrcp.pop %v6981
        %v7050 = vrcp.pop %v6984
        %v7051 = vrcp.pop %v6987
        %v7052 = vrcp.pop %v6990
        %v7053 = vrcp.pop %v6993
        %v7054 = vrcp.pop %v6996
        %v7055 = vrcp.pop %v6999
        %v7056 = vrcp.pop %v7002
        %v7057 = vrcp.pop %v7005
        %v7058 = vrcp.pop %v7008
        %v7059 = vrcp.pop %v7011
        %v7060 = vrcp.pop %v7014
        %v7061 = vrcp.pop %v7017
        %v7062 = vrcp.pop %v7020
        %v7063 = vrcp.pop %v7023
        %v7064 = vrcp.pop %v7026
        %v7065 = vrcp.pop %v7029
        %v7066 = vrcp.pop %v7032
        %v7067 = vrcp.pop %v7035
        %v7068 = vmul.f32 %v6877, %v7036
        %v7069 = vmul.f32 %v6879, %v7037
        %v7070 = vmul.f32 %v6881, %v7038
        %v7071 = vmul.f32 %v6883, %v7039
        %v7072 = vmul.f32 %v6885, %v7040
        %v7073 = vmul.f32 %v6887, %v7041
        %v7074 = vmul.f32 %v6889, %v7042
        %v7075 = vmul.f32 %v6891, %v7043
        %v7076 = vmul.f32 %v6893, %v7044
        %v7077 = vmul.f32 %v6895, %v7045
        %v7078 = vmul.f32 %v6897, %v7046
        %v7079 = vmul.f32 %v6899, %v7047
        %v7080 = vmul.f32 %v6901, %v7048
        %v7081 = vmul.f32 %v6903, %v7049
        %v7082 = vmul.f32 %v6905, %v7050
        %v7083 = vmul.f32 %v6907, %v7051
        %v7084 = vmul.f32 %v6909, %v7052
        %v7085 = vmul.f32 %v6911, %v7053
        %v7086 = vmul.f32 %v6913, %v7054
        %v7087 = vmul.f32 %v6915, %v7055
        %v7088 = vmul.f32 %v6917, %v7056
        %v7089 = vmul.f32 %v6919, %v7057
        %v7090 = vmul.f32 %v6921, %v7058
        %v7091 = vmul.f32 %v6923, %v7059
        %v7092 = vmul.f32 %v6925, %v7060
        %v7093 = vmul.f32 %v6927, %v7061
        %v7094 = vmul.f32 %v6929, %v7062
        %v7095 = vmul.f32 %v6931, %v7063
        %v7096 = vmul.f32 %v6933, %v7064
        %v7097 = vmul.f32 %v6935, %v7065
        %v7098 = vmul.f32 %v6937, %v7066
        %v7099 = vmul.f32 %v6939, %v7067
        %v7100 = vpack.c.bf16 %v7069, %v7068
        %v7101 = vpack.c.bf16 %v7071, %v7070
        %v7102 = vpack.c.bf16 %v7073, %v7072
        %v7103 = vpack.c.bf16 %v7075, %v7074
        %v7104 = vpack.c.bf16 %v7077, %v7076
        %v7105 = vpack.c.bf16 %v7079, %v7078
        %v7106 = vpack.c.bf16 %v7081, %v7080
        %v7107 = vpack.c.bf16 %v7083, %v7082
        %v7108 = vpack.c.bf16 %v7085, %v7084
        %v7109 = vpack.c.bf16 %v7087, %v7086
        %v7110 = vpack.c.bf16 %v7089, %v7088
        %v7111 = vpack.c.bf16 %v7091, %v7090
        %v7112 = vpack.c.bf16 %v7093, %v7092
        %v7113 = vpack.c.bf16 %v7095, %v7094
        %v7114 = vpack.c.bf16 %v7097, %v7096
        %v7115 = vpack.c.bf16 %v7099, %v7098
        %7116 = vrot.lane.b32.xlu0 %v1971, 32
        %v7117 = vpop.permute.xlu0 %7116
        %7118 = vrot.lane.b32.xlu0 %v1972, 32
        %v7119 = vpop.permute.xlu0 %7118
        %v7123 = vsel %vm1987, %v7100, 0
        %v7126 = vsel %vm1987, %v7101, 0
        %7128 = vmatprep.subr.bf16.mxu0 0
        %7129 = vmatpush1.bf16.msra.mxu0 %v7117
        %7130 = vmatprep.subr.bf16.mxu0 0
        %7131 = vmatpush1.bf16.msra.mxu0 %v7119
        %7132 = vmatprep.subr.bf16.mxu0 0
        %7133 = vmatpush1.bf16.msra.mxu0 0
        %7134 = vmatprep.subr.bf16.mxu0 0
        %7135 = vmatpush1.bf16.msra.mxu0 0
        %7136 = vmatprep.subr.bf16.mxu0 0
        %7137 = vmatpush1.bf16.msra.mxu0 0
        %7138 = vmatprep.subr.bf16.mxu0 0
        %7139 = vmatpush1.bf16.msra.mxu0 0
        %7140 = vmatprep.subr.bf16.mxu0 0
        %7141 = vmatpush1.bf16.msra.mxu0 0
        %7142 = vmatprep.subr.bf16.mxu0 0
        %7143 = vmatpush1.bf16.msra.mxu0 0
        %7144 = vmatprep.subr.bf16.mxu0 0
        %7145 = vmatpush1.bf16.msra.mxu0 0
        %7146 = vmatprep.subr.bf16.mxu0 0
        %7147 = vmatpush1.bf16.msra.mxu0 0
        %7148 = vmatprep.subr.bf16.mxu0 0
        %7149 = vmatpush1.bf16.msra.mxu0 0
        %7150 = vmatprep.subr.bf16.mxu0 0
        %7151 = vmatpush1.bf16.msra.mxu0 0
        %7152 = vmatprep.subr.bf16.mxu0 0
        %7153 = vmatpush1.bf16.msra.mxu0 0
        %7154 = vmatprep.subr.bf16.mxu0 0
        %7155 = vmatpush1.bf16.msra.mxu0 0
        %7156 = vmatprep.subr.bf16.mxu0 0
        %7157 = vmatpush1.bf16.msra.mxu0 0
        %7158 = vmatprep.subr.bf16.mxu0 0
        %7159 = vmatpush1.bf16.msra.mxu0 0
        %7160 = vmatprep.mubr.bf16.mxu0 0
        %7161 = vmatmul.mubr.bf16.gmra.mrb[0].mxu0 %v7123
        %v7162 = vpop.f32.mrb[0].mxu0
        %v7163 = vadd.f32 0.0, %v7162
        %v7164 = vpop.f32.mrb[0].mxu0
        %v7165 = vpop.f32.mrb[0].mxu0
        %v7166 = vadd.f32 0.0, %v7165
        %v7167 = vpop.f32.mrb[0].mxu0
        %7168 = vmatprep.mubr.bf16.mxu0 0
        %7169 = vmatmul.mubr.bf16.gmra.mrb[0].mxu0 %v7126
        %v7170 = vpop.f32.mrb[0].mxu0
        %v7171 = vadd.f32 0.0, %v7170
        %v7172 = vpop.f32.mrb[0].mxu0
        %v7173 = vpop.f32.mrb[0].mxu0
        %v7174 = vadd.f32 0.0, %v7173
        %v7175 = vpop.f32.mrb[0].mxu0
        %7176 = vdwg.mxu0
        %7177 = vrot.lane.b32.xlu0 %v1973, 32
        %v7178 = vpop.permute.xlu0 %7177
        %7179 = vrot.lane.b32.xlu0 %v1974, 32
        %v7180 = vpop.permute.xlu0 %7179
        %v7184 = vsel %vm1987, %v7102, 0
        %v7187 = vsel %vm1987, %v7103, 0
        %7189 = vmatprep.subr.bf16.mxu0 0
        %7190 = vmatpush1.bf16.msra.mxu0 %v7178
        %7191 = vmatprep.subr.bf16.mxu0 0
        %7192 = vmatpush1.bf16.msra.mxu0 %v7180
        %7193 = vmatprep.subr.bf16.mxu0 0
        %7194 = vmatpush1.bf16.msra.mxu0 0
        %7195 = vmatprep.subr.bf16.mxu0 0
        %7196 = vmatpush1.bf16.msra.mxu0 0
        %7197 = vmatprep.subr.bf16.mxu0 0
        %7198 = vmatpush1.bf16.msra.mxu0 0
        %7199 = vmatprep.subr.bf16.mxu0 0
        %7200 = vmatpush1.bf16.msra.mxu0 0
        %7201 = vmatprep.subr.bf16.mxu0 0
        %7202 = vmatpush1.bf16.msra.mxu0 0
        %7203 = vmatprep.subr.bf16.mxu0 0
        %7204 = vmatpush1.bf16.msra.mxu0 0
        %7205 = vmatprep.subr.bf16.mxu0 0
        %7206 = vmatpush1.bf16.msra.mxu0 0
        %7207 = vmatprep.subr.bf16.mxu0 0
        %7208 = vmatpush1.bf16.msra.mxu0 0
        %7209 = vmatprep.subr.bf16.mxu0 0
        %7210 = vmatpush1.bf16.msra.mxu0 0
        %7211 = vmatprep.subr.bf16.mxu0 0
        %7212 = vmatpush1.bf16.msra.mxu0 0
        %7213 = vmatprep.subr.bf16.mxu0 0
        %7214 = vmatpush1.bf16.msra.mxu0 0
        %7215 = vmatprep.subr.bf16.mxu0 0
        %7216 = vmatpush1.bf16.msra.mxu0 0
        %7217 = vmatprep.subr.bf16.mxu0 0
        %7218 = vmatpush1.bf16.msra.mxu0 0
        %7219 = vmatprep.subr.bf16.mxu0 0
        %7220 = vmatpush1.bf16.msra.mxu0 0
        %7221 = vmatprep.mubr.bf16.mxu0 0
        %7222 = vmatmul.mubr.bf16.gmra.mrb[0].mxu0 %v7184
        %v7223 = vpop.f32.mrb[0].mxu0
        %v7224 = vadd.f32 0.0, %v7223
        %v7225 = vpop.f32.mrb[0].mxu0
        %v7226 = vpop.f32.mrb[0].mxu0
        %v7227 = vadd.f32 0.0, %v7226
        %v7228 = vpop.f32.mrb[0].mxu0
        %7229 = vmatprep.mubr.bf16.mxu0 0
        %7230 = vmatmul.mubr.bf16.gmra.mrb[0].mxu0 %v7187
        %v7231 = vpop.f32.mrb[0].mxu0
        %v7232 = vadd.f32 0.0, %v7231
        %v7233 = vpop.f32.mrb[0].mxu0
        %v7234 = vpop.f32.mrb[0].mxu0
        %v7235 = vadd.f32 0.0, %v7234
        %v7236 = vpop.f32.mrb[0].mxu0
        %7237 = vdwg.mxu0
        %7238 = vrot.lane.b32.xlu0 %v1975, 32
        %v7239 = vpop.permute.xlu0 %7238
        %7240 = vrot.lane.b32.xlu0 %v1976, 32
        %v7241 = vpop.permute.xlu0 %7240
        %v7245 = vsel %vm1987, %v7104, 0
        %v7248 = vsel %vm1987, %v7105, 0
        %7250 = vmatprep.subr.bf16.mxu0 0
        %7251 = vmatpush1.bf16.msra.mxu0 %v7239
        %7252 = vmatprep.subr.bf16.mxu0 0
        %7253 = vmatpush1.bf16.msra.mxu0 %v7241
        %7254 = vmatprep.subr.bf16.mxu0 0
        %7255 = vmatpush1.bf16.msra.mxu0 0
        %7256 = vmatprep.subr.bf16.mxu0 0
        %7257 = vmatpush1.bf16.msra.mxu0 0
        %7258 = vmatprep.subr.bf16.mxu0 0
        %7259 = vmatpush1.bf16.msra.mxu0 0
        %7260 = vmatprep.subr.bf16.mxu0 0
        %7261 = vmatpush1.bf16.msra.mxu0 0
        %7262 = vmatprep.subr.bf16.mxu0 0
        %7263 = vmatpush1.bf16.msra.mxu0 0
        %7264 = vmatprep.subr.bf16.mxu0 0
        %7265 = vmatpush1.bf16.msra.mxu0 0
        %7266 = vmatprep.subr.bf16.mxu0 0
        %7267 = vmatpush1.bf16.msra.mxu0 0
        %7268 = vmatprep.subr.bf16.mxu0 0
        %7269 = vmatpush1.bf16.msra.mxu0 0
        %7270 = vmatprep.subr.bf16.mxu0 0
        %7271 = vmatpush1.bf16.msra.mxu0 0
        %7272 = vmatprep.subr.bf16.mxu0 0
        %7273 = vmatpush1.bf16.msra.mxu0 0
        %7274 = vmatprep.subr.bf16.mxu0 0
        %7275 = vmatpush1.bf16.msra.mxu0 0
        %7276 = vmatprep.subr.bf16.mxu0 0
        %7277 = vmatpush1.bf16.msra.mxu0 0
        %7278 = vmatprep.subr.bf16.mxu0 0
        %7279 = vmatpush1.bf16.msra.mxu0 0
        %7280 = vmatprep.subr.bf16.mxu0 0
        %7281 = vmatpush1.bf16.msra.mxu0 0
        %7282 = vmatprep.mubr.bf16.mxu0 0
        %7283 = vmatmul.mubr.bf16.gmra.mrb[0].mxu0 %v7245
        %v7284 = vpop.f32.mrb[0].mxu0
        %v7285 = vadd.f32 0.0, %v7284
        %v7286 = vpop.f32.mrb[0].mxu0
        %v7287 = vpop.f32.mrb[0].mxu0
        %v7288 = vadd.f32 0.0, %v7287
        %v7289 = vpop.f32.mrb[0].mxu0
        %7290 = vmatprep.mubr.bf16.mxu0 0
        %7291 = vmatmul.mubr.bf16.gmra.mrb[0].mxu0 %v7248
        %v7292 = vpop.f32.mrb[0].mxu0
        %v7293 = vadd.f32 0.0, %v7292
        %v7294 = vpop.f32.mrb[0].mxu0
        %v7295 = vpop.f32.mrb[0].mxu0
        %v7296 = vadd.f32 0.0, %v7295
        %v7297 = vpop.f32.mrb[0].mxu0
        %7298 = vdwg.mxu0
        %7299 = vrot.lane.b32.xlu0 %v1977, 32
        %v7300 = vpop.permute.xlu0 %7299
        %7301 = vrot.lane.b32.xlu0 %v1978, 32
        %v7302 = vpop.permute.xlu0 %7301
        %v7306 = vsel %vm1987, %v7106, 0
        %v7309 = vsel %vm1987, %v7107, 0
        %7311 = vmatprep.subr.bf16.mxu0 0
        %7312 = vmatpush1.bf16.msra.mxu0 %v7300
        %7313 = vmatprep.subr.bf16.mxu0 0
        %7314 = vmatpush1.bf16.msra.mxu0 %v7302
        %7315 = vmatprep.subr.bf16.mxu0 0
        %7316 = vmatpush1.bf16.msra.mxu0 0
        %7317 = vmatprep.subr.bf16.mxu0 0
        %7318 = vmatpush1.bf16.msra.mxu0 0
        %7319 = vmatprep.subr.bf16.mxu0 0
        %7320 = vmatpush1.bf16.msra.mxu0 0
        %7321 = vmatprep.subr.bf16.mxu0 0
        %7322 = vmatpush1.bf16.msra.mxu0 0
        %7323 = vmatprep.subr.bf16.mxu0 0
        %7324 = vmatpush1.bf16.msra.mxu0 0
        %7325 = vmatprep.subr.bf16.mxu0 0
        %7326 = vmatpush1.bf16.msra.mxu0 0
        %7327 = vmatprep.subr.bf16.mxu0 0
        %7328 = vmatpush1.bf16.msra.mxu0 0
        %7329 = vmatprep.subr.bf16.mxu0 0
        %7330 = vmatpush1.bf16.msra.mxu0 0
        %7331 = vmatprep.subr.bf16.mxu0 0
        %7332 = vmatpush1.bf16.msra.mxu0 0
        %7333 = vmatprep.subr.bf16.mxu0 0
        %7334 = vmatpush1.bf16.msra.mxu0 0
        %7335 = vmatprep.subr.bf16.mxu0 0
        %7336 = vmatpush1.bf16.msra.mxu0 0
        %7337 = vmatprep.subr.bf16.mxu0 0
        %7338 = vmatpush1.bf16.msra.mxu0 0
        %7339 = vmatprep.subr.bf16.mxu0 0
        %7340 = vmatpush1.bf16.msra.mxu0 0
        %7341 = vmatprep.subr.bf16.mxu0 0
        %7342 = vmatpush1.bf16.msra.mxu0 0
        %7343 = vmatprep.mubr.bf16.mxu0 0
        %7344 = vmatmul.mubr.bf16.gmra.mrb[0].mxu0 %v7306
        %v7345 = vpop.f32.mrb[0].mxu0
        %v7346 = vadd.f32 0.0, %v7345
        %v7347 = vpop.f32.mrb[0].mxu0
        %v7348 = vpop.f32.mrb[0].mxu0
        %v7349 = vadd.f32 0.0, %v7348
        %v7350 = vpop.f32.mrb[0].mxu0
        %7351 = vmatprep.mubr.bf16.mxu0 0
        %7352 = vmatmul.mubr.bf16.gmra.mrb[0].mxu0 %v7309
        %v7353 = vpop.f32.mrb[0].mxu0
        %v7354 = vadd.f32 0.0, %v7353
        %v7355 = vpop.f32.mrb[0].mxu0
        %v7356 = vpop.f32.mrb[0].mxu0
        %v7357 = vadd.f32 0.0, %v7356
        %v7358 = vpop.f32.mrb[0].mxu0
        %7359 = vdwg.mxu0
        %7360 = vrot.lane.b32.xlu0 %v1979, 32
        %v7361 = vpop.permute.xlu0 %7360
        %7362 = vrot.lane.b32.xlu0 %v1980, 32
        %v7363 = vpop.permute.xlu0 %7362
        %v7367 = vsel %vm1987, %v7108, 0
        %v7370 = vsel %vm1987, %v7109, 0
        %7372 = vmatprep.subr.bf16.mxu0 0
        %7373 = vmatpush1.bf16.msra.mxu0 %v7361
        %7374 = vmatprep.subr.bf16.mxu0 0
        %7375 = vmatpush1.bf16.msra.mxu0 %v7363
        %7376 = vmatprep.subr.bf16.mxu0 0
        %7377 = vmatpush1.bf16.msra.mxu0 0
        %7378 = vmatprep.subr.bf16.mxu0 0
        %7379 = vmatpush1.bf16.msra.mxu0 0
        %7380 = vmatprep.subr.bf16.mxu0 0
        %7381 = vmatpush1.bf16.msra.mxu0 0
        %7382 = vmatprep.subr.bf16.mxu0 0
        %7383 = vmatpush1.bf16.msra.mxu0 0
        %7384 = vmatprep.subr.bf16.mxu0 0
        %7385 = vmatpush1.bf16.msra.mxu0 0
        %7386 = vmatprep.subr.bf16.mxu0 0
        %7387 = vmatpush1.bf16.msra.mxu0 0
        %7388 = vmatprep.subr.bf16.mxu0 0
        %7389 = vmatpush1.bf16.msra.mxu0 0
        %7390 = vmatprep.subr.bf16.mxu0 0
        %7391 = vmatpush1.bf16.msra.mxu0 0
        %7392 = vmatprep.subr.bf16.mxu0 0
        %7393 = vmatpush1.bf16.msra.mxu0 0
        %7394 = vmatprep.subr.bf16.mxu0 0
        %7395 = vmatpush1.bf16.msra.mxu0 0
        %7396 = vmatprep.subr.bf16.mxu0 0
        %7397 = vmatpush1.bf16.msra.mxu0 0
        %7398 = vmatprep.subr.bf16.mxu0 0
        %7399 = vmatpush1.bf16.msra.mxu0 0
        %7400 = vmatprep.subr.bf16.mxu0 0
        %7401 = vmatpush1.bf16.msra.mxu0 0
        %7402 = vmatprep.subr.bf16.mxu0 0
        %7403 = vmatpush1.bf16.msra.mxu0 0
        %7404 = vmatprep.mubr.bf16.mxu0 0
        %7405 = vmatmul.mubr.bf16.gmra.mrb[0].mxu0 %v7367
        %v7406 = vpop.f32.mrb[0].mxu0
        %v7407 = vadd.f32 0.0, %v7406
        %v7408 = vpop.f32.mrb[0].mxu0
        %v7409 = vpop.f32.mrb[0].mxu0
        %v7410 = vadd.f32 0.0, %v7409
        %v7411 = vpop.f32.mrb[0].mxu0
        %7412 = vmatprep.mubr.bf16.mxu0 0
        %7413 = vmatmul.mubr.bf16.gmra.mrb[0].mxu0 %v7370
        %v7414 = vpop.f32.mrb[0].mxu0
        %v7415 = vadd.f32 0.0, %v7414
        %v7416 = vpop.f32.mrb[0].mxu0
        %v7417 = vpop.f32.mrb[0].mxu0
        %v7418 = vadd.f32 0.0, %v7417
        %v7419 = vpop.f32.mrb[0].mxu0
        %7420 = vdwg.mxu0
        %7421 = vrot.lane.b32.xlu0 %v1981, 32
        %v7422 = vpop.permute.xlu0 %7421
        %7423 = vrot.lane.b32.xlu0 %v1982, 32
        %v7424 = vpop.permute.xlu0 %7423
        %v7428 = vsel %vm1987, %v7110, 0
        %v7431 = vsel %vm1987, %v7111, 0
        %7433 = vmatprep.subr.bf16.mxu0 0
        %7434 = vmatpush1.bf16.msra.mxu0 %v7422
        %7435 = vmatprep.subr.bf16.mxu0 0
        %7436 = vmatpush1.bf16.msra.mxu0 %v7424
        %7437 = vmatprep.subr.bf16.mxu0 0
        %7438 = vmatpush1.bf16.msra.mxu0 0
        %7439 = vmatprep.subr.bf16.mxu0 0
        %7440 = vmatpush1.bf16.msra.mxu0 0
        %7441 = vmatprep.subr.bf16.mxu0 0
        %7442 = vmatpush1.bf16.msra.mxu0 0
        %7443 = vmatprep.subr.bf16.mxu0 0
        %7444 = vmatpush1.bf16.msra.mxu0 0
        %7445 = vmatprep.subr.bf16.mxu0 0
        %7446 = vmatpush1.bf16.msra.mxu0 0
        %7447 = vmatprep.subr.bf16.mxu0 0
        %7448 = vmatpush1.bf16.msra.mxu0 0
        %7449 = vmatprep.subr.bf16.mxu0 0
        %7450 = vmatpush1.bf16.msra.mxu0 0
        %7451 = vmatprep.subr.bf16.mxu0 0
        %7452 = vmatpush1.bf16.msra.mxu0 0
        %7453 = vmatprep.subr.bf16.mxu0 0
        %7454 = vmatpush1.bf16.msra.mxu0 0
        %7455 = vmatprep.subr.bf16.mxu0 0
        %7456 = vmatpush1.bf16.msra.mxu0 0
        %7457 = vmatprep.subr.bf16.mxu0 0
        %7458 = vmatpush1.bf16.msra.mxu0 0
        %7459 = vmatprep.subr.bf16.mxu0 0
        %7460 = vmatpush1.bf16.msra.mxu0 0
        %7461 = vmatprep.subr.bf16.mxu0 0
        %7462 = vmatpush1.bf16.msra.mxu0 0
        %7463 = vmatprep.subr.bf16.mxu0 0
        %7464 = vmatpush1.bf16.msra.mxu0 0
        %7465 = vmatprep.mubr.bf16.mxu0 0
        %7466 = vmatmul.mubr.bf16.gmra.mrb[0].mxu0 %v7428
        %v7467 = vpop.f32.mrb[0].mxu0
        %v7468 = vadd.f32 0.0, %v7467
        %v7469 = vpop.f32.mrb[0].mxu0
        %v7470 = vpop.f32.mrb[0].mxu0
        %v7471 = vadd.f32 0.0, %v7470
        %v7472 = vpop.f32.mrb[0].mxu0
        %7473 = vmatprep.mubr.bf16.mxu0 0
        %7474 = vmatmul.mubr.bf16.gmra.mrb[0].mxu0 %v7431
        %v7475 = vpop.f32.mrb[0].mxu0
        %v7476 = vadd.f32 0.0, %v7475
        %v7477 = vpop.f32.mrb[0].mxu0
        %v7478 = vpop.f32.mrb[0].mxu0
        %v7479 = vadd.f32 0.0, %v7478
        %v7480 = vpop.f32.mrb[0].mxu0
        %7481 = vdwg.mxu0
        %7482 = vrot.lane.b32.xlu0 %v1983, 32
        %v7483 = vpop.permute.xlu0 %7482
        %7484 = vrot.lane.b32.xlu0 %v1984, 32
        %v7485 = vpop.permute.xlu0 %7484
        %v7489 = vsel %vm1987, %v7112, 0
        %v7492 = vsel %vm1987, %v7113, 0
        %7494 = vmatprep.subr.bf16.mxu0 0
        %7495 = vmatpush1.bf16.msra.mxu0 %v7483
        %7496 = vmatprep.subr.bf16.mxu0 0
        %7497 = vmatpush1.bf16.msra.mxu0 %v7485
        %7498 = vmatprep.subr.bf16.mxu0 0
        %7499 = vmatpush1.bf16.msra.mxu0 0
        %7500 = vmatprep.subr.bf16.mxu0 0
        %7501 = vmatpush1.bf16.msra.mxu0 0
        %7502 = vmatprep.subr.bf16.mxu0 0
        %7503 = vmatpush1.bf16.msra.mxu0 0
        %7504 = vmatprep.subr.bf16.mxu0 0
        %7505 = vmatpush1.bf16.msra.mxu0 0
        %7506 = vmatprep.subr.bf16.mxu0 0
        %7507 = vmatpush1.bf16.msra.mxu0 0
        %7508 = vmatprep.subr.bf16.mxu0 0
        %7509 = vmatpush1.bf16.msra.mxu0 0
        %7510 = vmatprep.subr.bf16.mxu0 0
        %7511 = vmatpush1.bf16.msra.mxu0 0
        %7512 = vmatprep.subr.bf16.mxu0 0
        %7513 = vmatpush1.bf16.msra.mxu0 0
        %7514 = vmatprep.subr.bf16.mxu0 0
        %7515 = vmatpush1.bf16.msra.mxu0 0
        %7516 = vmatprep.subr.bf16.mxu0 0
        %7517 = vmatpush1.bf16.msra.mxu0 0
        %7518 = vmatprep.subr.bf16.mxu0 0
        %7519 = vmatpush1.bf16.msra.mxu0 0
        %7520 = vmatprep.subr.bf16.mxu0 0
        %7521 = vmatpush1.bf16.msra.mxu0 0
        %7522 = vmatprep.subr.bf16.mxu0 0
        %7523 = vmatpush1.bf16.msra.mxu0 0
        %7524 = vmatprep.subr.bf16.mxu0 0
        %7525 = vmatpush1.bf16.msra.mxu0 0
        %7526 = vmatprep.mubr.bf16.mxu0 0
        %7527 = vmatmul.mubr.bf16.gmra.mrb[0].mxu0 %v7489
        %v7528 = vpop.f32.mrb[0].mxu0
        %v7529 = vadd.f32 0.0, %v7528
        %v7530 = vpop.f32.mrb[0].mxu0
        %v7531 = vpop.f32.mrb[0].mxu0
        %v7532 = vadd.f32 0.0, %v7531
        %v7533 = vpop.f32.mrb[0].mxu0
        %7534 = vmatprep.mubr.bf16.mxu0 0
        %7535 = vmatmul.mubr.bf16.gmra.mrb[0].mxu0 %v7492
        %v7536 = vpop.f32.mrb[0].mxu0
        %v7537 = vadd.f32 0.0, %v7536
        %v7538 = vpop.f32.mrb[0].mxu0
        %v7539 = vpop.f32.mrb[0].mxu0
        %v7540 = vadd.f32 0.0, %v7539
        %v7541 = vpop.f32.mrb[0].mxu0
        %7542 = vdwg.mxu0
        %7543 = vrot.lane.b32.xlu0 %v1985, 32
        %v7544 = vpop.permute.xlu0 %7543
        %7545 = vrot.lane.b32.xlu0 %v1986, 32
        %v7546 = vpop.permute.xlu0 %7545
        %v7550 = vsel %vm1987, %v7114, 0
        %v7553 = vsel %vm1987, %v7115, 0
        %7555 = vmatprep.subr.bf16.mxu0 0
        %7556 = vmatpush1.bf16.msra.mxu0 %v7544
        %7557 = vmatprep.subr.bf16.mxu0 0
        %7558 = vmatpush1.bf16.msra.mxu0 %v7546
        %7559 = vmatprep.subr.bf16.mxu0 0
        %7560 = vmatpush1.bf16.msra.mxu0 0
        %7561 = vmatprep.subr.bf16.mxu0 0
        %7562 = vmatpush1.bf16.msra.mxu0 0
        %7563 = vmatprep.subr.bf16.mxu0 0
        %7564 = vmatpush1.bf16.msra.mxu0 0
        %7565 = vmatprep.subr.bf16.mxu0 0
        %7566 = vmatpush1.bf16.msra.mxu0 0
        %7567 = vmatprep.subr.bf16.mxu0 0
        %7568 = vmatpush1.bf16.msra.mxu0 0
        %7569 = vmatprep.subr.bf16.mxu0 0
        %7570 = vmatpush1.bf16.msra.mxu0 0
        %7571 = vmatprep.subr.bf16.mxu0 0
        %7572 = vmatpush1.bf16.msra.mxu0 0
        %7573 = vmatprep.subr.bf16.mxu0 0
        %7574 = vmatpush1.bf16.msra.mxu0 0
        %7575 = vmatprep.subr.bf16.mxu0 0
        %7576 = vmatpush1.bf16.msra.mxu0 0
        %7577 = vmatprep.subr.bf16.mxu0 0
        %7578 = vmatpush1.bf16.msra.mxu0 0
        %7579 = vmatprep.subr.bf16.mxu0 0
        %7580 = vmatpush1.bf16.msra.mxu0 0
        %7581 = vmatprep.subr.bf16.mxu0 0
        %7582 = vmatpush1.bf16.msra.mxu0 0
        %7583 = vmatprep.subr.bf16.mxu0 0
        %7584 = vmatpush1.bf16.msra.mxu0 0
        %7585 = vmatprep.subr.bf16.mxu0 0
        %7586 = vmatpush1.bf16.msra.mxu0 0
        %7587 = vmatprep.mubr.bf16.mxu0 0
        %7588 = vmatmul.mubr.bf16.gmra.mrb[0].mxu0 %v7550
        %v7589 = vpop.f32.mrb[0].mxu0
        %v7590 = vadd.f32 0.0, %v7589
        %v7591 = vpop.f32.mrb[0].mxu0
        %v7592 = vpop.f32.mrb[0].mxu0
        %v7593 = vadd.f32 0.0, %v7592
        %v7594 = vpop.f32.mrb[0].mxu0
        %7595 = vmatprep.mubr.bf16.mxu0 0
        %7596 = vmatmul.mubr.bf16.gmra.mrb[0].mxu0 %v7553
        %v7597 = vpop.f32.mrb[0].mxu0
        %v7598 = vadd.f32 0.0, %v7597
        %v7599 = vpop.f32.mrb[0].mxu0
        %v7600 = vpop.f32.mrb[0].mxu0
        %v7601 = vadd.f32 0.0, %v7600
        %v7602 = vpop.f32.mrb[0].mxu0
        %7603 = vdwg.mxu0
        %v7604 = vpack.c.bf16 %v7166, %v7163
        %v7605 = vpack.c.bf16 %v7174, %v7171
        %v7606 = vpack.c.bf16 %v7227, %v7224
        %v7607 = vpack.c.bf16 %v7235, %v7232
        %v7608 = vpack.c.bf16 %v7288, %v7285
        %v7609 = vpack.c.bf16 %v7296, %v7293
        %v7610 = vpack.c.bf16 %v7349, %v7346
        %v7611 = vpack.c.bf16 %v7357, %v7354
        %v7612 = vpack.c.bf16 %v7410, %v7407
        %v7613 = vpack.c.bf16 %v7418, %v7415
        %v7614 = vpack.c.bf16 %v7471, %v7468
        %v7615 = vpack.c.bf16 %v7479, %v7476
        %v7616 = vpack.c.bf16 %v7532, %v7529
        %v7617 = vpack.c.bf16 %v7540, %v7537
        %v7618 = vpack.c.bf16 %v7593, %v7590
        %v7619 = vpack.c.bf16 %v7601, %v7598
        %7636 = vrot.lane.b32.xlu0 %v4756, 32
        %v7637 = vpop.permute.xlu0 %7636
        %7638 = vrot.lane.b32.xlu0 %v4757, 32
        %v7639 = vpop.permute.xlu0 %7638
        %7640 = vrot.lane.b32.xlu0 %v4758, 32
        %v7641 = vpop.permute.xlu0 %7640
        %7642 = vrot.lane.b32.xlu0 %v4759, 32
        %v7643 = vpop.permute.xlu0 %7642
        %7644 = vrot.lane.b32.xlu0 %v4760, 32
        %v7645 = vpop.permute.xlu0 %7644
        %7646 = vrot.lane.b32.xlu0 %v4761, 32
        %v7647 = vpop.permute.xlu0 %7646
        %7648 = vrot.lane.b32.xlu0 %v4762, 32
        %v7649 = vpop.permute.xlu0 %7648
        %7650 = vrot.lane.b32.xlu0 %v4763, 32
        %v7651 = vpop.permute.xlu0 %7650
        %7652 = vrot.lane.b32.xlu0 %v4764, 32
        %v7653 = vpop.permute.xlu0 %7652
        %7654 = vrot.lane.b32.xlu0 %v4765, 32
        %v7655 = vpop.permute.xlu0 %7654
        %7656 = vrot.lane.b32.xlu0 %v4766, 32
        %v7657 = vpop.permute.xlu0 %7656
        %7658 = vrot.lane.b32.xlu0 %v4767, 32
        %v7659 = vpop.permute.xlu0 %7658
        %7660 = vrot.lane.b32.xlu0 %v4768, 32
        %v7661 = vpop.permute.xlu0 %7660
        %7662 = vrot.lane.b32.xlu0 %v4769, 32
        %v7663 = vpop.permute.xlu0 %7662
        %7664 = vrot.lane.b32.xlu0 %v4770, 32
        %v7665 = vpop.permute.xlu0 %7664
        %7666 = vrot.lane.b32.xlu0 %v4771, 32
        %v7667 = vpop.permute.xlu0 %7666
        %7684 = vrot.lane.b32.xlu0 %v6180, 64
        %v7685 = vpop.permute.xlu0 %7684
        %7686 = vrot.lane.b32.xlu0 %v6181, 64
        %v7687 = vpop.permute.xlu0 %7686
        %7688 = vrot.lane.b32.xlu0 %v6182, 64
        %v7689 = vpop.permute.xlu0 %7688
        %7690 = vrot.lane.b32.xlu0 %v6183, 64
        %v7691 = vpop.permute.xlu0 %7690
        %7692 = vrot.lane.b32.xlu0 %v6184, 64
        %v7693 = vpop.permute.xlu0 %7692
        %7694 = vrot.lane.b32.xlu0 %v6185, 64
        %v7695 = vpop.permute.xlu0 %7694
        %7696 = vrot.lane.b32.xlu0 %v6186, 64
        %v7697 = vpop.permute.xlu0 %7696
        %7698 = vrot.lane.b32.xlu0 %v6187, 64
        %v7699 = vpop.permute.xlu0 %7698
        %7700 = vrot.lane.b32.xlu0 %v6188, 64
        %v7701 = vpop.permute.xlu0 %7700
        %7702 = vrot.lane.b32.xlu0 %v6189, 64
        %v7703 = vpop.permute.xlu0 %7702
        %7704 = vrot.lane.b32.xlu0 %v6190, 64
        %v7705 = vpop.permute.xlu0 %7704
        %7706 = vrot.lane.b32.xlu0 %v6191, 64
        %v7707 = vpop.permute.xlu0 %7706
        %7708 = vrot.lane.b32.xlu0 %v6192, 64
        %v7709 = vpop.permute.xlu0 %7708
        %7710 = vrot.lane.b32.xlu0 %v6193, 64
        %v7711 = vpop.permute.xlu0 %7710
        %7712 = vrot.lane.b32.xlu0 %v6194, 64
        %v7713 = vpop.permute.xlu0 %7712
        %7714 = vrot.lane.b32.xlu0 %v6195, 64
        %v7715 = vpop.permute.xlu0 %7714
        %7732 = vrot.lane.b32.xlu0 %v7604, 96
        %v7733 = vpop.permute.xlu0 %7732
        %7734 = vrot.lane.b32.xlu0 %v7605, 96
        %v7735 = vpop.permute.xlu0 %7734
        %7736 = vrot.lane.b32.xlu0 %v7606, 96
        %v7737 = vpop.permute.xlu0 %7736
        %7738 = vrot.lane.b32.xlu0 %v7607, 96
        %v7739 = vpop.permute.xlu0 %7738
        %7740 = vrot.lane.b32.xlu0 %v7608, 96
        %v7741 = vpop.permute.xlu0 %7740
        %7742 = vrot.lane.b32.xlu0 %v7609, 96
        %v7743 = vpop.permute.xlu0 %7742
        %7744 = vrot.lane.b32.xlu0 %v7610, 96
        %v7745 = vpop.permute.xlu0 %7744
        %7746 = vrot.lane.b32.xlu0 %v7611, 96
        %v7747 = vpop.permute.xlu0 %7746
        %7748 = vrot.lane.b32.xlu0 %v7612, 96
        %v7749 = vpop.permute.xlu0 %7748
        %7750 = vrot.lane.b32.xlu0 %v7613, 96
        %v7751 = vpop.permute.xlu0 %7750
        %7752 = vrot.lane.b32.xlu0 %v7614, 96
        %v7753 = vpop.permute.xlu0 %7752
        %7754 = vrot.lane.b32.xlu0 %v7615, 96
        %v7755 = vpop.permute.xlu0 %7754
        %7756 = vrot.lane.b32.xlu0 %v7616, 96
        %v7757 = vpop.permute.xlu0 %7756
        %7758 = vrot.lane.b32.xlu0 %v7617, 96
        %v7759 = vpop.permute.xlu0 %7758
        %7760 = vrot.lane.b32.xlu0 %v7618, 96
        %v7761 = vpop.permute.xlu0 %7760
        %7762 = vrot.lane.b32.xlu0 %v7619, 96
        %v7763 = vpop.permute.xlu0 %7762
        %v7766 = vsel %vm1987, %v3284, %v7637
        %v7769 = vsel %vm1987, %v3285, %v7639
        %v7772 = vsel %vm1987, %v3286, %v7641
        %v7775 = vsel %vm1987, %v3287, %v7643
        %v7778 = vsel %vm1987, %v3288, %v7645
        %v7781 = vsel %vm1987, %v3289, %v7647
        %v7784 = vsel %vm1987, %v3290, %v7649
        %v7787 = vsel %vm1987, %v3291, %v7651
        %v7790 = vsel %vm1987, %v3292, %v7653
        %v7793 = vsel %vm1987, %v3293, %v7655
        %v7796 = vsel %vm1987, %v3294, %v7657
        %v7799 = vsel %vm1987, %v3295, %v7659
        %v7802 = vsel %vm1987, %v3296, %v7661
        %v7805 = vsel %vm1987, %v3297, %v7663
        %v7808 = vsel %vm1987, %v3298, %v7665
        %v7811 = vsel %vm1987, %v3299, %v7667
        %vm7812 = vcmask 523264
        %v7814 = vsel %vm7812, %v7766, %v7685
        %v7816 = vsel %vm7812, %v7769, %v7687
        %v7818 = vsel %vm7812, %v7772, %v7689
        %v7820 = vsel %vm7812, %v7775, %v7691
        %v7822 = vsel %vm7812, %v7778, %v7693
        %v7824 = vsel %vm7812, %v7781, %v7695
        %v7826 = vsel %vm7812, %v7784, %v7697
        %v7828 = vsel %vm7812, %v7787, %v7699
        %v7830 = vsel %vm7812, %v7790, %v7701
        %v7832 = vsel %vm7812, %v7793, %v7703
        %v7834 = vsel %vm7812, %v7796, %v7705
        %v7836 = vsel %vm7812, %v7799, %v7707
        %v7838 = vsel %vm7812, %v7802, %v7709
        %v7840 = vsel %vm7812, %v7805, %v7711
        %v7842 = vsel %vm7812, %v7808, %v7713
        %v7844 = vsel %vm7812, %v7811, %v7715
        %vm7845 = vcmask 785408
        %v7847 = vsel %vm7845, %v7814, %v7733
        %v7850 = vsel %vm7845, %v7816, %v7735
        %v7853 = vsel %vm7845, %v7818, %v7737
        %v7856 = vsel %vm7845, %v7820, %v7739
        %v7859 = vsel %vm7845, %v7822, %v7741
        %v7862 = vsel %vm7845, %v7824, %v7743
        %v7865 = vsel %vm7845, %v7826, %v7745
        %v7868 = vsel %vm7845, %v7828, %v7747
        %v7871 = vsel %vm7845, %v7830, %v7749
        %v7874 = vsel %vm7845, %v7832, %v7751
        %v7877 = vsel %vm7845, %v7834, %v7753
        %v7880 = vsel %vm7845, %v7836, %v7755
        %v7883 = vsel %vm7845, %v7838, %v7757
        %v7886 = vsel %vm7845, %v7840, %v7759
        %v7889 = vsel %vm7845, %v7842, %v7761
        %v7892 = vsel %vm7845, %v7844, %v7763
        %v7895 = vlaneseq
        %v7896 = vshrl.u32 %v7895, 7
        %v7897 = vsub.s32 0, %v7896
        %v7898 = vrot.slane %v913, %v7897
        %v7916 = vunpack.c.l.b16 %v897
        %v7917 = vunpack.c.l.b16 %v898
        %v7918 = vunpack.c.l.b16 %v899
        %v7919 = vunpack.c.l.b16 %v900
        %v7920 = vunpack.c.l.b16 %v901
        %v7921 = vunpack.c.l.b16 %v902
        %v7922 = vunpack.c.l.b16 %v903
        %v7923 = vunpack.c.l.b16 %v904
        %v7924 = vunpack.c.l.b16 %v905
        %v7925 = vunpack.c.l.b16 %v906
        %v7926 = vunpack.c.l.b16 %v907
        %v7927 = vunpack.c.l.b16 %v908
        %v7928 = vunpack.c.l.b16 %v909
        %v7929 = vunpack.c.l.b16 %v910
        %v7930 = vunpack.c.l.b16 %v911
        %v7931 = vunpack.c.l.b16 %v912
        %v7932 = vpack.c.b16 %v7917, %v7916
        %v7933 = vpack.c.b16 %v7919, %v7918
        %v7934 = vpack.c.b16 %v7921, %v7920
        %v7935 = vpack.c.b16 %v7923, %v7922
        %v7936 = vpack.c.b16 %v7925, %v7924
        %v7937 = vpack.c.b16 %v7927, %v7926
        %v7938 = vpack.c.b16 %v7929, %v7928
        %v7939 = vpack.c.b16 %v7931, %v7930
        %7948 = vmatprep.subr.bf16.mxu0 0
        %7949 = vmatpush1.bf16.msra.mxu0 %v7932
        %7950 = vmatprep.subr.bf16.mxu0 0
        %7951 = vmatpush1.bf16.msra.mxu0 %v7933
        %7952 = vmatprep.subr.bf16.mxu0 0
        %7953 = vmatpush1.bf16.msra.mxu0 %v7934
        %7954 = vmatprep.subr.bf16.mxu0 0
        %7955 = vmatpush1.bf16.msra.mxu0 %v7935
        %7956 = vmatprep.subr.bf16.mxu0 0
        %7957 = vmatpush1.bf16.msra.mxu0 %v7936
        %7958 = vmatprep.subr.bf16.mxu0 0
        %7959 = vmatpush1.bf16.msra.mxu0 %v7937
        %7960 = vmatprep.subr.bf16.mxu0 0
        %7961 = vmatpush1.bf16.msra.mxu0 %v7938
        %7962 = vmatprep.subr.bf16.mxu0 0
        %7963 = vmatpush1.bf16.msra.mxu0 %v7939
        %7964 = vmatprep.subr.bf16.mxu0 0
        %7965 = vmatpush1.bf16.msra.mxu0 0
        %7966 = vmatprep.subr.bf16.mxu0 0
        %7967 = vmatpush1.bf16.msra.mxu0 0
        %7968 = vmatprep.subr.bf16.mxu0 0
        %7969 = vmatpush1.bf16.msra.mxu0 0
        %7970 = vmatprep.subr.bf16.mxu0 0
        %7971 = vmatpush1.bf16.msra.mxu0 0
        %7972 = vmatprep.subr.bf16.mxu0 0
        %7973 = vmatpush1.bf16.msra.mxu0 0
        %7974 = vmatprep.subr.bf16.mxu0 0
        %7975 = vmatpush1.bf16.msra.mxu0 0
        %7976 = vmatprep.subr.bf16.mxu0 0
        %7977 = vmatpush1.bf16.msra.mxu0 0
        %7978 = vmatprep.subr.bf16.mxu0 0
        %7979 = vmatpush1.bf16.msra.mxu0 0
        %7980 = vmatprep.mubr.bf16.mxu0 0
        %7981 = vmatmul.mubr.bf16.gmra.mrb[0].mxu0 %v7847
        %v7982 = vpop.f32.mrb[0].mxu0
        %v7983 = vadd.f32 %v7898, %v7982
        %v7984 = vpop.f32.mrb[0].mxu0
        %v7985 = vpop.f32.mrb[0].mxu0
        %v7986 = vadd.f32 %v7898, %v7985
        %v7987 = vpop.f32.mrb[0].mxu0
        %7988 = vmatprep.mubr.bf16.mxu0 0
        %7989 = vmatmul.mubr.bf16.gmra.mrb[0].mxu0 %v7850
        %v7990 = vpop.f32.mrb[0].mxu0
        %v7991 = vadd.f32 %v7898, %v7990
        %v7992 = vpop.f32.mrb[0].mxu0
        %v7993 = vpop.f32.mrb[0].mxu0
        %v7994 = vadd.f32 %v7898, %v7993
        %v7995 = vpop.f32.mrb[0].mxu0
        %7996 = vmatprep.mubr.bf16.mxu0 0
        %7997 = vmatmul.mubr.bf16.gmra.mrb[0].mxu0 %v7853
        %v7998 = vpop.f32.mrb[0].mxu0
        %v7999 = vadd.f32 %v7898, %v7998
        %v8000 = vpop.f32.mrb[0].mxu0
        %v8001 = vpop.f32.mrb[0].mxu0
        %v8002 = vadd.f32 %v7898, %v8001
        %v8003 = vpop.f32.mrb[0].mxu0
        %8004 = vmatprep.mubr.bf16.mxu0 0
        %8005 = vmatmul.mubr.bf16.gmra.mrb[0].mxu0 %v7856
        %v8006 = vpop.f32.mrb[0].mxu0
        %v8007 = vadd.f32 %v7898, %v8006
        %v8008 = vpop.f32.mrb[0].mxu0
        %v8009 = vpop.f32.mrb[0].mxu0
        %v8010 = vadd.f32 %v7898, %v8009
        %v8011 = vpop.f32.mrb[0].mxu0
        %8012 = vmatprep.mubr.bf16.mxu0 0
        %8013 = vmatmul.mubr.bf16.gmra.mrb[0].mxu0 %v7859
        %v8014 = vpop.f32.mrb[0].mxu0
        %v8015 = vadd.f32 %v7898, %v8014
        %v8016 = vpop.f32.mrb[0].mxu0
        %v8017 = vpop.f32.mrb[0].mxu0
        %v8018 = vadd.f32 %v7898, %v8017
        %v8019 = vpop.f32.mrb[0].mxu0
        %8020 = vmatprep.mubr.bf16.mxu0 0
        %8021 = vmatmul.mubr.bf16.gmra.mrb[0].mxu0 %v7862
        %v8022 = vpop.f32.mrb[0].mxu0
        %v8023 = vadd.f32 %v7898, %v8022
        %v8024 = vpop.f32.mrb[0].mxu0
        %v8025 = vpop.f32.mrb[0].mxu0
        %v8026 = vadd.f32 %v7898, %v8025
        %v8027 = vpop.f32.mrb[0].mxu0
        %8028 = vmatprep.mubr.bf16.mxu0 0
        %8029 = vmatmul.mubr.bf16.gmra.mrb[0].mxu0 %v7865
        %v8030 = vpop.f32.mrb[0].mxu0
        %v8031 = vadd.f32 %v7898, %v8030
        %v8032 = vpop.f32.mrb[0].mxu0
        %v8033 = vpop.f32.mrb[0].mxu0
        %v8034 = vadd.f32 %v7898, %v8033
        %v8035 = vpop.f32.mrb[0].mxu0
        %8036 = vmatprep.mubr.bf16.mxu0 0
        %8037 = vmatmul.mubr.bf16.gmra.mrb[0].mxu0 %v7868
        %v8038 = vpop.f32.mrb[0].mxu0
        %v8039 = vadd.f32 %v7898, %v8038
        %v8040 = vpop.f32.mrb[0].mxu0
        %v8041 = vpop.f32.mrb[0].mxu0
        %v8042 = vadd.f32 %v7898, %v8041
        %v8043 = vpop.f32.mrb[0].mxu0
        %8044 = vmatprep.mubr.bf16.mxu0 0
        %8045 = vmatmul.mubr.bf16.gmra.mrb[0].mxu0 %v7871
        %v8046 = vpop.f32.mrb[0].mxu0
        %v8047 = vadd.f32 %v7898, %v8046
        %v8048 = vpop.f32.mrb[0].mxu0
        %v8049 = vpop.f32.mrb[0].mxu0
        %v8050 = vadd.f32 %v7898, %v8049
        %v8051 = vpop.f32.mrb[0].mxu0
        %8052 = vmatprep.mubr.bf16.mxu0 0
        %8053 = vmatmul.mubr.bf16.gmra.mrb[0].mxu0 %v7874
        %v8054 = vpop.f32.mrb[0].mxu0
        %v8055 = vadd.f32 %v7898, %v8054
        %v8056 = vpop.f32.mrb[0].mxu0
        %v8057 = vpop.f32.mrb[0].mxu0
        %v8058 = vadd.f32 %v7898, %v8057
        %v8059 = vpop.f32.mrb[0].mxu0
        %8060 = vmatprep.mubr.bf16.mxu0 0
        %8061 = vmatmul.mubr.bf16.gmra.mrb[0].mxu0 %v7877
        %v8062 = vpop.f32.mrb[0].mxu0
        %v8063 = vadd.f32 %v7898, %v8062
        %v8064 = vpop.f32.mrb[0].mxu0
        %v8065 = vpop.f32.mrb[0].mxu0
        %v8066 = vadd.f32 %v7898, %v8065
        %v8067 = vpop.f32.mrb[0].mxu0
        %8068 = vmatprep.mubr.bf16.mxu0 0
        %8069 = vmatmul.mubr.bf16.gmra.mrb[0].mxu0 %v7880
        %v8070 = vpop.f32.mrb[0].mxu0
        %v8071 = vadd.f32 %v7898, %v8070
        %v8072 = vpop.f32.mrb[0].mxu0
        %v8073 = vpop.f32.mrb[0].mxu0
        %v8074 = vadd.f32 %v7898, %v8073
        %v8075 = vpop.f32.mrb[0].mxu0
        %8076 = vmatprep.mubr.bf16.mxu0 0
        %8077 = vmatmul.mubr.bf16.gmra.mrb[0].mxu0 %v7883
        %v8078 = vpop.f32.mrb[0].mxu0
        %v8079 = vadd.f32 %v7898, %v8078
        %v8080 = vpop.f32.mrb[0].mxu0
        %v8081 = vpop.f32.mrb[0].mxu0
        %v8082 = vadd.f32 %v7898, %v8081
        %v8083 = vpop.f32.mrb[0].mxu0
        %8084 = vmatprep.mubr.bf16.mxu0 0
        %8085 = vmatmul.mubr.bf16.gmra.mrb[0].mxu0 %v7886
        %v8086 = vpop.f32.mrb[0].mxu0
        %v8087 = vadd.f32 %v7898, %v8086
        %v8088 = vpop.f32.mrb[0].mxu0
        %v8089 = vpop.f32.mrb[0].mxu0
        %v8090 = vadd.f32 %v7898, %v8089
        %v8091 = vpop.f32.mrb[0].mxu0
        %8092 = vmatprep.mubr.bf16.mxu0 0
        %8093 = vmatmul.mubr.bf16.gmra.mrb[0].mxu0 %v7889
        %v8094 = vpop.f32.mrb[0].mxu0
        %v8095 = vadd.f32 %v7898, %v8094
        %v8096 = vpop.f32.mrb[0].mxu0
        %v8097 = vpop.f32.mrb[0].mxu0
        %v8098 = vadd.f32 %v7898, %v8097
        %v8099 = vpop.f32.mrb[0].mxu0
        %8100 = vmatprep.mubr.bf16.mxu0 0
        %8101 = vmatmul.mubr.bf16.gmra.mrb[0].mxu0 %v7892
        %v8102 = vpop.f32.mrb[0].mxu0
        %v8103 = vadd.f32 %v7898, %v8102
        %v8104 = vpop.f32.mrb[0].mxu0
        %v8105 = vpop.f32.mrb[0].mxu0
        %v8106 = vadd.f32 %v7898, %v8105
        %v8107 = vpop.f32.mrb[0].mxu0
        %8108 = vdwg.mxu0
        %v8109 = vadd.f32 %v828, %v7983
        %v8110 = vadd.f32 %v829, %v7986
        %v8111 = vadd.f32 %v830, %v7991
        %v8112 = vadd.f32 %v831, %v7994
        %v8113 = vadd.f32 %v832, %v7999
        %v8114 = vadd.f32 %v833, %v8002
        %v8115 = vadd.f32 %v834, %v8007
        %v8116 = vadd.f32 %v835, %v8010
        %v8117 = vadd.f32 %v836, %v8015
        %v8118 = vadd.f32 %v837, %v8018
        %v8119 = vadd.f32 %v838, %v8023
        %v8120 = vadd.f32 %v839, %v8026
        %v8121 = vadd.f32 %v840, %v8031
        %v8122 = vadd.f32 %v841, %v8034
        %v8123 = vadd.f32 %v842, %v8039
        %v8124 = vadd.f32 %v843, %v8042
        %v8125 = vadd.f32 %v844, %v8047
        %v8126 = vadd.f32 %v845, %v8050
        %v8127 = vadd.f32 %v846, %v8055
        %v8128 = vadd.f32 %v847, %v8058
        %v8129 = vadd.f32 %v848, %v8063
        %v8130 = vadd.f32 %v849, %v8066
        %v8131 = vadd.f32 %v850, %v8071
        %v8132 = vadd.f32 %v851, %v8074
        %v8133 = vadd.f32 %v852, %v8079
        %v8134 = vadd.f32 %v853, %v8082
        %v8135 = vadd.f32 %v854, %v8087
        %v8136 = vadd.f32 %v855, %v8090
        %v8137 = vadd.f32 %v856, %v8095
        %v8138 = vadd.f32 %v857, %v8098
        %v8139 = vadd.f32 %v858, %v8103
        %v8140 = vadd.f32 %v859, %v8106
        %8141 = vadd.xlane.f32.xlu0 %v8109
        %v8142 = vpop.xlane.xlu0 %8141
        %8143 = vadd.xlane.f32.xlu0 %v8110
        %v8144 = vpop.xlane.xlu0 %8143
        %8145 = vadd.xlane.f32.xlu0 %v8111
        %v8146 = vpop.xlane.xlu0 %8145
        %8147 = vadd.xlane.f32.xlu0 %v8112
        %v8148 = vpop.xlane.xlu0 %8147
        %8149 = vadd.xlane.f32.xlu0 %v8113
        %v8150 = vpop.xlane.xlu0 %8149
        %8151 = vadd.xlane.f32.xlu0 %v8114
        %v8152 = vpop.xlane.xlu0 %8151
        %8153 = vadd.xlane.f32.xlu0 %v8115
        %v8154 = vpop.xlane.xlu0 %8153
        %8155 = vadd.xlane.f32.xlu0 %v8116
        %v8156 = vpop.xlane.xlu0 %8155
        %8157 = vadd.xlane.f32.xlu0 %v8117
        %v8158 = vpop.xlane.xlu0 %8157
        %8159 = vadd.xlane.f32.xlu0 %v8118
        %v8160 = vpop.xlane.xlu0 %8159
        %8161 = vadd.xlane.f32.xlu0 %v8119
        %v8162 = vpop.xlane.xlu0 %8161
        %8163 = vadd.xlane.f32.xlu0 %v8120
        %v8164 = vpop.xlane.xlu0 %8163
        %8165 = vadd.xlane.f32.xlu0 %v8121
        %v8166 = vpop.xlane.xlu0 %8165
        %8167 = vadd.xlane.f32.xlu0 %v8122
        %v8168 = vpop.xlane.xlu0 %8167
        %8169 = vadd.xlane.f32.xlu0 %v8123
        %v8170 = vpop.xlane.xlu0 %8169
        %8171 = vadd.xlane.f32.xlu0 %v8124
        %v8172 = vpop.xlane.xlu0 %8171
        %8173 = vadd.xlane.f32.xlu0 %v8125
        %v8174 = vpop.xlane.xlu0 %8173
        %8175 = vadd.xlane.f32.xlu0 %v8126
        %v8176 = vpop.xlane.xlu0 %8175
        %8177 = vadd.xlane.f32.xlu0 %v8127
        %v8178 = vpop.xlane.xlu0 %8177
        %8179 = vadd.xlane.f32.xlu0 %v8128
        %v8180 = vpop.xlane.xlu0 %8179
        %8181 = vadd.xlane.f32.xlu0 %v8129
        %v8182 = vpop.xlane.xlu0 %8181
        %8183 = vadd.xlane.f32.xlu0 %v8130
        %v8184 = vpop.xlane.xlu0 %8183
        %8185 = vadd.xlane.f32.xlu0 %v8131
        %v8186 = vpop.xlane.xlu0 %8185
        %8187 = vadd.xlane.f32.xlu0 %v8132
        %v8188 = vpop.xlane.xlu0 %8187
        %8189 = vadd.xlane.f32.xlu0 %v8133
        %v8190 = vpop.xlane.xlu0 %8189
        %8191 = vadd.xlane.f32.xlu0 %v8134
        %v8192 = vpop.xlane.xlu0 %8191
        %8193 = vadd.xlane.f32.xlu0 %v8135
        %v8194 = vpop.xlane.xlu0 %8193
        %8195 = vadd.xlane.f32.xlu0 %v8136
        %v8196 = vpop.xlane.xlu0 %8195
        %8197 = vadd.xlane.f32.xlu0 %v8137
        %v8198 = vpop.xlane.xlu0 %8197
        %8199 = vadd.xlane.f32.xlu0 %v8138
        %v8200 = vpop.xlane.xlu0 %8199
        %8201 = vadd.xlane.f32.xlu0 %v8139
        %v8202 = vpop.xlane.xlu0 %8201
        %8203 = vadd.xlane.f32.xlu0 %v8140
        %v8204 = vpop.xlane.xlu0 %8203
        %v8205 = vmul.f32 %v8142, %v1028
        %v8206 = vmul.f32 %v8144, %v1028
        %v8207 = vmul.f32 %v8146, %v1028
        %v8208 = vmul.f32 %v8148, %v1028
        %v8209 = vmul.f32 %v8150, %v1028
        %v8210 = vmul.f32 %v8152, %v1028
        %v8211 = vmul.f32 %v8154, %v1028
        %v8212 = vmul.f32 %v8156, %v1028
        %v8213 = vmul.f32 %v8158, %v1028
        %v8214 = vmul.f32 %v8160, %v1028
        %v8215 = vmul.f32 %v8162, %v1028
        %v8216 = vmul.f32 %v8164, %v1028
        %v8217 = vmul.f32 %v8166, %v1028
        %v8218 = vmul.f32 %v8168, %v1028
        %v8219 = vmul.f32 %v8170, %v1028
        %v8220 = vmul.f32 %v8172, %v1028
        %v8221 = vmul.f32 %v8174, %v1028
        %v8222 = vmul.f32 %v8176, %v1028
        %v8223 = vmul.f32 %v8178, %v1028
        %v8224 = vmul.f32 %v8180, %v1028
        %v8225 = vmul.f32 %v8182, %v1028
        %v8226 = vmul.f32 %v8184, %v1028
        %v8227 = vmul.f32 %v8186, %v1028
        %v8228 = vmul.f32 %v8188, %v1028
        %v8229 = vmul.f32 %v8190, %v1028
        %v8230 = vmul.f32 %v8192, %v1028
        %v8231 = vmul.f32 %v8194, %v1028
        %v8232 = vmul.f32 %v8196, %v1028
        %v8233 = vmul.f32 %v8198, %v1028
        %v8234 = vmul.f32 %v8200, %v1028
        %v8235 = vmul.f32 %v8202, %v1028
        %v8236 = vmul.f32 %v8204, %v1028
        %v8237 = vsub.f32 %v8109, %v8205
        %v8238 = vsub.f32 %v8110, %v8206
        %v8239 = vsub.f32 %v8111, %v8207
        %v8240 = vsub.f32 %v8112, %v8208
        %v8241 = vsub.f32 %v8113, %v8209
        %v8242 = vsub.f32 %v8114, %v8210
        %v8243 = vsub.f32 %v8115, %v8211
        %v8244 = vsub.f32 %v8116, %v8212
        %v8245 = vsub.f32 %v8117, %v8213
        %v8246 = vsub.f32 %v8118, %v8214
        %v8247 = vsub.f32 %v8119, %v8215
        %v8248 = vsub.f32 %v8120, %v8216
        %v8249 = vsub.f32 %v8121, %v8217
        %v8250 = vsub.f32 %v8122, %v8218
        %v8251 = vsub.f32 %v8123, %v8219
        %v8252 = vsub.f32 %v8124, %v8220
        %v8253 = vsub.f32 %v8125, %v8221
        %v8254 = vsub.f32 %v8126, %v8222
        %v8255 = vsub.f32 %v8127, %v8223
        %v8256 = vsub.f32 %v8128, %v8224
        %v8257 = vsub.f32 %v8129, %v8225
        %v8258 = vsub.f32 %v8130, %v8226
        %v8259 = vsub.f32 %v8131, %v8227
        %v8260 = vsub.f32 %v8132, %v8228
        %v8261 = vsub.f32 %v8133, %v8229
        %v8262 = vsub.f32 %v8134, %v8230
        %v8263 = vsub.f32 %v8135, %v8231
        %v8264 = vsub.f32 %v8136, %v8232
        %v8265 = vsub.f32 %v8137, %v8233
        %v8266 = vsub.f32 %v8138, %v8234
        %v8267 = vsub.f32 %v8139, %v8235
        %v8268 = vsub.f32 %v8140, %v8236
        %v8269 = vmul.f32 %v8237, %v8237
        %v8270 = vmul.f32 %v8238, %v8238
        %v8271 = vmul.f32 %v8239, %v8239
        %v8272 = vmul.f32 %v8240, %v8240
        %v8273 = vmul.f32 %v8241, %v8241
        %v8274 = vmul.f32 %v8242, %v8242
        %v8275 = vmul.f32 %v8243, %v8243
        %v8276 = vmul.f32 %v8244, %v8244
        %v8277 = vmul.f32 %v8245, %v8245
        %v8278 = vmul.f32 %v8246, %v8246
        %v8279 = vmul.f32 %v8247, %v8247
        %v8280 = vmul.f32 %v8248, %v8248
        %v8281 = vmul.f32 %v8249, %v8249
        %v8282 = vmul.f32 %v8250, %v8250
        %v8283 = vmul.f32 %v8251, %v8251
        %v8284 = vmul.f32 %v8252, %v8252
        %v8285 = vmul.f32 %v8253, %v8253
        %v8286 = vmul.f32 %v8254, %v8254
        %v8287 = vmul.f32 %v8255, %v8255
        %v8288 = vmul.f32 %v8256, %v8256
        %v8289 = vmul.f32 %v8257, %v8257
        %v8290 = vmul.f32 %v8258, %v8258
        %v8291 = vmul.f32 %v8259, %v8259
        %v8292 = vmul.f32 %v8260, %v8260
        %v8293 = vmul.f32 %v8261, %v8261
        %v8294 = vmul.f32 %v8262, %v8262
        %v8295 = vmul.f32 %v8263, %v8263
        %v8296 = vmul.f32 %v8264, %v8264
        %v8297 = vmul.f32 %v8265, %v8265
        %v8298 = vmul.f32 %v8266, %v8266
        %v8299 = vmul.f32 %v8267, %v8267
        %v8300 = vmul.f32 %v8268, %v8268
        %8301 = vadd.xlane.f32.xlu0 %v8269
        %v8302 = vpop.xlane.xlu0 %8301
        %8303 = vadd.xlane.f32.xlu0 %v8270
        %v8304 = vpop.xlane.xlu0 %8303
        %8305 = vadd.xlane.f32.xlu0 %v8271
        %v8306 = vpop.xlane.xlu0 %8305
        %8307 = vadd.xlane.f32.xlu0 %v8272
        %v8308 = vpop.xlane.xlu0 %8307
        %8309 = vadd.xlane.f32.xlu0 %v8273
        %v8310 = vpop.xlane.xlu0 %8309
        %8311 = vadd.xlane.f32.xlu0 %v8274
        %v8312 = vpop.xlane.xlu0 %8311
        %8313 = vadd.xlane.f32.xlu0 %v8275
        %v8314 = vpop.xlane.xlu0 %8313
        %8315 = vadd.xlane.f32.xlu0 %v8276
        %v8316 = vpop.xlane.xlu0 %8315
        %8317 = vadd.xlane.f32.xlu0 %v8277
        %v8318 = vpop.xlane.xlu0 %8317
        %8319 = vadd.xlane.f32.xlu0 %v8278
        %v8320 = vpop.xlane.xlu0 %8319
        %8321 = vadd.xlane.f32.xlu0 %v8279
        %v8322 = vpop.xlane.xlu0 %8321
        %8323 = vadd.xlane.f32.xlu0 %v8280
        %v8324 = vpop.xlane.xlu0 %8323
        %8325 = vadd.xlane.f32.xlu0 %v8281
        %v8326 = vpop.xlane.xlu0 %8325
        %8327 = vadd.xlane.f32.xlu0 %v8282
        %v8328 = vpop.xlane.xlu0 %8327
        %8329 = vadd.xlane.f32.xlu0 %v8283
        %v8330 = vpop.xlane.xlu0 %8329
        %8331 = vadd.xlane.f32.xlu0 %v8284
        %v8332 = vpop.xlane.xlu0 %8331
        %8333 = vadd.xlane.f32.xlu0 %v8285
        %v8334 = vpop.xlane.xlu0 %8333
        %8335 = vadd.xlane.f32.xlu0 %v8286
        %v8336 = vpop.xlane.xlu0 %8335
        %8337 = vadd.xlane.f32.xlu0 %v8287
        %v8338 = vpop.xlane.xlu0 %8337
        %8339 = vadd.xlane.f32.xlu0 %v8288
        %v8340 = vpop.xlane.xlu0 %8339
        %8341 = vadd.xlane.f32.xlu0 %v8289
        %v8342 = vpop.xlane.xlu0 %8341
        %8343 = vadd.xlane.f32.xlu0 %v8290
        %v8344 = vpop.xlane.xlu0 %8343
        %8345 = vadd.xlane.f32.xlu0 %v8291
        %v8346 = vpop.xlane.xlu0 %8345
        %8347 = vadd.xlane.f32.xlu0 %v8292
        %v8348 = vpop.xlane.xlu0 %8347
        %8349 = vadd.xlane.f32.xlu0 %v8293
        %v8350 = vpop.xlane.xlu0 %8349
        %8351 = vadd.xlane.f32.xlu0 %v8294
        %v8352 = vpop.xlane.xlu0 %8351
        %8353 = vadd.xlane.f32.xlu0 %v8295
        %v8354 = vpop.xlane.xlu0 %8353
        %8355 = vadd.xlane.f32.xlu0 %v8296
        %v8356 = vpop.xlane.xlu0 %8355
        %8357 = vadd.xlane.f32.xlu0 %v8297
        %v8358 = vpop.xlane.xlu0 %8357
        %8359 = vadd.xlane.f32.xlu0 %v8298
        %v8360 = vpop.xlane.xlu0 %8359
        %8361 = vadd.xlane.f32.xlu0 %v8299
        %v8362 = vpop.xlane.xlu0 %8361
        %8363 = vadd.xlane.f32.xlu0 %v8300
        %v8364 = vpop.xlane.xlu0 %8363
        %v8365 = vmul.f32 %v8302, %v1028
        %v8366 = vmul.f32 %v8304, %v1028
        %v8367 = vmul.f32 %v8306, %v1028
        %v8368 = vmul.f32 %v8308, %v1028
        %v8369 = vmul.f32 %v8310, %v1028
        %v8370 = vmul.f32 %v8312, %v1028
        %v8371 = vmul.f32 %v8314, %v1028
        %v8372 = vmul.f32 %v8316, %v1028
        %v8373 = vmul.f32 %v8318, %v1028
        %v8374 = vmul.f32 %v8320, %v1028
        %v8375 = vmul.f32 %v8322, %v1028
        %v8376 = vmul.f32 %v8324, %v1028
        %v8377 = vmul.f32 %v8326, %v1028
        %v8378 = vmul.f32 %v8328, %v1028
        %v8379 = vmul.f32 %v8330, %v1028
        %v8380 = vmul.f32 %v8332, %v1028
        %v8381 = vmul.f32 %v8334, %v1028
        %v8382 = vmul.f32 %v8336, %v1028
        %v8383 = vmul.f32 %v8338, %v1028
        %v8384 = vmul.f32 %v8340, %v1028
        %v8385 = vmul.f32 %v8342, %v1028
        %v8386 = vmul.f32 %v8344, %v1028
        %v8387 = vmul.f32 %v8346, %v1028
        %v8388 = vmul.f32 %v8348, %v1028
        %v8389 = vmul.f32 %v8350, %v1028
        %v8390 = vmul.f32 %v8352, %v1028
        %v8391 = vmul.f32 %v8354, %v1028
        %v8392 = vmul.f32 %v8356, %v1028
        %v8393 = vmul.f32 %v8358, %v1028
        %v8394 = vmul.f32 %v8360, %v1028
        %v8395 = vmul.f32 %v8362, %v1028
        %v8396 = vmul.f32 %v8364, %v1028
        %v8397 = vadd.f32 %v8365, 1e-05
        %v8398 = vadd.f32 %v8366, 1e-05
        %v8399 = vadd.f32 %v8367, 1e-05
        %v8400 = vadd.f32 %v8368, 1e-05
        %v8401 = vadd.f32 %v8369, 1e-05
        %v8402 = vadd.f32 %v8370, 1e-05
        %v8403 = vadd.f32 %v8371, 1e-05
        %v8404 = vadd.f32 %v8372, 1e-05
        %v8405 = vadd.f32 %v8373, 1e-05
        %v8406 = vadd.f32 %v8374, 1e-05
        %v8407 = vadd.f32 %v8375, 1e-05
        %v8408 = vadd.f32 %v8376, 1e-05
        %v8409 = vadd.f32 %v8377, 1e-05
        %v8410 = vadd.f32 %v8378, 1e-05
        %v8411 = vadd.f32 %v8379, 1e-05
        %v8412 = vadd.f32 %v8380, 1e-05
        %v8413 = vadd.f32 %v8381, 1e-05
        %v8414 = vadd.f32 %v8382, 1e-05
        %v8415 = vadd.f32 %v8383, 1e-05
        %v8416 = vadd.f32 %v8384, 1e-05
        %v8417 = vadd.f32 %v8385, 1e-05
        %v8418 = vadd.f32 %v8386, 1e-05
        %v8419 = vadd.f32 %v8387, 1e-05
        %v8420 = vadd.f32 %v8388, 1e-05
        %v8421 = vadd.f32 %v8389, 1e-05
        %v8422 = vadd.f32 %v8390, 1e-05
        %v8423 = vadd.f32 %v8391, 1e-05
        %v8424 = vadd.f32 %v8392, 1e-05
        %v8425 = vadd.f32 %v8393, 1e-05
        %v8426 = vadd.f32 %v8394, 1e-05
        %v8427 = vadd.f32 %v8395, 1e-05
        %v8428 = vadd.f32 %v8396, 1e-05
        %v8429 = vrsqrt.pop %v8397
        %v8430 = vrsqrt.pop %v8398
        %v8431 = vrsqrt.pop %v8399
        %v8432 = vrsqrt.pop %v8400
        %v8433 = vrsqrt.pop %v8401
        %v8434 = vrsqrt.pop %v8402
        %v8435 = vrsqrt.pop %v8403
        %v8436 = vrsqrt.pop %v8404
        %v8437 = vrsqrt.pop %v8405
        %v8438 = vrsqrt.pop %v8406
        %v8439 = vrsqrt.pop %v8407
        %v8440 = vrsqrt.pop %v8408
        %v8441 = vrsqrt.pop %v8409
        %v8442 = vrsqrt.pop %v8410
        %v8443 = vrsqrt.pop %v8411
        %v8444 = vrsqrt.pop %v8412
        %v8445 = vrsqrt.pop %v8413
        %v8446 = vrsqrt.pop %v8414
        %v8447 = vrsqrt.pop %v8415
        %v8448 = vrsqrt.pop %v8416
        %v8449 = vrsqrt.pop %v8417
        %v8450 = vrsqrt.pop %v8418
        %v8451 = vrsqrt.pop %v8419
        %v8452 = vrsqrt.pop %v8420
        %v8453 = vrsqrt.pop %v8421
        %v8454 = vrsqrt.pop %v8422
        %v8455 = vrsqrt.pop %v8423
        %v8456 = vrsqrt.pop %v8424
        %v8457 = vrsqrt.pop %v8425
        %v8458 = vrsqrt.pop %v8426
        %v8459 = vrsqrt.pop %v8427
        %v8460 = vrsqrt.pop %v8428
        %v8461 = vmul.f32 %v8237, %v8429
        %v8462 = vmul.f32 %v8238, %v8430
        %v8463 = vmul.f32 %v8239, %v8431
        %v8464 = vmul.f32 %v8240, %v8432
        %v8465 = vmul.f32 %v8241, %v8433
        %v8466 = vmul.f32 %v8242, %v8434
        %v8467 = vmul.f32 %v8243, %v8435
        %v8468 = vmul.f32 %v8244, %v8436
        %v8469 = vmul.f32 %v8245, %v8437
        %v8470 = vmul.f32 %v8246, %v8438
        %v8471 = vmul.f32 %v8247, %v8439
        %v8472 = vmul.f32 %v8248, %v8440
        %v8473 = vmul.f32 %v8249, %v8441
        %v8474 = vmul.f32 %v8250, %v8442
        %v8475 = vmul.f32 %v8251, %v8443
        %v8476 = vmul.f32 %v8252, %v8444
        %v8477 = vmul.f32 %v8253, %v8445
        %v8478 = vmul.f32 %v8254, %v8446
        %v8479 = vmul.f32 %v8255, %v8447
        %v8480 = vmul.f32 %v8256, %v8448
        %v8481 = vmul.f32 %v8257, %v8449
        %v8482 = vmul.f32 %v8258, %v8450
        %v8483 = vmul.f32 %v8259, %v8451
        %v8484 = vmul.f32 %v8260, %v8452
        %v8485 = vmul.f32 %v8261, %v8453
        %v8486 = vmul.f32 %v8262, %v8454
        %v8487 = vmul.f32 %v8263, %v8455
        %v8488 = vmul.f32 %v8264, %v8456
        %v8489 = vmul.f32 %v8265, %v8457
        %v8490 = vmul.f32 %v8266, %v8458
        %v8491 = vmul.f32 %v8267, %v8459
        %v8492 = vmul.f32 %v8268, %v8460
        %v8494 = vlaneseq
        %v8495 = vshrl.u32 %v8494, 7
        %v8496 = vsub.s32 0, %v8495
        %v8497 = vrot.slane %v862, %v8496
        %v8499 = vmul.f32 %v8461, %v8497
        %v8500 = vmul.f32 %v8462, %v8497
        %v8501 = vmul.f32 %v8463, %v8497
        %v8502 = vmul.f32 %v8464, %v8497
        %v8503 = vmul.f32 %v8465, %v8497
        %v8504 = vmul.f32 %v8466, %v8497
        %v8505 = vmul.f32 %v8467, %v8497
        %v8506 = vmul.f32 %v8468, %v8497
        %v8507 = vmul.f32 %v8469, %v8497
        %v8508 = vmul.f32 %v8470, %v8497
        %v8509 = vmul.f32 %v8471, %v8497
        %v8510 = vmul.f32 %v8472, %v8497
        %v8511 = vmul.f32 %v8473, %v8497
        %v8512 = vmul.f32 %v8474, %v8497
        %v8513 = vmul.f32 %v8475, %v8497
        %v8514 = vmul.f32 %v8476, %v8497
        %v8515 = vmul.f32 %v8477, %v8497
        %v8516 = vmul.f32 %v8478, %v8497
        %v8517 = vmul.f32 %v8479, %v8497
        %v8518 = vmul.f32 %v8480, %v8497
        %v8519 = vmul.f32 %v8481, %v8497
        %v8520 = vmul.f32 %v8482, %v8497
        %v8521 = vmul.f32 %v8483, %v8497
        %v8522 = vmul.f32 %v8484, %v8497
        %v8523 = vmul.f32 %v8485, %v8497
        %v8524 = vmul.f32 %v8486, %v8497
        %v8525 = vmul.f32 %v8487, %v8497
        %v8526 = vmul.f32 %v8488, %v8497
        %v8527 = vmul.f32 %v8489, %v8497
        %v8528 = vmul.f32 %v8490, %v8497
        %v8529 = vmul.f32 %v8491, %v8497
        %v8530 = vmul.f32 %v8492, %v8497
        %v8532 = vlaneseq
        %v8533 = vshrl.u32 %v8532, 7
        %v8534 = vsub.s32 0, %v8533
        %v8535 = vrot.slane %v863, %v8534
        %v8537 = vadd.f32 %v8499, %v8535
        %v8538 = vadd.f32 %v8500, %v8535
        %v8539 = vadd.f32 %v8501, %v8535
        %v8540 = vadd.f32 %v8502, %v8535
        %v8541 = vadd.f32 %v8503, %v8535
        %v8542 = vadd.f32 %v8504, %v8535
        %v8543 = vadd.f32 %v8505, %v8535
        %v8544 = vadd.f32 %v8506, %v8535
        %v8545 = vadd.f32 %v8507, %v8535
        %v8546 = vadd.f32 %v8508, %v8535
        %v8547 = vadd.f32 %v8509, %v8535
        %v8548 = vadd.f32 %v8510, %v8535
        %v8549 = vadd.f32 %v8511, %v8535
        %v8550 = vadd.f32 %v8512, %v8535
        %v8551 = vadd.f32 %v8513, %v8535
        %v8552 = vadd.f32 %v8514, %v8535
        %v8553 = vadd.f32 %v8515, %v8535
        %v8554 = vadd.f32 %v8516, %v8535
        %v8555 = vadd.f32 %v8517, %v8535
        %v8556 = vadd.f32 %v8518, %v8535
        %v8557 = vadd.f32 %v8519, %v8535
        %v8558 = vadd.f32 %v8520, %v8535
        %v8559 = vadd.f32 %v8521, %v8535
        %v8560 = vadd.f32 %v8522, %v8535
        %v8561 = vadd.f32 %v8523, %v8535
        %v8562 = vadd.f32 %v8524, %v8535
        %v8563 = vadd.f32 %v8525, %v8535
        %v8564 = vadd.f32 %v8526, %v8535
        %v8565 = vadd.f32 %v8527, %v8535
        %v8566 = vadd.f32 %v8528, %v8535
        %v8567 = vadd.f32 %v8529, %v8535
        %v8568 = vadd.f32 %v8530, %v8535
        %v8569 = vpack.c.bf16 %v8538, %v8537
        %v8570 = vpack.c.bf16 %v8540, %v8539
        %v8571 = vpack.c.bf16 %v8542, %v8541
        %v8572 = vpack.c.bf16 %v8544, %v8543
        %v8573 = vpack.c.bf16 %v8546, %v8545
        %v8574 = vpack.c.bf16 %v8548, %v8547
        %v8575 = vpack.c.bf16 %v8550, %v8549
        %v8576 = vpack.c.bf16 %v8552, %v8551
        %v8577 = vpack.c.bf16 %v8554, %v8553
        %v8578 = vpack.c.bf16 %v8556, %v8555
        %v8579 = vpack.c.bf16 %v8558, %v8557
        %v8580 = vpack.c.bf16 %v8560, %v8559
        %v8581 = vpack.c.bf16 %v8562, %v8561
        %v8582 = vpack.c.bf16 %v8564, %v8563
        %v8583 = vpack.c.bf16 %v8566, %v8565
        %v8584 = vpack.c.bf16 %v8568, %v8567
        %v8586 = vlaneseq
        %v8587 = vshrl.u32 %v8586, 7
        %v8588 = vsub.s32 0, %v8587
        %v8589 = vrot.slane %v930, %v8588
        %v8590 = vlaneseq
        %v8591 = vshrl.u32 %v8590, 7
        %v8592 = vsub.s32 1, %v8591
        %v8593 = vrot.slane %v930, %v8592
        %v8612 = vunpack.c.l.b16 %v914
        %v8613 = vunpack.c.h.b16 %v914
        %v8614 = vunpack.c.l.b16 %v915
        %v8615 = vunpack.c.h.b16 %v915
        %v8616 = vunpack.c.l.b16 %v916
        %v8617 = vunpack.c.h.b16 %v916
        %v8618 = vunpack.c.l.b16 %v917
        %v8619 = vunpack.c.h.b16 %v917
        %v8620 = vunpack.c.l.b16 %v918
        %v8621 = vunpack.c.h.b16 %v918
        %v8622 = vunpack.c.l.b16 %v919
        %v8623 = vunpack.c.h.b16 %v919
        %v8624 = vunpack.c.l.b16 %v920
        %v8625 = vunpack.c.h.b16 %v920
        %v8626 = vunpack.c.l.b16 %v921
        %v8627 = vunpack.c.h.b16 %v921
        %v8628 = vunpack.c.l.b16 %v922
        %v8629 = vunpack.c.h.b16 %v922
        %v8630 = vunpack.c.l.b16 %v923
        %v8631 = vunpack.c.h.b16 %v923
        %v8632 = vunpack.c.l.b16 %v924
        %v8633 = vunpack.c.h.b16 %v924
        %v8634 = vunpack.c.l.b16 %v925
        %v8635 = vunpack.c.h.b16 %v925
        %v8636 = vunpack.c.l.b16 %v926
        %v8637 = vunpack.c.h.b16 %v926
        %v8638 = vunpack.c.l.b16 %v927
        %v8639 = vunpack.c.h.b16 %v927
        %v8640 = vunpack.c.l.b16 %v928
        %v8641 = vunpack.c.h.b16 %v928
        %v8642 = vunpack.c.l.b16 %v929
        %v8643 = vunpack.c.h.b16 %v929
        %v8644 = vpack.c.b16 %v8614, %v8612
        %v8645 = vpack.c.b16 %v8615, %v8613
        %v8646 = vpack.c.b16 %v8618, %v8616
        %v8647 = vpack.c.b16 %v8619, %v8617
        %v8648 = vpack.c.b16 %v8622, %v8620
        %v8649 = vpack.c.b16 %v8623, %v8621
        %v8650 = vpack.c.b16 %v8626, %v8624
        %v8651 = vpack.c.b16 %v8627, %v8625
        %v8652 = vpack.c.b16 %v8630, %v8628
        %v8653 = vpack.c.b16 %v8631, %v8629
        %v8654 = vpack.c.b16 %v8634, %v8632
        %v8655 = vpack.c.b16 %v8635, %v8633
        %v8656 = vpack.c.b16 %v8638, %v8636
        %v8657 = vpack.c.b16 %v8639, %v8637
        %v8658 = vpack.c.b16 %v8642, %v8640
        %v8659 = vpack.c.b16 %v8643, %v8641
        %8676 = vmatprep.subr.bf16.mxu0 %v8645
        %8677 = vmatpush1.bf16.msra.mxu0 %v8644
        %8678 = vmatprep.subr.bf16.mxu0 %v8647
        %8679 = vmatpush1.bf16.msra.mxu0 %v8646
        %8680 = vmatprep.subr.bf16.mxu0 %v8649
        %8681 = vmatpush1.bf16.msra.mxu0 %v8648
        %8682 = vmatprep.subr.bf16.mxu0 %v8651
        %8683 = vmatpush1.bf16.msra.mxu0 %v8650
        %8684 = vmatprep.subr.bf16.mxu0 %v8653
        %8685 = vmatpush1.bf16.msra.mxu0 %v8652
        %8686 = vmatprep.subr.bf16.mxu0 %v8655
        %8687 = vmatpush1.bf16.msra.mxu0 %v8654
        %8688 = vmatprep.subr.bf16.mxu0 %v8657
        %8689 = vmatpush1.bf16.msra.mxu0 %v8656
        %8690 = vmatprep.subr.bf16.mxu0 %v8659
        %8691 = vmatpush1.bf16.msra.mxu0 %v8658
        %8692 = vmatprep.subr.bf16.mxu0 0
        %8693 = vmatpush1.bf16.msra.mxu0 0
        %8694 = vmatprep.subr.bf16.mxu0 0
        %8695 = vmatpush1.bf16.msra.mxu0 0
        %8696 = vmatprep.subr.bf16.mxu0 0
        %8697 = vmatpush1.bf16.msra.mxu0 0
        %8698 = vmatprep.subr.bf16.mxu0 0
        %8699 = vmatpush1.bf16.msra.mxu0 0
        %8700 = vmatprep.subr.bf16.mxu0 0
        %8701 = vmatpush1.bf16.msra.mxu0 0
        %8702 = vmatprep.subr.bf16.mxu0 0
        %8703 = vmatpush1.bf16.msra.mxu0 0
        %8704 = vmatprep.subr.bf16.mxu0 0
        %8705 = vmatpush1.bf16.msra.mxu0 0
        %8706 = vmatprep.subr.bf16.mxu0 0
        %8707 = vmatpush1.bf16.msra.mxu0 0
        %8708 = vmatprep.mubr.bf16.mxu0 0
        %8709 = vmatmul.mubr.bf16.gmra.mrb[0].mxu0 %v8569
        %v8710 = vpop.f32.mrb[0].mxu0
        %v8711 = vadd.f32 %v8589, %v8710
        %v8712 = vpop.f32.mrb[0].mxu0
        %v8713 = vadd.f32 %v8593, %v8712
        %v8714 = vpop.f32.mrb[0].mxu0
        %v8715 = vadd.f32 %v8589, %v8714
        %v8716 = vpop.f32.mrb[0].mxu0
        %v8717 = vadd.f32 %v8593, %v8716
        %8718 = vmatprep.mubr.bf16.mxu0 0
        %8719 = vmatmul.mubr.bf16.gmra.mrb[0].mxu0 %v8570
        %v8720 = vpop.f32.mrb[0].mxu0
        %v8721 = vadd.f32 %v8589, %v8720
        %v8722 = vpop.f32.mrb[0].mxu0
        %v8723 = vadd.f32 %v8593, %v8722
        %v8724 = vpop.f32.mrb[0].mxu0
        %v8725 = vadd.f32 %v8589, %v8724
        %v8726 = vpop.f32.mrb[0].mxu0
        %v8727 = vadd.f32 %v8593, %v8726
        %8728 = vmatprep.mubr.bf16.mxu0 0
        %8729 = vmatmul.mubr.bf16.gmra.mrb[0].mxu0 %v8571
        %v8730 = vpop.f32.mrb[0].mxu0
        %v8731 = vadd.f32 %v8589, %v8730
        %v8732 = vpop.f32.mrb[0].mxu0
        %v8733 = vadd.f32 %v8593, %v8732
        %v8734 = vpop.f32.mrb[0].mxu0
        %v8735 = vadd.f32 %v8589, %v8734
        %v8736 = vpop.f32.mrb[0].mxu0
        %v8737 = vadd.f32 %v8593, %v8736
        %8738 = vmatprep.mubr.bf16.mxu0 0
        %8739 = vmatmul.mubr.bf16.gmra.mrb[0].mxu0 %v8572
        %v8740 = vpop.f32.mrb[0].mxu0
        %v8741 = vadd.f32 %v8589, %v8740
        %v8742 = vpop.f32.mrb[0].mxu0
        %v8743 = vadd.f32 %v8593, %v8742
        %v8744 = vpop.f32.mrb[0].mxu0
        %v8745 = vadd.f32 %v8589, %v8744
        %v8746 = vpop.f32.mrb[0].mxu0
        %v8747 = vadd.f32 %v8593, %v8746
        %8748 = vmatprep.mubr.bf16.mxu0 0
        %8749 = vmatmul.mubr.bf16.gmra.mrb[0].mxu0 %v8573
        %v8750 = vpop.f32.mrb[0].mxu0
        %v8751 = vadd.f32 %v8589, %v8750
        %v8752 = vpop.f32.mrb[0].mxu0
        %v8753 = vadd.f32 %v8593, %v8752
        %v8754 = vpop.f32.mrb[0].mxu0
        %v8755 = vadd.f32 %v8589, %v8754
        %v8756 = vpop.f32.mrb[0].mxu0
        %v8757 = vadd.f32 %v8593, %v8756
        %8758 = vmatprep.mubr.bf16.mxu0 0
        %8759 = vmatmul.mubr.bf16.gmra.mrb[0].mxu0 %v8574
        %v8760 = vpop.f32.mrb[0].mxu0
        %v8761 = vadd.f32 %v8589, %v8760
        %v8762 = vpop.f32.mrb[0].mxu0
        %v8763 = vadd.f32 %v8593, %v8762
        %v8764 = vpop.f32.mrb[0].mxu0
        %v8765 = vadd.f32 %v8589, %v8764
        %v8766 = vpop.f32.mrb[0].mxu0
        %v8767 = vadd.f32 %v8593, %v8766
        %8768 = vmatprep.mubr.bf16.mxu0 0
        %8769 = vmatmul.mubr.bf16.gmra.mrb[0].mxu0 %v8575
        %v8770 = vpop.f32.mrb[0].mxu0
        %v8771 = vadd.f32 %v8589, %v8770
        %v8772 = vpop.f32.mrb[0].mxu0
        %v8773 = vadd.f32 %v8593, %v8772
        %v8774 = vpop.f32.mrb[0].mxu0
        %v8775 = vadd.f32 %v8589, %v8774
        %v8776 = vpop.f32.mrb[0].mxu0
        %v8777 = vadd.f32 %v8593, %v8776
        %8778 = vmatprep.mubr.bf16.mxu0 0
        %8779 = vmatmul.mubr.bf16.gmra.mrb[0].mxu0 %v8576
        %v8780 = vpop.f32.mrb[0].mxu0
        %v8781 = vadd.f32 %v8589, %v8780
        %v8782 = vpop.f32.mrb[0].mxu0
        %v8783 = vadd.f32 %v8593, %v8782
        %v8784 = vpop.f32.mrb[0].mxu0
        %v8785 = vadd.f32 %v8589, %v8784
        %v8786 = vpop.f32.mrb[0].mxu0
        %v8787 = vadd.f32 %v8593, %v8786
        %8788 = vmatprep.mubr.bf16.mxu0 0
        %8789 = vmatmul.mubr.bf16.gmra.mrb[0].mxu0 %v8577
        %v8790 = vpop.f32.mrb[0].mxu0
        %v8791 = vadd.f32 %v8589, %v8790
        %v8792 = vpop.f32.mrb[0].mxu0
        %v8793 = vadd.f32 %v8593, %v8792
        %v8794 = vpop.f32.mrb[0].mxu0
        %v8795 = vadd.f32 %v8589, %v8794
        %v8796 = vpop.f32.mrb[0].mxu0
        %v8797 = vadd.f32 %v8593, %v8796
        %8798 = vmatprep.mubr.bf16.mxu0 0
        %8799 = vmatmul.mubr.bf16.gmra.mrb[0].mxu0 %v8578
        %v8800 = vpop.f32.mrb[0].mxu0
        %v8801 = vadd.f32 %v8589, %v8800
        %v8802 = vpop.f32.mrb[0].mxu0
        %v8803 = vadd.f32 %v8593, %v8802
        %v8804 = vpop.f32.mrb[0].mxu0
        %v8805 = vadd.f32 %v8589, %v8804
        %v8806 = vpop.f32.mrb[0].mxu0
        %v8807 = vadd.f32 %v8593, %v8806
        %8808 = vmatprep.mubr.bf16.mxu0 0
        %8809 = vmatmul.mubr.bf16.gmra.mrb[0].mxu0 %v8579
        %v8810 = vpop.f32.mrb[0].mxu0
        %v8811 = vadd.f32 %v8589, %v8810
        %v8812 = vpop.f32.mrb[0].mxu0
        %v8813 = vadd.f32 %v8593, %v8812
        %v8814 = vpop.f32.mrb[0].mxu0
        %v8815 = vadd.f32 %v8589, %v8814
        %v8816 = vpop.f32.mrb[0].mxu0
        %v8817 = vadd.f32 %v8593, %v8816
        %8818 = vmatprep.mubr.bf16.mxu0 0
        %8819 = vmatmul.mubr.bf16.gmra.mrb[0].mxu0 %v8580
        %v8820 = vpop.f32.mrb[0].mxu0
        %v8821 = vadd.f32 %v8589, %v8820
        %v8822 = vpop.f32.mrb[0].mxu0
        %v8823 = vadd.f32 %v8593, %v8822
        %v8824 = vpop.f32.mrb[0].mxu0
        %v8825 = vadd.f32 %v8589, %v8824
        %v8826 = vpop.f32.mrb[0].mxu0
        %v8827 = vadd.f32 %v8593, %v8826
        %8828 = vmatprep.mubr.bf16.mxu0 0
        %8829 = vmatmul.mubr.bf16.gmra.mrb[0].mxu0 %v8581
        %v8830 = vpop.f32.mrb[0].mxu0
        %v8831 = vadd.f32 %v8589, %v8830
        %v8832 = vpop.f32.mrb[0].mxu0
        %v8833 = vadd.f32 %v8593, %v8832
        %v8834 = vpop.f32.mrb[0].mxu0
        %v8835 = vadd.f32 %v8589, %v8834
        %v8836 = vpop.f32.mrb[0].mxu0
        %v8837 = vadd.f32 %v8593, %v8836
        %8838 = vmatprep.mubr.bf16.mxu0 0
        %8839 = vmatmul.mubr.bf16.gmra.mrb[0].mxu0 %v8582
        %v8840 = vpop.f32.mrb[0].mxu0
        %v8841 = vadd.f32 %v8589, %v8840
        %v8842 = vpop.f32.mrb[0].mxu0
        %v8843 = vadd.f32 %v8593, %v8842
        %v8844 = vpop.f32.mrb[0].mxu0
        %v8845 = vadd.f32 %v8589, %v8844
        %v8846 = vpop.f32.mrb[0].mxu0
        %v8847 = vadd.f32 %v8593, %v8846
        %8848 = vmatprep.mubr.bf16.mxu0 0
        %8849 = vmatmul.mubr.bf16.gmra.mrb[0].mxu0 %v8583
        %v8850 = vpop.f32.mrb[0].mxu0
        %v8851 = vadd.f32 %v8589, %v8850
        %v8852 = vpop.f32.mrb[0].mxu0
        %v8853 = vadd.f32 %v8593, %v8852
        %v8854 = vpop.f32.mrb[0].mxu0
        %v8855 = vadd.f32 %v8589, %v8854
        %v8856 = vpop.f32.mrb[0].mxu0
        %v8857 = vadd.f32 %v8593, %v8856
        %8858 = vmatprep.mubr.bf16.mxu0 0
        %8859 = vmatmul.mubr.bf16.gmra.mrb[0].mxu0 %v8584
        %v8860 = vpop.f32.mrb[0].mxu0
        %v8861 = vadd.f32 %v8589, %v8860
        %v8862 = vpop.f32.mrb[0].mxu0
        %v8863 = vadd.f32 %v8593, %v8862
        %v8864 = vpop.f32.mrb[0].mxu0
        %v8865 = vadd.f32 %v8589, %v8864
        %v8866 = vpop.f32.mrb[0].mxu0
        %v8867 = vadd.f32 %v8593, %v8866
        %8868 = vdwg.mxu0
        %v8869 = vmul.f32 %v8711, 0.5
        %v8870 = vmul.f32 %v8713, 0.5
        %v8871 = vmul.f32 %v8715, 0.5
        %v8872 = vmul.f32 %v8717, 0.5
        %v8873 = vmul.f32 %v8721, 0.5
        %v8874 = vmul.f32 %v8723, 0.5
        %v8875 = vmul.f32 %v8725, 0.5
        %v8876 = vmul.f32 %v8727, 0.5
        %v8877 = vmul.f32 %v8731, 0.5
        %v8878 = vmul.f32 %v8733, 0.5
        %v8879 = vmul.f32 %v8735, 0.5
        %v8880 = vmul.f32 %v8737, 0.5
        %v8881 = vmul.f32 %v8741, 0.5
        %v8882 = vmul.f32 %v8743, 0.5
        %v8883 = vmul.f32 %v8745, 0.5
        %v8884 = vmul.f32 %v8747, 0.5
        %v8885 = vmul.f32 %v8751, 0.5
        %v8886 = vmul.f32 %v8753, 0.5
        %v8887 = vmul.f32 %v8755, 0.5
        %v8888 = vmul.f32 %v8757, 0.5
        %v8889 = vmul.f32 %v8761, 0.5
        %v8890 = vmul.f32 %v8763, 0.5
        %v8891 = vmul.f32 %v8765, 0.5
        %v8892 = vmul.f32 %v8767, 0.5
        %v8893 = vmul.f32 %v8771, 0.5
        %v8894 = vmul.f32 %v8773, 0.5
        %v8895 = vmul.f32 %v8775, 0.5
        %v8896 = vmul.f32 %v8777, 0.5
        %v8897 = vmul.f32 %v8781, 0.5
        %v8898 = vmul.f32 %v8783, 0.5
        %v8899 = vmul.f32 %v8785, 0.5
        %v8900 = vmul.f32 %v8787, 0.5
        %v8901 = vmul.f32 %v8791, 0.5
        %v8902 = vmul.f32 %v8793, 0.5
        %v8903 = vmul.f32 %v8795, 0.5
        %v8904 = vmul.f32 %v8797, 0.5
        %v8905 = vmul.f32 %v8801, 0.5
        %v8906 = vmul.f32 %v8803, 0.5
        %v8907 = vmul.f32 %v8805, 0.5
        %v8908 = vmul.f32 %v8807, 0.5
        %v8909 = vmul.f32 %v8811, 0.5
        %v8910 = vmul.f32 %v8813, 0.5
        %v8911 = vmul.f32 %v8815, 0.5
        %v8912 = vmul.f32 %v8817, 0.5
        %v8913 = vmul.f32 %v8821, 0.5
        %v8914 = vmul.f32 %v8823, 0.5
        %v8915 = vmul.f32 %v8825, 0.5
        %v8916 = vmul.f32 %v8827, 0.5
        %v8917 = vmul.f32 %v8831, 0.5
        %v8918 = vmul.f32 %v8833, 0.5
        %v8919 = vmul.f32 %v8835, 0.5
        %v8920 = vmul.f32 %v8837, 0.5
        %v8921 = vmul.f32 %v8841, 0.5
        %v8922 = vmul.f32 %v8843, 0.5
        %v8923 = vmul.f32 %v8845, 0.5
        %v8924 = vmul.f32 %v8847, 0.5
        %v8925 = vmul.f32 %v8851, 0.5
        %v8926 = vmul.f32 %v8853, 0.5
        %v8927 = vmul.f32 %v8855, 0.5
        %v8928 = vmul.f32 %v8857, 0.5
        %v8929 = vmul.f32 %v8861, 0.5
        %v8930 = vmul.f32 %v8863, 0.5
        %v8931 = vmul.f32 %v8865, 0.5
        %v8932 = vmul.f32 %v8867, 0.5
        %v8933 = vmul.f32 %v8711, 0.70710677
        %v8934 = vmul.f32 %v8713, 0.70710677
        %v8935 = vmul.f32 %v8715, 0.70710677
        %v8936 = vmul.f32 %v8717, 0.70710677
        %v8937 = vmul.f32 %v8721, 0.70710677
        %v8938 = vmul.f32 %v8723, 0.70710677
        %v8939 = vmul.f32 %v8725, 0.70710677
        %v8940 = vmul.f32 %v8727, 0.70710677
        %v8941 = vmul.f32 %v8731, 0.70710677
        %v8942 = vmul.f32 %v8733, 0.70710677
        %v8943 = vmul.f32 %v8735, 0.70710677
        %v8944 = vmul.f32 %v8737, 0.70710677
        %v8945 = vmul.f32 %v8741, 0.70710677
        %v8946 = vmul.f32 %v8743, 0.70710677
        %v8947 = vmul.f32 %v8745, 0.70710677
        %v8948 = vmul.f32 %v8747, 0.70710677
        %v8949 = vmul.f32 %v8751, 0.70710677
        %v8950 = vmul.f32 %v8753, 0.70710677
        %v8951 = vmul.f32 %v8755, 0.70710677
        %v8952 = vmul.f32 %v8757, 0.70710677
        %v8953 = vmul.f32 %v8761, 0.70710677
        %v8954 = vmul.f32 %v8763, 0.70710677
        %v8955 = vmul.f32 %v8765, 0.70710677
        %v8956 = vmul.f32 %v8767, 0.70710677
        %v8957 = vmul.f32 %v8771, 0.70710677
        %v8958 = vmul.f32 %v8773, 0.70710677
        %v8959 = vmul.f32 %v8775, 0.70710677
        %v8960 = vmul.f32 %v8777, 0.70710677
        %v8961 = vmul.f32 %v8781, 0.70710677
        %v8962 = vmul.f32 %v8783, 0.70710677
        %v8963 = vmul.f32 %v8785, 0.70710677
        %v8964 = vmul.f32 %v8787, 0.70710677
        %v8965 = vmul.f32 %v8791, 0.70710677
        %v8966 = vmul.f32 %v8793, 0.70710677
        %v8967 = vmul.f32 %v8795, 0.70710677
        %v8968 = vmul.f32 %v8797, 0.70710677
        %v8969 = vmul.f32 %v8801, 0.70710677
        %v8970 = vmul.f32 %v8803, 0.70710677
        %v8971 = vmul.f32 %v8805, 0.70710677
        %v8972 = vmul.f32 %v8807, 0.70710677
        %v8973 = vmul.f32 %v8811, 0.70710677
        %v8974 = vmul.f32 %v8813, 0.70710677
        %v8975 = vmul.f32 %v8815, 0.70710677
        %v8976 = vmul.f32 %v8817, 0.70710677
        %v8977 = vmul.f32 %v8821, 0.70710677
        %v8978 = vmul.f32 %v8823, 0.70710677
        %v8979 = vmul.f32 %v8825, 0.70710677
        %v8980 = vmul.f32 %v8827, 0.70710677
        %v8981 = vmul.f32 %v8831, 0.70710677
        %v8982 = vmul.f32 %v8833, 0.70710677
        %v8983 = vmul.f32 %v8835, 0.70710677
        %v8984 = vmul.f32 %v8837, 0.70710677
        %v8985 = vmul.f32 %v8841, 0.70710677
        %v8986 = vmul.f32 %v8843, 0.70710677
        %v8987 = vmul.f32 %v8845, 0.70710677
        %v8988 = vmul.f32 %v8847, 0.70710677
        %v8989 = vmul.f32 %v8851, 0.70710677
        %v8990 = vmul.f32 %v8853, 0.70710677
        %v8991 = vmul.f32 %v8855, 0.70710677
        %v8992 = vmul.f32 %v8857, 0.70710677
        %v8993 = vmul.f32 %v8861, 0.70710677
        %v8994 = vmul.f32 %v8863, 0.70710677
        %v8995 = vmul.f32 %v8865, 0.70710677
        %v8996 = vmul.f32 %v8867, 0.70710677
        %v8997 = verf.f32.pop %v8933
        %v8998 = verf.f32.pop %v8934
        %v8999 = verf.f32.pop %v8935
        %v9000 = verf.f32.pop %v8936
        %v9001 = verf.f32.pop %v8937
        %v9002 = verf.f32.pop %v8938
        %v9003 = verf.f32.pop %v8939
        %v9004 = verf.f32.pop %v8940
        %v9005 = verf.f32.pop %v8941
        %v9006 = verf.f32.pop %v8942
        %v9007 = verf.f32.pop %v8943
        %v9008 = verf.f32.pop %v8944
        %v9009 = verf.f32.pop %v8945
        %v9010 = verf.f32.pop %v8946
        %v9011 = verf.f32.pop %v8947
        %v9012 = verf.f32.pop %v8948
        %v9013 = verf.f32.pop %v8949
        %v9014 = verf.f32.pop %v8950
        %v9015 = verf.f32.pop %v8951
        %v9016 = verf.f32.pop %v8952
        %v9017 = verf.f32.pop %v8953
        %v9018 = verf.f32.pop %v8954
        %v9019 = verf.f32.pop %v8955
        %v9020 = verf.f32.pop %v8956
        %v9021 = verf.f32.pop %v8957
        %v9022 = verf.f32.pop %v8958
        %v9023 = verf.f32.pop %v8959
        %v9024 = verf.f32.pop %v8960
        %v9025 = verf.f32.pop %v8961
        %v9026 = verf.f32.pop %v8962
        %v9027 = verf.f32.pop %v8963
        %v9028 = verf.f32.pop %v8964
        %v9029 = verf.f32.pop %v8965
        %v9030 = verf.f32.pop %v8966
        %v9031 = verf.f32.pop %v8967
        %v9032 = verf.f32.pop %v8968
        %v9033 = verf.f32.pop %v8969
        %v9034 = verf.f32.pop %v8970
        %v9035 = verf.f32.pop %v8971
        %v9036 = verf.f32.pop %v8972
        %v9037 = verf.f32.pop %v8973
        %v9038 = verf.f32.pop %v8974
        %v9039 = verf.f32.pop %v8975
        %v9040 = verf.f32.pop %v8976
        %v9041 = verf.f32.pop %v8977
        %v9042 = verf.f32.pop %v8978
        %v9043 = verf.f32.pop %v8979
        %v9044 = verf.f32.pop %v8980
        %v9045 = verf.f32.pop %v8981
        %v9046 = verf.f32.pop %v8982
        %v9047 = verf.f32.pop %v8983
        %v9048 = verf.f32.pop %v8984
        %v9049 = verf.f32.pop %v8985
        %v9050 = verf.f32.pop %v8986
        %v9051 = verf.f32.pop %v8987
        %v9052 = verf.f32.pop %v8988
        %v9053 = verf.f32.pop %v8989
        %v9054 = verf.f32.pop %v8990
        %v9055 = verf.f32.pop %v8991
        %v9056 = verf.f32.pop %v8992
        %v9057 = verf.f32.pop %v8993
        %v9058 = verf.f32.pop %v8994
        %v9059 = verf.f32.pop %v8995
        %v9060 = verf.f32.pop %v8996
        %v9061 = vadd.f32 %v8997, 1.0
        %v9062 = vadd.f32 %v8998, 1.0
        %v9063 = vadd.f32 %v8999, 1.0
        %v9064 = vadd.f32 %v9000, 1.0
        %v9065 = vadd.f32 %v9001, 1.0
        %v9066 = vadd.f32 %v9002, 1.0
        %v9067 = vadd.f32 %v9003, 1.0
        %v9068 = vadd.f32 %v9004, 1.0
        %v9069 = vadd.f32 %v9005, 1.0
        %v9070 = vadd.f32 %v9006, 1.0
        %v9071 = vadd.f32 %v9007, 1.0
        %v9072 = vadd.f32 %v9008, 1.0
        %v9073 = vadd.f32 %v9009, 1.0
        %v9074 = vadd.f32 %v9010, 1.0
        %v9075 = vadd.f32 %v9011, 1.0
        %v9076 = vadd.f32 %v9012, 1.0
        %v9077 = vadd.f32 %v9013, 1.0
        %v9078 = vadd.f32 %v9014, 1.0
        %v9079 = vadd.f32 %v9015, 1.0
        %v9080 = vadd.f32 %v9016, 1.0
        %v9081 = vadd.f32 %v9017, 1.0
        %v9082 = vadd.f32 %v9018, 1.0
        %v9083 = vadd.f32 %v9019, 1.0
        %v9084 = vadd.f32 %v9020, 1.0
        %v9085 = vadd.f32 %v9021, 1.0
        %v9086 = vadd.f32 %v9022, 1.0
        %v9087 = vadd.f32 %v9023, 1.0
        %v9088 = vadd.f32 %v9024, 1.0
        %v9089 = vadd.f32 %v9025, 1.0
        %v9090 = vadd.f32 %v9026, 1.0
        %v9091 = vadd.f32 %v9027, 1.0
        %v9092 = vadd.f32 %v9028, 1.0
        %v9093 = vadd.f32 %v9029, 1.0
        %v9094 = vadd.f32 %v9030, 1.0
        %v9095 = vadd.f32 %v9031, 1.0
        %v9096 = vadd.f32 %v9032, 1.0
        %v9097 = vadd.f32 %v9033, 1.0
        %v9098 = vadd.f32 %v9034, 1.0
        %v9099 = vadd.f32 %v9035, 1.0
        %v9100 = vadd.f32 %v9036, 1.0
        %v9101 = vadd.f32 %v9037, 1.0
        %v9102 = vadd.f32 %v9038, 1.0
        %v9103 = vadd.f32 %v9039, 1.0
        %v9104 = vadd.f32 %v9040, 1.0
        %v9105 = vadd.f32 %v9041, 1.0
        %v9106 = vadd.f32 %v9042, 1.0
        %v9107 = vadd.f32 %v9043, 1.0
        %v9108 = vadd.f32 %v9044, 1.0
        %v9109 = vadd.f32 %v9045, 1.0
        %v9110 = vadd.f32 %v9046, 1.0
        %v9111 = vadd.f32 %v9047, 1.0
        %v9112 = vadd.f32 %v9048, 1.0
        %v9113 = vadd.f32 %v9049, 1.0
        %v9114 = vadd.f32 %v9050, 1.0
        %v9115 = vadd.f32 %v9051, 1.0
        %v9116 = vadd.f32 %v9052, 1.0
        %v9117 = vadd.f32 %v9053, 1.0
        %v9118 = vadd.f32 %v9054, 1.0
        %v9119 = vadd.f32 %v9055, 1.0
        %v9120 = vadd.f32 %v9056, 1.0
        %v9121 = vadd.f32 %v9057, 1.0
        %v9122 = vadd.f32 %v9058, 1.0
        %v9123 = vadd.f32 %v9059, 1.0
        %v9124 = vadd.f32 %v9060, 1.0
        %v9125 = vmul.f32 %v8869, %v9061
        %v9126 = vmul.f32 %v8870, %v9062
        %v9127 = vmul.f32 %v8871, %v9063
        %v9128 = vmul.f32 %v8872, %v9064
        %v9129 = vmul.f32 %v8873, %v9065
        %v9130 = vmul.f32 %v8874, %v9066
        %v9131 = vmul.f32 %v8875, %v9067
        %v9132 = vmul.f32 %v8876, %v9068
        %v9133 = vmul.f32 %v8877, %v9069
        %v9134 = vmul.f32 %v8878, %v9070
        %v9135 = vmul.f32 %v8879, %v9071
        %v9136 = vmul.f32 %v8880, %v9072
        %v9137 = vmul.f32 %v8881, %v9073
        %v9138 = vmul.f32 %v8882, %v9074
        %v9139 = vmul.f32 %v8883, %v9075
        %v9140 = vmul.f32 %v8884, %v9076
        %v9141 = vmul.f32 %v8885, %v9077
        %v9142 = vmul.f32 %v8886, %v9078
        %v9143 = vmul.f32 %v8887, %v9079
        %v9144 = vmul.f32 %v8888, %v9080
        %v9145 = vmul.f32 %v8889, %v9081
        %v9146 = vmul.f32 %v8890, %v9082
        %v9147 = vmul.f32 %v8891, %v9083
        %v9148 = vmul.f32 %v8892, %v9084
        %v9149 = vmul.f32 %v8893, %v9085
        %v9150 = vmul.f32 %v8894, %v9086
        %v9151 = vmul.f32 %v8895, %v9087
        %v9152 = vmul.f32 %v8896, %v9088
        %v9153 = vmul.f32 %v8897, %v9089
        %v9154 = vmul.f32 %v8898, %v9090
        %v9155 = vmul.f32 %v8899, %v9091
        %v9156 = vmul.f32 %v8900, %v9092
        %v9157 = vmul.f32 %v8901, %v9093
        %v9158 = vmul.f32 %v8902, %v9094
        %v9159 = vmul.f32 %v8903, %v9095
        %v9160 = vmul.f32 %v8904, %v9096
        %v9161 = vmul.f32 %v8905, %v9097
        %v9162 = vmul.f32 %v8906, %v9098
        %v9163 = vmul.f32 %v8907, %v9099
        %v9164 = vmul.f32 %v8908, %v9100
        %v9165 = vmul.f32 %v8909, %v9101
        %v9166 = vmul.f32 %v8910, %v9102
        %v9167 = vmul.f32 %v8911, %v9103
        %v9168 = vmul.f32 %v8912, %v9104
        %v9169 = vmul.f32 %v8913, %v9105
        %v9170 = vmul.f32 %v8914, %v9106
        %v9171 = vmul.f32 %v8915, %v9107
        %v9172 = vmul.f32 %v8916, %v9108
        %v9173 = vmul.f32 %v8917, %v9109
        %v9174 = vmul.f32 %v8918, %v9110
        %v9175 = vmul.f32 %v8919, %v9111
        %v9176 = vmul.f32 %v8920, %v9112
        %v9177 = vmul.f32 %v8921, %v9113
        %v9178 = vmul.f32 %v8922, %v9114
        %v9179 = vmul.f32 %v8923, %v9115
        %v9180 = vmul.f32 %v8924, %v9116
        %v9181 = vmul.f32 %v8925, %v9117
        %v9182 = vmul.f32 %v8926, %v9118
        %v9183 = vmul.f32 %v8927, %v9119
        %v9184 = vmul.f32 %v8928, %v9120
        %v9185 = vmul.f32 %v8929, %v9121
        %v9186 = vmul.f32 %v8930, %v9122
        %v9187 = vmul.f32 %v8931, %v9123
        %v9188 = vmul.f32 %v8932, %v9124
        %v9189 = vpack.c.bf16 %v9127, %v9125
        %v9190 = vpack.c.bf16 %v9128, %v9126
        %v9191 = vpack.c.bf16 %v9131, %v9129
        %v9192 = vpack.c.bf16 %v9132, %v9130
        %v9193 = vpack.c.bf16 %v9135, %v9133
        %v9194 = vpack.c.bf16 %v9136, %v9134
        %v9195 = vpack.c.bf16 %v9139, %v9137
        %v9196 = vpack.c.bf16 %v9140, %v9138
        %v9197 = vpack.c.bf16 %v9143, %v9141
        %v9198 = vpack.c.bf16 %v9144, %v9142
        %v9199 = vpack.c.bf16 %v9147, %v9145
        %v9200 = vpack.c.bf16 %v9148, %v9146
        %v9201 = vpack.c.bf16 %v9151, %v9149
        %v9202 = vpack.c.bf16 %v9152, %v9150
        %v9203 = vpack.c.bf16 %v9155, %v9153
        %v9204 = vpack.c.bf16 %v9156, %v9154
        %v9205 = vpack.c.bf16 %v9159, %v9157
        %v9206 = vpack.c.bf16 %v9160, %v9158
        %v9207 = vpack.c.bf16 %v9163, %v9161
        %v9208 = vpack.c.bf16 %v9164, %v9162
        %v9209 = vpack.c.bf16 %v9167, %v9165
        %v9210 = vpack.c.bf16 %v9168, %v9166
        %v9211 = vpack.c.bf16 %v9171, %v9169
        %v9212 = vpack.c.bf16 %v9172, %v9170
        %v9213 = vpack.c.bf16 %v9175, %v9173
        %v9214 = vpack.c.bf16 %v9176, %v9174
        %v9215 = vpack.c.bf16 %v9179, %v9177
        %v9216 = vpack.c.bf16 %v9180, %v9178
        %v9217 = vpack.c.bf16 %v9183, %v9181
        %v9218 = vpack.c.bf16 %v9184, %v9182
        %v9219 = vpack.c.bf16 %v9187, %v9185
        %v9220 = vpack.c.bf16 %v9188, %v9186
        %v9222 = vlaneseq
        %v9223 = vshrl.u32 %v9222, 7
        %v9224 = vsub.s32 0, %v9223
        %v9225 = vrot.slane %v963, %v9224
        %v9259 = vunpack.c.l.b16 %v931
        %v9260 = vunpack.c.l.b16 %v932
        %v9261 = vunpack.c.l.b16 %v933
        %v9262 = vunpack.c.l.b16 %v934
        %v9263 = vunpack.c.l.b16 %v935
        %v9264 = vunpack.c.l.b16 %v936
        %v9265 = vunpack.c.l.b16 %v937
        %v9266 = vunpack.c.l.b16 %v938
        %v9267 = vunpack.c.l.b16 %v939
        %v9268 = vunpack.c.l.b16 %v940
        %v9269 = vunpack.c.l.b16 %v941
        %v9270 = vunpack.c.l.b16 %v942
        %v9271 = vunpack.c.l.b16 %v943
        %v9272 = vunpack.c.l.b16 %v944
        %v9273 = vunpack.c.l.b16 %v945
        %v9274 = vunpack.c.l.b16 %v946
        %v9275 = vunpack.c.l.b16 %v947
        %v9276 = vunpack.c.l.b16 %v948
        %v9277 = vunpack.c.l.b16 %v949
        %v9278 = vunpack.c.l.b16 %v950
        %v9279 = vunpack.c.l.b16 %v951
        %v9280 = vunpack.c.l.b16 %v952
        %v9281 = vunpack.c.l.b16 %v953
        %v9282 = vunpack.c.l.b16 %v954
        %v9283 = vunpack.c.l.b16 %v955
        %v9284 = vunpack.c.l.b16 %v956
        %v9285 = vunpack.c.l.b16 %v957
        %v9286 = vunpack.c.l.b16 %v958
        %v9287 = vunpack.c.l.b16 %v959
        %v9288 = vunpack.c.l.b16 %v960
        %v9289 = vunpack.c.l.b16 %v961
        %v9290 = vunpack.c.l.b16 %v962
        %v9291 = vpack.c.b16 %v9260, %v9259
        %v9292 = vpack.c.b16 %v9262, %v9261
        %v9293 = vpack.c.b16 %v9264, %v9263
        %v9294 = vpack.c.b16 %v9266, %v9265
        %v9295 = vpack.c.b16 %v9268, %v9267
        %v9296 = vpack.c.b16 %v9270, %v9269
        %v9297 = vpack.c.b16 %v9272, %v9271
        %v9298 = vpack.c.b16 %v9274, %v9273
        %v9299 = vpack.c.b16 %v9276, %v9275
        %v9300 = vpack.c.b16 %v9278, %v9277
        %v9301 = vpack.c.b16 %v9280, %v9279
        %v9302 = vpack.c.b16 %v9282, %v9281
        %v9303 = vpack.c.b16 %v9284, %v9283
        %v9304 = vpack.c.b16 %v9286, %v9285
        %v9305 = vpack.c.b16 %v9288, %v9287
        %v9306 = vpack.c.b16 %v9290, %v9289
        %9323 = vmatprep.subr.bf16.mxu0 0
        %9324 = vmatpush1.bf16.msra.mxu0 %v9291
        %9325 = vmatprep.subr.bf16.mxu0 0
        %9326 = vmatpush1.bf16.msra.mxu0 %v9292
        %9327 = vmatprep.subr.bf16.mxu0 0
        %9328 = vmatpush1.bf16.msra.mxu0 %v9293
        %9329 = vmatprep.subr.bf16.mxu0 0
        %9330 = vmatpush1.bf16.msra.mxu0 %v9294
        %9331 = vmatprep.subr.bf16.mxu0 0
        %9332 = vmatpush1.bf16.msra.mxu0 %v9295
        %9333 = vmatprep.subr.bf16.mxu0 0
        %9334 = vmatpush1.bf16.msra.mxu0 %v9296
        %9335 = vmatprep.subr.bf16.mxu0 0
        %9336 = vmatpush1.bf16.msra.mxu0 %v9297
        %9337 = vmatprep.subr.bf16.mxu0 0
        %9338 = vmatpush1.bf16.msra.mxu0 %v9298
        %9339 = vmatprep.subr.bf16.mxu0 0
        %9340 = vmatpush1.bf16.msra.mxu0 %v9299
        %9341 = vmatprep.subr.bf16.mxu0 0
        %9342 = vmatpush1.bf16.msra.mxu0 %v9300
        %9343 = vmatprep.subr.bf16.mxu0 0
        %9344 = vmatpush1.bf16.msra.mxu0 %v9301
        %9345 = vmatprep.subr.bf16.mxu0 0
        %9346 = vmatpush1.bf16.msra.mxu0 %v9302
        %9347 = vmatprep.subr.bf16.mxu0 0
        %9348 = vmatpush1.bf16.msra.mxu0 %v9303
        %9349 = vmatprep.subr.bf16.mxu0 0
        %9350 = vmatpush1.bf16.msra.mxu0 %v9304
        %9351 = vmatprep.subr.bf16.mxu0 0
        %9352 = vmatpush1.bf16.msra.mxu0 %v9305
        %9353 = vmatprep.subr.bf16.mxu0 0
        %9354 = vmatpush1.bf16.msra.mxu0 %v9306
        %9355 = vmatprep.mubr.bf16.mxu0 %v9190
        %9356 = vmatmul.mubr.bf16.gmra.mrb[0].mxu0 %v9189
        %v9357 = vpop.f32.mrb[0].mxu0
        %v9358 = vadd.f32 %v9225, %v9357
        %v9359 = vpop.f32.mrb[0].mxu0
        %v9360 = vpop.f32.mrb[0].mxu0
        %v9361 = vadd.f32 %v9225, %v9360
        %v9362 = vpop.f32.mrb[0].mxu0
        %9363 = vmatprep.mubr.bf16.mxu0 %v9192
        %9364 = vmatmul.mubr.bf16.gmra.mrb[0].mxu0 %v9191
        %v9365 = vpop.f32.mrb[0].mxu0
        %v9366 = vadd.f32 %v9225, %v9365
        %v9367 = vpop.f32.mrb[0].mxu0
        %v9368 = vpop.f32.mrb[0].mxu0
        %v9369 = vadd.f32 %v9225, %v9368
        %v9370 = vpop.f32.mrb[0].mxu0
        %9371 = vmatprep.mubr.bf16.mxu0 %v9194
        %9372 = vmatmul.mubr.bf16.gmra.mrb[0].mxu0 %v9193
        %v9373 = vpop.f32.mrb[0].mxu0
        %v9374 = vadd.f32 %v9225, %v9373
        %v9375 = vpop.f32.mrb[0].mxu0
        %v9376 = vpop.f32.mrb[0].mxu0
        %v9377 = vadd.f32 %v9225, %v9376
        %v9378 = vpop.f32.mrb[0].mxu0
        %9379 = vmatprep.mubr.bf16.mxu0 %v9196
        %9380 = vmatmul.mubr.bf16.gmra.mrb[0].mxu0 %v9195
        %v9381 = vpop.f32.mrb[0].mxu0
        %v9382 = vadd.f32 %v9225, %v9381
        %v9383 = vpop.f32.mrb[0].mxu0
        %v9384 = vpop.f32.mrb[0].mxu0
        %v9385 = vadd.f32 %v9225, %v9384
        %v9386 = vpop.f32.mrb[0].mxu0
        %9387 = vmatprep.mubr.bf16.mxu0 %v9198
        %9388 = vmatmul.mubr.bf16.gmra.mrb[0].mxu0 %v9197
        %v9389 = vpop.f32.mrb[0].mxu0
        %v9390 = vadd.f32 %v9225, %v9389
        %v9391 = vpop.f32.mrb[0].mxu0
        %v9392 = vpop.f32.mrb[0].mxu0
        %v9393 = vadd.f32 %v9225, %v9392
        %v9394 = vpop.f32.mrb[0].mxu0
        %9395 = vmatprep.mubr.bf16.mxu0 %v9200
        %9396 = vmatmul.mubr.bf16.gmra.mrb[0].mxu0 %v9199
        %v9397 = vpop.f32.mrb[0].mxu0
        %v9398 = vadd.f32 %v9225, %v9397
        %v9399 = vpop.f32.mrb[0].mxu0
        %v9400 = vpop.f32.mrb[0].mxu0
        %v9401 = vadd.f32 %v9225, %v9400
        %v9402 = vpop.f32.mrb[0].mxu0
        %9403 = vmatprep.mubr.bf16.mxu0 %v9202
        %9404 = vmatmul.mubr.bf16.gmra.mrb[0].mxu0 %v9201
        %v9405 = vpop.f32.mrb[0].mxu0
        %v9406 = vadd.f32 %v9225, %v9405
        %v9407 = vpop.f32.mrb[0].mxu0
        %v9408 = vpop.f32.mrb[0].mxu0
        %v9409 = vadd.f32 %v9225, %v9408
        %v9410 = vpop.f32.mrb[0].mxu0
        %9411 = vmatprep.mubr.bf16.mxu0 %v9204
        %9412 = vmatmul.mubr.bf16.gmra.mrb[0].mxu0 %v9203
        %v9413 = vpop.f32.mrb[0].mxu0
        %v9414 = vadd.f32 %v9225, %v9413
        %v9415 = vpop.f32.mrb[0].mxu0
        %v9416 = vpop.f32.mrb[0].mxu0
        %v9417 = vadd.f32 %v9225, %v9416
        %v9418 = vpop.f32.mrb[0].mxu0
        %9419 = vmatprep.mubr.bf16.mxu0 %v9206
        %9420 = vmatmul.mubr.bf16.gmra.mrb[0].mxu0 %v9205
        %v9421 = vpop.f32.mrb[0].mxu0
        %v9422 = vadd.f32 %v9225, %v9421
        %v9423 = vpop.f32.mrb[0].mxu0
        %v9424 = vpop.f32.mrb[0].mxu0
        %v9425 = vadd.f32 %v9225, %v9424
        %v9426 = vpop.f32.mrb[0].mxu0
        %9427 = vmatprep.mubr.bf16.mxu0 %v9208
        %9428 = vmatmul.mubr.bf16.gmra.mrb[0].mxu0 %v9207
        %v9429 = vpop.f32.mrb[0].mxu0
        %v9430 = vadd.f32 %v9225, %v9429
        %v9431 = vpop.f32.mrb[0].mxu0
        %v9432 = vpop.f32.mrb[0].mxu0
        %v9433 = vadd.f32 %v9225, %v9432
        %v9434 = vpop.f32.mrb[0].mxu0
        %9435 = vmatprep.mubr.bf16.mxu0 %v9210
        %9436 = vmatmul.mubr.bf16.gmra.mrb[0].mxu0 %v9209
        %v9437 = vpop.f32.mrb[0].mxu0
        %v9438 = vadd.f32 %v9225, %v9437
        %v9439 = vpop.f32.mrb[0].mxu0
        %v9440 = vpop.f32.mrb[0].mxu0
        %v9441 = vadd.f32 %v9225, %v9440
        %v9442 = vpop.f32.mrb[0].mxu0
        %9443 = vmatprep.mubr.bf16.mxu0 %v9212
        %9444 = vmatmul.mubr.bf16.gmra.mrb[0].mxu0 %v9211
        %v9445 = vpop.f32.mrb[0].mxu0
        %v9446 = vadd.f32 %v9225, %v9445
        %v9447 = vpop.f32.mrb[0].mxu0
        %v9448 = vpop.f32.mrb[0].mxu0
        %v9449 = vadd.f32 %v9225, %v9448
        %v9450 = vpop.f32.mrb[0].mxu0
        %9451 = vmatprep.mubr.bf16.mxu0 %v9214
        %9452 = vmatmul.mubr.bf16.gmra.mrb[0].mxu0 %v9213
        %v9453 = vpop.f32.mrb[0].mxu0
        %v9454 = vadd.f32 %v9225, %v9453
        %v9455 = vpop.f32.mrb[0].mxu0
        %v9456 = vpop.f32.mrb[0].mxu0
        %v9457 = vadd.f32 %v9225, %v9456
        %v9458 = vpop.f32.mrb[0].mxu0
        %9459 = vmatprep.mubr.bf16.mxu0 %v9216
        %9460 = vmatmul.mubr.bf16.gmra.mrb[0].mxu0 %v9215
        %v9461 = vpop.f32.mrb[0].mxu0
        %v9462 = vadd.f32 %v9225, %v9461
        %v9463 = vpop.f32.mrb[0].mxu0
        %v9464 = vpop.f32.mrb[0].mxu0
        %v9465 = vadd.f32 %v9225, %v9464
        %v9466 = vpop.f32.mrb[0].mxu0
        %9467 = vmatprep.mubr.bf16.mxu0 %v9218
        %9468 = vmatmul.mubr.bf16.gmra.mrb[0].mxu0 %v9217
        %v9469 = vpop.f32.mrb[0].mxu0
        %v9470 = vadd.f32 %v9225, %v9469
        %v9471 = vpop.f32.mrb[0].mxu0
        %v9472 = vpop.f32.mrb[0].mxu0
        %v9473 = vadd.f32 %v9225, %v9472
        %v9474 = vpop.f32.mrb[0].mxu0
        %9475 = vmatprep.mubr.bf16.mxu0 %v9220
        %9476 = vmatmul.mubr.bf16.gmra.mrb[0].mxu0 %v9219
        %v9477 = vpop.f32.mrb[0].mxu0
        %v9478 = vadd.f32 %v9225, %v9477
        %v9479 = vpop.f32.mrb[0].mxu0
        %v9480 = vpop.f32.mrb[0].mxu0
        %v9481 = vadd.f32 %v9225, %v9480
        %v9482 = vpop.f32.mrb[0].mxu0
        %9483 = vdwg.mxu0
        %v9484 = vadd.f32 %v8109, %v9358
        %v9485 = vadd.f32 %v8110, %v9361
        %v9486 = vadd.f32 %v8111, %v9366
        %v9487 = vadd.f32 %v8112, %v9369
        %v9488 = vadd.f32 %v8113, %v9374
        %v9489 = vadd.f32 %v8114, %v9377
        %v9490 = vadd.f32 %v8115, %v9382
        %v9491 = vadd.f32 %v8116, %v9385
        %v9492 = vadd.f32 %v8117, %v9390
        %v9493 = vadd.f32 %v8118, %v9393
        %v9494 = vadd.f32 %v8119, %v9398
        %v9495 = vadd.f32 %v8120, %v9401
        %v9496 = vadd.f32 %v8121, %v9406
        %v9497 = vadd.f32 %v8122, %v9409
        %v9498 = vadd.f32 %v8123, %v9414
        %v9499 = vadd.f32 %v8124, %v9417
        %v9500 = vadd.f32 %v8125, %v9422
        %v9501 = vadd.f32 %v8126, %v9425
        %v9502 = vadd.f32 %v8127, %v9430
        %v9503 = vadd.f32 %v8128, %v9433
        %v9504 = vadd.f32 %v8129, %v9438
        %v9505 = vadd.f32 %v8130, %v9441
        %v9506 = vadd.f32 %v8131, %v9446
        %v9507 = vadd.f32 %v8132, %v9449
        %v9508 = vadd.f32 %v8133, %v9454
        %v9509 = vadd.f32 %v8134, %v9457
        %v9510 = vadd.f32 %v8135, %v9462
        %v9511 = vadd.f32 %v8136, %v9465
        %v9512 = vadd.f32 %v8137, %v9470
        %v9513 = vadd.f32 %v8138, %v9473
        %v9514 = vadd.f32 %v8139, %v9478
        %v9515 = vadd.f32 %v8140, %v9481
        %9516 = vst [vmem:[#allocation14] sm:$0xff] %v9484
        %9517 = vst [vmem:[#allocation14 + $0x8] sm:$0xff] %v9485
        %9518 = vst [vmem:[#allocation14 + $0x10] sm:$0xff] %v9486
        %9519 = vst [vmem:[#allocation14 + $0x18] sm:$0xff] %v9487
        %9520 = vst [vmem:[#allocation14 + $0x20] sm:$0xff] %v9488
        %9521 = vst [vmem:[#allocation14 + $0x28] sm:$0xff] %v9489
        %9522 = vst [vmem:[#allocation14 + $0x30] sm:$0xff] %v9490
        %9523 = vst [vmem:[#allocation14 + $0x38] sm:$0xff] %v9491
        %9524 = vst [vmem:[#allocation14 + $0x40] sm:$0xff] %v9492
        %9525 = vst [vmem:[#allocation14 + $0x48] sm:$0xff] %v9493
        %9526 = vst [vmem:[#allocation14 + $0x50] sm:$0xff] %v9494
        %9527 = vst [vmem:[#allocation14 + $0x58] sm:$0xff] %v9495
        %9528 = vst [vmem:[#allocation14 + $0x60] sm:$0xff] %v9496
        %9529 = vst [vmem:[#allocation14 + $0x68] sm:$0xff] %v9497
        %9530 = vst [vmem:[#allocation14 + $0x70] sm:$0xff] %v9498
        %9531 = vst [vmem:[#allocation14 + $0x78] sm:$0xff] %v9499
        %9532 = vst [vmem:[#allocation14 + $0x80] sm:$0xff] %v9500
        %9533 = vst [vmem:[#allocation14 + $0x88] sm:$0xff] %v9501
        %9534 = vst [vmem:[#allocation14 + $0x90] sm:$0xff] %v9502
        %9535 = vst [vmem:[#allocation14 + $0x98] sm:$0xff] %v9503
        %9536 = vst [vmem:[#allocation14 + $0xa0] sm:$0xff] %v9504
        %9537 = vst [vmem:[#allocation14 + $0xa8] sm:$0xff] %v9505
        %9538 = vst [vmem:[#allocation14 + $0xb0] sm:$0xff] %v9506
        %9539 = vst [vmem:[#allocation14 + $0xb8] sm:$0xff] %v9507
        %9540 = vst [vmem:[#allocation14 + $0xc0] sm:$0xff] %v9508
        %9541 = vst [vmem:[#allocation14 + $0xc8] sm:$0xff] %v9509
        %9542 = vst [vmem:[#allocation14 + $0xd0] sm:$0xff] %v9510
        %9543 = vst [vmem:[#allocation14 + $0xd8] sm:$0xff] %v9511
        %9544 = vst [vmem:[#allocation14 + $0xe0] sm:$0xff] %v9512
        %9545 = vst [vmem:[#allocation14 + $0xe8] sm:$0xff] %v9513
        %9546 = vst [vmem:[#allocation14 + $0xf0] sm:$0xff] %v9514
        %9547 = vst [vmem:[#allocation14 + $0xf8] sm:$0xff] %v9515
        // Predicated region
        $region105: #{tpu_custom_call.1} parent=71 // pred_check
          %p9548 = pneg %p403
        $region106: #{tpu_custom_call.1} parent=71 // pred_check_branch
          %9550 = sbr.rel (%p9548) target = $region108
        $region107: #{tpu_custom_call.1} parent=71 // pred_region
          %s9551 = smul.u32 8, %s39
          %s9553 = ssub.s32 4096, 4096
          %9554 = vsyncadd [#allocation4], %s9553
          %s9555 = smul.addr %s9551, 4
          %s9556 = smul.addr %s9555, 128
          %s9557 = scalar_lea.hbm %s13, %s9556
          %s9558 = sshll.u32 [#allocation14], 4
          %s9559 = int_to_ptr.vmem [resolvable:$true] %s9558
          %9564 = dma.vmem_to_hbm [thread:$0]  %s9559, 4096, %s9557, [#allocation4], 128, 128, 8
        $region108: #{tpu_custom_call.1} parent=71 // pred_fallthru
          _
        // Predicated region
        $region109: #{tpu_custom_call.1} parent=71 // pred_check
          %p9565 = pneg %p403
        $region110: #{tpu_custom_call.1} parent=71 // pred_check_branch
          %9567 = sbr.rel (%p9565) target = $region112
        $region111: #{tpu_custom_call.1} parent=71 // pred_region
          %9568 = dma.done [#allocation4], 4096
        $region112: #{tpu_custom_call.1} parent=71 // pred_fallthru
          _
      $region72: #{tpu_custom_call.1} parent=5 // pred_fallthru
        _
      %p9569 = scmp.le.s32.totalorder 2, %s30
      // Predicated region
      $region113: #{tpu_custom_call.1} parent=5 // pred_check
        %p9570 = pneg %p9569
      $region114: #{tpu_custom_call.1} parent=5 // pred_check_branch
        %9572 = sbr.rel (%p9570) target = $region116
      $region115: #{tpu_custom_call.1} parent=5 // pred_region
        %s9573 = ssub.s32 %s30, 2
      $region116: #{tpu_custom_call.1} parent=5 // pred_fallthru
        _
    $region6: #{tpu_custom_call.1} parent=1 // loop_footer
      %s34 = sadd.s32 1, %s30
    $region7: #{tpu_custom_call.1} parent=1 // loop_footer_branch
      %29 = sbr.rel target = $region3
    $region8: #{tpu_custom_call.1} parent=1 // loop_exit
      _
    %9574 = vsyncpa [#allocation3], 1
    %s9575 = scalar_lea.sflag [#allocation3], 1
    %9576 = vsyncpa %s9575, 1
    %9577 = vsyncpa [#allocation6], 1
    %s9578 = scalar_lea.sflag [#allocation6], 1
    %9579 = vsyncpa %s9578, 1
    %9580 = vsyncpa [#allocation9], 1
    %s9581 = scalar_lea.sflag [#allocation9], 1
    %9582 = vsyncpa %s9581, 1
    %9583 = vsyncpa [#allocation12], 1
    %s9584 = scalar_lea.sflag [#allocation12], 1
    %9585 = vsyncpa %s9584, 1
    %9586 = vsyncpa [#allocation4], 1
    %s9587 = scalar_lea.sflag [#allocation4], 1
    %9588 = vsyncpa %s9587, 1

</llo_original>
